<compile_context>
chip_gen: v7x
topology: tpu7x:2x2x1
jax: 0.10.0
libtpu: 0.0.40
codegen_flags: <defaults>
</compile_context>

<pallas_src>
import jax
import jax.numpy as jnp
from jax.experimental import pallas as pl
from jax.experimental.pallas import tpu as pltpu

# Geometry fixed by the module (Linear(1024, 64) implies a 3x32x32 input).
_H1, _W1, _C0, _C1 = 32, 32, 3, 32
_H2, _W2, _C2 = 16, 16, 32
_H3, _W3, _C3 = 8, 8, 64
_P2, _P3 = 40, 24                     # flat pad rows: >= 2*W+2 and a multiple of 8
_NP2 = _H2 * _W2 + 2 * _P2            # 336
_NP3 = _H3 * _W3 + 2 * _P3            # 112
_NLOGIT = 10
_OUTPAD = 128                         # lane-dense logits; host slices [:, :10]


# ----------------------------------------------------------------------------
# In-kernel building blocks
# ----------------------------------------------------------------------------
def _conv5x5_folded(src_ref, p0, H, W, cout, w_ref, b_ref):
    """5x5 'same' conv on a flat (p0 + H*W + p0, Cin) zero-padded f32 slab.

    The 5 dh taps are folded into the contraction dim (K = 5*Cin): one bf16 MXU
    dot per dw (5 dots total) instead of 25 tiny-K dots.  The width border is
    handled with the usual per-dw iota mask; dh borders fall into the zero pad
    rows of the slab automatically.
    """
    f32 = jnp.float32
    HW = H * W
    wcoord = jax.lax.broadcasted_iota(jnp.int32, (HW, 1), 0) & (W - 1)
    acc = jnp.zeros((HW, cout), f32)
    for kw in range(5):
        dw = kw - 2
        v = src_ref[pl.ds(p0 - 2 * W + dw, HW + 4 * W), :].astype(jnp.bfloat16)
        vk = jnp.concatenate([v[kh * W:kh * W + HW, :] for kh in range(5)],
                             axis=-1)                       # (HW, 5*Cin) bf16
        part = jnp.dot(vk, w_ref[kw], preferred_element_type=f32)
        if dw != 0:
            part = part * ((wcoord + dw >= 0) & (wcoord + dw < W)).astype(f32)
        acc = acc + part
    return acc + b_ref[...]


def _pool2x2(y_ref, hp, W):
    """2x2 max-pool of output-row block `hp` of a flat (H*W, C) conv output."""
    Wh = W // 2
    a = y_ref[pl.ds(2 * hp * W, Wh, 2), :]
    b = y_ref[pl.ds(2 * hp * W + 1, Wh, 2), :]
    c = y_ref[pl.ds((2 * hp + 1) * W, Wh, 2), :]
    d = y_ref[pl.ds((2 * hp + 1) * W + 1, Wh, 2), :]
    return jnp.maximum(jnp.maximum(a, b), jnp.maximum(c, d))


# ----------------------------------------------------------------------------
# Fused kernel: T images per grid step, whole forward pass in VMEM
# ----------------------------------------------------------------------------
def _ocean_kernel(x_ref, w1_ref, b1_ref, w2_ref, b2_ref, w3_ref, b3_ref,
                  fc1_ref, fb1_ref, fc2_ref, fb2_ref, o_ref,
                  yc1, xp2, yc2, xp3, yc3, fcin):
    f32 = jnp.float32
    bf16 = jnp.bfloat16
    T = o_ref.shape[0]

    # Zero the pad rows of the conv2/conv3 input slabs once per grid step; the
    # interiors are fully rewritten for every image and pads are never written.
    xp2[pl.ds(0, _P2), :] = jnp.zeros((_P2, _C1), f32)
    xp2[pl.ds(_P2 + _H2 * _W2, _P2), :] = jnp.zeros((_P2, _C1), f32)
    xp3[pl.ds(0, _P3), :] = jnp.zeros((_P3, _C2), f32)
    xp3[pl.ds(_P3 + _H3 * _W3, _P3), :] = jnp.zeros((_P3, _C2), f32)

    def one_image(t, carry):
        # ---- stage 1: im2col'd conv1 = one (1024, 75)@(75, 32) bf16 dot
        xi = x_ref[t]                                               # (1024, 75) bf16
        yc1[...] = jnp.dot(xi, w1_ref[...], preferred_element_type=f32) + b1_ref[...]
        for hp in range(_H1 // 2):                                  # fused 2x2 pool
            xp2[pl.ds(_P2 + hp * (_W1 // 2), _W1 // 2), :] = _pool2x2(yc1, hp, _W1)

        # ---- stage 2: 16x16x32 -> conv(32) -> pool -> 8x8x32
        yc2[...] = _conv5x5_folded(xp2, _P2, _H2, _W2, _C2, w2_ref, b2_ref)
        for hp in range(_H2 // 2):
            xp3[pl.ds(_P3 + hp * (_W2 // 2), _W2 // 2), :] = _pool2x2(yc2, hp, _W2)

        # ---- stage 3: 8x8x32 -> conv(64) -> pool -> 4x4x64, rows (pixel, channel)
        yc3[...] = _conv5x5_folded(xp3, _P3, _H3, _W3, _C3, w3_ref, b3_ref)
        for hp in range(_H3 // 2):
            fcin[pl.ds(t * 16 + hp * (_W3 // 2), _W3 // 2), :] = _pool2x2(yc3, hp, _W3)
        return carry

    jax.lax.fori_loop(0, T, one_image, 0)

    # ---- MLP head, batched over the T images of this grid step
    hidden = jnp.zeros((T, 64), f32)
    for p in range(16):                                             # 16 pooled pixels
        xp = fcin[pl.ds(p, T, 16), :].astype(bf16)                  # (T, 64) per pixel
        hidden = hidden + jnp.dot(xp, fc1_ref[p], preferred_element_type=f32)
    hidden = (hidden + fb1_ref[...]).astype(bf16)
    o_ref[...] = jnp.dot(hidden, fc2_ref[...], preferred_element_type=f32) + fb2_ref[...]


# ----------------------------------------------------------------------------
# Host-side wrappers
# ----------------------------------------------------------------------------
def prepare_params(params):
    """One-time reshuffle of PyTorch-layout params into kernel layout (bf16 weights)."""
    bf16 = jnp.bfloat16
    kp = {}
    # conv1: full im2col weight (kh, kw, cin) -> rows, cout -> cols.
    kp["conv0_w"] = params["conv0_w"].reshape(25 * _C0, _C1).astype(bf16)
    kp["conv0_b"] = params["conv0_b"].reshape(1, -1).astype(jnp.float32)
    # conv2/conv3: fold the 5 dh taps into the contraction dim -> (kw, 5*cin, cout).
    for i in (1, 2):
        w = params[f"conv{i}_w"]                                    # (5,5,cin,cout) HWIO
        cin, cout = w.shape[2], w.shape[3]
        kp[f"conv{i}_w"] = jnp.transpose(w, (1, 0, 2, 3)).reshape(5, 5 * cin, cout).astype(bf16)
        kp[f"conv{i}_b"] = params[f"conv{i}_b"].reshape(1, -1).astype(jnp.float32)
    # PyTorch flattens the pooled (C=64, 4, 4) map as c*16 + pixel; permute fc1 rows
    # to (pixel, channel) so the kernel needs no transpose/flatten glue.
    kp["fc1_w"] = params["fc1_w"].reshape(_C3, 16, 64).transpose(1, 0, 2).astype(bf16)
    kp["fc1_b"] = params["fc1_b"].reshape(1, 64).astype(jnp.float32)
    # fc2: zero-pad the 10 logits to 128 lanes for a lane-dense output store.
    fc2 = jnp.zeros((64, _OUTPAD), jnp.float32).at[:, :_NLOGIT].set(params["fc2_w"])
    kp["fc2_w"] = fc2.astype(bf16)
    kp["fc2_b"] = jnp.zeros((1, _OUTPAD), jnp.float32).at[:, :_NLOGIT].set(params["fc2_b"])
    return kp


def _im2col_conv1(x_nhwc):
    """Host-side 5x5 patch extraction for conv1 (pure layout plumbing)."""
    xp = jnp.pad(x_nhwc, ((0, 0), (2, 2), (2, 2), (0, 0)))
    patches = jnp.concatenate(
        [xp[:, kh:kh + _H1, kw:kw + _W1, :] for kh in range(5) for kw in range(5)],
        axis=-1)
    return patches.reshape(x_nhwc.shape[0], _H1 * _W1, 25 * _C0)


def ocean_forward(x_nchw, kp, images_per_step=8):
    B, C, H, W = x_nchw.shape
    assert (C, H, W) == (_C0, _H1, _W1), x_nchw.shape
    T = images_per_step
    assert T % 8 == 0
    x = _im2col_conv1(jnp.transpose(x_nchw, (0, 2, 3, 1))).astype(jnp.bfloat16)
    Bp = ((B + T - 1) // T) * T
    if Bp != B:
        x = jnp.pad(x, ((0, Bp - B), (0, 0), (0, 0)))

    def full(shape):
        return pl.BlockSpec(shape, lambda g: (0,) * len(shape))

    out = pl.pallas_call(
        _ocean_kernel,
        out_shape=jax.ShapeDtypeStruct((Bp, _OUTPAD), jnp.float32),
        grid=(Bp // T,),
        in_specs=[
            pl.BlockSpec((T, _H1 * _W1, 25 * _C0), lambda g: (g, 0, 0)),
            full((25 * _C0, _C1)), full((1, _C1)),
            full((5, 5 * _C1, _C2)), full((1, _C2)),
            full((5, 5 * _C2, _C3)), full((1, _C3)),
            full((16, _C3, 64)), full((1, 64)),
            full((64, _OUTPAD)), full((1, _OUTPAD)),
        ],
        out_specs=pl.BlockSpec((T, _OUTPAD), lambda g: (g, 0)),
        scratch_shapes=[
            pltpu.VMEM((_H1 * _W1, _C1), jnp.float32),   # conv1 output
            pltpu.VMEM((_NP2, _C1), jnp.float32),        # padded conv2 input slab
            pltpu.VMEM((_H2 * _W2, _C2), jnp.float32),   # conv2 output
            pltpu.VMEM((_NP3, _C2), jnp.float32),        # padded conv3 input slab
            pltpu.VMEM((_H3 * _W3, _C3), jnp.float32),   # conv3 output
            pltpu.VMEM((T * 16, _C3), jnp.float32),      # pooled (pixel, ch) rows for FC
        ],
        compiler_params=pltpu.CompilerParams(
            dimension_semantics=("parallel",),
            vmem_limit_bytes=16 * 1024 * 1024,
        ),
    )(x, kp["conv0_w"], kp["conv0_b"], kp["conv1_w"], kp["conv1_b"],
      kp["conv2_w"], kp["conv2_b"], kp["fc1_w"], kp["fc1_b"],
      kp["fc2_w"], kp["fc2_b"])
    return out[:B, :_NLOGIT]


# ----------------------------------------------------------------------------
# Deterministic PyTorch-style init (uniform(-1/sqrt(fan_in), 1/sqrt(fan_in)))
# ----------------------------------------------------------------------------
def init_params(key):
    def u(k, shape, fan_in):
        bound = float(fan_in) ** -0.5
        return jax.random.uniform(k, shape, jnp.float32, -bound, bound)

    ks = jax.random.split(key, 10)
    params = {}
    conv_io = [(3, 32), (32, 32), (32, 64)]
    for i, (cin, cout) in enumerate(conv_io):
        fan = cin * 5 * 5
        params[f"conv{i}_w"] = u(ks[2 * i], (5, 5, cin, cout), fan)      # HWIO
        params[f"conv{i}_b"] = u(ks[2 * i + 1], (cout,), fan)
    params["fc1_w"] = u(ks[6], (1024, 64), 1024)
    params["fc1_b"] = u(ks[7], (64,), 1024)
    params["fc2_w"] = u(ks[8], (64, 10), 64)
    params["fc2_b"] = u(ks[9], (10,), 64)
    return params


# ----------------------------------------------------------------------------
# Pure-JAX reference (independent path via lax.conv, all-f32) for sanity check
# ----------------------------------------------------------------------------
def ref_forward(x_nchw, params):
    y = jnp.transpose(x_nchw, (0, 2, 3, 1))
    for i in range(3):
        w, b = params[f"conv{i}_w"], params[f"conv{i}_b"]
        y = jax.lax.conv_general_dilated(
            y, w, window_strides=(1, 1), padding="SAME",
            dimension_numbers=("NHWC", "HWIO", "NHWC")) + b
        y = jnp.maximum(
            jnp.maximum(y[:, 0::2, 0::2], y[:, 0::2, 1::2]),
            jnp.maximum(y[:, 1::2, 0::2], y[:, 1::2, 1::2]))
    B = y.shape[0]
    y = jnp.transpose(y, (0, 3, 1, 2)).reshape(B, -1)   # PyTorch (C, H, W) flatten
    y = y @ params["fc1_w"] + params["fc1_b"]
    y = y @ params["fc2_w"] + params["fc2_b"]
    return y


if __name__ == "__main__":
    key = jax.random.PRNGKey(0)
    kparam_key, kx = jax.random.split(key)
    params = init_params(kparam_key)
    kparams = prepare_params(params)      # one-time layout/bf16 prep, off the hot path

    # NCHW 3x32x32 input (Linear(1024,64) fixes the spatial size); B=16 so the grid
    # has 2 parallel steps of 8 images each (keeps both v7x TensorCores busy).
    x = jax.random.normal(kx, (16, 3, 32, 32), jnp.float32)

    fwd = jax.jit(ocean_forward)
    out = jax.block_until_ready(fwd(x, kparams))

    assert out.shape == (16, 10), out.shape
    assert bool(jnp.all(jnp.isfinite(out)))

    ref = jax.block_until_ready(ref_forward(x, params))
    # bf16 matmul operands with f32 accumulation -> keep a loose-but-bug-catching bound
    assert bool(jnp.allclose(out, ref, rtol=3e-2, atol=3e-2)), (out, ref)

    print("KERNEL_OK")
</pallas_src>

<mosaic_0001>
module attributes {stable_mosaic.version = 11 : i64} {
  func.func @_ocean_kernel(%arg0: i32, %arg1: memref<8x1024x75xbf16, #tpu.memory_space<vmem>>, %arg2: memref<75x32xbf16, #tpu.memory_space<vmem>>, %arg3: memref<1x32xf32, #tpu.memory_space<vmem>>, %arg4: memref<5x160x32xbf16, #tpu.memory_space<vmem>>, %arg5: memref<1x32xf32, #tpu.memory_space<vmem>>, %arg6: memref<5x160x64xbf16, #tpu.memory_space<vmem>>, %arg7: memref<1x64xf32, #tpu.memory_space<vmem>>, %arg8: memref<16x64x64xbf16, #tpu.memory_space<vmem>>, %arg9: memref<1x64xf32, #tpu.memory_space<vmem>>, %arg10: memref<64x128xbf16, #tpu.memory_space<vmem>>, %arg11: memref<1x128xf32, #tpu.memory_space<vmem>>, %arg12: memref<8x128xf32, #tpu.memory_space<vmem>>, %arg13: memref<1024x32xf32, #tpu.memory_space<vmem>>, %arg14: memref<336x32xf32, #tpu.memory_space<vmem>>, %arg15: memref<256x32xf32, #tpu.memory_space<vmem>>, %arg16: memref<112x32xf32, #tpu.memory_space<vmem>>, %arg17: memref<64x64xf32, #tpu.memory_space<vmem>>, %arg18: memref<128x64xf32, #tpu.memory_space<vmem>>) attributes {dimension_semantics = [#tpu.dimension_semantics<parallel>], iteration_bounds = array<i64: 2>, scalar_prefetch = 0 : i64, scratch_operands = 6 : i64, tpu.core_type = #tpu.core_type<tc>, window_params = [{transform_indices = @transform_0, window_bounds = array<i64: 8, 1024, 75>}, {pipeline_mode = #tpu.pipeline_mode<synchronous>, transform_indices = @transform_1, window_bounds = array<i64: 75, 32>}, {pipeline_mode = #tpu.pipeline_mode<synchronous>, transform_indices = @transform_2, window_bounds = array<i64: 1, 32>}, {pipeline_mode = #tpu.pipeline_mode<synchronous>, transform_indices = @transform_3, window_bounds = array<i64: 5, 160, 32>}, {pipeline_mode = #tpu.pipeline_mode<synchronous>, transform_indices = @transform_4, window_bounds = array<i64: 1, 32>}, {pipeline_mode = #tpu.pipeline_mode<synchronous>, transform_indices = @transform_5, window_bounds = array<i64: 5, 160, 64>}, {pipeline_mode = #tpu.pipeline_mode<synchronous>, transform_indices = @transform_6, window_bounds = array<i64: 1, 64>}, {pipeline_mode = #tpu.pipeline_mode<synchronous>, transform_indices = @transform_7, window_bounds = array<i64: 16, 64, 64>}, {pipeline_mode = #tpu.pipeline_mode<synchronous>, transform_indices = @transform_8, window_bounds = array<i64: 1, 64>}, {pipeline_mode = #tpu.pipeline_mode<synchronous>, transform_indices = @transform_9, window_bounds = array<i64: 64, 128>}, {pipeline_mode = #tpu.pipeline_mode<synchronous>, transform_indices = @transform_10, window_bounds = array<i64: 1, 128>}, {transform_indices = @transform_11, window_bounds = array<i64: 8, 128>}]} {
    %cst = arith.constant 0.000000e+00 : f32
    %0 = vector.broadcast %cst : f32 to vector<40x32xf32>
    %c0 = arith.constant 0 : index
    %c0_0 = arith.constant 0 : index
    %1 = vector.load %arg14[%c0, %c0_0] : memref<336x32xf32, #tpu.memory_space<vmem>>, vector<40x32xf32>
    tpu.vector_store %arg14[%c0, %c0_0], %0 {strides = array<i32>} : memref<336x32xf32, #tpu.memory_space<vmem>>, vector<40x32xf32>,
    %cst_1 = arith.constant 0.000000e+00 : f32
    %2 = vector.broadcast %cst_1 : f32 to vector<40x32xf32>
    %c296 = arith.constant 296 : index
    %c0_2 = arith.constant 0 : index
    %3 = vector.load %arg14[%c296, %c0_2] : memref<336x32xf32, #tpu.memory_space<vmem>>, vector<40x32xf32>
    tpu.vector_store %arg14[%c296, %c0_2], %2 {strides = array<i32>} : memref<336x32xf32, #tpu.memory_space<vmem>>, vector<40x32xf32>,
    %cst_3 = arith.constant 0.000000e+00 : f32
    %4 = vector.broadcast %cst_3 : f32 to vector<24x32xf32>
    %c0_4 = arith.constant 0 : index
    %c0_5 = arith.constant 0 : index
    %5 = vector.load %arg16[%c0_4, %c0_5] : memref<112x32xf32, #tpu.memory_space<vmem>>, vector<24x32xf32>
    tpu.vector_store %arg16[%c0_4, %c0_5], %4 {strides = array<i32>} : memref<112x32xf32, #tpu.memory_space<vmem>>, vector<24x32xf32>,
    %cst_6 = arith.constant 0.000000e+00 : f32
    %6 = vector.broadcast %cst_6 : f32 to vector<24x32xf32>
    %c88 = arith.constant 88 : index
    %c0_7 = arith.constant 0 : index
    %7 = vector.load %arg16[%c88, %c0_7] : memref<112x32xf32, #tpu.memory_space<vmem>>, vector<24x32xf32>
    tpu.vector_store %arg16[%c88, %c0_7], %6 {strides = array<i32>} : memref<112x32xf32, #tpu.memory_space<vmem>>, vector<24x32xf32>,
    %c0_i32 = arith.constant 0 : i32
    %c8_i32 = arith.constant 8 : i32
    %8 = arith.addi %c0_i32, %c8_i32 : i32
    %c1_i32 = arith.constant 1 : i32
    scf.for %arg19 = %c0_i32 to %8 step %c1_i32  : i32 {
      %116 = arith.index_cast %arg19 : i32 to index
      %c0_100 = arith.constant 0 : index
      %c0_101 = arith.constant 0 : index
      %117 = vector.load %arg1[%116, %c0_100, %c0_101] : memref<8x1024x75xbf16, #tpu.memory_space<vmem>>, vector<1x1024x75xbf16>
      %118 = vector.shape_cast %117 : vector<1x1024x75xbf16> to vector<1024x75xbf16>
      %c0_102 = arith.constant 0 : index
      %c0_103 = arith.constant 0 : index
      %119 = vector.load %arg2[%c0_102, %c0_103] : memref<75x32xbf16, #tpu.memory_space<vmem>>, vector<75x32xbf16>
      %cst_104 = arith.constant dense<0.000000e+00> : vector<1024x32xf32>
      %120 = tpu.matmul %118, %119, %cst_104 {dimension_numbers = #tpu.dot_dimension_numbers<[1], [0], [0], [1], [0, 0, 1, 1], [], []>} : vector<1024x75xbf16>, vector<75x32xbf16>, vector<1024x32xf32> -> vector<1024x32xf32>
      %c0_105 = arith.constant 0 : index
      %c0_106 = arith.constant 0 : index
      %121 = vector.load %arg3[%c0_105, %c0_106] : memref<1x32xf32, #tpu.memory_space<vmem>>, vector<1x32xf32>
      %122 = vector.broadcast %121 : vector<1x32xf32> to vector<1024x32xf32>
      %123 = arith.addf %120, %122 : vector<1024x32xf32>
      %c0_107 = arith.constant 0 : index
      %c0_108 = arith.constant 0 : index
      %124 = vector.load %arg13[%c0_107, %c0_108] : memref<1024x32xf32, #tpu.memory_space<vmem>>, vector<1024x32xf32>
      tpu.vector_store %arg13[%c0_107, %c0_108], %123 {strides = array<i32>} : memref<1024x32xf32, #tpu.memory_space<vmem>>, vector<1024x32xf32>,
      %c0_109 = arith.constant 0 : index
      %c0_110 = arith.constant 0 : index
      %125 = tpu.strided_load %arg13[%c0_109, %c0_110] {strides = array<i32: 2, 1>} : memref<1024x32xf32, #tpu.memory_space<vmem>>, vector<16x32xf32>
      %c1_111 = arith.constant 1 : index
      %c0_112 = arith.constant 0 : index
      %126 = tpu.strided_load %arg13[%c1_111, %c0_112] {strides = array<i32: 2, 1>} : memref<1024x32xf32, #tpu.memory_space<vmem>>, vector<16x32xf32>
      %c32 = arith.constant 32 : index
      %c0_113 = arith.constant 0 : index
      %127 = tpu.strided_load %arg13[%c32, %c0_113] {strides = array<i32: 2, 1>} : memref<1024x32xf32, #tpu.memory_space<vmem>>, vector<16x32xf32>
      %c33 = arith.constant 33 : index
      %c0_114 = arith.constant 0 : index
      %128 = tpu.strided_load %arg13[%c33, %c0_114] {strides = array<i32: 2, 1>} : memref<1024x32xf32, #tpu.memory_space<vmem>>, vector<16x32xf32>
      %129 = arith.maximumf %125, %126 : vector<16x32xf32>
      %130 = arith.maximumf %127, %128 : vector<16x32xf32>
      %131 = arith.maximumf %129, %130 : vector<16x32xf32>
      %c40 = arith.constant 40 : index
      %c0_115 = arith.constant 0 : index
      %132 = vector.load %arg14[%c40, %c0_115] : memref<336x32xf32, #tpu.memory_space<vmem>>, vector<16x32xf32>
      tpu.vector_store %arg14[%c40, %c0_115], %131 {strides = array<i32>} : memref<336x32xf32, #tpu.memory_space<vmem>>, vector<16x32xf32>,
      %c64 = arith.constant 64 : index
      %c0_116 = arith.constant 0 : index
      %133 = tpu.strided_load %arg13[%c64, %c0_116] {strides = array<i32: 2, 1>} : memref<1024x32xf32, #tpu.memory_space<vmem>>, vector<16x32xf32>
      %c65 = arith.constant 65 : index
      %c0_117 = arith.constant 0 : index
      %134 = tpu.strided_load %arg13[%c65, %c0_117] {strides = array<i32: 2, 1>} : memref<1024x32xf32, #tpu.memory_space<vmem>>, vector<16x32xf32>
      %c96 = arith.constant 96 : index
      %c0_118 = arith.constant 0 : index
      %135 = tpu.strided_load %arg13[%c96, %c0_118] {strides = array<i32: 2, 1>} : memref<1024x32xf32, #tpu.memory_space<vmem>>, vector<16x32xf32>
      %c97 = arith.constant 97 : index
      %c0_119 = arith.constant 0 : index
      %136 = tpu.strided_load %arg13[%c97, %c0_119] {strides = array<i32: 2, 1>} : memref<1024x32xf32, #tpu.memory_space<vmem>>, vector<16x32xf32>
      %137 = arith.maximumf %133, %134 : vector<16x32xf32>
      %138 = arith.maximumf %135, %136 : vector<16x32xf32>
      %139 = arith.maximumf %137, %138 : vector<16x32xf32>
      %c56 = arith.constant 56 : index
      %c0_120 = arith.constant 0 : index
      %140 = vector.load %arg14[%c56, %c0_120] : memref<336x32xf32, #tpu.memory_space<vmem>>, vector<16x32xf32>
      tpu.vector_store %arg14[%c56, %c0_120], %139 {strides = array<i32>} : memref<336x32xf32, #tpu.memory_space<vmem>>, vector<16x32xf32>,
      %c128 = arith.constant 128 : index
      %c0_121 = arith.constant 0 : index
      %141 = tpu.strided_load %arg13[%c128, %c0_121] {strides = array<i32: 2, 1>} : memref<1024x32xf32, #tpu.memory_space<vmem>>, vector<16x32xf32>
      %c129 = arith.constant 129 : index
      %c0_122 = arith.constant 0 : index
      %142 = tpu.strided_load %arg13[%c129, %c0_122] {strides = array<i32: 2, 1>} : memref<1024x32xf32, #tpu.memory_space<vmem>>, vector<16x32xf32>
      %c160 = arith.constant 160 : index
      %c0_123 = arith.constant 0 : index
      %143 = tpu.strided_load %arg13[%c160, %c0_123] {strides = array<i32: 2, 1>} : memref<1024x32xf32, #tpu.memory_space<vmem>>, vector<16x32xf32>
      %c161 = arith.constant 161 : index
      %c0_124 = arith.constant 0 : index
      %144 = tpu.strided_load %arg13[%c161, %c0_124] {strides = array<i32: 2, 1>} : memref<1024x32xf32, #tpu.memory_space<vmem>>, vector<16x32xf32>
      %145 = arith.maximumf %141, %142 : vector<16x32xf32>
      %146 = arith.maximumf %143, %144 : vector<16x32xf32>
      %147 = arith.maximumf %145, %146 : vector<16x32xf32>
      %c72 = arith.constant 72 : index
      %c0_125 = arith.constant 0 : index
      %148 = vector.load %arg14[%c72, %c0_125] : memref<336x32xf32, #tpu.memory_space<vmem>>, vector<16x32xf32>
      tpu.vector_store %arg14[%c72, %c0_125], %147 {strides = array<i32>} : memref<336x32xf32, #tpu.memory_space<vmem>>, vector<16x32xf32>,
      %c192 = arith.constant 192 : index
      %c0_126 = arith.constant 0 : index
      %149 = tpu.strided_load %arg13[%c192, %c0_126] {strides = array<i32: 2, 1>} : memref<1024x32xf32, #tpu.memory_space<vmem>>, vector<16x32xf32>
      %c193 = arith.constant 193 : index
      %c0_127 = arith.constant 0 : index
      %150 = tpu.strided_load %arg13[%c193, %c0_127] {strides = array<i32: 2, 1>} : memref<1024x32xf32, #tpu.memory_space<vmem>>, vector<16x32xf32>
      %c224 = arith.constant 224 : index
      %c0_128 = arith.constant 0 : index
      %151 = tpu.strided_load %arg13[%c224, %c0_128] {strides = array<i32: 2, 1>} : memref<1024x32xf32, #tpu.memory_space<vmem>>, vector<16x32xf32>
      %c225 = arith.constant 225 : index
      %c0_129 = arith.constant 0 : index
      %152 = tpu.strided_load %arg13[%c225, %c0_129] {strides = array<i32: 2, 1>} : memref<1024x32xf32, #tpu.memory_space<vmem>>, vector<16x32xf32>
      %153 = arith.maximumf %149, %150 : vector<16x32xf32>
      %154 = arith.maximumf %151, %152 : vector<16x32xf32>
      %155 = arith.maximumf %153, %154 : vector<16x32xf32>
      %c88_130 = arith.constant 88 : index
      %c0_131 = arith.constant 0 : index
      %156 = vector.load %arg14[%c88_130, %c0_131] : memref<336x32xf32, #tpu.memory_space<vmem>>, vector<16x32xf32>
      tpu.vector_store %arg14[%c88_130, %c0_131], %155 {strides = array<i32>} : memref<336x32xf32, #tpu.memory_space<vmem>>, vector<16x32xf32>,
      %c256 = arith.constant 256 : index
      %c0_132 = arith.constant 0 : index
      %157 = tpu.strided_load %arg13[%c256, %c0_132] {strides = array<i32: 2, 1>} : memref<1024x32xf32, #tpu.memory_space<vmem>>, vector<16x32xf32>
      %c257 = arith.constant 257 : index
      %c0_133 = arith.constant 0 : index
      %158 = tpu.strided_load %arg13[%c257, %c0_133] {strides = array<i32: 2, 1>} : memref<1024x32xf32, #tpu.memory_space<vmem>>, vector<16x32xf32>
      %c288 = arith.constant 288 : index
      %c0_134 = arith.constant 0 : index
      %159 = tpu.strided_load %arg13[%c288, %c0_134] {strides = array<i32: 2, 1>} : memref<1024x32xf32, #tpu.memory_space<vmem>>, vector<16x32xf32>
      %c289 = arith.constant 289 : index
      %c0_135 = arith.constant 0 : index
      %160 = tpu.strided_load %arg13[%c289, %c0_135] {strides = array<i32: 2, 1>} : memref<1024x32xf32, #tpu.memory_space<vmem>>, vector<16x32xf32>
      %161 = arith.maximumf %157, %158 : vector<16x32xf32>
      %162 = arith.maximumf %159, %160 : vector<16x32xf32>
      %163 = arith.maximumf %161, %162 : vector<16x32xf32>
      %c104 = arith.constant 104 : index
      %c0_136 = arith.constant 0 : index
      %164 = vector.load %arg14[%c104, %c0_136] : memref<336x32xf32, #tpu.memory_space<vmem>>, vector<16x32xf32>
      tpu.vector_store %arg14[%c104, %c0_136], %163 {strides = array<i32>} : memref<336x32xf32, #tpu.memory_space<vmem>>, vector<16x32xf32>,
      %c320 = arith.constant 320 : index
      %c0_137 = arith.constant 0 : index
      %165 = tpu.strided_load %arg13[%c320, %c0_137] {strides = array<i32: 2, 1>} : memref<1024x32xf32, #tpu.memory_space<vmem>>, vector<16x32xf32>
      %c321 = arith.constant 321 : index
      %c0_138 = arith.constant 0 : index
      %166 = tpu.strided_load %arg13[%c321, %c0_138] {strides = array<i32: 2, 1>} : memref<1024x32xf32, #tpu.memory_space<vmem>>, vector<16x32xf32>
      %c352 = arith.constant 352 : index
      %c0_139 = arith.constant 0 : index
      %167 = tpu.strided_load %arg13[%c352, %c0_139] {strides = array<i32: 2, 1>} : memref<1024x32xf32, #tpu.memory_space<vmem>>, vector<16x32xf32>
      %c353 = arith.constant 353 : index
      %c0_140 = arith.constant 0 : index
      %168 = tpu.strided_load %arg13[%c353, %c0_140] {strides = array<i32: 2, 1>} : memref<1024x32xf32, #tpu.memory_space<vmem>>, vector<16x32xf32>
      %169 = arith.maximumf %165, %166 : vector<16x32xf32>
      %170 = arith.maximumf %167, %168 : vector<16x32xf32>
      %171 = arith.maximumf %169, %170 : vector<16x32xf32>
      %c120 = arith.constant 120 : index
      %c0_141 = arith.constant 0 : index
      %172 = vector.load %arg14[%c120, %c0_141] : memref<336x32xf32, #tpu.memory_space<vmem>>, vector<16x32xf32>
      tpu.vector_store %arg14[%c120, %c0_141], %171 {strides = array<i32>} : memref<336x32xf32, #tpu.memory_space<vmem>>, vector<16x32xf32>,
      %c384 = arith.constant 384 : index
      %c0_142 = arith.constant 0 : index
      %173 = tpu.strided_load %arg13[%c384, %c0_142] {strides = array<i32: 2, 1>} : memref<1024x32xf32, #tpu.memory_space<vmem>>, vector<16x32xf32>
      %c385 = arith.constant 385 : index
      %c0_143 = arith.constant 0 : index
      %174 = tpu.strided_load %arg13[%c385, %c0_143] {strides = array<i32: 2, 1>} : memref<1024x32xf32, #tpu.memory_space<vmem>>, vector<16x32xf32>
      %c416 = arith.constant 416 : index
      %c0_144 = arith.constant 0 : index
      %175 = tpu.strided_load %arg13[%c416, %c0_144] {strides = array<i32: 2, 1>} : memref<1024x32xf32, #tpu.memory_space<vmem>>, vector<16x32xf32>
      %c417 = arith.constant 417 : index
      %c0_145 = arith.constant 0 : index
      %176 = tpu.strided_load %arg13[%c417, %c0_145] {strides = array<i32: 2, 1>} : memref<1024x32xf32, #tpu.memory_space<vmem>>, vector<16x32xf32>
      %177 = arith.maximumf %173, %174 : vector<16x32xf32>
      %178 = arith.maximumf %175, %176 : vector<16x32xf32>
      %179 = arith.maximumf %177, %178 : vector<16x32xf32>
      %c136 = arith.constant 136 : index
      %c0_146 = arith.constant 0 : index
      %180 = vector.load %arg14[%c136, %c0_146] : memref<336x32xf32, #tpu.memory_space<vmem>>, vector<16x32xf32>
      tpu.vector_store %arg14[%c136, %c0_146], %179 {strides = array<i32>} : memref<336x32xf32, #tpu.memory_space<vmem>>, vector<16x32xf32>,
      %c448 = arith.constant 448 : index
      %c0_147 = arith.constant 0 : index
      %181 = tpu.strided_load %arg13[%c448, %c0_147] {strides = array<i32: 2, 1>} : memref<1024x32xf32, #tpu.memory_space<vmem>>, vector<16x32xf32>
      %c449 = arith.constant 449 : index
      %c0_148 = arith.constant 0 : index
      %182 = tpu.strided_load %arg13[%c449, %c0_148] {strides = array<i32: 2, 1>} : memref<1024x32xf32, #tpu.memory_space<vmem>>, vector<16x32xf32>
      %c480 = arith.constant 480 : index
      %c0_149 = arith.constant 0 : index
      %183 = tpu.strided_load %arg13[%c480, %c0_149] {strides = array<i32: 2, 1>} : memref<1024x32xf32, #tpu.memory_space<vmem>>, vector<16x32xf32>
      %c481 = arith.constant 481 : index
      %c0_150 = arith.constant 0 : index
      %184 = tpu.strided_load %arg13[%c481, %c0_150] {strides = array<i32: 2, 1>} : memref<1024x32xf32, #tpu.memory_space<vmem>>, vector<16x32xf32>
      %185 = arith.maximumf %181, %182 : vector<16x32xf32>
      %186 = arith.maximumf %183, %184 : vector<16x32xf32>
      %187 = arith.maximumf %185, %186 : vector<16x32xf32>
      %c152 = arith.constant 152 : index
      %c0_151 = arith.constant 0 : index
      %188 = vector.load %arg14[%c152, %c0_151] : memref<336x32xf32, #tpu.memory_space<vmem>>, vector<16x32xf32>
      tpu.vector_store %arg14[%c152, %c0_151], %187 {strides = array<i32>} : memref<336x32xf32, #tpu.memory_space<vmem>>, vector<16x32xf32>,
      %c512 = arith.constant 512 : index
      %c0_152 = arith.constant 0 : index
      %189 = tpu.strided_load %arg13[%c512, %c0_152] {strides = array<i32: 2, 1>} : memref<1024x32xf32, #tpu.memory_space<vmem>>, vector<16x32xf32>
      %c513 = arith.constant 513 : index
      %c0_153 = arith.constant 0 : index
      %190 = tpu.strided_load %arg13[%c513, %c0_153] {strides = array<i32: 2, 1>} : memref<1024x32xf32, #tpu.memory_space<vmem>>, vector<16x32xf32>
      %c544 = arith.constant 544 : index
      %c0_154 = arith.constant 0 : index
      %191 = tpu.strided_load %arg13[%c544, %c0_154] {strides = array<i32: 2, 1>} : memref<1024x32xf32, #tpu.memory_space<vmem>>, vector<16x32xf32>
      %c545 = arith.constant 545 : index
      %c0_155 = arith.constant 0 : index
      %192 = tpu.strided_load %arg13[%c545, %c0_155] {strides = array<i32: 2, 1>} : memref<1024x32xf32, #tpu.memory_space<vmem>>, vector<16x32xf32>
      %193 = arith.maximumf %189, %190 : vector<16x32xf32>
      %194 = arith.maximumf %191, %192 : vector<16x32xf32>
      %195 = arith.maximumf %193, %194 : vector<16x32xf32>
      %c168 = arith.constant 168 : index
      %c0_156 = arith.constant 0 : index
      %196 = vector.load %arg14[%c168, %c0_156] : memref<336x32xf32, #tpu.memory_space<vmem>>, vector<16x32xf32>
      tpu.vector_store %arg14[%c168, %c0_156], %195 {strides = array<i32>} : memref<336x32xf32, #tpu.memory_space<vmem>>, vector<16x32xf32>,
      %c576 = arith.constant 576 : index
      %c0_157 = arith.constant 0 : index
      %197 = tpu.strided_load %arg13[%c576, %c0_157] {strides = array<i32: 2, 1>} : memref<1024x32xf32, #tpu.memory_space<vmem>>, vector<16x32xf32>
      %c577 = arith.constant 577 : index
      %c0_158 = arith.constant 0 : index
      %198 = tpu.strided_load %arg13[%c577, %c0_158] {strides = array<i32: 2, 1>} : memref<1024x32xf32, #tpu.memory_space<vmem>>, vector<16x32xf32>
      %c608 = arith.constant 608 : index
      %c0_159 = arith.constant 0 : index
      %199 = tpu.strided_load %arg13[%c608, %c0_159] {strides = array<i32: 2, 1>} : memref<1024x32xf32, #tpu.memory_space<vmem>>, vector<16x32xf32>
      %c609 = arith.constant 609 : index
      %c0_160 = arith.constant 0 : index
      %200 = tpu.strided_load %arg13[%c609, %c0_160] {strides = array<i32: 2, 1>} : memref<1024x32xf32, #tpu.memory_space<vmem>>, vector<16x32xf32>
      %201 = arith.maximumf %197, %198 : vector<16x32xf32>
      %202 = arith.maximumf %199, %200 : vector<16x32xf32>
      %203 = arith.maximumf %201, %202 : vector<16x32xf32>
      %c184 = arith.constant 184 : index
      %c0_161 = arith.constant 0 : index
      %204 = vector.load %arg14[%c184, %c0_161] : memref<336x32xf32, #tpu.memory_space<vmem>>, vector<16x32xf32>
      tpu.vector_store %arg14[%c184, %c0_161], %203 {strides = array<i32>} : memref<336x32xf32, #tpu.memory_space<vmem>>, vector<16x32xf32>,
      %c640 = arith.constant 640 : index
      %c0_162 = arith.constant 0 : index
      %205 = tpu.strided_load %arg13[%c640, %c0_162] {strides = array<i32: 2, 1>} : memref<1024x32xf32, #tpu.memory_space<vmem>>, vector<16x32xf32>
      %c641 = arith.constant 641 : index
      %c0_163 = arith.constant 0 : index
      %206 = tpu.strided_load %arg13[%c641, %c0_163] {strides = array<i32: 2, 1>} : memref<1024x32xf32, #tpu.memory_space<vmem>>, vector<16x32xf32>
      %c672 = arith.constant 672 : index
      %c0_164 = arith.constant 0 : index
      %207 = tpu.strided_load %arg13[%c672, %c0_164] {strides = array<i32: 2, 1>} : memref<1024x32xf32, #tpu.memory_space<vmem>>, vector<16x32xf32>
      %c673 = arith.constant 673 : index
      %c0_165 = arith.constant 0 : index
      %208 = tpu.strided_load %arg13[%c673, %c0_165] {strides = array<i32: 2, 1>} : memref<1024x32xf32, #tpu.memory_space<vmem>>, vector<16x32xf32>
      %209 = arith.maximumf %205, %206 : vector<16x32xf32>
      %210 = arith.maximumf %207, %208 : vector<16x32xf32>
      %211 = arith.maximumf %209, %210 : vector<16x32xf32>
      %c200 = arith.constant 200 : index
      %c0_166 = arith.constant 0 : index
      %212 = vector.load %arg14[%c200, %c0_166] : memref<336x32xf32, #tpu.memory_space<vmem>>, vector<16x32xf32>
      tpu.vector_store %arg14[%c200, %c0_166], %211 {strides = array<i32>} : memref<336x32xf32, #tpu.memory_space<vmem>>, vector<16x32xf32>,
      %c704 = arith.constant 704 : index
      %c0_167 = arith.constant 0 : index
      %213 = tpu.strided_load %arg13[%c704, %c0_167] {strides = array<i32: 2, 1>} : memref<1024x32xf32, #tpu.memory_space<vmem>>, vector<16x32xf32>
      %c705 = arith.constant 705 : index
      %c0_168 = arith.constant 0 : index
      %214 = tpu.strided_load %arg13[%c705, %c0_168] {strides = array<i32: 2, 1>} : memref<1024x32xf32, #tpu.memory_space<vmem>>, vector<16x32xf32>
      %c736 = arith.constant 736 : index
      %c0_169 = arith.constant 0 : index
      %215 = tpu.strided_load %arg13[%c736, %c0_169] {strides = array<i32: 2, 1>} : memref<1024x32xf32, #tpu.memory_space<vmem>>, vector<16x32xf32>
      %c737 = arith.constant 737 : index
      %c0_170 = arith.constant 0 : index
      %216 = tpu.strided_load %arg13[%c737, %c0_170] {strides = array<i32: 2, 1>} : memref<1024x32xf32, #tpu.memory_space<vmem>>, vector<16x32xf32>
      %217 = arith.maximumf %213, %214 : vector<16x32xf32>
      %218 = arith.maximumf %215, %216 : vector<16x32xf32>
      %219 = arith.maximumf %217, %218 : vector<16x32xf32>
      %c216 = arith.constant 216 : index
      %c0_171 = arith.constant 0 : index
      %220 = vector.load %arg14[%c216, %c0_171] : memref<336x32xf32, #tpu.memory_space<vmem>>, vector<16x32xf32>
      tpu.vector_store %arg14[%c216, %c0_171], %219 {strides = array<i32>} : memref<336x32xf32, #tpu.memory_space<vmem>>, vector<16x32xf32>,
      %c768 = arith.constant 768 : index
      %c0_172 = arith.constant 0 : index
      %221 = tpu.strided_load %arg13[%c768, %c0_172] {strides = array<i32: 2, 1>} : memref<1024x32xf32, #tpu.memory_space<vmem>>, vector<16x32xf32>
      %c769 = arith.constant 769 : index
      %c0_173 = arith.constant 0 : index
      %222 = tpu.strided_load %arg13[%c769, %c0_173] {strides = array<i32: 2, 1>} : memref<1024x32xf32, #tpu.memory_space<vmem>>, vector<16x32xf32>
      %c800 = arith.constant 800 : index
      %c0_174 = arith.constant 0 : index
      %223 = tpu.strided_load %arg13[%c800, %c0_174] {strides = array<i32: 2, 1>} : memref<1024x32xf32, #tpu.memory_space<vmem>>, vector<16x32xf32>
      %c801 = arith.constant 801 : index
      %c0_175 = arith.constant 0 : index
      %224 = tpu.strided_load %arg13[%c801, %c0_175] {strides = array<i32: 2, 1>} : memref<1024x32xf32, #tpu.memory_space<vmem>>, vector<16x32xf32>
      %225 = arith.maximumf %221, %222 : vector<16x32xf32>
      %226 = arith.maximumf %223, %224 : vector<16x32xf32>
      %227 = arith.maximumf %225, %226 : vector<16x32xf32>
      %c232 = arith.constant 232 : index
      %c0_176 = arith.constant 0 : index
      %228 = vector.load %arg14[%c232, %c0_176] : memref<336x32xf32, #tpu.memory_space<vmem>>, vector<16x32xf32>
      tpu.vector_store %arg14[%c232, %c0_176], %227 {strides = array<i32>} : memref<336x32xf32, #tpu.memory_space<vmem>>, vector<16x32xf32>,
      %c832 = arith.constant 832 : index
      %c0_177 = arith.constant 0 : index
      %229 = tpu.strided_load %arg13[%c832, %c0_177] {strides = array<i32: 2, 1>} : memref<1024x32xf32, #tpu.memory_space<vmem>>, vector<16x32xf32>
      %c833 = arith.constant 833 : index
      %c0_178 = arith.constant 0 : index
      %230 = tpu.strided_load %arg13[%c833, %c0_178] {strides = array<i32: 2, 1>} : memref<1024x32xf32, #tpu.memory_space<vmem>>, vector<16x32xf32>
      %c864 = arith.constant 864 : index
      %c0_179 = arith.constant 0 : index
      %231 = tpu.strided_load %arg13[%c864, %c0_179] {strides = array<i32: 2, 1>} : memref<1024x32xf32, #tpu.memory_space<vmem>>, vector<16x32xf32>
      %c865 = arith.constant 865 : index
      %c0_180 = arith.constant 0 : index
      %232 = tpu.strided_load %arg13[%c865, %c0_180] {strides = array<i32: 2, 1>} : memref<1024x32xf32, #tpu.memory_space<vmem>>, vector<16x32xf32>
      %233 = arith.maximumf %229, %230 : vector<16x32xf32>
      %234 = arith.maximumf %231, %232 : vector<16x32xf32>
      %235 = arith.maximumf %233, %234 : vector<16x32xf32>
      %c248 = arith.constant 248 : index
      %c0_181 = arith.constant 0 : index
      %236 = vector.load %arg14[%c248, %c0_181] : memref<336x32xf32, #tpu.memory_space<vmem>>, vector<16x32xf32>
      tpu.vector_store %arg14[%c248, %c0_181], %235 {strides = array<i32>} : memref<336x32xf32, #tpu.memory_space<vmem>>, vector<16x32xf32>,
      %c896 = arith.constant 896 : index
      %c0_182 = arith.constant 0 : index
      %237 = tpu.strided_load %arg13[%c896, %c0_182] {strides = array<i32: 2, 1>} : memref<1024x32xf32, #tpu.memory_space<vmem>>, vector<16x32xf32>
      %c897 = arith.constant 897 : index
      %c0_183 = arith.constant 0 : index
      %238 = tpu.strided_load %arg13[%c897, %c0_183] {strides = array<i32: 2, 1>} : memref<1024x32xf32, #tpu.memory_space<vmem>>, vector<16x32xf32>
      %c928 = arith.constant 928 : index
      %c0_184 = arith.constant 0 : index
      %239 = tpu.strided_load %arg13[%c928, %c0_184] {strides = array<i32: 2, 1>} : memref<1024x32xf32, #tpu.memory_space<vmem>>, vector<16x32xf32>
      %c929 = arith.constant 929 : index
      %c0_185 = arith.constant 0 : index
      %240 = tpu.strided_load %arg13[%c929, %c0_185] {strides = array<i32: 2, 1>} : memref<1024x32xf32, #tpu.memory_space<vmem>>, vector<16x32xf32>
      %241 = arith.maximumf %237, %238 : vector<16x32xf32>
      %242 = arith.maximumf %239, %240 : vector<16x32xf32>
      %243 = arith.maximumf %241, %242 : vector<16x32xf32>
      %c264 = arith.constant 264 : index
      %c0_186 = arith.constant 0 : index
      %244 = vector.load %arg14[%c264, %c0_186] : memref<336x32xf32, #tpu.memory_space<vmem>>, vector<16x32xf32>
      tpu.vector_store %arg14[%c264, %c0_186], %243 {strides = array<i32>} : memref<336x32xf32, #tpu.memory_space<vmem>>, vector<16x32xf32>,
      %c960 = arith.constant 960 : index
      %c0_187 = arith.constant 0 : index
      %245 = tpu.strided_load %arg13[%c960, %c0_187] {strides = array<i32: 2, 1>} : memref<1024x32xf32, #tpu.memory_space<vmem>>, vector<16x32xf32>
      %c961 = arith.constant 961 : index
      %c0_188 = arith.constant 0 : index
      %246 = tpu.strided_load %arg13[%c961, %c0_188] {strides = array<i32: 2, 1>} : memref<1024x32xf32, #tpu.memory_space<vmem>>, vector<16x32xf32>
      %c992 = arith.constant 992 : index
      %c0_189 = arith.constant 0 : index
      %247 = tpu.strided_load %arg13[%c992, %c0_189] {strides = array<i32: 2, 1>} : memref<1024x32xf32, #tpu.memory_space<vmem>>, vector<16x32xf32>
      %c993 = arith.constant 993 : index
      %c0_190 = arith.constant 0 : index
      %248 = tpu.strided_load %arg13[%c993, %c0_190] {strides = array<i32: 2, 1>} : memref<1024x32xf32, #tpu.memory_space<vmem>>, vector<16x32xf32>
      %249 = arith.maximumf %245, %246 : vector<16x32xf32>
      %250 = arith.maximumf %247, %248 : vector<16x32xf32>
      %251 = arith.maximumf %249, %250 : vector<16x32xf32>
      %c280 = arith.constant 280 : index
      %c0_191 = arith.constant 0 : index
      %252 = vector.load %arg14[%c280, %c0_191] : memref<336x32xf32, #tpu.memory_space<vmem>>, vector<16x32xf32>
      tpu.vector_store %arg14[%c280, %c0_191], %251 {strides = array<i32>} : memref<336x32xf32, #tpu.memory_space<vmem>>, vector<16x32xf32>,
      %253 = tpu.iota {dimensions = array<i32: 0>} : vector<256x1xi32>
      %c15_i32 = arith.constant 15 : i32
      %254 = vector.broadcast %c15_i32 : i32 to vector<256x1xi32>
      %255 = arith.andi %253, %254 : vector<256x1xi32>
      %cst_192 = arith.constant 0.000000e+00 : f32
      %256 = vector.broadcast %cst_192 : f32 to vector<256x32xf32>
      %c6_193 = arith.constant 6 : index
      %c0_194 = arith.constant 0 : index
      %257 = vector.load %arg14[%c6_193, %c0_194] : memref<336x32xf32, #tpu.memory_space<vmem>>, vector<320x32xf32>
      %258 = arith.truncf %257 : vector<320x32xf32> to vector<320x32xbf16>
      %259 = vector.extract_strided_slice %258 {offsets = [0, 0], sizes = [256, 32], strides = [1, 1]} : vector<320x32xbf16> to vector<256x32xbf16>
      %260 = vector.extract_strided_slice %258 {offsets = [16, 0], sizes = [256, 32], strides = [1, 1]} : vector<320x32xbf16> to vector<256x32xbf16>
      %261 = vector.extract_strided_slice %258 {offsets = [32, 0], sizes = [256, 32], strides = [1, 1]} : vector<320x32xbf16> to vector<256x32xbf16>
      %262 = vector.extract_strided_slice %258 {offsets = [48, 0], sizes = [256, 32], strides = [1, 1]} : vector<320x32xbf16> to vector<256x32xbf16>
      %263 = vector.extract_strided_slice %258 {offsets = [64, 0], sizes = [256, 32], strides = [1, 1]} : vector<320x32xbf16> to vector<256x32xbf16>
      %264 = tpu.concatenate %259, %260, %261, %262, %263 in 1 : vector<256x32xbf16>, vector<256x32xbf16>, vector<256x32xbf16>, vector<256x32xbf16>, vector<256x32xbf16> -> vector<256x160xbf16>
      %c0_195 = arith.constant 0 : index
      %c0_196 = arith.constant 0 : index
      %c0_197 = arith.constant 0 : index
      %265 = vector.load %arg4[%c0_195, %c0_196, %c0_197] : memref<5x160x32xbf16, #tpu.memory_space<vmem>>, vector<1x160x32xbf16>
      %266 = vector.shape_cast %265 : vector<1x160x32xbf16> to vector<160x32xbf16>
      %cst_198 = arith.constant dense<0.000000e+00> : vector<256x32xf32>
      %267 = tpu.matmul %264, %266, %cst_198 {dimension_numbers = #tpu.dot_dimension_numbers<[1], [0], [0], [1], [0, 0, 1, 1], [], []>} : vector<256x160xbf16>, vector<160x32xbf16>, vector<256x32xf32> -> vector<256x32xf32>
      %c-2_i32 = arith.constant -2 : i32
      %268 = vector.broadcast %c-2_i32 : i32 to vector<256x1xi32>
      %269 = arith.addi %255, %268 : vector<256x1xi32>
      %c0_i32_199 = arith.constant 0 : i32
      %270 = vector.broadcast %c0_i32_199 : i32 to vector<256x1xi32>
      %271 = arith.cmpi sge, %269, %270 : vector<256x1xi32>
      %c-2_i32_200 = arith.constant -2 : i32
      %272 = vector.broadcast %c-2_i32_200 : i32 to vector<256x1xi32>
      %273 = arith.addi %255, %272 : vector<256x1xi32>
      %c16_i32 = arith.constant 16 : i32
      %274 = vector.broadcast %c16_i32 : i32 to vector<256x1xi32>
      %275 = arith.cmpi slt, %273, %274 : vector<256x1xi32>
      %276 = arith.andi %271, %275 : vector<256x1xi1>
      %277 = arith.extui %276 : vector<256x1xi1> to vector<256x1xi32>
      %278 = arith.sitofp %277 : vector<256x1xi32> to vector<256x1xf32>
      %279 = vector.broadcast %278 : vector<256x1xf32> to vector<256x32xf32>
      %280 = arith.mulf %267, %279 : vector<256x32xf32>
      %281 = arith.addf %256, %280 : vector<256x32xf32>
      %c7_201 = arith.constant 7 : index
      %c0_202 = arith.constant 0 : index
      %282 = vector.load %arg14[%c7_201, %c0_202] : memref<336x32xf32, #tpu.memory_space<vmem>>, vector<320x32xf32>
      %283 = arith.truncf %282 : vector<320x32xf32> to vector<320x32xbf16>
      %284 = vector.extract_strided_slice %283 {offsets = [0, 0], sizes = [256, 32], strides = [1, 1]} : vector<320x32xbf16> to vector<256x32xbf16>
      %285 = vector.extract_strided_slice %283 {offsets = [16, 0], sizes = [256, 32], strides = [1, 1]} : vector<320x32xbf16> to vector<256x32xbf16>
      %286 = vector.extract_strided_slice %283 {offsets = [32, 0], sizes = [256, 32], strides = [1, 1]} : vector<320x32xbf16> to vector<256x32xbf16>
      %287 = vector.extract_strided_slice %283 {offsets = [48, 0], sizes = [256, 32], strides = [1, 1]} : vector<320x32xbf16> to vector<256x32xbf16>
      %288 = vector.extract_strided_slice %283 {offsets = [64, 0], sizes = [256, 32], strides = [1, 1]} : vector<320x32xbf16> to vector<256x32xbf16>
      %289 = tpu.concatenate %284, %285, %286, %287, %288 in 1 : vector<256x32xbf16>, vector<256x32xbf16>, vector<256x32xbf16>, vector<256x32xbf16>, vector<256x32xbf16> -> vector<256x160xbf16>
      %c1_203 = arith.constant 1 : index
      %c0_204 = arith.constant 0 : index
      %c0_205 = arith.constant 0 : index
      %290 = vector.load %arg4[%c1_203, %c0_204, %c0_205] : memref<5x160x32xbf16, #tpu.memory_space<vmem>>, vector<1x160x32xbf16>
      %291 = vector.shape_cast %290 : vector<1x160x32xbf16> to vector<160x32xbf16>
      %cst_206 = arith.constant dense<0.000000e+00> : vector<256x32xf32>
      %292 = tpu.matmul %289, %291, %cst_206 {dimension_numbers = #tpu.dot_dimension_numbers<[1], [0], [0], [1], [0, 0, 1, 1], [], []>} : vector<256x160xbf16>, vector<160x32xbf16>, vector<256x32xf32> -> vector<256x32xf32>
      %c-1_i32 = arith.constant -1 : i32
      %293 = vector.broadcast %c-1_i32 : i32 to vector<256x1xi32>
      %294 = arith.addi %255, %293 : vector<256x1xi32>
      %c0_i32_207 = arith.constant 0 : i32
      %295 = vector.broadcast %c0_i32_207 : i32 to vector<256x1xi32>
      %296 = arith.cmpi sge, %294, %295 : vector<256x1xi32>
      %c-1_i32_208 = arith.constant -1 : i32
      %297 = vector.broadcast %c-1_i32_208 : i32 to vector<256x1xi32>
      %298 = arith.addi %255, %297 : vector<256x1xi32>
      %c16_i32_209 = arith.constant 16 : i32
      %299 = vector.broadcast %c16_i32_209 : i32 to vector<256x1xi32>
      %300 = arith.cmpi slt, %298, %299 : vector<256x1xi32>
      %301 = arith.andi %296, %300 : vector<256x1xi1>
      %302 = arith.extui %301 : vector<256x1xi1> to vector<256x1xi32>
      %303 = arith.sitofp %302 : vector<256x1xi32> to vector<256x1xf32>
      %304 = vector.broadcast %303 : vector<256x1xf32> to vector<256x32xf32>
      %305 = arith.mulf %292, %304 : vector<256x32xf32>
      %306 = arith.addf %281, %305 : vector<256x32xf32>
      %c8_210 = arith.constant 8 : index
      %c0_211 = arith.constant 0 : index
      %307 = vector.load %arg14[%c8_210, %c0_211] : memref<336x32xf32, #tpu.memory_space<vmem>>, vector<320x32xf32>
      %308 = arith.truncf %307 : vector<320x32xf32> to vector<320x32xbf16>
      %309 = vector.extract_strided_slice %308 {offsets = [0, 0], sizes = [256, 32], strides = [1, 1]} : vector<320x32xbf16> to vector<256x32xbf16>
      %310 = vector.extract_strided_slice %308 {offsets = [16, 0], sizes = [256, 32], strides = [1, 1]} : vector<320x32xbf16> to vector<256x32xbf16>
      %311 = vector.extract_strided_slice %308 {offsets = [32, 0], sizes = [256, 32], strides = [1, 1]} : vector<320x32xbf16> to vector<256x32xbf16>
      %312 = vector.extract_strided_slice %308 {offsets = [48, 0], sizes = [256, 32], strides = [1, 1]} : vector<320x32xbf16> to vector<256x32xbf16>
      %313 = vector.extract_strided_slice %308 {offsets = [64, 0], sizes = [256, 32], strides = [1, 1]} : vector<320x32xbf16> to vector<256x32xbf16>
      %314 = tpu.concatenate %309, %310, %311, %312, %313 in 1 : vector<256x32xbf16>, vector<256x32xbf16>, vector<256x32xbf16>, vector<256x32xbf16>, vector<256x32xbf16> -> vector<256x160xbf16>
      %c2_212 = arith.constant 2 : index
      %c0_213 = arith.constant 0 : index
      %c0_214 = arith.constant 0 : index
      %315 = vector.load %arg4[%c2_212, %c0_213, %c0_214] : memref<5x160x32xbf16, #tpu.memory_space<vmem>>, vector<1x160x32xbf16>
      %316 = vector.shape_cast %315 : vector<1x160x32xbf16> to vector<160x32xbf16>
      %cst_215 = arith.constant dense<0.000000e+00> : vector<256x32xf32>
      %317 = tpu.matmul %314, %316, %cst_215 {dimension_numbers = #tpu.dot_dimension_numbers<[1], [0], [0], [1], [0, 0, 1, 1], [], []>} : vector<256x160xbf16>, vector<160x32xbf16>, vector<256x32xf32> -> vector<256x32xf32>
      %318 = arith.addf %306, %317 : vector<256x32xf32>
      %c9_216 = arith.constant 9 : index
      %c0_217 = arith.constant 0 : index
      %319 = vector.load %arg14[%c9_216, %c0_217] : memref<336x32xf32, #tpu.memory_space<vmem>>, vector<320x32xf32>
      %320 = arith.truncf %319 : vector<320x32xf32> to vector<320x32xbf16>
      %321 = vector.extract_strided_slice %320 {offsets = [0, 0], sizes = [256, 32], strides = [1, 1]} : vector<320x32xbf16> to vector<256x32xbf16>
      %322 = vector.extract_strided_slice %320 {offsets = [16, 0], sizes = [256, 32], strides = [1, 1]} : vector<320x32xbf16> to vector<256x32xbf16>
      %323 = vector.extract_strided_slice %320 {offsets = [32, 0], sizes = [256, 32], strides = [1, 1]} : vector<320x32xbf16> to vector<256x32xbf16>
      %324 = vector.extract_strided_slice %320 {offsets = [48, 0], sizes = [256, 32], strides = [1, 1]} : vector<320x32xbf16> to vector<256x32xbf16>
      %325 = vector.extract_strided_slice %320 {offsets = [64, 0], sizes = [256, 32], strides = [1, 1]} : vector<320x32xbf16> to vector<256x32xbf16>
      %326 = tpu.concatenate %321, %322, %323, %324, %325 in 1 : vector<256x32xbf16>, vector<256x32xbf16>, vector<256x32xbf16>, vector<256x32xbf16>, vector<256x32xbf16> -> vector<256x160xbf16>
      %c3_218 = arith.constant 3 : index
      %c0_219 = arith.constant 0 : index
      %c0_220 = arith.constant 0 : index
      %327 = vector.load %arg4[%c3_218, %c0_219, %c0_220] : memref<5x160x32xbf16, #tpu.memory_space<vmem>>, vector<1x160x32xbf16>
      %328 = vector.shape_cast %327 : vector<1x160x32xbf16> to vector<160x32xbf16>
      %cst_221 = arith.constant dense<0.000000e+00> : vector<256x32xf32>
      %329 = tpu.matmul %326, %328, %cst_221 {dimension_numbers = #tpu.dot_dimension_numbers<[1], [0], [0], [1], [0, 0, 1, 1], [], []>} : vector<256x160xbf16>, vector<160x32xbf16>, vector<256x32xf32> -> vector<256x32xf32>
      %c1_i32_222 = arith.constant 1 : i32
      %330 = vector.broadcast %c1_i32_222 : i32 to vector<256x1xi32>
      %331 = arith.addi %255, %330 : vector<256x1xi32>
      %c0_i32_223 = arith.constant 0 : i32
      %332 = vector.broadcast %c0_i32_223 : i32 to vector<256x1xi32>
      %333 = arith.cmpi sge, %331, %332 : vector<256x1xi32>
      %c1_i32_224 = arith.constant 1 : i32
      %334 = vector.broadcast %c1_i32_224 : i32 to vector<256x1xi32>
      %335 = arith.addi %255, %334 : vector<256x1xi32>
      %c16_i32_225 = arith.constant 16 : i32
      %336 = vector.broadcast %c16_i32_225 : i32 to vector<256x1xi32>
      %337 = arith.cmpi slt, %335, %336 : vector<256x1xi32>
      %338 = arith.andi %333, %337 : vector<256x1xi1>
      %339 = arith.extui %338 : vector<256x1xi1> to vector<256x1xi32>
      %340 = arith.sitofp %339 : vector<256x1xi32> to vector<256x1xf32>
      %341 = vector.broadcast %340 : vector<256x1xf32> to vector<256x32xf32>
      %342 = arith.mulf %329, %341 : vector<256x32xf32>
      %343 = arith.addf %318, %342 : vector<256x32xf32>
      %c10_226 = arith.constant 10 : index
      %c0_227 = arith.constant 0 : index
      %344 = vector.load %arg14[%c10_226, %c0_227] : memref<336x32xf32, #tpu.memory_space<vmem>>, vector<320x32xf32>
      %345 = arith.truncf %344 : vector<320x32xf32> to vector<320x32xbf16>
      %346 = vector.extract_strided_slice %345 {offsets = [0, 0], sizes = [256, 32], strides = [1, 1]} : vector<320x32xbf16> to vector<256x32xbf16>
      %347 = vector.extract_strided_slice %345 {offsets = [16, 0], sizes = [256, 32], strides = [1, 1]} : vector<320x32xbf16> to vector<256x32xbf16>
      %348 = vector.extract_strided_slice %345 {offsets = [32, 0], sizes = [256, 32], strides = [1, 1]} : vector<320x32xbf16> to vector<256x32xbf16>
      %349 = vector.extract_strided_slice %345 {offsets = [48, 0], sizes = [256, 32], strides = [1, 1]} : vector<320x32xbf16> to vector<256x32xbf16>
      %350 = vector.extract_strided_slice %345 {offsets = [64, 0], sizes = [256, 32], strides = [1, 1]} : vector<320x32xbf16> to vector<256x32xbf16>
      %351 = tpu.concatenate %346, %347, %348, %349, %350 in 1 : vector<256x32xbf16>, vector<256x32xbf16>, vector<256x32xbf16>, vector<256x32xbf16>, vector<256x32xbf16> -> vector<256x160xbf16>
      %c4_228 = arith.constant 4 : index
      %c0_229 = arith.constant 0 : index
      %c0_230 = arith.constant 0 : index
      %352 = vector.load %arg4[%c4_228, %c0_229, %c0_230] : memref<5x160x32xbf16, #tpu.memory_space<vmem>>, vector<1x160x32xbf16>
      %353 = vector.shape_cast %352 : vector<1x160x32xbf16> to vector<160x32xbf16>
      %cst_231 = arith.constant dense<0.000000e+00> : vector<256x32xf32>
      %354 = tpu.matmul %351, %353, %cst_231 {dimension_numbers = #tpu.dot_dimension_numbers<[1], [0], [0], [1], [0, 0, 1, 1], [], []>} : vector<256x160xbf16>, vector<160x32xbf16>, vector<256x32xf32> -> vector<256x32xf32>
      %c2_i32 = arith.constant 2 : i32
      %355 = vector.broadcast %c2_i32 : i32 to vector<256x1xi32>
      %356 = arith.addi %255, %355 : vector<256x1xi32>
      %c0_i32_232 = arith.constant 0 : i32
      %357 = vector.broadcast %c0_i32_232 : i32 to vector<256x1xi32>
      %358 = arith.cmpi sge, %356, %357 : vector<256x1xi32>
      %c2_i32_233 = arith.constant 2 : i32
      %359 = vector.broadcast %c2_i32_233 : i32 to vector<256x1xi32>
      %360 = arith.addi %255, %359 : vector<256x1xi32>
      %c16_i32_234 = arith.constant 16 : i32
      %361 = vector.broadcast %c16_i32_234 : i32 to vector<256x1xi32>
      %362 = arith.cmpi slt, %360, %361 : vector<256x1xi32>
      %363 = arith.andi %358, %362 : vector<256x1xi1>
      %364 = arith.extui %363 : vector<256x1xi1> to vector<256x1xi32>
      %365 = arith.sitofp %364 : vector<256x1xi32> to vector<256x1xf32>
      %366 = vector.broadcast %365 : vector<256x1xf32> to vector<256x32xf32>
      %367 = arith.mulf %354, %366 : vector<256x32xf32>
      %368 = arith.addf %343, %367 : vector<256x32xf32>
      %c0_235 = arith.constant 0 : index
      %c0_236 = arith.constant 0 : index
      %369 = vector.load %arg5[%c0_235, %c0_236] : memref<1x32xf32, #tpu.memory_space<vmem>>, vector<1x32xf32>
      %370 = vector.broadcast %369 : vector<1x32xf32> to vector<256x32xf32>
      %371 = arith.addf %368, %370 : vector<256x32xf32>
      %c0_237 = arith.constant 0 : index
      %c0_238 = arith.constant 0 : index
      %372 = vector.load %arg15[%c0_237, %c0_238] : memref<256x32xf32, #tpu.memory_space<vmem>>, vector<256x32xf32>
      tpu.vector_store %arg15[%c0_237, %c0_238], %371 {strides = array<i32>} : memref<256x32xf32, #tpu.memory_space<vmem>>, vector<256x32xf32>,
      %c0_239 = arith.constant 0 : index
      %c0_240 = arith.constant 0 : index
      %373 = tpu.strided_load %arg15[%c0_239, %c0_240] {strides = array<i32: 2, 1>} : memref<256x32xf32, #tpu.memory_space<vmem>>, vector<8x32xf32>
      %c1_241 = arith.constant 1 : index
      %c0_242 = arith.constant 0 : index
      %374 = tpu.strided_load %arg15[%c1_241, %c0_242] {strides = array<i32: 2, 1>} : memref<256x32xf32, #tpu.memory_space<vmem>>, vector<8x32xf32>
      %c16 = arith.constant 16 : index
      %c0_243 = arith.constant 0 : index
      %375 = tpu.strided_load %arg15[%c16, %c0_243] {strides = array<i32: 2, 1>} : memref<256x32xf32, #tpu.memory_space<vmem>>, vector<8x32xf32>
      %c17 = arith.constant 17 : index
      %c0_244 = arith.constant 0 : index
      %376 = tpu.strided_load %arg15[%c17, %c0_244] {strides = array<i32: 2, 1>} : memref<256x32xf32, #tpu.memory_space<vmem>>, vector<8x32xf32>
      %377 = arith.maximumf %373, %374 : vector<8x32xf32>
      %378 = arith.maximumf %375, %376 : vector<8x32xf32>
      %379 = arith.maximumf %377, %378 : vector<8x32xf32>
      %c24 = arith.constant 24 : index
      %c0_245 = arith.constant 0 : index
      %380 = vector.load %arg16[%c24, %c0_245] : memref<112x32xf32, #tpu.memory_space<vmem>>, vector<8x32xf32>
      tpu.vector_store %arg16[%c24, %c0_245], %379 {strides = array<i32>} : memref<112x32xf32, #tpu.memory_space<vmem>>, vector<8x32xf32>,
      %c32_246 = arith.constant 32 : index
      %c0_247 = arith.constant 0 : index
      %381 = tpu.strided_load %arg15[%c32_246, %c0_247] {strides = array<i32: 2, 1>} : memref<256x32xf32, #tpu.memory_space<vmem>>, vector<8x32xf32>
      %c33_248 = arith.constant 33 : index
      %c0_249 = arith.constant 0 : index
      %382 = tpu.strided_load %arg15[%c33_248, %c0_249] {strides = array<i32: 2, 1>} : memref<256x32xf32, #tpu.memory_space<vmem>>, vector<8x32xf32>
      %c48 = arith.constant 48 : index
      %c0_250 = arith.constant 0 : index
      %383 = tpu.strided_load %arg15[%c48, %c0_250] {strides = array<i32: 2, 1>} : memref<256x32xf32, #tpu.memory_space<vmem>>, vector<8x32xf32>
      %c49 = arith.constant 49 : index
      %c0_251 = arith.constant 0 : index
      %384 = tpu.strided_load %arg15[%c49, %c0_251] {strides = array<i32: 2, 1>} : memref<256x32xf32, #tpu.memory_space<vmem>>, vector<8x32xf32>
      %385 = arith.maximumf %381, %382 : vector<8x32xf32>
      %386 = arith.maximumf %383, %384 : vector<8x32xf32>
      %387 = arith.maximumf %385, %386 : vector<8x32xf32>
      %c32_252 = arith.constant 32 : index
      %c0_253 = arith.constant 0 : index
      %388 = vector.load %arg16[%c32_252, %c0_253] : memref<112x32xf32, #tpu.memory_space<vmem>>, vector<8x32xf32>
      tpu.vector_store %arg16[%c32_252, %c0_253], %387 {strides = array<i32>} : memref<112x32xf32, #tpu.memory_space<vmem>>, vector<8x32xf32>,
      %c64_254 = arith.constant 64 : index
      %c0_255 = arith.constant 0 : index
      %389 = tpu.strided_load %arg15[%c64_254, %c0_255] {strides = array<i32: 2, 1>} : memref<256x32xf32, #tpu.memory_space<vmem>>, vector<8x32xf32>
      %c65_256 = arith.constant 65 : index
      %c0_257 = arith.constant 0 : index
      %390 = tpu.strided_load %arg15[%c65_256, %c0_257] {strides = array<i32: 2, 1>} : memref<256x32xf32, #tpu.memory_space<vmem>>, vector<8x32xf32>
      %c80 = arith.constant 80 : index
      %c0_258 = arith.constant 0 : index
      %391 = tpu.strided_load %arg15[%c80, %c0_258] {strides = array<i32: 2, 1>} : memref<256x32xf32, #tpu.memory_space<vmem>>, vector<8x32xf32>
      %c81 = arith.constant 81 : index
      %c0_259 = arith.constant 0 : index
      %392 = tpu.strided_load %arg15[%c81, %c0_259] {strides = array<i32: 2, 1>} : memref<256x32xf32, #tpu.memory_space<vmem>>, vector<8x32xf32>
      %393 = arith.maximumf %389, %390 : vector<8x32xf32>
      %394 = arith.maximumf %391, %392 : vector<8x32xf32>
      %395 = arith.maximumf %393, %394 : vector<8x32xf32>
      %c40_260 = arith.constant 40 : index
      %c0_261 = arith.constant 0 : index
      %396 = vector.load %arg16[%c40_260, %c0_261] : memref<112x32xf32, #tpu.memory_space<vmem>>, vector<8x32xf32>
      tpu.vector_store %arg16[%c40_260, %c0_261], %395 {strides = array<i32>} : memref<112x32xf32, #tpu.memory_space<vmem>>, vector<8x32xf32>,
      %c96_262 = arith.constant 96 : index
      %c0_263 = arith.constant 0 : index
      %397 = tpu.strided_load %arg15[%c96_262, %c0_263] {strides = array<i32: 2, 1>} : memref<256x32xf32, #tpu.memory_space<vmem>>, vector<8x32xf32>
      %c97_264 = arith.constant 97 : index
      %c0_265 = arith.constant 0 : index
      %398 = tpu.strided_load %arg15[%c97_264, %c0_265] {strides = array<i32: 2, 1>} : memref<256x32xf32, #tpu.memory_space<vmem>>, vector<8x32xf32>
      %c112 = arith.constant 112 : index
      %c0_266 = arith.constant 0 : index
      %399 = tpu.strided_load %arg15[%c112, %c0_266] {strides = array<i32: 2, 1>} : memref<256x32xf32, #tpu.memory_space<vmem>>, vector<8x32xf32>
      %c113 = arith.constant 113 : index
      %c0_267 = arith.constant 0 : index
      %400 = tpu.strided_load %arg15[%c113, %c0_267] {strides = array<i32: 2, 1>} : memref<256x32xf32, #tpu.memory_space<vmem>>, vector<8x32xf32>
      %401 = arith.maximumf %397, %398 : vector<8x32xf32>
      %402 = arith.maximumf %399, %400 : vector<8x32xf32>
      %403 = arith.maximumf %401, %402 : vector<8x32xf32>
      %c48_268 = arith.constant 48 : index
      %c0_269 = arith.constant 0 : index
      %404 = vector.load %arg16[%c48_268, %c0_269] : memref<112x32xf32, #tpu.memory_space<vmem>>, vector<8x32xf32>
      tpu.vector_store %arg16[%c48_268, %c0_269], %403 {strides = array<i32>} : memref<112x32xf32, #tpu.memory_space<vmem>>, vector<8x32xf32>,
      %c128_270 = arith.constant 128 : index
      %c0_271 = arith.constant 0 : index
      %405 = tpu.strided_load %arg15[%c128_270, %c0_271] {strides = array<i32: 2, 1>} : memref<256x32xf32, #tpu.memory_space<vmem>>, vector<8x32xf32>
      %c129_272 = arith.constant 129 : index
      %c0_273 = arith.constant 0 : index
      %406 = tpu.strided_load %arg15[%c129_272, %c0_273] {strides = array<i32: 2, 1>} : memref<256x32xf32, #tpu.memory_space<vmem>>, vector<8x32xf32>
      %c144 = arith.constant 144 : index
      %c0_274 = arith.constant 0 : index
      %407 = tpu.strided_load %arg15[%c144, %c0_274] {strides = array<i32: 2, 1>} : memref<256x32xf32, #tpu.memory_space<vmem>>, vector<8x32xf32>
      %c145 = arith.constant 145 : index
      %c0_275 = arith.constant 0 : index
      %408 = tpu.strided_load %arg15[%c145, %c0_275] {strides = array<i32: 2, 1>} : memref<256x32xf32, #tpu.memory_space<vmem>>, vector<8x32xf32>
      %409 = arith.maximumf %405, %406 : vector<8x32xf32>
      %410 = arith.maximumf %407, %408 : vector<8x32xf32>
      %411 = arith.maximumf %409, %410 : vector<8x32xf32>
      %c56_276 = arith.constant 56 : index
      %c0_277 = arith.constant 0 : index
      %412 = vector.load %arg16[%c56_276, %c0_277] : memref<112x32xf32, #tpu.memory_space<vmem>>, vector<8x32xf32>
      tpu.vector_store %arg16[%c56_276, %c0_277], %411 {strides = array<i32>} : memref<112x32xf32, #tpu.memory_space<vmem>>, vector<8x32xf32>,
      %c160_278 = arith.constant 160 : index
      %c0_279 = arith.constant 0 : index
      %413 = tpu.strided_load %arg15[%c160_278, %c0_279] {strides = array<i32: 2, 1>} : memref<256x32xf32, #tpu.memory_space<vmem>>, vector<8x32xf32>
      %c161_280 = arith.constant 161 : index
      %c0_281 = arith.constant 0 : index
      %414 = tpu.strided_load %arg15[%c161_280, %c0_281] {strides = array<i32: 2, 1>} : memref<256x32xf32, #tpu.memory_space<vmem>>, vector<8x32xf32>
      %c176 = arith.constant 176 : index
      %c0_282 = arith.constant 0 : index
      %415 = tpu.strided_load %arg15[%c176, %c0_282] {strides = array<i32: 2, 1>} : memref<256x32xf32, #tpu.memory_space<vmem>>, vector<8x32xf32>
      %c177 = arith.constant 177 : index
      %c0_283 = arith.constant 0 : index
      %416 = tpu.strided_load %arg15[%c177, %c0_283] {strides = array<i32: 2, 1>} : memref<256x32xf32, #tpu.memory_space<vmem>>, vector<8x32xf32>
      %417 = arith.maximumf %413, %414 : vector<8x32xf32>
      %418 = arith.maximumf %415, %416 : vector<8x32xf32>
      %419 = arith.maximumf %417, %418 : vector<8x32xf32>
      %c64_284 = arith.constant 64 : index
      %c0_285 = arith.constant 0 : index
      %420 = vector.load %arg16[%c64_284, %c0_285] : memref<112x32xf32, #tpu.memory_space<vmem>>, vector<8x32xf32>
      tpu.vector_store %arg16[%c64_284, %c0_285], %419 {strides = array<i32>} : memref<112x32xf32, #tpu.memory_space<vmem>>, vector<8x32xf32>,
      %c192_286 = arith.constant 192 : index
      %c0_287 = arith.constant 0 : index
      %421 = tpu.strided_load %arg15[%c192_286, %c0_287] {strides = array<i32: 2, 1>} : memref<256x32xf32, #tpu.memory_space<vmem>>, vector<8x32xf32>
      %c193_288 = arith.constant 193 : index
      %c0_289 = arith.constant 0 : index
      %422 = tpu.strided_load %arg15[%c193_288, %c0_289] {strides = array<i32: 2, 1>} : memref<256x32xf32, #tpu.memory_space<vmem>>, vector<8x32xf32>
      %c208 = arith.constant 208 : index
      %c0_290 = arith.constant 0 : index
      %423 = tpu.strided_load %arg15[%c208, %c0_290] {strides = array<i32: 2, 1>} : memref<256x32xf32, #tpu.memory_space<vmem>>, vector<8x32xf32>
      %c209 = arith.constant 209 : index
      %c0_291 = arith.constant 0 : index
      %424 = tpu.strided_load %arg15[%c209, %c0_291] {strides = array<i32: 2, 1>} : memref<256x32xf32, #tpu.memory_space<vmem>>, vector<8x32xf32>
      %425 = arith.maximumf %421, %422 : vector<8x32xf32>
      %426 = arith.maximumf %423, %424 : vector<8x32xf32>
      %427 = arith.maximumf %425, %426 : vector<8x32xf32>
      %c72_292 = arith.constant 72 : index
      %c0_293 = arith.constant 0 : index
      %428 = vector.load %arg16[%c72_292, %c0_293] : memref<112x32xf32, #tpu.memory_space<vmem>>, vector<8x32xf32>
      tpu.vector_store %arg16[%c72_292, %c0_293], %427 {strides = array<i32>} : memref<112x32xf32, #tpu.memory_space<vmem>>, vector<8x32xf32>,
      %c224_294 = arith.constant 224 : index
      %c0_295 = arith.constant 0 : index
      %429 = tpu.strided_load %arg15[%c224_294, %c0_295] {strides = array<i32: 2, 1>} : memref<256x32xf32, #tpu.memory_space<vmem>>, vector<8x32xf32>
      %c225_296 = arith.constant 225 : index
      %c0_297 = arith.constant 0 : index
      %430 = tpu.strided_load %arg15[%c225_296, %c0_297] {strides = array<i32: 2, 1>} : memref<256x32xf32, #tpu.memory_space<vmem>>, vector<8x32xf32>
      %c240 = arith.constant 240 : index
      %c0_298 = arith.constant 0 : index
      %431 = tpu.strided_load %arg15[%c240, %c0_298] {strides = array<i32: 2, 1>} : memref<256x32xf32, #tpu.memory_space<vmem>>, vector<8x32xf32>
      %c241 = arith.constant 241 : index
      %c0_299 = arith.constant 0 : index
      %432 = tpu.strided_load %arg15[%c241, %c0_299] {strides = array<i32: 2, 1>} : memref<256x32xf32, #tpu.memory_space<vmem>>, vector<8x32xf32>
      %433 = arith.maximumf %429, %430 : vector<8x32xf32>
      %434 = arith.maximumf %431, %432 : vector<8x32xf32>
      %435 = arith.maximumf %433, %434 : vector<8x32xf32>
      %c80_300 = arith.constant 80 : index
      %c0_301 = arith.constant 0 : index
      %436 = vector.load %arg16[%c80_300, %c0_301] : memref<112x32xf32, #tpu.memory_space<vmem>>, vector<8x32xf32>
      tpu.vector_store %arg16[%c80_300, %c0_301], %435 {strides = array<i32>} : memref<112x32xf32, #tpu.memory_space<vmem>>, vector<8x32xf32>,
      %437 = tpu.iota {dimensions = array<i32: 0>} : vector<64x1xi32>
      %c7_i32 = arith.constant 7 : i32
      %438 = vector.broadcast %c7_i32 : i32 to vector<64x1xi32>
      %439 = arith.andi %437, %438 : vector<64x1xi32>
      %cst_302 = arith.constant 0.000000e+00 : f32
      %440 = vector.broadcast %cst_302 : f32 to vector<64x64xf32>
      %c6_303 = arith.constant 6 : index
      %c0_304 = arith.constant 0 : index
      %441 = vector.load %arg16[%c6_303, %c0_304] : memref<112x32xf32, #tpu.memory_space<vmem>>, vector<96x32xf32>
      %442 = arith.truncf %441 : vector<96x32xf32> to vector<96x32xbf16>
      %443 = vector.extract_strided_slice %442 {offsets = [0, 0], sizes = [64, 32], strides = [1, 1]} : vector<96x32xbf16> to vector<64x32xbf16>
      %444 = vector.extract_strided_slice %442 {offsets = [8, 0], sizes = [64, 32], strides = [1, 1]} : vector<96x32xbf16> to vector<64x32xbf16>
      %445 = vector.extract_strided_slice %442 {offsets = [16, 0], sizes = [64, 32], strides = [1, 1]} : vector<96x32xbf16> to vector<64x32xbf16>
      %446 = vector.extract_strided_slice %442 {offsets = [24, 0], sizes = [64, 32], strides = [1, 1]} : vector<96x32xbf16> to vector<64x32xbf16>
      %447 = vector.extract_strided_slice %442 {offsets = [32, 0], sizes = [64, 32], strides = [1, 1]} : vector<96x32xbf16> to vector<64x32xbf16>
      %448 = tpu.concatenate %443, %444, %445, %446, %447 in 1 : vector<64x32xbf16>, vector<64x32xbf16>, vector<64x32xbf16>, vector<64x32xbf16>, vector<64x32xbf16> -> vector<64x160xbf16>
      %c0_305 = arith.constant 0 : index
      %c0_306 = arith.constant 0 : index
      %c0_307 = arith.constant 0 : index
      %449 = vector.load %arg6[%c0_305, %c0_306, %c0_307] : memref<5x160x64xbf16, #tpu.memory_space<vmem>>, vector<1x160x64xbf16>
      %450 = vector.shape_cast %449 : vector<1x160x64xbf16> to vector<160x64xbf16>
      %cst_308 = arith.constant dense<0.000000e+00> : vector<64x64xf32>
      %451 = tpu.matmul %448, %450, %cst_308 {dimension_numbers = #tpu.dot_dimension_numbers<[1], [0], [0], [1], [0, 0, 1, 1], [], []>} : vector<64x160xbf16>, vector<160x64xbf16>, vector<64x64xf32> -> vector<64x64xf32>
      %c-2_i32_309 = arith.constant -2 : i32
      %452 = vector.broadcast %c-2_i32_309 : i32 to vector<64x1xi32>
      %453 = arith.addi %439, %452 : vector<64x1xi32>
      %c0_i32_310 = arith.constant 0 : i32
      %454 = vector.broadcast %c0_i32_310 : i32 to vector<64x1xi32>
      %455 = arith.cmpi sge, %453, %454 : vector<64x1xi32>
      %c-2_i32_311 = arith.constant -2 : i32
      %456 = vector.broadcast %c-2_i32_311 : i32 to vector<64x1xi32>
      %457 = arith.addi %439, %456 : vector<64x1xi32>
      %c8_i32_312 = arith.constant 8 : i32
      %458 = vector.broadcast %c8_i32_312 : i32 to vector<64x1xi32>
      %459 = arith.cmpi slt, %457, %458 : vector<64x1xi32>
      %460 = arith.andi %455, %459 : vector<64x1xi1>
      %461 = arith.extui %460 : vector<64x1xi1> to vector<64x1xi32>
      %462 = arith.sitofp %461 : vector<64x1xi32> to vector<64x1xf32>
      %463 = vector.broadcast %462 : vector<64x1xf32> to vector<64x64xf32>
      %464 = arith.mulf %451, %463 : vector<64x64xf32>
      %465 = arith.addf %440, %464 : vector<64x64xf32>
      %c7_313 = arith.constant 7 : index
      %c0_314 = arith.constant 0 : index
      %466 = vector.load %arg16[%c7_313, %c0_314] : memref<112x32xf32, #tpu.memory_space<vmem>>, vector<96x32xf32>
      %467 = arith.truncf %466 : vector<96x32xf32> to vector<96x32xbf16>
      %468 = vector.extract_strided_slice %467 {offsets = [0, 0], sizes = [64, 32], strides = [1, 1]} : vector<96x32xbf16> to vector<64x32xbf16>
      %469 = vector.extract_strided_slice %467 {offsets = [8, 0], sizes = [64, 32], strides = [1, 1]} : vector<96x32xbf16> to vector<64x32xbf16>
      %470 = vector.extract_strided_slice %467 {offsets = [16, 0], sizes = [64, 32], strides = [1, 1]} : vector<96x32xbf16> to vector<64x32xbf16>
      %471 = vector.extract_strided_slice %467 {offsets = [24, 0], sizes = [64, 32], strides = [1, 1]} : vector<96x32xbf16> to vector<64x32xbf16>
      %472 = vector.extract_strided_slice %467 {offsets = [32, 0], sizes = [64, 32], strides = [1, 1]} : vector<96x32xbf16> to vector<64x32xbf16>
      %473 = tpu.concatenate %468, %469, %470, %471, %472 in 1 : vector<64x32xbf16>, vector<64x32xbf16>, vector<64x32xbf16>, vector<64x32xbf16>, vector<64x32xbf16> -> vector<64x160xbf16>
      %c1_315 = arith.constant 1 : index
      %c0_316 = arith.constant 0 : index
      %c0_317 = arith.constant 0 : index
      %474 = vector.load %arg6[%c1_315, %c0_316, %c0_317] : memref<5x160x64xbf16, #tpu.memory_space<vmem>>, vector<1x160x64xbf16>
      %475 = vector.shape_cast %474 : vector<1x160x64xbf16> to vector<160x64xbf16>
      %cst_318 = arith.constant dense<0.000000e+00> : vector<64x64xf32>
      %476 = tpu.matmul %473, %475, %cst_318 {dimension_numbers = #tpu.dot_dimension_numbers<[1], [0], [0], [1], [0, 0, 1, 1], [], []>} : vector<64x160xbf16>, vector<160x64xbf16>, vector<64x64xf32> -> vector<64x64xf32>
      %c-1_i32_319 = arith.constant -1 : i32
      %477 = vector.broadcast %c-1_i32_319 : i32 to vector<64x1xi32>
      %478 = arith.addi %439, %477 : vector<64x1xi32>
      %c0_i32_320 = arith.constant 0 : i32
      %479 = vector.broadcast %c0_i32_320 : i32 to vector<64x1xi32>
      %480 = arith.cmpi sge, %478, %479 : vector<64x1xi32>
      %c-1_i32_321 = arith.constant -1 : i32
      %481 = vector.broadcast %c-1_i32_321 : i32 to vector<64x1xi32>
      %482 = arith.addi %439, %481 : vector<64x1xi32>
      %c8_i32_322 = arith.constant 8 : i32
      %483 = vector.broadcast %c8_i32_322 : i32 to vector<64x1xi32>
      %484 = arith.cmpi slt, %482, %483 : vector<64x1xi32>
      %485 = arith.andi %480, %484 : vector<64x1xi1>
      %486 = arith.extui %485 : vector<64x1xi1> to vector<64x1xi32>
      %487 = arith.sitofp %486 : vector<64x1xi32> to vector<64x1xf32>
      %488 = vector.broadcast %487 : vector<64x1xf32> to vector<64x64xf32>
      %489 = arith.mulf %476, %488 : vector<64x64xf32>
      %490 = arith.addf %465, %489 : vector<64x64xf32>
      %c8_323 = arith.constant 8 : index
      %c0_324 = arith.constant 0 : index
      %491 = vector.load %arg16[%c8_323, %c0_324] : memref<112x32xf32, #tpu.memory_space<vmem>>, vector<96x32xf32>
      %492 = arith.truncf %491 : vector<96x32xf32> to vector<96x32xbf16>
      %493 = vector.extract_strided_slice %492 {offsets = [0, 0], sizes = [64, 32], strides = [1, 1]} : vector<96x32xbf16> to vector<64x32xbf16>
      %494 = vector.extract_strided_slice %492 {offsets = [8, 0], sizes = [64, 32], strides = [1, 1]} : vector<96x32xbf16> to vector<64x32xbf16>
      %495 = vector.extract_strided_slice %492 {offsets = [16, 0], sizes = [64, 32], strides = [1, 1]} : vector<96x32xbf16> to vector<64x32xbf16>
      %496 = vector.extract_strided_slice %492 {offsets = [24, 0], sizes = [64, 32], strides = [1, 1]} : vector<96x32xbf16> to vector<64x32xbf16>
      %497 = vector.extract_strided_slice %492 {offsets = [32, 0], sizes = [64, 32], strides = [1, 1]} : vector<96x32xbf16> to vector<64x32xbf16>
      %498 = tpu.concatenate %493, %494, %495, %496, %497 in 1 : vector<64x32xbf16>, vector<64x32xbf16>, vector<64x32xbf16>, vector<64x32xbf16>, vector<64x32xbf16> -> vector<64x160xbf16>
      %c2_325 = arith.constant 2 : index
      %c0_326 = arith.constant 0 : index
      %c0_327 = arith.constant 0 : index
      %499 = vector.load %arg6[%c2_325, %c0_326, %c0_327] : memref<5x160x64xbf16, #tpu.memory_space<vmem>>, vector<1x160x64xbf16>
      %500 = vector.shape_cast %499 : vector<1x160x64xbf16> to vector<160x64xbf16>
      %cst_328 = arith.constant dense<0.000000e+00> : vector<64x64xf32>
      %501 = tpu.matmul %498, %500, %cst_328 {dimension_numbers = #tpu.dot_dimension_numbers<[1], [0], [0], [1], [0, 0, 1, 1], [], []>} : vector<64x160xbf16>, vector<160x64xbf16>, vector<64x64xf32> -> vector<64x64xf32>
      %502 = arith.addf %490, %501 : vector<64x64xf32>
      %c9_329 = arith.constant 9 : index
      %c0_330 = arith.constant 0 : index
      %503 = vector.load %arg16[%c9_329, %c0_330] : memref<112x32xf32, #tpu.memory_space<vmem>>, vector<96x32xf32>
      %504 = arith.truncf %503 : vector<96x32xf32> to vector<96x32xbf16>
      %505 = vector.extract_strided_slice %504 {offsets = [0, 0], sizes = [64, 32], strides = [1, 1]} : vector<96x32xbf16> to vector<64x32xbf16>
      %506 = vector.extract_strided_slice %504 {offsets = [8, 0], sizes = [64, 32], strides = [1, 1]} : vector<96x32xbf16> to vector<64x32xbf16>
      %507 = vector.extract_strided_slice %504 {offsets = [16, 0], sizes = [64, 32], strides = [1, 1]} : vector<96x32xbf16> to vector<64x32xbf16>
      %508 = vector.extract_strided_slice %504 {offsets = [24, 0], sizes = [64, 32], strides = [1, 1]} : vector<96x32xbf16> to vector<64x32xbf16>
      %509 = vector.extract_strided_slice %504 {offsets = [32, 0], sizes = [64, 32], strides = [1, 1]} : vector<96x32xbf16> to vector<64x32xbf16>
      %510 = tpu.concatenate %505, %506, %507, %508, %509 in 1 : vector<64x32xbf16>, vector<64x32xbf16>, vector<64x32xbf16>, vector<64x32xbf16>, vector<64x32xbf16> -> vector<64x160xbf16>
      %c3_331 = arith.constant 3 : index
      %c0_332 = arith.constant 0 : index
      %c0_333 = arith.constant 0 : index
      %511 = vector.load %arg6[%c3_331, %c0_332, %c0_333] : memref<5x160x64xbf16, #tpu.memory_space<vmem>>, vector<1x160x64xbf16>
      %512 = vector.shape_cast %511 : vector<1x160x64xbf16> to vector<160x64xbf16>
      %cst_334 = arith.constant dense<0.000000e+00> : vector<64x64xf32>
      %513 = tpu.matmul %510, %512, %cst_334 {dimension_numbers = #tpu.dot_dimension_numbers<[1], [0], [0], [1], [0, 0, 1, 1], [], []>} : vector<64x160xbf16>, vector<160x64xbf16>, vector<64x64xf32> -> vector<64x64xf32>
      %c1_i32_335 = arith.constant 1 : i32
      %514 = vector.broadcast %c1_i32_335 : i32 to vector<64x1xi32>
      %515 = arith.addi %439, %514 : vector<64x1xi32>
      %c0_i32_336 = arith.constant 0 : i32
      %516 = vector.broadcast %c0_i32_336 : i32 to vector<64x1xi32>
      %517 = arith.cmpi sge, %515, %516 : vector<64x1xi32>
      %c1_i32_337 = arith.constant 1 : i32
      %518 = vector.broadcast %c1_i32_337 : i32 to vector<64x1xi32>
      %519 = arith.addi %439, %518 : vector<64x1xi32>
      %c8_i32_338 = arith.constant 8 : i32
      %520 = vector.broadcast %c8_i32_338 : i32 to vector<64x1xi32>
      %521 = arith.cmpi slt, %519, %520 : vector<64x1xi32>
      %522 = arith.andi %517, %521 : vector<64x1xi1>
      %523 = arith.extui %522 : vector<64x1xi1> to vector<64x1xi32>
      %524 = arith.sitofp %523 : vector<64x1xi32> to vector<64x1xf32>
      %525 = vector.broadcast %524 : vector<64x1xf32> to vector<64x64xf32>
      %526 = arith.mulf %513, %525 : vector<64x64xf32>
      %527 = arith.addf %502, %526 : vector<64x64xf32>
      %c10_339 = arith.constant 10 : index
      %c0_340 = arith.constant 0 : index
      %528 = vector.load %arg16[%c10_339, %c0_340] : memref<112x32xf32, #tpu.memory_space<vmem>>, vector<96x32xf32>
      %529 = arith.truncf %528 : vector<96x32xf32> to vector<96x32xbf16>
      %530 = vector.extract_strided_slice %529 {offsets = [0, 0], sizes = [64, 32], strides = [1, 1]} : vector<96x32xbf16> to vector<64x32xbf16>
      %531 = vector.extract_strided_slice %529 {offsets = [8, 0], sizes = [64, 32], strides = [1, 1]} : vector<96x32xbf16> to vector<64x32xbf16>
      %532 = vector.extract_strided_slice %529 {offsets = [16, 0], sizes = [64, 32], strides = [1, 1]} : vector<96x32xbf16> to vector<64x32xbf16>
      %533 = vector.extract_strided_slice %529 {offsets = [24, 0], sizes = [64, 32], strides = [1, 1]} : vector<96x32xbf16> to vector<64x32xbf16>
      %534 = vector.extract_strided_slice %529 {offsets = [32, 0], sizes = [64, 32], strides = [1, 1]} : vector<96x32xbf16> to vector<64x32xbf16>
      %535 = tpu.concatenate %530, %531, %532, %533, %534 in 1 : vector<64x32xbf16>, vector<64x32xbf16>, vector<64x32xbf16>, vector<64x32xbf16>, vector<64x32xbf16> -> vector<64x160xbf16>
      %c4_341 = arith.constant 4 : index
      %c0_342 = arith.constant 0 : index
      %c0_343 = arith.constant 0 : index
      %536 = vector.load %arg6[%c4_341, %c0_342, %c0_343] : memref<5x160x64xbf16, #tpu.memory_space<vmem>>, vector<1x160x64xbf16>
      %537 = vector.shape_cast %536 : vector<1x160x64xbf16> to vector<160x64xbf16>
      %cst_344 = arith.constant dense<0.000000e+00> : vector<64x64xf32>
      %538 = tpu.matmul %535, %537, %cst_344 {dimension_numbers = #tpu.dot_dimension_numbers<[1], [0], [0], [1], [0, 0, 1, 1], [], []>} : vector<64x160xbf16>, vector<160x64xbf16>, vector<64x64xf32> -> vector<64x64xf32>
      %c2_i32_345 = arith.constant 2 : i32
      %539 = vector.broadcast %c2_i32_345 : i32 to vector<64x1xi32>
      %540 = arith.addi %439, %539 : vector<64x1xi32>
      %c0_i32_346 = arith.constant 0 : i32
      %541 = vector.broadcast %c0_i32_346 : i32 to vector<64x1xi32>
      %542 = arith.cmpi sge, %540, %541 : vector<64x1xi32>
      %c2_i32_347 = arith.constant 2 : i32
      %543 = vector.broadcast %c2_i32_347 : i32 to vector<64x1xi32>
      %544 = arith.addi %439, %543 : vector<64x1xi32>
      %c8_i32_348 = arith.constant 8 : i32
      %545 = vector.broadcast %c8_i32_348 : i32 to vector<64x1xi32>
      %546 = arith.cmpi slt, %544, %545 : vector<64x1xi32>
      %547 = arith.andi %542, %546 : vector<64x1xi1>
      %548 = arith.extui %547 : vector<64x1xi1> to vector<64x1xi32>
      %549 = arith.sitofp %548 : vector<64x1xi32> to vector<64x1xf32>
      %550 = vector.broadcast %549 : vector<64x1xf32> to vector<64x64xf32>
      %551 = arith.mulf %538, %550 : vector<64x64xf32>
      %552 = arith.addf %527, %551 : vector<64x64xf32>
      %c0_349 = arith.constant 0 : index
      %c0_350 = arith.constant 0 : index
      %553 = vector.load %arg7[%c0_349, %c0_350] : memref<1x64xf32, #tpu.memory_space<vmem>>, vector<1x64xf32>
      %554 = vector.broadcast %553 : vector<1x64xf32> to vector<64x64xf32>
      %555 = arith.addf %552, %554 : vector<64x64xf32>
      %c0_351 = arith.constant 0 : index
      %c0_352 = arith.constant 0 : index
      %556 = vector.load %arg17[%c0_351, %c0_352] : memref<64x64xf32, #tpu.memory_space<vmem>>, vector<64x64xf32>
      tpu.vector_store %arg17[%c0_351, %c0_352], %555 {strides = array<i32>} : memref<64x64xf32, #tpu.memory_space<vmem>>, vector<64x64xf32>,
      %c0_353 = arith.constant 0 : index
      %c0_354 = arith.constant 0 : index
      %557 = tpu.strided_load %arg17[%c0_353, %c0_354] {strides = array<i32: 2, 1>} : memref<64x64xf32, #tpu.memory_space<vmem>>, vector<4x64xf32>
      %c1_355 = arith.constant 1 : index
      %c0_356 = arith.constant 0 : index
      %558 = tpu.strided_load %arg17[%c1_355, %c0_356] {strides = array<i32: 2, 1>} : memref<64x64xf32, #tpu.memory_space<vmem>>, vector<4x64xf32>
      %c8_357 = arith.constant 8 : index
      %c0_358 = arith.constant 0 : index
      %559 = tpu.strided_load %arg17[%c8_357, %c0_358] {strides = array<i32: 2, 1>} : memref<64x64xf32, #tpu.memory_space<vmem>>, vector<4x64xf32>
      %c9_359 = arith.constant 9 : index
      %c0_360 = arith.constant 0 : index
      %560 = tpu.strided_load %arg17[%c9_359, %c0_360] {strides = array<i32: 2, 1>} : memref<64x64xf32, #tpu.memory_space<vmem>>, vector<4x64xf32>
      %561 = arith.maximumf %557, %558 : vector<4x64xf32>
      %562 = arith.maximumf %559, %560 : vector<4x64xf32>
      %563 = arith.maximumf %561, %562 : vector<4x64xf32>
      %c16_i32_361 = arith.constant 16 : i32
      %564 = arith.muli %arg19, %c16_i32_361 : i32
      %c0_i32_362 = arith.constant 0 : i32
      %565 = arith.addi %564, %c0_i32_362 : i32
      %566 = arith.index_cast %565 : i32 to index
      %c0_363 = arith.constant 0 : index
      %567 = vector.load %arg18[%566, %c0_363] : memref<128x64xf32, #tpu.memory_space<vmem>>, vector<4x64xf32>
      tpu.vector_store %arg18[%566, %c0_363], %563 {strides = array<i32>} : memref<128x64xf32, #tpu.memory_space<vmem>>, vector<4x64xf32>,
      %c16_364 = arith.constant 16 : index
      %c0_365 = arith.constant 0 : index
      %568 = tpu.strided_load %arg17[%c16_364, %c0_365] {strides = array<i32: 2, 1>} : memref<64x64xf32, #tpu.memory_space<vmem>>, vector<4x64xf32>
      %c17_366 = arith.constant 17 : index
      %c0_367 = arith.constant 0 : index
      %569 = tpu.strided_load %arg17[%c17_366, %c0_367] {strides = array<i32: 2, 1>} : memref<64x64xf32, #tpu.memory_space<vmem>>, vector<4x64xf32>
      %c24_368 = arith.constant 24 : index
      %c0_369 = arith.constant 0 : index
      %570 = tpu.strided_load %arg17[%c24_368, %c0_369] {strides = array<i32: 2, 1>} : memref<64x64xf32, #tpu.memory_space<vmem>>, vector<4x64xf32>
      %c25 = arith.constant 25 : index
      %c0_370 = arith.constant 0 : index
      %571 = tpu.strided_load %arg17[%c25, %c0_370] {strides = array<i32: 2, 1>} : memref<64x64xf32, #tpu.memory_space<vmem>>, vector<4x64xf32>
      %572 = arith.maximumf %568, %569 : vector<4x64xf32>
      %573 = arith.maximumf %570, %571 : vector<4x64xf32>
      %574 = arith.maximumf %572, %573 : vector<4x64xf32>
      %c16_i32_371 = arith.constant 16 : i32
      %575 = arith.muli %arg19, %c16_i32_371 : i32
      %c4_i32 = arith.constant 4 : i32
      %576 = arith.addi %575, %c4_i32 : i32
      %577 = arith.index_cast %576 : i32 to index
      %c0_372 = arith.constant 0 : index
      %578 = vector.load %arg18[%577, %c0_372] : memref<128x64xf32, #tpu.memory_space<vmem>>, vector<4x64xf32>
      tpu.vector_store %arg18[%577, %c0_372], %574 {strides = array<i32>} : memref<128x64xf32, #tpu.memory_space<vmem>>, vector<4x64xf32>,
      %c32_373 = arith.constant 32 : index
      %c0_374 = arith.constant 0 : index
      %579 = tpu.strided_load %arg17[%c32_373, %c0_374] {strides = array<i32: 2, 1>} : memref<64x64xf32, #tpu.memory_space<vmem>>, vector<4x64xf32>
      %c33_375 = arith.constant 33 : index
      %c0_376 = arith.constant 0 : index
      %580 = tpu.strided_load %arg17[%c33_375, %c0_376] {strides = array<i32: 2, 1>} : memref<64x64xf32, #tpu.memory_space<vmem>>, vector<4x64xf32>
      %c40_377 = arith.constant 40 : index
      %c0_378 = arith.constant 0 : index
      %581 = tpu.strided_load %arg17[%c40_377, %c0_378] {strides = array<i32: 2, 1>} : memref<64x64xf32, #tpu.memory_space<vmem>>, vector<4x64xf32>
      %c41 = arith.constant 41 : index
      %c0_379 = arith.constant 0 : index
      %582 = tpu.strided_load %arg17[%c41, %c0_379] {strides = array<i32: 2, 1>} : memref<64x64xf32, #tpu.memory_space<vmem>>, vector<4x64xf32>
      %583 = arith.maximumf %579, %580 : vector<4x64xf32>
      %584 = arith.maximumf %581, %582 : vector<4x64xf32>
      %585 = arith.maximumf %583, %584 : vector<4x64xf32>
      %c16_i32_380 = arith.constant 16 : i32
      %586 = arith.muli %arg19, %c16_i32_380 : i32
      %c8_i32_381 = arith.constant 8 : i32
      %587 = arith.addi %586, %c8_i32_381 : i32
      %588 = arith.index_cast %587 : i32 to index
      %c0_382 = arith.constant 0 : index
      %589 = vector.load %arg18[%588, %c0_382] : memref<128x64xf32, #tpu.memory_space<vmem>>, vector<4x64xf32>
      tpu.vector_store %arg18[%588, %c0_382], %585 {strides = array<i32>} : memref<128x64xf32, #tpu.memory_space<vmem>>, vector<4x64xf32>,
      %c48_383 = arith.constant 48 : index
      %c0_384 = arith.constant 0 : index
      %590 = tpu.strided_load %arg17[%c48_383, %c0_384] {strides = array<i32: 2, 1>} : memref<64x64xf32, #tpu.memory_space<vmem>>, vector<4x64xf32>
      %c49_385 = arith.constant 49 : index
      %c0_386 = arith.constant 0 : index
      %591 = tpu.strided_load %arg17[%c49_385, %c0_386] {strides = array<i32: 2, 1>} : memref<64x64xf32, #tpu.memory_space<vmem>>, vector<4x64xf32>
      %c56_387 = arith.constant 56 : index
      %c0_388 = arith.constant 0 : index
      %592 = tpu.strided_load %arg17[%c56_387, %c0_388] {strides = array<i32: 2, 1>} : memref<64x64xf32, #tpu.memory_space<vmem>>, vector<4x64xf32>
      %c57 = arith.constant 57 : index
      %c0_389 = arith.constant 0 : index
      %593 = tpu.strided_load %arg17[%c57, %c0_389] {strides = array<i32: 2, 1>} : memref<64x64xf32, #tpu.memory_space<vmem>>, vector<4x64xf32>
      %594 = arith.maximumf %590, %591 : vector<4x64xf32>
      %595 = arith.maximumf %592, %593 : vector<4x64xf32>
      %596 = arith.maximumf %594, %595 : vector<4x64xf32>
      %c16_i32_390 = arith.constant 16 : i32
      %597 = arith.muli %arg19, %c16_i32_390 : i32
      %c12_i32 = arith.constant 12 : i32
      %598 = arith.addi %597, %c12_i32 : i32
      %599 = arith.index_cast %598 : i32 to index
      %c0_391 = arith.constant 0 : index
      %600 = vector.load %arg18[%599, %c0_391] : memref<128x64xf32, #tpu.memory_space<vmem>>, vector<4x64xf32>
      tpu.vector_store %arg18[%599, %c0_391], %596 {strides = array<i32>} : memref<128x64xf32, #tpu.memory_space<vmem>>, vector<4x64xf32>,
    }
    %c8_i32_8 = arith.constant 8 : i32
    %cst_9 = arith.constant 0.000000e+00 : f32
    %9 = vector.broadcast %cst_9 : f32 to vector<8x64xf32>
    %c0_10 = arith.constant 0 : index
    %c0_11 = arith.constant 0 : index
    %10 = tpu.strided_load %arg18[%c0_10, %c0_11] {strides = array<i32: 16, 1>} : memref<128x64xf32, #tpu.memory_space<vmem>>, vector<8x64xf32>
    %11 = arith.truncf %10 : vector<8x64xf32> to vector<8x64xbf16>
    %c0_12 = arith.constant 0 : index
    %c0_13 = arith.constant 0 : index
    %c0_14 = arith.constant 0 : index
    %12 = vector.load %arg8[%c0_12, %c0_13, %c0_14] : memref<16x64x64xbf16, #tpu.memory_space<vmem>>, vector<1x64x64xbf16>
    %13 = vector.shape_cast %12 : vector<1x64x64xbf16> to vector<64x64xbf16>
    %cst_15 = arith.constant dense<0.000000e+00> : vector<8x64xf32>
    %14 = tpu.matmul %11, %13, %cst_15 {dimension_numbers = #tpu.dot_dimension_numbers<[1], [0], [0], [1], [0, 0, 1, 1], [], []>} : vector<8x64xbf16>, vector<64x64xbf16>, vector<8x64xf32> -> vector<8x64xf32>
    %15 = arith.addf %9, %14 : vector<8x64xf32>
    %c1 = arith.constant 1 : index
    %c0_16 = arith.constant 0 : index
    %16 = tpu.strided_load %arg18[%c1, %c0_16] {strides = array<i32: 16, 1>} : memref<128x64xf32, #tpu.memory_space<vmem>>, vector<8x64xf32>
    %17 = arith.truncf %16 : vector<8x64xf32> to vector<8x64xbf16>
    %c1_17 = arith.constant 1 : index
    %c0_18 = arith.constant 0 : index
    %c0_19 = arith.constant 0 : index
    %18 = vector.load %arg8[%c1_17, %c0_18, %c0_19] : memref<16x64x64xbf16, #tpu.memory_space<vmem>>, vector<1x64x64xbf16>
    %19 = vector.shape_cast %18 : vector<1x64x64xbf16> to vector<64x64xbf16>
    %cst_20 = arith.constant dense<0.000000e+00> : vector<8x64xf32>
    %20 = tpu.matmul %17, %19, %cst_20 {dimension_numbers = #tpu.dot_dimension_numbers<[1], [0], [0], [1], [0, 0, 1, 1], [], []>} : vector<8x64xbf16>, vector<64x64xbf16>, vector<8x64xf32> -> vector<8x64xf32>
    %21 = arith.addf %15, %20 : vector<8x64xf32>
    %c2 = arith.constant 2 : index
    %c0_21 = arith.constant 0 : index
    %22 = tpu.strided_load %arg18[%c2, %c0_21] {strides = array<i32: 16, 1>} : memref<128x64xf32, #tpu.memory_space<vmem>>, vector<8x64xf32>
    %23 = arith.truncf %22 : vector<8x64xf32> to vector<8x64xbf16>
    %c2_22 = arith.constant 2 : index
    %c0_23 = arith.constant 0 : index
    %c0_24 = arith.constant 0 : index
    %24 = vector.load %arg8[%c2_22, %c0_23, %c0_24] : memref<16x64x64xbf16, #tpu.memory_space<vmem>>, vector<1x64x64xbf16>
    %25 = vector.shape_cast %24 : vector<1x64x64xbf16> to vector<64x64xbf16>
    %cst_25 = arith.constant dense<0.000000e+00> : vector<8x64xf32>
    %26 = tpu.matmul %23, %25, %cst_25 {dimension_numbers = #tpu.dot_dimension_numbers<[1], [0], [0], [1], [0, 0, 1, 1], [], []>} : vector<8x64xbf16>, vector<64x64xbf16>, vector<8x64xf32> -> vector<8x64xf32>
    %27 = arith.addf %21, %26 : vector<8x64xf32>
    %c3 = arith.constant 3 : index
    %c0_26 = arith.constant 0 : index
    %28 = tpu.strided_load %arg18[%c3, %c0_26] {strides = array<i32: 16, 1>} : memref<128x64xf32, #tpu.memory_space<vmem>>, vector<8x64xf32>
    %29 = arith.truncf %28 : vector<8x64xf32> to vector<8x64xbf16>
    %c3_27 = arith.constant 3 : index
    %c0_28 = arith.constant 0 : index
    %c0_29 = arith.constant 0 : index
    %30 = vector.load %arg8[%c3_27, %c0_28, %c0_29] : memref<16x64x64xbf16, #tpu.memory_space<vmem>>, vector<1x64x64xbf16>
    %31 = vector.shape_cast %30 : vector<1x64x64xbf16> to vector<64x64xbf16>
    %cst_30 = arith.constant dense<0.000000e+00> : vector<8x64xf32>
    %32 = tpu.matmul %29, %31, %cst_30 {dimension_numbers = #tpu.dot_dimension_numbers<[1], [0], [0], [1], [0, 0, 1, 1], [], []>} : vector<8x64xbf16>, vector<64x64xbf16>, vector<8x64xf32> -> vector<8x64xf32>
    %33 = arith.addf %27, %32 : vector<8x64xf32>
    %c4 = arith.constant 4 : index
    %c0_31 = arith.constant 0 : index
    %34 = tpu.strided_load %arg18[%c4, %c0_31] {strides = array<i32: 16, 1>} : memref<128x64xf32, #tpu.memory_space<vmem>>, vector<8x64xf32>
    %35 = arith.truncf %34 : vector<8x64xf32> to vector<8x64xbf16>
    %c4_32 = arith.constant 4 : index
    %c0_33 = arith.constant 0 : index
    %c0_34 = arith.constant 0 : index
    %36 = vector.load %arg8[%c4_32, %c0_33, %c0_34] : memref<16x64x64xbf16, #tpu.memory_space<vmem>>, vector<1x64x64xbf16>
    %37 = vector.shape_cast %36 : vector<1x64x64xbf16> to vector<64x64xbf16>
    %cst_35 = arith.constant dense<0.000000e+00> : vector<8x64xf32>
    %38 = tpu.matmul %35, %37, %cst_35 {dimension_numbers = #tpu.dot_dimension_numbers<[1], [0], [0], [1], [0, 0, 1, 1], [], []>} : vector<8x64xbf16>, vector<64x64xbf16>, vector<8x64xf32> -> vector<8x64xf32>
    %39 = arith.addf %33, %38 : vector<8x64xf32>
    %c5 = arith.constant 5 : index
    %c0_36 = arith.constant 0 : index
    %40 = tpu.strided_load %arg18[%c5, %c0_36] {strides = array<i32: 16, 1>} : memref<128x64xf32, #tpu.memory_space<vmem>>, vector<8x64xf32>
    %41 = arith.truncf %40 : vector<8x64xf32> to vector<8x64xbf16>
    %c5_37 = arith.constant 5 : index
    %c0_38 = arith.constant 0 : index
    %c0_39 = arith.constant 0 : index
    %42 = vector.load %arg8[%c5_37, %c0_38, %c0_39] : memref<16x64x64xbf16, #tpu.memory_space<vmem>>, vector<1x64x64xbf16>
    %43 = vector.shape_cast %42 : vector<1x64x64xbf16> to vector<64x64xbf16>
    %cst_40 = arith.constant dense<0.000000e+00> : vector<8x64xf32>
    %44 = tpu.matmul %41, %43, %cst_40 {dimension_numbers = #tpu.dot_dimension_numbers<[1], [0], [0], [1], [0, 0, 1, 1], [], []>} : vector<8x64xbf16>, vector<64x64xbf16>, vector<8x64xf32> -> vector<8x64xf32>
    %45 = arith.addf %39, %44 : vector<8x64xf32>
    %c6 = arith.constant 6 : index
    %c0_41 = arith.constant 0 : index
    %46 = tpu.strided_load %arg18[%c6, %c0_41] {strides = array<i32: 16, 1>} : memref<128x64xf32, #tpu.memory_space<vmem>>, vector<8x64xf32>
    %47 = arith.truncf %46 : vector<8x64xf32> to vector<8x64xbf16>
    %c6_42 = arith.constant 6 : index
    %c0_43 = arith.constant 0 : index
    %c0_44 = arith.constant 0 : index
    %48 = vector.load %arg8[%c6_42, %c0_43, %c0_44] : memref<16x64x64xbf16, #tpu.memory_space<vmem>>, vector<1x64x64xbf16>
    %49 = vector.shape_cast %48 : vector<1x64x64xbf16> to vector<64x64xbf16>
    %cst_45 = arith.constant dense<0.000000e+00> : vector<8x64xf32>
    %50 = tpu.matmul %47, %49, %cst_45 {dimension_numbers = #tpu.dot_dimension_numbers<[1], [0], [0], [1], [0, 0, 1, 1], [], []>} : vector<8x64xbf16>, vector<64x64xbf16>, vector<8x64xf32> -> vector<8x64xf32>
    %51 = arith.addf %45, %50 : vector<8x64xf32>
    %c7 = arith.constant 7 : index
    %c0_46 = arith.constant 0 : index
    %52 = tpu.strided_load %arg18[%c7, %c0_46] {strides = array<i32: 16, 1>} : memref<128x64xf32, #tpu.memory_space<vmem>>, vector<8x64xf32>
    %53 = arith.truncf %52 : vector<8x64xf32> to vector<8x64xbf16>
    %c7_47 = arith.constant 7 : index
    %c0_48 = arith.constant 0 : index
    %c0_49 = arith.constant 0 : index
    %54 = vector.load %arg8[%c7_47, %c0_48, %c0_49] : memref<16x64x64xbf16, #tpu.memory_space<vmem>>, vector<1x64x64xbf16>
    %55 = vector.shape_cast %54 : vector<1x64x64xbf16> to vector<64x64xbf16>
    %cst_50 = arith.constant dense<0.000000e+00> : vector<8x64xf32>
    %56 = tpu.matmul %53, %55, %cst_50 {dimension_numbers = #tpu.dot_dimension_numbers<[1], [0], [0], [1], [0, 0, 1, 1], [], []>} : vector<8x64xbf16>, vector<64x64xbf16>, vector<8x64xf32> -> vector<8x64xf32>
    %57 = arith.addf %51, %56 : vector<8x64xf32>
    %c8 = arith.constant 8 : index
    %c0_51 = arith.constant 0 : index
    %58 = tpu.strided_load %arg18[%c8, %c0_51] {strides = array<i32: 16, 1>} : memref<128x64xf32, #tpu.memory_space<vmem>>, vector<8x64xf32>
    %59 = arith.truncf %58 : vector<8x64xf32> to vector<8x64xbf16>
    %c8_52 = arith.constant 8 : index
    %c0_53 = arith.constant 0 : index
    %c0_54 = arith.constant 0 : index
    %60 = vector.load %arg8[%c8_52, %c0_53, %c0_54] : memref<16x64x64xbf16, #tpu.memory_space<vmem>>, vector<1x64x64xbf16>
    %61 = vector.shape_cast %60 : vector<1x64x64xbf16> to vector<64x64xbf16>
    %cst_55 = arith.constant dense<0.000000e+00> : vector<8x64xf32>
    %62 = tpu.matmul %59, %61, %cst_55 {dimension_numbers = #tpu.dot_dimension_numbers<[1], [0], [0], [1], [0, 0, 1, 1], [], []>} : vector<8x64xbf16>, vector<64x64xbf16>, vector<8x64xf32> -> vector<8x64xf32>
    %63 = arith.addf %57, %62 : vector<8x64xf32>
    %c9 = arith.constant 9 : index
    %c0_56 = arith.constant 0 : index
    %64 = tpu.strided_load %arg18[%c9, %c0_56] {strides = array<i32: 16, 1>} : memref<128x64xf32, #tpu.memory_space<vmem>>, vector<8x64xf32>
    %65 = arith.truncf %64 : vector<8x64xf32> to vector<8x64xbf16>
    %c9_57 = arith.constant 9 : index
    %c0_58 = arith.constant 0 : index
    %c0_59 = arith.constant 0 : index
    %66 = vector.load %arg8[%c9_57, %c0_58, %c0_59] : memref<16x64x64xbf16, #tpu.memory_space<vmem>>, vector<1x64x64xbf16>
    %67 = vector.shape_cast %66 : vector<1x64x64xbf16> to vector<64x64xbf16>
    %cst_60 = arith.constant dense<0.000000e+00> : vector<8x64xf32>
    %68 = tpu.matmul %65, %67, %cst_60 {dimension_numbers = #tpu.dot_dimension_numbers<[1], [0], [0], [1], [0, 0, 1, 1], [], []>} : vector<8x64xbf16>, vector<64x64xbf16>, vector<8x64xf32> -> vector<8x64xf32>
    %69 = arith.addf %63, %68 : vector<8x64xf32>
    %c10 = arith.constant 10 : index
    %c0_61 = arith.constant 0 : index
    %70 = tpu.strided_load %arg18[%c10, %c0_61] {strides = array<i32: 16, 1>} : memref<128x64xf32, #tpu.memory_space<vmem>>, vector<8x64xf32>
    %71 = arith.truncf %70 : vector<8x64xf32> to vector<8x64xbf16>
    %c10_62 = arith.constant 10 : index
    %c0_63 = arith.constant 0 : index
    %c0_64 = arith.constant 0 : index
    %72 = vector.load %arg8[%c10_62, %c0_63, %c0_64] : memref<16x64x64xbf16, #tpu.memory_space<vmem>>, vector<1x64x64xbf16>
    %73 = vector.shape_cast %72 : vector<1x64x64xbf16> to vector<64x64xbf16>
    %cst_65 = arith.constant dense<0.000000e+00> : vector<8x64xf32>
    %74 = tpu.matmul %71, %73, %cst_65 {dimension_numbers = #tpu.dot_dimension_numbers<[1], [0], [0], [1], [0, 0, 1, 1], [], []>} : vector<8x64xbf16>, vector<64x64xbf16>, vector<8x64xf32> -> vector<8x64xf32>
    %75 = arith.addf %69, %74 : vector<8x64xf32>
    %c11 = arith.constant 11 : index
    %c0_66 = arith.constant 0 : index
    %76 = tpu.strided_load %arg18[%c11, %c0_66] {strides = array<i32: 16, 1>} : memref<128x64xf32, #tpu.memory_space<vmem>>, vector<8x64xf32>
    %77 = arith.truncf %76 : vector<8x64xf32> to vector<8x64xbf16>
    %c11_67 = arith.constant 11 : index
    %c0_68 = arith.constant 0 : index
    %c0_69 = arith.constant 0 : index
    %78 = vector.load %arg8[%c11_67, %c0_68, %c0_69] : memref<16x64x64xbf16, #tpu.memory_space<vmem>>, vector<1x64x64xbf16>
    %79 = vector.shape_cast %78 : vector<1x64x64xbf16> to vector<64x64xbf16>
    %cst_70 = arith.constant dense<0.000000e+00> : vector<8x64xf32>
    %80 = tpu.matmul %77, %79, %cst_70 {dimension_numbers = #tpu.dot_dimension_numbers<[1], [0], [0], [1], [0, 0, 1, 1], [], []>} : vector<8x64xbf16>, vector<64x64xbf16>, vector<8x64xf32> -> vector<8x64xf32>
    %81 = arith.addf %75, %80 : vector<8x64xf32>
    %c12 = arith.constant 12 : index
    %c0_71 = arith.constant 0 : index
    %82 = tpu.strided_load %arg18[%c12, %c0_71] {strides = array<i32: 16, 1>} : memref<128x64xf32, #tpu.memory_space<vmem>>, vector<8x64xf32>
    %83 = arith.truncf %82 : vector<8x64xf32> to vector<8x64xbf16>
    %c12_72 = arith.constant 12 : index
    %c0_73 = arith.constant 0 : index
    %c0_74 = arith.constant 0 : index
    %84 = vector.load %arg8[%c12_72, %c0_73, %c0_74] : memref<16x64x64xbf16, #tpu.memory_space<vmem>>, vector<1x64x64xbf16>
    %85 = vector.shape_cast %84 : vector<1x64x64xbf16> to vector<64x64xbf16>
    %cst_75 = arith.constant dense<0.000000e+00> : vector<8x64xf32>
    %86 = tpu.matmul %83, %85, %cst_75 {dimension_numbers = #tpu.dot_dimension_numbers<[1], [0], [0], [1], [0, 0, 1, 1], [], []>} : vector<8x64xbf16>, vector<64x64xbf16>, vector<8x64xf32> -> vector<8x64xf32>
    %87 = arith.addf %81, %86 : vector<8x64xf32>
    %c13 = arith.constant 13 : index
    %c0_76 = arith.constant 0 : index
    %88 = tpu.strided_load %arg18[%c13, %c0_76] {strides = array<i32: 16, 1>} : memref<128x64xf32, #tpu.memory_space<vmem>>, vector<8x64xf32>
    %89 = arith.truncf %88 : vector<8x64xf32> to vector<8x64xbf16>
    %c13_77 = arith.constant 13 : index
    %c0_78 = arith.constant 0 : index
    %c0_79 = arith.constant 0 : index
    %90 = vector.load %arg8[%c13_77, %c0_78, %c0_79] : memref<16x64x64xbf16, #tpu.memory_space<vmem>>, vector<1x64x64xbf16>
    %91 = vector.shape_cast %90 : vector<1x64x64xbf16> to vector<64x64xbf16>
    %cst_80 = arith.constant dense<0.000000e+00> : vector<8x64xf32>
    %92 = tpu.matmul %89, %91, %cst_80 {dimension_numbers = #tpu.dot_dimension_numbers<[1], [0], [0], [1], [0, 0, 1, 1], [], []>} : vector<8x64xbf16>, vector<64x64xbf16>, vector<8x64xf32> -> vector<8x64xf32>
    %93 = arith.addf %87, %92 : vector<8x64xf32>
    %c14 = arith.constant 14 : index
    %c0_81 = arith.constant 0 : index
    %94 = tpu.strided_load %arg18[%c14, %c0_81] {strides = array<i32: 16, 1>} : memref<128x64xf32, #tpu.memory_space<vmem>>, vector<8x64xf32>
    %95 = arith.truncf %94 : vector<8x64xf32> to vector<8x64xbf16>
    %c14_82 = arith.constant 14 : index
    %c0_83 = arith.constant 0 : index
    %c0_84 = arith.constant 0 : index
    %96 = vector.load %arg8[%c14_82, %c0_83, %c0_84] : memref<16x64x64xbf16, #tpu.memory_space<vmem>>, vector<1x64x64xbf16>
    %97 = vector.shape_cast %96 : vector<1x64x64xbf16> to vector<64x64xbf16>
    %cst_85 = arith.constant dense<0.000000e+00> : vector<8x64xf32>
    %98 = tpu.matmul %95, %97, %cst_85 {dimension_numbers = #tpu.dot_dimension_numbers<[1], [0], [0], [1], [0, 0, 1, 1], [], []>} : vector<8x64xbf16>, vector<64x64xbf16>, vector<8x64xf32> -> vector<8x64xf32>
    %99 = arith.addf %93, %98 : vector<8x64xf32>
    %c15 = arith.constant 15 : index
    %c0_86 = arith.constant 0 : index
    %100 = tpu.strided_load %arg18[%c15, %c0_86] {strides = array<i32: 16, 1>} : memref<128x64xf32, #tpu.memory_space<vmem>>, vector<8x64xf32>
    %101 = arith.truncf %100 : vector<8x64xf32> to vector<8x64xbf16>
    %c15_87 = arith.constant 15 : index
    %c0_88 = arith.constant 0 : index
    %c0_89 = arith.constant 0 : index
    %102 = vector.load %arg8[%c15_87, %c0_88, %c0_89] : memref<16x64x64xbf16, #tpu.memory_space<vmem>>, vector<1x64x64xbf16>
    %103 = vector.shape_cast %102 : vector<1x64x64xbf16> to vector<64x64xbf16>
    %cst_90 = arith.constant dense<0.000000e+00> : vector<8x64xf32>
    %104 = tpu.matmul %101, %103, %cst_90 {dimension_numbers = #tpu.dot_dimension_numbers<[1], [0], [0], [1], [0, 0, 1, 1], [], []>} : vector<8x64xbf16>, vector<64x64xbf16>, vector<8x64xf32> -> vector<8x64xf32>
    %105 = arith.addf %99, %104 : vector<8x64xf32>
    %c0_91 = arith.constant 0 : index
    %c0_92 = arith.constant 0 : index
    %106 = vector.load %arg9[%c0_91, %c0_92] : memref<1x64xf32, #tpu.memory_space<vmem>>, vector<1x64xf32>
    %107 = vector.broadcast %106 : vector<1x64xf32> to vector<8x64xf32>
    %108 = arith.addf %105, %107 : vector<8x64xf32>
    %109 = arith.truncf %108 : vector<8x64xf32> to vector<8x64xbf16>
    %c0_93 = arith.constant 0 : index
    %c0_94 = arith.constant 0 : index
    %110 = vector.load %arg10[%c0_93, %c0_94] : memref<64x128xbf16, #tpu.memory_space<vmem>>, vector<64x128xbf16>
    %cst_95 = arith.constant dense<0.000000e+00> : vector<8x128xf32>
    %111 = tpu.matmul %109, %110, %cst_95 {dimension_numbers = #tpu.dot_dimension_numbers<[1], [0], [0], [1], [0, 0, 1, 1], [], []>} : vector<8x64xbf16>, vector<64x128xbf16>, vector<8x128xf32> -> vector<8x128xf32>
    %c0_96 = arith.constant 0 : index
    %c0_97 = arith.constant 0 : index
    %112 = vector.load %arg11[%c0_96, %c0_97] : memref<1x128xf32, #tpu.memory_space<vmem>>, vector<1x128xf32>
    %113 = vector.broadcast %112 : vector<1x128xf32> to vector<8x128xf32>
    %114 = arith.addf %111, %113 : vector<8x128xf32>
    %c0_98 = arith.constant 0 : index
    %c0_99 = arith.constant 0 : index
    %115 = vector.load %arg12[%c0_98, %c0_99] : memref<8x128xf32, #tpu.memory_space<vmem>>, vector<8x128xf32>
    tpu.vector_store %arg12[%c0_98, %c0_99], %114 {strides = array<i32>} : memref<8x128xf32, #tpu.memory_space<vmem>>, vector<8x128xf32>,
    return
  }
  func.func @transform_0(%arg0: i32) -> (i32, i32, i32) {
    %c0_i32 = arith.constant 0 : i32
    %c0_i32_0 = arith.constant 0 : i32
    %c0_i32_1 = arith.constant 0 : i32
    return %arg0, %c0_i32, %c0_i32_0 : i32, i32, i32
  }
  func.func @transform_1(%arg0: i32) -> (i32, i32) {
    %c0_i32 = arith.constant 0 : i32
    %c0_i32_0 = arith.constant 0 : i32
    %c0_i32_1 = arith.constant 0 : i32
    return %c0_i32, %c0_i32_0 : i32, i32
  }
  func.func @transform_2(%arg0: i32) -> (i32, i32) {
    %c0_i32 = arith.constant 0 : i32
    %c0_i32_0 = arith.constant 0 : i32
    %c0_i32_1 = arith.constant 0 : i32
    return %c0_i32, %c0_i32_0 : i32, i32
  }
  func.func @transform_3(%arg0: i32) -> (i32, i32, i32) {
    %c0_i32 = arith.constant 0 : i32
    %c0_i32_0 = arith.constant 0 : i32
    %c0_i32_1 = arith.constant 0 : i32
    %c0_i32_2 = arith.constant 0 : i32
    return %c0_i32, %c0_i32_0, %c0_i32_1 : i32, i32, i32
  }
  func.func @transform_4(%arg0: i32) -> (i32, i32) {
    %c0_i32 = arith.constant 0 : i32
    %c0_i32_0 = arith.constant 0 : i32
    %c0_i32_1 = arith.constant 0 : i32
    return %c0_i32, %c0_i32_0 : i32, i32
  }
  func.func @transform_5(%arg0: i32) -> (i32, i32, i32) {
    %c0_i32 = arith.constant 0 : i32
    %c0_i32_0 = arith.constant 0 : i32
    %c0_i32_1 = arith.constant 0 : i32
    %c0_i32_2 = arith.constant 0 : i32
    return %c0_i32, %c0_i32_0, %c0_i32_1 : i32, i32, i32
  }
  func.func @transform_6(%arg0: i32) -> (i32, i32) {
    %c0_i32 = arith.constant 0 : i32
    %c0_i32_0 = arith.constant 0 : i32
    %c0_i32_1 = arith.constant 0 : i32
    return %c0_i32, %c0_i32_0 : i32, i32
  }
  func.func @transform_7(%arg0: i32) -> (i32, i32, i32) {
    %c0_i32 = arith.constant 0 : i32
    %c0_i32_0 = arith.constant 0 : i32
    %c0_i32_1 = arith.constant 0 : i32
    %c0_i32_2 = arith.constant 0 : i32
    return %c0_i32, %c0_i32_0, %c0_i32_1 : i32, i32, i32
  }
  func.func @transform_8(%arg0: i32) -> (i32, i32) {
    %c0_i32 = arith.constant 0 : i32
    %c0_i32_0 = arith.constant 0 : i32
    %c0_i32_1 = arith.constant 0 : i32
    return %c0_i32, %c0_i32_0 : i32, i32
  }
  func.func @transform_9(%arg0: i32) -> (i32, i32) {
    %c0_i32 = arith.constant 0 : i32
    %c0_i32_0 = arith.constant 0 : i32
    %c0_i32_1 = arith.constant 0 : i32
    return %c0_i32, %c0_i32_0 : i32, i32
  }
  func.func @transform_10(%arg0: i32) -> (i32, i32) {
    %c0_i32 = arith.constant 0 : i32
    %c0_i32_0 = arith.constant 0 : i32
    %c0_i32_1 = arith.constant 0 : i32
    return %c0_i32, %c0_i32_0 : i32, i32
  }
  func.func @transform_11(%arg0: i32) -> (i32, i32) {
    %c0_i32 = arith.constant 0 : i32
    %c0_i32_0 = arith.constant 0 : i32
    return %arg0, %c0_i32 : i32, i32
  }
}

</mosaic_0001>

<llo_original>
// kernel: ocean_forward.1
$region0: #{ocean_forward.1}
  #allocation0 [shape = 'u32[]', space=smem, size = 0x4, offset = 0x4, fixed_abs, tag = 'smem constant byte address 0x4 - core index']
  #allocation1 [shape = 'u32[144,128]{1,0:T(1,128)}', space=vmem, size = 0x12000, scoped, tag = 'internal scratch']
  #allocation2 [shape = 'f32[1024,32]{1,0:T(8,128)}', space=vmem, size = 0x80000, scoped, tag = 'scratch operand']
  #allocation3 [shape = 'f32[336,32]{1,0:T(8,128)}', space=vmem, size = 0x2a000, scoped, tag = 'scratch operand']
  #allocation4 [shape = 'f32[256,32]{1,0:T(8,128)}', space=vmem, size = 0x20000, scoped, tag = 'scratch operand']
  #allocation5 [shape = 'f32[112,32]{1,0:T(8,128)}', space=vmem, size = 0xe000, scoped, tag = 'scratch operand']
  #allocation6 [shape = 'f32[64,64]{1,0:T(8,128)}', space=vmem, size = 0x8000, scoped, tag = 'scratch operand']
  #allocation7 [shape = 'f32[128,64]{1,0:T(8,128)}', space=vmem, size = 0x10000, scoped, tag = 'scratch operand']
  %s0 = inlined_call_operand.vmem [shape: bf16[16,1024,75], index: 0, kind: input, shape index: {}]
  %s1 = inlined_call_operand.vmem [shape: bf16[75,32], index: 1, kind: input, shape index: {}]
  %s2 = inlined_call_operand.vmem [shape: f32[1,32], index: 2, kind: input, shape index: {}]
  %s3 = inlined_call_operand.vmem [shape: bf16[5,160,32], index: 3, kind: input, shape index: {}]
  %s4 = inlined_call_operand.vmem [shape: f32[1,32], index: 4, kind: input, shape index: {}]
  %s5 = inlined_call_operand.vmem [shape: bf16[5,160,64], index: 5, kind: input, shape index: {}]
  %s6 = inlined_call_operand.vmem [shape: f32[1,64], index: 6, kind: input, shape index: {}]
  %s7 = inlined_call_operand.vmem [shape: bf16[16,64,64], index: 7, kind: input, shape index: {}]
  %s8 = inlined_call_operand.vmem [shape: f32[1,64], index: 8, kind: input, shape index: {}]
  %s9 = inlined_call_operand.vmem [shape: bf16[64,128], index: 9, kind: input, shape index: {}]
  %s10 = inlined_call_operand.vmem [shape: f32[1,128], index: 10, kind: input, shape index: {}]
  %s11 = inlined_call_operand.hbm [shape: f32[16,128], index: 11, kind: output, shape index: {}]
  %s12 = sld [smem:[#allocation0]]
  $region84: #{ocean_forward.1} parent=0
    _
  %s14 = ssub.s32 1, %s12
  %s15 = scalar_select 0, %s14, %s12
  $region1: #{ocean_forward.1} parent=0
    #allocation8 [shape = 'u8[8192]{0}', space=vmem, size = 0x2000, scoped, tag = 'output window, operand 0']
    #allocation9 [shape = 's32[2]{0}', space=sflag, size = 0x8, scoped, tag = 'scoped memory for ocean_forward.1']
    %16 = vsyncpa [#allocation9], 0
    %s17 = scalar_lea.sflag [#allocation9], 1
    %18 = vsyncpa %s17, 0
    loop: start=0, step=1, limit=4
    $region2: #{ocean_forward.1} parent=1 // loop_pre_header
      _
    $region3: #{ocean_forward.1} parent=1 // loop_header
      %s20 = sphi 0, %s24
      %p21 = scmp.ge.s32.totalorder %s20, 4
      %s30 = sphi 0, %s32
      %s33 = sphi 0, %s30
      %s34 = sphi 0, %s33
      %s50 = sphi 0, %s34
      %s54 = sphi 0, %s54
      %s56 = sphi 0, %s54
      %s57 = sphi 0, %s56
      %s71 = sphi 0, %s57
      %s75 = sphi 0, %s75
      %s77 = sphi 0, %s75
      %s78 = sphi 0, %s77
      %s92 = sphi 0, %s78
      %s96 = sphi 0, %s96
      %s98 = sphi 0, %s96
      %s99 = sphi 0, %s98
      %s113 = sphi 0, %s99
      %s117 = sphi 0, %s117
      %s119 = sphi 0, %s117
      %s120 = sphi 0, %s119
      %s134 = sphi 0, %s120
      %s138 = sphi 0, %s138
      %s140 = sphi 0, %s138
      %s141 = sphi 0, %s140
      %s155 = sphi 0, %s141
      %s159 = sphi 0, %s159
      %s161 = sphi 0, %s159
      %s162 = sphi 0, %s161
      %s176 = sphi 0, %s162
      %s180 = sphi 0, %s180
      %s182 = sphi 0, %s180
      %s183 = sphi 0, %s182
      %s197 = sphi 0, %s183
      %s201 = sphi 0, %s201
      %s203 = sphi 0, %s201
      %s204 = sphi 0, %s203
      %s218 = sphi 0, %s204
      %s222 = sphi 0, %s222
      %s224 = sphi 0, %s222
      %s225 = sphi 0, %s224
      %s239 = sphi 0, %s225
      %s243 = sphi 0, %s243
      %s245 = sphi 0, %s243
      %s246 = sphi 0, %s245
      %s260 = sphi 0, %s246
      %s266 = sphi 0, %s268
      %s269 = sphi 0, %s266
      %s270 = sphi 0, %s269
      %s286 = sphi 0, %s270
    $region4: #{ocean_forward.1} parent=1 // loop_header_branch
      %23 = sbr.rel (%p21) target = $region8
    $region5: #{ocean_forward.1} parent=1 // loop_body
      %s25 = ssub.s32 %s20, 1
      %s26 = ssub.s32 %s20, 2
      %s27 = sadd.s32 %s20, 1
      %s28 = ssub.s32 %s20, %s27
      %p29 = scmp.eq.s32.totalorder %s28, 0
      %s31 = sadd.s32 %s30, 1
      %s32 = scalar_select %p29, %s30, %s31
      %p35 = pneg %p29
      %p36 = scmp.eq.s32.totalorder %s20, 1
      %p37 = por %p35, %p36
      %p38 = scmp.ne.s32.totalorder %s30, %s33
      %p39 = scmp.eq.s32.totalorder %s20, 0
      %p40 = por %p38, %p39
      %p41 = scmp.ne.s32.totalorder %s30, %s33
      %p42 = scmp.eq.s32.totalorder %s25, 1
      %p43 = por %p41, %p42
      %p44 = scmp.ne.s32.totalorder %s33, %s34
      %p45 = scmp.eq.s32.totalorder %s25, 0
      %p46 = por %p44, %p45
      %p47 = scmp.ne.s32.totalorder %s33, %s34
      %p48 = scmp.eq.s32.totalorder %s26, 1
      %p49 = por %p47, %p48
      %p51 = scmp.ne.s32.totalorder %s34, %s50
      %p52 = scmp.eq.s32.totalorder %s26, 0
      %p53 = por %p51, %p52
      %s55 = sadd.s32 %s54, 1
      %p58 = scmp.eq.s32.totalorder %s20, 1
      %p59 = scmp.ne.s32.totalorder %s54, %s56
      %p60 = scmp.eq.s32.totalorder %s20, 0
      %p61 = por %p59, %p60
      %p62 = scmp.ne.s32.totalorder %s54, %s56
      %p63 = scmp.eq.s32.totalorder %s25, 1
      %p64 = por %p62, %p63
      %p65 = scmp.ne.s32.totalorder %s56, %s57
      %p66 = scmp.eq.s32.totalorder %s25, 0
      %p67 = por %p65, %p66
      %p68 = scmp.ne.s32.totalorder %s56, %s57
      %p69 = scmp.eq.s32.totalorder %s26, 1
      %p70 = por %p68, %p69
      %p72 = scmp.ne.s32.totalorder %s57, %s71
      %p73 = scmp.eq.s32.totalorder %s26, 0
      %p74 = por %p72, %p73
      %s76 = sadd.s32 %s75, 1
      %p79 = scmp.eq.s32.totalorder %s20, 1
      %p80 = scmp.ne.s32.totalorder %s75, %s77
      %p81 = scmp.eq.s32.totalorder %s20, 0
      %p82 = por %p80, %p81
      %p83 = scmp.ne.s32.totalorder %s75, %s77
      %p84 = scmp.eq.s32.totalorder %s25, 1
      %p85 = por %p83, %p84
      %p86 = scmp.ne.s32.totalorder %s77, %s78
      %p87 = scmp.eq.s32.totalorder %s25, 0
      %p88 = por %p86, %p87
      %p89 = scmp.ne.s32.totalorder %s77, %s78
      %p90 = scmp.eq.s32.totalorder %s26, 1
      %p91 = por %p89, %p90
      %p93 = scmp.ne.s32.totalorder %s78, %s92
      %p94 = scmp.eq.s32.totalorder %s26, 0
      %p95 = por %p93, %p94
      %s97 = sadd.s32 %s96, 1
      %p100 = scmp.eq.s32.totalorder %s20, 1
      %p101 = scmp.ne.s32.totalorder %s96, %s98
      %p102 = scmp.eq.s32.totalorder %s20, 0
      %p103 = por %p101, %p102
      %p104 = scmp.ne.s32.totalorder %s96, %s98
      %p105 = scmp.eq.s32.totalorder %s25, 1
      %p106 = por %p104, %p105
      %p107 = scmp.ne.s32.totalorder %s98, %s99
      %p108 = scmp.eq.s32.totalorder %s25, 0
      %p109 = por %p107, %p108
      %p110 = scmp.ne.s32.totalorder %s98, %s99
      %p111 = scmp.eq.s32.totalorder %s26, 1
      %p112 = por %p110, %p111
      %p114 = scmp.ne.s32.totalorder %s99, %s113
      %p115 = scmp.eq.s32.totalorder %s26, 0
      %p116 = por %p114, %p115
      %s118 = sadd.s32 %s117, 1
      %p121 = scmp.eq.s32.totalorder %s20, 1
      %p122 = scmp.ne.s32.totalorder %s117, %s119
      %p123 = scmp.eq.s32.totalorder %s20, 0
      %p124 = por %p122, %p123
      %p125 = scmp.ne.s32.totalorder %s117, %s119
      %p126 = scmp.eq.s32.totalorder %s25, 1
      %p127 = por %p125, %p126
      %p128 = scmp.ne.s32.totalorder %s119, %s120
      %p129 = scmp.eq.s32.totalorder %s25, 0
      %p130 = por %p128, %p129
      %p131 = scmp.ne.s32.totalorder %s119, %s120
      %p132 = scmp.eq.s32.totalorder %s26, 1
      %p133 = por %p131, %p132
      %p135 = scmp.ne.s32.totalorder %s120, %s134
      %p136 = scmp.eq.s32.totalorder %s26, 0
      %p137 = por %p135, %p136
      %s139 = sadd.s32 %s138, 1
      %p142 = scmp.eq.s32.totalorder %s20, 1
      %p143 = scmp.ne.s32.totalorder %s138, %s140
      %p144 = scmp.eq.s32.totalorder %s20, 0
      %p145 = por %p143, %p144
      %p146 = scmp.ne.s32.totalorder %s138, %s140
      %p147 = scmp.eq.s32.totalorder %s25, 1
      %p148 = por %p146, %p147
      %p149 = scmp.ne.s32.totalorder %s140, %s141
      %p150 = scmp.eq.s32.totalorder %s25, 0
      %p151 = por %p149, %p150
      %p152 = scmp.ne.s32.totalorder %s140, %s141
      %p153 = scmp.eq.s32.totalorder %s26, 1
      %p154 = por %p152, %p153
      %p156 = scmp.ne.s32.totalorder %s141, %s155
      %p157 = scmp.eq.s32.totalorder %s26, 0
      %p158 = por %p156, %p157
      %s160 = sadd.s32 %s159, 1
      %p163 = scmp.eq.s32.totalorder %s20, 1
      %p164 = scmp.ne.s32.totalorder %s159, %s161
      %p165 = scmp.eq.s32.totalorder %s20, 0
      %p166 = por %p164, %p165
      %p167 = scmp.ne.s32.totalorder %s159, %s161
      %p168 = scmp.eq.s32.totalorder %s25, 1
      %p169 = por %p167, %p168
      %p170 = scmp.ne.s32.totalorder %s161, %s162
      %p171 = scmp.eq.s32.totalorder %s25, 0
      %p172 = por %p170, %p171
      %p173 = scmp.ne.s32.totalorder %s161, %s162
      %p174 = scmp.eq.s32.totalorder %s26, 1
      %p175 = por %p173, %p174
      %p177 = scmp.ne.s32.totalorder %s162, %s176
      %p178 = scmp.eq.s32.totalorder %s26, 0
      %p179 = por %p177, %p178
      %s181 = sadd.s32 %s180, 1
      %p184 = scmp.eq.s32.totalorder %s20, 1
      %p185 = scmp.ne.s32.totalorder %s180, %s182
      %p186 = scmp.eq.s32.totalorder %s20, 0
      %p187 = por %p185, %p186
      %p188 = scmp.ne.s32.totalorder %s180, %s182
      %p189 = scmp.eq.s32.totalorder %s25, 1
      %p190 = por %p188, %p189
      %p191 = scmp.ne.s32.totalorder %s182, %s183
      %p192 = scmp.eq.s32.totalorder %s25, 0
      %p193 = por %p191, %p192
      %p194 = scmp.ne.s32.totalorder %s182, %s183
      %p195 = scmp.eq.s32.totalorder %s26, 1
      %p196 = por %p194, %p195
      %p198 = scmp.ne.s32.totalorder %s183, %s197
      %p199 = scmp.eq.s32.totalorder %s26, 0
      %p200 = por %p198, %p199
      %s202 = sadd.s32 %s201, 1
      %p205 = scmp.eq.s32.totalorder %s20, 1
      %p206 = scmp.ne.s32.totalorder %s201, %s203
      %p207 = scmp.eq.s32.totalorder %s20, 0
      %p208 = por %p206, %p207
      %p209 = scmp.ne.s32.totalorder %s201, %s203
      %p210 = scmp.eq.s32.totalorder %s25, 1
      %p211 = por %p209, %p210
      %p212 = scmp.ne.s32.totalorder %s203, %s204
      %p213 = scmp.eq.s32.totalorder %s25, 0
      %p214 = por %p212, %p213
      %p215 = scmp.ne.s32.totalorder %s203, %s204
      %p216 = scmp.eq.s32.totalorder %s26, 1
      %p217 = por %p215, %p216
      %p219 = scmp.ne.s32.totalorder %s204, %s218
      %p220 = scmp.eq.s32.totalorder %s26, 0
      %p221 = por %p219, %p220
      %s223 = sadd.s32 %s222, 1
      %p226 = scmp.eq.s32.totalorder %s20, 1
      %p227 = scmp.ne.s32.totalorder %s222, %s224
      %p228 = scmp.eq.s32.totalorder %s20, 0
      %p229 = por %p227, %p228
      %p230 = scmp.ne.s32.totalorder %s222, %s224
      %p231 = scmp.eq.s32.totalorder %s25, 1
      %p232 = por %p230, %p231
      %p233 = scmp.ne.s32.totalorder %s224, %s225
      %p234 = scmp.eq.s32.totalorder %s25, 0
      %p235 = por %p233, %p234
      %p236 = scmp.ne.s32.totalorder %s224, %s225
      %p237 = scmp.eq.s32.totalorder %s26, 1
      %p238 = por %p236, %p237
      %p240 = scmp.ne.s32.totalorder %s225, %s239
      %p241 = scmp.eq.s32.totalorder %s26, 0
      %p242 = por %p240, %p241
      %s244 = sadd.s32 %s243, 1
      %p247 = scmp.eq.s32.totalorder %s20, 1
      %p248 = scmp.ne.s32.totalorder %s243, %s245
      %p249 = scmp.eq.s32.totalorder %s20, 0
      %p250 = por %p248, %p249
      %p251 = scmp.ne.s32.totalorder %s243, %s245
      %p252 = scmp.eq.s32.totalorder %s25, 1
      %p253 = por %p251, %p252
      %p254 = scmp.ne.s32.totalorder %s245, %s246
      %p255 = scmp.eq.s32.totalorder %s25, 0
      %p256 = por %p254, %p255
      %p257 = scmp.ne.s32.totalorder %s245, %s246
      %p258 = scmp.eq.s32.totalorder %s26, 1
      %p259 = por %p257, %p258
      %p261 = scmp.ne.s32.totalorder %s246, %s260
      %p262 = scmp.eq.s32.totalorder %s26, 0
      %p263 = por %p261, %p262
      %s264 = ssub.s32 %s20, %s27
      %p265 = scmp.eq.s32.totalorder %s264, 0
      %s267 = sadd.s32 %s266, 1
      %s268 = scalar_select %p265, %s266, %s267
      %p271 = pneg %p265
      %p272 = scmp.eq.s32.totalorder %s20, 1
      %p273 = por %p271, %p272
      %p274 = scmp.ne.s32.totalorder %s266, %s269
      %p275 = scmp.eq.s32.totalorder %s20, 0
      %p276 = por %p274, %p275
      %p277 = scmp.ne.s32.totalorder %s266, %s269
      %p278 = scmp.eq.s32.totalorder %s25, 1
      %p279 = por %p277, %p278
      %p280 = scmp.ne.s32.totalorder %s269, %s270
      %p281 = scmp.eq.s32.totalorder %s25, 0
      %p282 = por %p280, %p281
      %p283 = scmp.ne.s32.totalorder %s269, %s270
      %p284 = scmp.eq.s32.totalorder %s26, 1
      %p285 = por %p283, %p284
      %p287 = scmp.ne.s32.totalorder %s270, %s286
      %p288 = scmp.eq.s32.totalorder %s26, 0
      %p289 = por %p287, %p288
      %p290 = scmp.le.s32.totalorder 1, %s20
      %p291 = scmp.lt.s32.totalorder %s20, 3
      %p292 = pnand %p290, %p291
      %p293 = pneg %p292
      // Predicated region
      $region9: #{ocean_forward.1} parent=5 // pred_check
        _
      $region10: #{ocean_forward.1} parent=5 // pred_check_branch
        %295 = sbr.rel (%p292) target = $region12
      $region11: #{ocean_forward.1} parent=5 // pred_region
        %s296 = ssub.s32 %s20, 1
        // Predicated region
        $region13: #{ocean_forward.1} parent=11 // pred_check
          %p297 = pneg %p67
        $region14: #{ocean_forward.1} parent=11 // pred_check_branch
          %299 = sbr.rel (%p297) target = $region16
        $region15: #{ocean_forward.1} parent=11 // pred_region
          _
        $region16: #{ocean_forward.1} parent=11 // pred_fallthru
          _
        // Predicated region
        $region17: #{ocean_forward.1} parent=11 // pred_check
          %p300 = pneg %p88
        $region18: #{ocean_forward.1} parent=11 // pred_check_branch
          %302 = sbr.rel (%p300) target = $region20
        $region19: #{ocean_forward.1} parent=11 // pred_region
          _
        $region20: #{ocean_forward.1} parent=11 // pred_fallthru
          _
        // Predicated region
        $region21: #{ocean_forward.1} parent=11 // pred_check
          %p303 = pneg %p109
        $region22: #{ocean_forward.1} parent=11 // pred_check_branch
          %305 = sbr.rel (%p303) target = $region24
        $region23: #{ocean_forward.1} parent=11 // pred_region
          _
        $region24: #{ocean_forward.1} parent=11 // pred_fallthru
          _
        // Predicated region
        $region25: #{ocean_forward.1} parent=11 // pred_check
          %p306 = pneg %p130
        $region26: #{ocean_forward.1} parent=11 // pred_check_branch
          %308 = sbr.rel (%p306) target = $region28
        $region27: #{ocean_forward.1} parent=11 // pred_region
          _
        $region28: #{ocean_forward.1} parent=11 // pred_fallthru
          _
        // Predicated region
        $region29: #{ocean_forward.1} parent=11 // pred_check
          %p309 = pneg %p151
        $region30: #{ocean_forward.1} parent=11 // pred_check_branch
          %311 = sbr.rel (%p309) target = $region32
        $region31: #{ocean_forward.1} parent=11 // pred_region
          _
        $region32: #{ocean_forward.1} parent=11 // pred_fallthru
          _
        // Predicated region
        $region33: #{ocean_forward.1} parent=11 // pred_check
          %p312 = pneg %p172
        $region34: #{ocean_forward.1} parent=11 // pred_check_branch
          %314 = sbr.rel (%p312) target = $region36
        $region35: #{ocean_forward.1} parent=11 // pred_region
          _
        $region36: #{ocean_forward.1} parent=11 // pred_fallthru
          _
        // Predicated region
        $region37: #{ocean_forward.1} parent=11 // pred_check
          %p315 = pneg %p193
        $region38: #{ocean_forward.1} parent=11 // pred_check_branch
          %317 = sbr.rel (%p315) target = $region40
        $region39: #{ocean_forward.1} parent=11 // pred_region
          _
        $region40: #{ocean_forward.1} parent=11 // pred_fallthru
          _
        // Predicated region
        $region41: #{ocean_forward.1} parent=11 // pred_check
          %p318 = pneg %p214
        $region42: #{ocean_forward.1} parent=11 // pred_check_branch
          %320 = sbr.rel (%p318) target = $region44
        $region43: #{ocean_forward.1} parent=11 // pred_region
          _
        $region44: #{ocean_forward.1} parent=11 // pred_fallthru
          _
        // Predicated region
        $region45: #{ocean_forward.1} parent=11 // pred_check
          %p321 = pneg %p235
        $region46: #{ocean_forward.1} parent=11 // pred_check_branch
          %323 = sbr.rel (%p321) target = $region48
        $region47: #{ocean_forward.1} parent=11 // pred_region
          _
        $region48: #{ocean_forward.1} parent=11 // pred_fallthru
          _
        // Predicated region
        $region49: #{ocean_forward.1} parent=11 // pred_check
          %p324 = pneg %p256
        $region50: #{ocean_forward.1} parent=11 // pred_check_branch
          %326 = sbr.rel (%p324) target = $region52
        $region51: #{ocean_forward.1} parent=11 // pred_region
          _
        $region52: #{ocean_forward.1} parent=11 // pred_fallthru
          _
      $region12: #{ocean_forward.1} parent=5 // pred_fallthru
        _
      %p327 = scmp.lt.s32.totalorder %s20, 2
      // Predicated region
      $region53: #{ocean_forward.1} parent=5 // pred_check
        %p328 = pneg %p327
      $region54: #{ocean_forward.1} parent=5 // pred_check_branch
        %330 = sbr.rel (%p328) target = $region56
      $region55: #{ocean_forward.1} parent=5 // pred_region
        // Predicated region
        $region57: #{ocean_forward.1} parent=55 // pred_check
          %p331 = pneg %p40
        $region58: #{ocean_forward.1} parent=55 // pred_check_branch
          %333 = sbr.rel (%p331) target = $region60
        $region59: #{ocean_forward.1} parent=55 // pred_region
          %s334 = smul.u32 8, %s20
          %p335 = scmp.lt.s32.totalorder %s334, 15
          %s336 = scalar_select %p335, %s334, 15
          %s337 = smul.addr %s336, 128
          %s338 = smul.addr %s337, 4
          %s339 = scalar_lea.vmem %s0, %s338
          %s340 = smul.u32 8, %s20
        $region60: #{ocean_forward.1} parent=55 // pred_fallthru
          _
      $region56: #{ocean_forward.1} parent=5 // pred_fallthru
        _
      %p341 = scmp.le.s32.totalorder 1, %s20
      %p342 = scmp.lt.s32.totalorder %s20, 3
      %p343 = pnand %p341, %p342
      %p344 = pneg %p343
      // Predicated region
      $region61: #{ocean_forward.1} parent=5 // pred_check
        _
      $region62: #{ocean_forward.1} parent=5 // pred_check_branch
        %346 = sbr.rel (%p343) target = $region64
      $region63: #{ocean_forward.1} parent=5 // pred_region
        %s347 = ssub.s32 %s20, 1
        %s348 = smul.u32 8, %s25
        %p349 = scmp.lt.s32.totalorder %s348, 15
        %s350 = scalar_select %p349, %s348, 15
        %s351 = smul.addr %s350, 128
        %s352 = smul.addr %s351, 4
        %s353 = scalar_lea.vmem %s0, %s352
        %p354 = pneg %p46
        %p355 = pneg %p43
        %p356 = pneg %p67
        %p357 = pneg %p64
        %p358 = pneg %p88
        %p359 = pneg %p85
        %p360 = pneg %p109
        %p361 = pneg %p106
        %p362 = pneg %p130
        %p363 = pneg %p127
        %p364 = pneg %p151
        %p365 = pneg %p148
        %p366 = pneg %p172
        %p367 = pneg %p169
        %p368 = pneg %p193
        %p369 = pneg %p190
        %p370 = pneg %p214
        %p371 = pneg %p211
        %p372 = pneg %p235
        %p373 = pneg %p232
        %p374 = pneg %p256
        %p375 = pneg %p253
        %p376 = pneg %p282
        %p377 = pneg %p279
        %s378 = sand.u32 %s269, 1
        %s379 = scalar_lea.sflag [#allocation9], %s378
        %s380 = sand.u32 %s269, 1
        %s381 = smul.addr %s380, 8
        %s382 = scalar_lea.vmem [#allocation8], %s381
        %s383 = smul.u32 8, %s25
        %p384 = scmp.lt.s32.totalorder %s383, 15
        %s385 = scalar_select %p384, %s383, 15
        %s386 = smul.addr %s385, 128
        %s387 = smul.addr %s386, 4
        %s388 = scalar_lea.vmem %s0, %s387
        %s389 = smul.u32 8, %s25
        %vm391 = vcmask 261120
        %392 = vst.msk [vmem:[#allocation3] sm:$0xff] %vm391, 0.0
        %393 = vst.msk [vmem:[#allocation3 + $0x8] sm:$0xff] %vm391, 0.0
        %394 = vst.msk [vmem:[#allocation3 + $0x10] sm:$0xff] %vm391, 0.0
        %395 = vst.msk [vmem:[#allocation3 + $0x18] sm:$0xff] %vm391, 0.0
        %396 = vst.msk [vmem:[#allocation3 + $0x20] sm:$0xff] %vm391, 0.0
        %397 = vst.msk [vmem:[#allocation3 + $0x128] sm:$0xff] %vm391, 0.0
        %398 = vst.msk [vmem:[#allocation3 + $0x130] sm:$0xff] %vm391, 0.0
        %399 = vst.msk [vmem:[#allocation3 + $0x138] sm:$0xff] %vm391, 0.0
        %400 = vst.msk [vmem:[#allocation3 + $0x140] sm:$0xff] %vm391, 0.0
        %401 = vst.msk [vmem:[#allocation3 + $0x148] sm:$0xff] %vm391, 0.0
        %402 = vst.msk [vmem:[#allocation5] sm:$0xff] %vm391, 0.0
        %403 = vst.msk [vmem:[#allocation5 + $0x8] sm:$0xff] %vm391, 0.0
        %404 = vst.msk [vmem:[#allocation5 + $0x10] sm:$0xff] %vm391, 0.0
        %405 = vst.msk [vmem:[#allocation5 + $0x58] sm:$0xff] %vm391, 0.0
        %406 = vst.msk [vmem:[#allocation5 + $0x60] sm:$0xff] %vm391, 0.0
        %407 = vst.msk [vmem:[#allocation5 + $0x68] sm:$0xff] %vm391, 0.0
        loop: start=0, step=1, limit=8
        $region65: #{ocean_forward.1} parent=63 // loop_pre_header
          _
        $region66: #{ocean_forward.1} parent=63 // loop_header
          %s409 = sphi 0, %s413
          %p410 = scmp.ge.s32.totalorder %s409, 8
        $region67: #{ocean_forward.1} parent=63 // loop_header_branch
          %412 = sbr.rel (%p410) target = $region71
        $region68: #{ocean_forward.1} parent=63 // loop_body
          %s414 = smul.u32 %s409, 128
          %s415 = smul.addr %s414, 4
          %s416 = scalar_lea.vmem %s388, %s415
          %v417 = vld [vmem:[%s416] sm:$0xf]
          %v418 = vld [vmem:[%s416 + $0x4] sm:$0xf]
          %v419 = vld [vmem:[%s416 + $0x8] sm:$0xf]
          %v420 = vld [vmem:[%s416 + $0xc] sm:$0xf]
          %v421 = vld [vmem:[%s416 + $0x10] sm:$0xf]
          %v422 = vld [vmem:[%s416 + $0x14] sm:$0xf]
          %v423 = vld [vmem:[%s416 + $0x18] sm:$0xf]
          %v424 = vld [vmem:[%s416 + $0x1c] sm:$0xf]
          %v425 = vld [vmem:[%s416 + $0x20] sm:$0xf]
          %v426 = vld [vmem:[%s416 + $0x24] sm:$0xf]
          %v427 = vld [vmem:[%s416 + $0x28] sm:$0xf]
          %v428 = vld [vmem:[%s416 + $0x2c] sm:$0xf]
          %v429 = vld [vmem:[%s416 + $0x30] sm:$0xf]
          %v430 = vld [vmem:[%s416 + $0x34] sm:$0xf]
          %v431 = vld [vmem:[%s416 + $0x38] sm:$0xf]
          %v432 = vld [vmem:[%s416 + $0x3c] sm:$0xf]
          %v433 = vld [vmem:[%s416 + $0x40] sm:$0xf]
          %v434 = vld [vmem:[%s416 + $0x44] sm:$0xf]
          %v435 = vld [vmem:[%s416 + $0x48] sm:$0xf]
          %v436 = vld [vmem:[%s416 + $0x4c] sm:$0xf]
          %v437 = vld [vmem:[%s416 + $0x50] sm:$0xf]
          %v438 = vld [vmem:[%s416 + $0x54] sm:$0xf]
          %v439 = vld [vmem:[%s416 + $0x58] sm:$0xf]
          %v440 = vld [vmem:[%s416 + $0x5c] sm:$0xf]
          %v441 = vld [vmem:[%s416 + $0x60] sm:$0xf]
          %v442 = vld [vmem:[%s416 + $0x64] sm:$0xf]
          %v443 = vld [vmem:[%s416 + $0x68] sm:$0xf]
          %v444 = vld [vmem:[%s416 + $0x6c] sm:$0xf]
          %v445 = vld [vmem:[%s416 + $0x70] sm:$0xf]
          %v446 = vld [vmem:[%s416 + $0x74] sm:$0xf]
          %v447 = vld [vmem:[%s416 + $0x78] sm:$0xf]
          %v448 = vld [vmem:[%s416 + $0x7c] sm:$0xf]
          %v449 = vld [vmem:[%s416 + $0x80] sm:$0xf]
          %v450 = vld [vmem:[%s416 + $0x84] sm:$0xf]
          %v451 = vld [vmem:[%s416 + $0x88] sm:$0xf]
          %v452 = vld [vmem:[%s416 + $0x8c] sm:$0xf]
          %v453 = vld [vmem:[%s416 + $0x90] sm:$0xf]
          %v454 = vld [vmem:[%s416 + $0x94] sm:$0xf]
          %v455 = vld [vmem:[%s416 + $0x98] sm:$0xf]
          %v456 = vld [vmem:[%s416 + $0x9c] sm:$0xf]
          %v457 = vld [vmem:[%s416 + $0xa0] sm:$0xf]
          %v458 = vld [vmem:[%s416 + $0xa4] sm:$0xf]
          %v459 = vld [vmem:[%s416 + $0xa8] sm:$0xf]
          %v460 = vld [vmem:[%s416 + $0xac] sm:$0xf]
          %v461 = vld [vmem:[%s416 + $0xb0] sm:$0xf]
          %v462 = vld [vmem:[%s416 + $0xb4] sm:$0xf]
          %v463 = vld [vmem:[%s416 + $0xb8] sm:$0xf]
          %v464 = vld [vmem:[%s416 + $0xbc] sm:$0xf]
          %v465 = vld [vmem:[%s416 + $0xc0] sm:$0xf]
          %v466 = vld [vmem:[%s416 + $0xc4] sm:$0xf]
          %v467 = vld [vmem:[%s416 + $0xc8] sm:$0xf]
          %v468 = vld [vmem:[%s416 + $0xcc] sm:$0xf]
          %v469 = vld [vmem:[%s416 + $0xd0] sm:$0xf]
          %v470 = vld [vmem:[%s416 + $0xd4] sm:$0xf]
          %v471 = vld [vmem:[%s416 + $0xd8] sm:$0xf]
          %v472 = vld [vmem:[%s416 + $0xdc] sm:$0xf]
          %v473 = vld [vmem:[%s416 + $0xe0] sm:$0xf]
          %v474 = vld [vmem:[%s416 + $0xe4] sm:$0xf]
          %v475 = vld [vmem:[%s416 + $0xe8] sm:$0xf]
          %v476 = vld [vmem:[%s416 + $0xec] sm:$0xf]
          %v477 = vld [vmem:[%s416 + $0xf0] sm:$0xf]
          %v478 = vld [vmem:[%s416 + $0xf4] sm:$0xf]
          %v479 = vld [vmem:[%s416 + $0xf8] sm:$0xf]
          %v480 = vld [vmem:[%s416 + $0xfc] sm:$0xf]
          %v481 = vld [vmem:[%s416 + $0x100] sm:$0xf]
          %v482 = vld [vmem:[%s416 + $0x104] sm:$0xf]
          %v483 = vld [vmem:[%s416 + $0x108] sm:$0xf]
          %v484 = vld [vmem:[%s416 + $0x10c] sm:$0xf]
          %v485 = vld [vmem:[%s416 + $0x110] sm:$0xf]
          %v486 = vld [vmem:[%s416 + $0x114] sm:$0xf]
          %v487 = vld [vmem:[%s416 + $0x118] sm:$0xf]
          %v488 = vld [vmem:[%s416 + $0x11c] sm:$0xf]
          %v489 = vld [vmem:[%s416 + $0x120] sm:$0xf]
          %v490 = vld [vmem:[%s416 + $0x124] sm:$0xf]
          %v491 = vld [vmem:[%s416 + $0x128] sm:$0xf]
          %v492 = vld [vmem:[%s416 + $0x12c] sm:$0xf]
          %v493 = vld [vmem:[%s416 + $0x130] sm:$0xf]
          %v494 = vld [vmem:[%s416 + $0x134] sm:$0xf]
          %v495 = vld [vmem:[%s416 + $0x138] sm:$0xf]
          %v496 = vld [vmem:[%s416 + $0x13c] sm:$0xf]
          %v497 = vld [vmem:[%s416 + $0x140] sm:$0xf]
          %v498 = vld [vmem:[%s416 + $0x144] sm:$0xf]
          %v499 = vld [vmem:[%s416 + $0x148] sm:$0xf]
          %v500 = vld [vmem:[%s416 + $0x14c] sm:$0xf]
          %v501 = vld [vmem:[%s416 + $0x150] sm:$0xf]
          %v502 = vld [vmem:[%s416 + $0x154] sm:$0xf]
          %v503 = vld [vmem:[%s416 + $0x158] sm:$0xf]
          %v504 = vld [vmem:[%s416 + $0x15c] sm:$0xf]
          %v505 = vld [vmem:[%s416 + $0x160] sm:$0xf]
          %v506 = vld [vmem:[%s416 + $0x164] sm:$0xf]
          %v507 = vld [vmem:[%s416 + $0x168] sm:$0xf]
          %v508 = vld [vmem:[%s416 + $0x16c] sm:$0xf]
          %v509 = vld [vmem:[%s416 + $0x170] sm:$0xf]
          %v510 = vld [vmem:[%s416 + $0x174] sm:$0xf]
          %v511 = vld [vmem:[%s416 + $0x178] sm:$0xf]
          %v512 = vld [vmem:[%s416 + $0x17c] sm:$0xf]
          %v513 = vld [vmem:[%s416 + $0x180] sm:$0xf]
          %v514 = vld [vmem:[%s416 + $0x184] sm:$0xf]
          %v515 = vld [vmem:[%s416 + $0x188] sm:$0xf]
          %v516 = vld [vmem:[%s416 + $0x18c] sm:$0xf]
          %v517 = vld [vmem:[%s416 + $0x190] sm:$0xf]
          %v518 = vld [vmem:[%s416 + $0x194] sm:$0xf]
          %v519 = vld [vmem:[%s416 + $0x198] sm:$0xf]
          %v520 = vld [vmem:[%s416 + $0x19c] sm:$0xf]
          %v521 = vld [vmem:[%s416 + $0x1a0] sm:$0xf]
          %v522 = vld [vmem:[%s416 + $0x1a4] sm:$0xf]
          %v523 = vld [vmem:[%s416 + $0x1a8] sm:$0xf]
          %v524 = vld [vmem:[%s416 + $0x1ac] sm:$0xf]
          %v525 = vld [vmem:[%s416 + $0x1b0] sm:$0xf]
          %v526 = vld [vmem:[%s416 + $0x1b4] sm:$0xf]
          %v527 = vld [vmem:[%s416 + $0x1b8] sm:$0xf]
          %v528 = vld [vmem:[%s416 + $0x1bc] sm:$0xf]
          %v529 = vld [vmem:[%s416 + $0x1c0] sm:$0xf]
          %v530 = vld [vmem:[%s416 + $0x1c4] sm:$0xf]
          %v531 = vld [vmem:[%s416 + $0x1c8] sm:$0xf]
          %v532 = vld [vmem:[%s416 + $0x1cc] sm:$0xf]
          %v533 = vld [vmem:[%s416 + $0x1d0] sm:$0xf]
          %v534 = vld [vmem:[%s416 + $0x1d4] sm:$0xf]
          %v535 = vld [vmem:[%s416 + $0x1d8] sm:$0xf]
          %v536 = vld [vmem:[%s416 + $0x1dc] sm:$0xf]
          %v537 = vld [vmem:[%s416 + $0x1e0] sm:$0xf]
          %v538 = vld [vmem:[%s416 + $0x1e4] sm:$0xf]
          %v539 = vld [vmem:[%s416 + $0x1e8] sm:$0xf]
          %v540 = vld [vmem:[%s416 + $0x1ec] sm:$0xf]
          %v541 = vld [vmem:[%s416 + $0x1f0] sm:$0xf]
          %v542 = vld [vmem:[%s416 + $0x1f4] sm:$0xf]
          %v543 = vld [vmem:[%s416 + $0x1f8] sm:$0xf]
          %v544 = vld [vmem:[%s416 + $0x1fc] sm:$0xf]
          %v545 = vld [vmem:[%s1] sm:$0xf]
          %v546 = vld [vmem:[%s1 + $0x4] sm:$0xf]
          %v547 = vld [vmem:[%s1 + $0x8] sm:$0xf]
          %v548 = vld [vmem:[%s1 + $0xc] sm:$0xf]
          %v549 = vld [vmem:[%s1 + $0x10] sm:$0xf]
          %v550 = vld [vmem:[%s1 + $0x14] sm:$0xf]
          %v551 = vld [vmem:[%s1 + $0x18] sm:$0xf]
          %v552 = vld [vmem:[%s1 + $0x1c] sm:$0xf]
          %v553 = vld [vmem:[%s1 + $0x20] sm:$0xf]
          %v554 = vld [vmem:[%s1 + $0x24] sm:$0x3]
          %v555 = vld [vmem:[%s2] sm:$0x1]
          %v557 = vlaneseq
          %v558 = vshrl.u32 %v557, 7
          %v559 = vsub.s32 0, %v558
          %v560 = vrot.slane %v555, %v559
          %v690 = vunpack.c.l.b16 %v417
          %v691 = vunpack.c.l.b16 %v418
          %v692 = vunpack.c.l.b16 %v419
          %v693 = vunpack.c.l.b16 %v420
          %v694 = vunpack.c.l.b16 %v421
          %v695 = vunpack.c.l.b16 %v422
          %v696 = vunpack.c.l.b16 %v423
          %v697 = vunpack.c.l.b16 %v424
          %v698 = vunpack.c.l.b16 %v425
          %v699 = vunpack.c.l.b16 %v426
          %v700 = vunpack.c.l.b16 %v427
          %v701 = vunpack.c.l.b16 %v428
          %v702 = vunpack.c.l.b16 %v429
          %v703 = vunpack.c.l.b16 %v430
          %v704 = vunpack.c.l.b16 %v431
          %v705 = vunpack.c.l.b16 %v432
          %v706 = vunpack.c.l.b16 %v433
          %v707 = vunpack.c.l.b16 %v434
          %v708 = vunpack.c.l.b16 %v435
          %v709 = vunpack.c.l.b16 %v436
          %v710 = vunpack.c.l.b16 %v437
          %v711 = vunpack.c.l.b16 %v438
          %v712 = vunpack.c.l.b16 %v439
          %v713 = vunpack.c.l.b16 %v440
          %v714 = vunpack.c.l.b16 %v441
          %v715 = vunpack.c.l.b16 %v442
          %v716 = vunpack.c.l.b16 %v443
          %v717 = vunpack.c.l.b16 %v444
          %v718 = vunpack.c.l.b16 %v445
          %v719 = vunpack.c.l.b16 %v446
          %v720 = vunpack.c.l.b16 %v447
          %v721 = vunpack.c.l.b16 %v448
          %v722 = vunpack.c.l.b16 %v449
          %v723 = vunpack.c.l.b16 %v450
          %v724 = vunpack.c.l.b16 %v451
          %v725 = vunpack.c.l.b16 %v452
          %v726 = vunpack.c.l.b16 %v453
          %v727 = vunpack.c.l.b16 %v454
          %v728 = vunpack.c.l.b16 %v455
          %v729 = vunpack.c.l.b16 %v456
          %v730 = vunpack.c.l.b16 %v457
          %v731 = vunpack.c.l.b16 %v458
          %v732 = vunpack.c.l.b16 %v459
          %v733 = vunpack.c.l.b16 %v460
          %v734 = vunpack.c.l.b16 %v461
          %v735 = vunpack.c.l.b16 %v462
          %v736 = vunpack.c.l.b16 %v463
          %v737 = vunpack.c.l.b16 %v464
          %v738 = vunpack.c.l.b16 %v465
          %v739 = vunpack.c.l.b16 %v466
          %v740 = vunpack.c.l.b16 %v467
          %v741 = vunpack.c.l.b16 %v468
          %v742 = vunpack.c.l.b16 %v469
          %v743 = vunpack.c.l.b16 %v470
          %v744 = vunpack.c.l.b16 %v471
          %v745 = vunpack.c.l.b16 %v472
          %v746 = vunpack.c.l.b16 %v473
          %v747 = vunpack.c.l.b16 %v474
          %v748 = vunpack.c.l.b16 %v475
          %v749 = vunpack.c.l.b16 %v476
          %v750 = vunpack.c.l.b16 %v477
          %v751 = vunpack.c.l.b16 %v478
          %v752 = vunpack.c.l.b16 %v479
          %v753 = vunpack.c.l.b16 %v480
          %v754 = vunpack.c.l.b16 %v481
          %v755 = vunpack.c.l.b16 %v482
          %v756 = vunpack.c.l.b16 %v483
          %v757 = vunpack.c.l.b16 %v484
          %v758 = vunpack.c.l.b16 %v485
          %v759 = vunpack.c.l.b16 %v486
          %v760 = vunpack.c.l.b16 %v487
          %v761 = vunpack.c.l.b16 %v488
          %v762 = vunpack.c.l.b16 %v489
          %v763 = vunpack.c.l.b16 %v490
          %v764 = vunpack.c.l.b16 %v491
          %v765 = vunpack.c.l.b16 %v492
          %v766 = vunpack.c.l.b16 %v493
          %v767 = vunpack.c.l.b16 %v494
          %v768 = vunpack.c.l.b16 %v495
          %v769 = vunpack.c.l.b16 %v496
          %v770 = vunpack.c.l.b16 %v497
          %v771 = vunpack.c.l.b16 %v498
          %v772 = vunpack.c.l.b16 %v499
          %v773 = vunpack.c.l.b16 %v500
          %v774 = vunpack.c.l.b16 %v501
          %v775 = vunpack.c.l.b16 %v502
          %v776 = vunpack.c.l.b16 %v503
          %v777 = vunpack.c.l.b16 %v504
          %v778 = vunpack.c.l.b16 %v505
          %v779 = vunpack.c.l.b16 %v506
          %v780 = vunpack.c.l.b16 %v507
          %v781 = vunpack.c.l.b16 %v508
          %v782 = vunpack.c.l.b16 %v509
          %v783 = vunpack.c.l.b16 %v510
          %v784 = vunpack.c.l.b16 %v511
          %v785 = vunpack.c.l.b16 %v512
          %v786 = vunpack.c.l.b16 %v513
          %v787 = vunpack.c.l.b16 %v514
          %v788 = vunpack.c.l.b16 %v515
          %v789 = vunpack.c.l.b16 %v516
          %v790 = vunpack.c.l.b16 %v517
          %v791 = vunpack.c.l.b16 %v518
          %v792 = vunpack.c.l.b16 %v519
          %v793 = vunpack.c.l.b16 %v520
          %v794 = vunpack.c.l.b16 %v521
          %v795 = vunpack.c.l.b16 %v522
          %v796 = vunpack.c.l.b16 %v523
          %v797 = vunpack.c.l.b16 %v524
          %v798 = vunpack.c.l.b16 %v525
          %v799 = vunpack.c.l.b16 %v526
          %v800 = vunpack.c.l.b16 %v527
          %v801 = vunpack.c.l.b16 %v528
          %v802 = vunpack.c.l.b16 %v529
          %v803 = vunpack.c.l.b16 %v530
          %v804 = vunpack.c.l.b16 %v531
          %v805 = vunpack.c.l.b16 %v532
          %v806 = vunpack.c.l.b16 %v533
          %v807 = vunpack.c.l.b16 %v534
          %v808 = vunpack.c.l.b16 %v535
          %v809 = vunpack.c.l.b16 %v536
          %v810 = vunpack.c.l.b16 %v537
          %v811 = vunpack.c.l.b16 %v538
          %v812 = vunpack.c.l.b16 %v539
          %v813 = vunpack.c.l.b16 %v540
          %v814 = vunpack.c.l.b16 %v541
          %v815 = vunpack.c.l.b16 %v542
          %v816 = vunpack.c.l.b16 %v543
          %v817 = vunpack.c.l.b16 %v544
          %v818 = vpack.c.b16 %v691, %v690
          %v819 = vpack.c.b16 %v693, %v692
          %v820 = vpack.c.b16 %v695, %v694
          %v821 = vpack.c.b16 %v697, %v696
          %v822 = vpack.c.b16 %v699, %v698
          %v823 = vpack.c.b16 %v701, %v700
          %v824 = vpack.c.b16 %v703, %v702
          %v825 = vpack.c.b16 %v705, %v704
          %v826 = vpack.c.b16 %v707, %v706
          %v827 = vpack.c.b16 %v709, %v708
          %v828 = vpack.c.b16 %v711, %v710
          %v829 = vpack.c.b16 %v713, %v712
          %v830 = vpack.c.b16 %v715, %v714
          %v831 = vpack.c.b16 %v717, %v716
          %v832 = vpack.c.b16 %v719, %v718
          %v833 = vpack.c.b16 %v721, %v720
          %v834 = vpack.c.b16 %v723, %v722
          %v835 = vpack.c.b16 %v725, %v724
          %v836 = vpack.c.b16 %v727, %v726
          %v837 = vpack.c.b16 %v729, %v728
          %v838 = vpack.c.b16 %v731, %v730
          %v839 = vpack.c.b16 %v733, %v732
          %v840 = vpack.c.b16 %v735, %v734
          %v841 = vpack.c.b16 %v737, %v736
          %v842 = vpack.c.b16 %v739, %v738
          %v843 = vpack.c.b16 %v741, %v740
          %v844 = vpack.c.b16 %v743, %v742
          %v845 = vpack.c.b16 %v745, %v744
          %v846 = vpack.c.b16 %v747, %v746
          %v847 = vpack.c.b16 %v749, %v748
          %v848 = vpack.c.b16 %v751, %v750
          %v849 = vpack.c.b16 %v753, %v752
          %v850 = vpack.c.b16 %v755, %v754
          %v851 = vpack.c.b16 %v757, %v756
          %v852 = vpack.c.b16 %v759, %v758
          %v853 = vpack.c.b16 %v761, %v760
          %v854 = vpack.c.b16 %v763, %v762
          %v855 = vpack.c.b16 %v765, %v764
          %v856 = vpack.c.b16 %v767, %v766
          %v857 = vpack.c.b16 %v769, %v768
          %v858 = vpack.c.b16 %v771, %v770
          %v859 = vpack.c.b16 %v773, %v772
          %v860 = vpack.c.b16 %v775, %v774
          %v861 = vpack.c.b16 %v777, %v776
          %v862 = vpack.c.b16 %v779, %v778
          %v863 = vpack.c.b16 %v781, %v780
          %v864 = vpack.c.b16 %v783, %v782
          %v865 = vpack.c.b16 %v785, %v784
          %v866 = vpack.c.b16 %v787, %v786
          %v867 = vpack.c.b16 %v789, %v788
          %v868 = vpack.c.b16 %v791, %v790
          %v869 = vpack.c.b16 %v793, %v792
          %v870 = vpack.c.b16 %v795, %v794
          %v871 = vpack.c.b16 %v797, %v796
          %v872 = vpack.c.b16 %v799, %v798
          %v873 = vpack.c.b16 %v801, %v800
          %v874 = vpack.c.b16 %v803, %v802
          %v875 = vpack.c.b16 %v805, %v804
          %v876 = vpack.c.b16 %v807, %v806
          %v877 = vpack.c.b16 %v809, %v808
          %v878 = vpack.c.b16 %v811, %v810
          %v879 = vpack.c.b16 %v813, %v812
          %v880 = vpack.c.b16 %v815, %v814
          %v881 = vpack.c.b16 %v817, %v816
          %v892 = vunpack.c.l.b16 %v545
          %v893 = vunpack.c.l.b16 %v546
          %v894 = vunpack.c.l.b16 %v547
          %v895 = vunpack.c.l.b16 %v548
          %v896 = vunpack.c.l.b16 %v549
          %v897 = vunpack.c.l.b16 %v550
          %v898 = vunpack.c.l.b16 %v551
          %v899 = vunpack.c.l.b16 %v552
          %v900 = vunpack.c.l.b16 %v553
          %v901 = vunpack.c.l.b16 %v554
          %v902 = vpack.c.b16 %v893, %v892
          %v903 = vpack.c.b16 %v895, %v894
          %v904 = vpack.c.b16 %v897, %v896
          %v905 = vpack.c.b16 %v899, %v898
          %v906 = vpack.c.b16 %v901, %v900
          %vm911 = vcmask 613376
          %v913 = vsel %vm911, %v818, 0
          %v916 = vsel %vm911, %v819, 0
          %v919 = vsel %vm911, %v820, 0
          %v922 = vsel %vm911, %v821, 0
          %v925 = vsel %vm911, %v822, 0
          %v928 = vsel %vm911, %v823, 0
          %v931 = vsel %vm911, %v824, 0
          %v934 = vsel %vm911, %v825, 0
          %v937 = vsel %vm911, %v826, 0
          %v940 = vsel %vm911, %v827, 0
          %v943 = vsel %vm911, %v828, 0
          %v946 = vsel %vm911, %v829, 0
          %v949 = vsel %vm911, %v830, 0
          %v952 = vsel %vm911, %v831, 0
          %v955 = vsel %vm911, %v832, 0
          %v958 = vsel %vm911, %v833, 0
          %v961 = vsel %vm911, %v834, 0
          %v964 = vsel %vm911, %v835, 0
          %v967 = vsel %vm911, %v836, 0
          %v970 = vsel %vm911, %v837, 0
          %v973 = vsel %vm911, %v838, 0
          %v976 = vsel %vm911, %v839, 0
          %v979 = vsel %vm911, %v840, 0
          %v982 = vsel %vm911, %v841, 0
          %v985 = vsel %vm911, %v842, 0
          %v988 = vsel %vm911, %v843, 0
          %v991 = vsel %vm911, %v844, 0
          %v994 = vsel %vm911, %v845, 0
          %v997 = vsel %vm911, %v846, 0
          %v1000 = vsel %vm911, %v847, 0
          %v1003 = vsel %vm911, %v848, 0
          %v1006 = vsel %vm911, %v849, 0
          %v1009 = vsel %vm911, %v850, 0
          %v1012 = vsel %vm911, %v851, 0
          %v1015 = vsel %vm911, %v852, 0
          %v1018 = vsel %vm911, %v853, 0
          %v1021 = vsel %vm911, %v854, 0
          %v1024 = vsel %vm911, %v855, 0
          %v1027 = vsel %vm911, %v856, 0
          %v1030 = vsel %vm911, %v857, 0
          %v1033 = vsel %vm911, %v858, 0
          %v1036 = vsel %vm911, %v859, 0
          %v1039 = vsel %vm911, %v860, 0
          %v1042 = vsel %vm911, %v861, 0
          %v1045 = vsel %vm911, %v862, 0
          %v1048 = vsel %vm911, %v863, 0
          %v1051 = vsel %vm911, %v864, 0
          %v1054 = vsel %vm911, %v865, 0
          %v1057 = vsel %vm911, %v866, 0
          %v1060 = vsel %vm911, %v867, 0
          %v1063 = vsel %vm911, %v868, 0
          %v1066 = vsel %vm911, %v869, 0
          %v1069 = vsel %vm911, %v870, 0
          %v1072 = vsel %vm911, %v871, 0
          %v1075 = vsel %vm911, %v872, 0
          %v1078 = vsel %vm911, %v873, 0
          %v1081 = vsel %vm911, %v874, 0
          %v1084 = vsel %vm911, %v875, 0
          %v1087 = vsel %vm911, %v876, 0
          %v1090 = vsel %vm911, %v877, 0
          %v1093 = vsel %vm911, %v878, 0
          %v1096 = vsel %vm911, %v879, 0
          %v1099 = vsel %vm911, %v880, 0
          %v1102 = vsel %vm911, %v881, 0
          %vm1104 = vcmask 1044480
          %vm1105 = vcmask 1045504
          %v1106 = vsel %vm1104, 4294967295, 65535
          %v1107 = vsel %vm1105, %v1106, 0
          %v1109 = vand.u32 %v906, %v1107
          %1111 = vmatprep.subr.bf16.mxu0 0
          %1112 = vmatpush1.bf16.msra.mxu0 %v902
          %1113 = vmatprep.subr.bf16.mxu0 0
          %1114 = vmatpush1.bf16.msra.mxu0 %v903
          %1115 = vmatprep.subr.bf16.mxu0 0
          %1116 = vmatpush1.bf16.msra.mxu0 %v904
          %1117 = vmatprep.subr.bf16.mxu0 0
          %1118 = vmatpush1.bf16.msra.mxu0 %v905
          %1119 = vmatprep.subr.bf16.mxu0 0
          %1120 = vmatpush1.bf16.msra.mxu0 %v1109
          %1121 = vmatprep.subr.bf16.mxu0 0
          %1122 = vmatpush1.bf16.msra.mxu0 0
          %1123 = vmatprep.subr.bf16.mxu0 0
          %1124 = vmatpush1.bf16.msra.mxu0 0
          %1125 = vmatprep.subr.bf16.mxu0 0
          %1126 = vmatpush1.bf16.msra.mxu0 0
          %1127 = vmatprep.subr.bf16.mxu0 0
          %1128 = vmatpush1.bf16.msra.mxu0 0
          %1129 = vmatprep.subr.bf16.mxu0 0
          %1130 = vmatpush1.bf16.msra.mxu0 0
          %1131 = vmatprep.subr.bf16.mxu0 0
          %1132 = vmatpush1.bf16.msra.mxu0 0
          %1133 = vmatprep.subr.bf16.mxu0 0
          %1134 = vmatpush1.bf16.msra.mxu0 0
          %1135 = vmatprep.subr.bf16.mxu0 0
          %1136 = vmatpush1.bf16.msra.mxu0 0
          %1137 = vmatprep.subr.bf16.mxu0 0
          %1138 = vmatpush1.bf16.msra.mxu0 0
          %1139 = vmatprep.subr.bf16.mxu0 0
          %1140 = vmatpush1.bf16.msra.mxu0 0
          %1141 = vmatprep.subr.bf16.mxu0 0
          %1142 = vmatpush1.bf16.msra.mxu0 0
          %1143 = vmatprep.mubr.bf16.mxu0 0
          %1144 = vmatmul.mubr.bf16.gmra.mrb[0].mxu0 %v913
          %v1145 = vpop.f32.mrb[0].mxu0
          %v1146 = vadd.f32 %v560, %v1145
          %v1147 = vpop.f32.mrb[0].mxu0
          %v1148 = vpop.f32.mrb[0].mxu0
          %v1149 = vadd.f32 %v560, %v1148
          %v1150 = vpop.f32.mrb[0].mxu0
          %1151 = vmatprep.mubr.bf16.mxu0 0
          %1152 = vmatmul.mubr.bf16.gmra.mrb[0].mxu0 %v916
          %v1153 = vpop.f32.mrb[0].mxu0
          %v1154 = vadd.f32 %v560, %v1153
          %v1155 = vpop.f32.mrb[0].mxu0
          %v1156 = vpop.f32.mrb[0].mxu0
          %v1157 = vadd.f32 %v560, %v1156
          %v1158 = vpop.f32.mrb[0].mxu0
          %1159 = vmatprep.mubr.bf16.mxu0 0
          %1160 = vmatmul.mubr.bf16.gmra.mrb[0].mxu0 %v919
          %v1161 = vpop.f32.mrb[0].mxu0
          %v1162 = vadd.f32 %v560, %v1161
          %v1163 = vpop.f32.mrb[0].mxu0
          %v1164 = vpop.f32.mrb[0].mxu0
          %v1165 = vadd.f32 %v560, %v1164
          %v1166 = vpop.f32.mrb[0].mxu0
          %1167 = vmatprep.mubr.bf16.mxu0 0
          %1168 = vmatmul.mubr.bf16.gmra.mrb[0].mxu0 %v922
          %v1169 = vpop.f32.mrb[0].mxu0
          %v1170 = vadd.f32 %v560, %v1169
          %v1171 = vpop.f32.mrb[0].mxu0
          %v1172 = vpop.f32.mrb[0].mxu0
          %v1173 = vadd.f32 %v560, %v1172
          %v1174 = vpop.f32.mrb[0].mxu0
          %1175 = vmatprep.mubr.bf16.mxu0 0
          %1176 = vmatmul.mubr.bf16.gmra.mrb[0].mxu0 %v925
          %v1177 = vpop.f32.mrb[0].mxu0
          %v1178 = vadd.f32 %v560, %v1177
          %v1179 = vpop.f32.mrb[0].mxu0
          %v1180 = vpop.f32.mrb[0].mxu0
          %v1181 = vadd.f32 %v560, %v1180
          %v1182 = vpop.f32.mrb[0].mxu0
          %1183 = vmatprep.mubr.bf16.mxu0 0
          %1184 = vmatmul.mubr.bf16.gmra.mrb[0].mxu0 %v928
          %v1185 = vpop.f32.mrb[0].mxu0
          %v1186 = vadd.f32 %v560, %v1185
          %v1187 = vpop.f32.mrb[0].mxu0
          %v1188 = vpop.f32.mrb[0].mxu0
          %v1189 = vadd.f32 %v560, %v1188
          %v1190 = vpop.f32.mrb[0].mxu0
          %1191 = vmatprep.mubr.bf16.mxu0 0
          %1192 = vmatmul.mubr.bf16.gmra.mrb[0].mxu0 %v931
          %v1193 = vpop.f32.mrb[0].mxu0
          %v1194 = vadd.f32 %v560, %v1193
          %v1195 = vpop.f32.mrb[0].mxu0
          %v1196 = vpop.f32.mrb[0].mxu0
          %v1197 = vadd.f32 %v560, %v1196
          %v1198 = vpop.f32.mrb[0].mxu0
          %1199 = vmatprep.mubr.bf16.mxu0 0
          %1200 = vmatmul.mubr.bf16.gmra.mrb[0].mxu0 %v934
          %v1201 = vpop.f32.mrb[0].mxu0
          %v1202 = vadd.f32 %v560, %v1201
          %v1203 = vpop.f32.mrb[0].mxu0
          %v1204 = vpop.f32.mrb[0].mxu0
          %v1205 = vadd.f32 %v560, %v1204
          %v1206 = vpop.f32.mrb[0].mxu0
          %1207 = vmatprep.mubr.bf16.mxu0 0
          %1208 = vmatmul.mubr.bf16.gmra.mrb[0].mxu0 %v937
          %v1209 = vpop.f32.mrb[0].mxu0
          %v1210 = vadd.f32 %v560, %v1209
          %v1211 = vpop.f32.mrb[0].mxu0
          %v1212 = vpop.f32.mrb[0].mxu0
          %v1213 = vadd.f32 %v560, %v1212
          %v1214 = vpop.f32.mrb[0].mxu0
          %1215 = vmatprep.mubr.bf16.mxu0 0
          %1216 = vmatmul.mubr.bf16.gmra.mrb[0].mxu0 %v940
          %v1217 = vpop.f32.mrb[0].mxu0
          %v1218 = vadd.f32 %v560, %v1217
          %v1219 = vpop.f32.mrb[0].mxu0
          %v1220 = vpop.f32.mrb[0].mxu0
          %v1221 = vadd.f32 %v560, %v1220
          %v1222 = vpop.f32.mrb[0].mxu0
          %1223 = vmatprep.mubr.bf16.mxu0 0
          %1224 = vmatmul.mubr.bf16.gmra.mrb[0].mxu0 %v943
          %v1225 = vpop.f32.mrb[0].mxu0
          %v1226 = vadd.f32 %v560, %v1225
          %v1227 = vpop.f32.mrb[0].mxu0
          %v1228 = vpop.f32.mrb[0].mxu0
          %v1229 = vadd.f32 %v560, %v1228
          %v1230 = vpop.f32.mrb[0].mxu0
          %1231 = vmatprep.mubr.bf16.mxu0 0
          %1232 = vmatmul.mubr.bf16.gmra.mrb[0].mxu0 %v946
          %v1233 = vpop.f32.mrb[0].mxu0
          %v1234 = vadd.f32 %v560, %v1233
          %v1235 = vpop.f32.mrb[0].mxu0
          %v1236 = vpop.f32.mrb[0].mxu0
          %v1237 = vadd.f32 %v560, %v1236
          %v1238 = vpop.f32.mrb[0].mxu0
          %1239 = vmatprep.mubr.bf16.mxu0 0
          %1240 = vmatmul.mubr.bf16.gmra.mrb[0].mxu0 %v949
          %v1241 = vpop.f32.mrb[0].mxu0
          %v1242 = vadd.f32 %v560, %v1241
          %v1243 = vpop.f32.mrb[0].mxu0
          %v1244 = vpop.f32.mrb[0].mxu0
          %v1245 = vadd.f32 %v560, %v1244
          %v1246 = vpop.f32.mrb[0].mxu0
          %1247 = vmatprep.mubr.bf16.mxu0 0
          %1248 = vmatmul.mubr.bf16.gmra.mrb[0].mxu0 %v952
          %v1249 = vpop.f32.mrb[0].mxu0
          %v1250 = vadd.f32 %v560, %v1249
          %v1251 = vpop.f32.mrb[0].mxu0
          %v1252 = vpop.f32.mrb[0].mxu0
          %v1253 = vadd.f32 %v560, %v1252
          %v1254 = vpop.f32.mrb[0].mxu0
          %1255 = vmatprep.mubr.bf16.mxu0 0
          %1256 = vmatmul.mubr.bf16.gmra.mrb[0].mxu0 %v955
          %v1257 = vpop.f32.mrb[0].mxu0
          %v1258 = vadd.f32 %v560, %v1257
          %v1259 = vpop.f32.mrb[0].mxu0
          %v1260 = vpop.f32.mrb[0].mxu0
          %v1261 = vadd.f32 %v560, %v1260
          %v1262 = vpop.f32.mrb[0].mxu0
          %1263 = vmatprep.mubr.bf16.mxu0 0
          %1264 = vmatmul.mubr.bf16.gmra.mrb[0].mxu0 %v958
          %v1265 = vpop.f32.mrb[0].mxu0
          %v1266 = vadd.f32 %v560, %v1265
          %v1267 = vpop.f32.mrb[0].mxu0
          %v1268 = vpop.f32.mrb[0].mxu0
          %v1269 = vadd.f32 %v560, %v1268
          %v1270 = vpop.f32.mrb[0].mxu0
          %1271 = vmatprep.mubr.bf16.mxu0 0
          %1272 = vmatmul.mubr.bf16.gmra.mrb[0].mxu0 %v961
          %v1273 = vpop.f32.mrb[0].mxu0
          %v1274 = vadd.f32 %v560, %v1273
          %v1275 = vpop.f32.mrb[0].mxu0
          %v1276 = vpop.f32.mrb[0].mxu0
          %v1277 = vadd.f32 %v560, %v1276
          %v1278 = vpop.f32.mrb[0].mxu0
          %1279 = vmatprep.mubr.bf16.mxu0 0
          %1280 = vmatmul.mubr.bf16.gmra.mrb[0].mxu0 %v964
          %v1281 = vpop.f32.mrb[0].mxu0
          %v1282 = vadd.f32 %v560, %v1281
          %v1283 = vpop.f32.mrb[0].mxu0
          %v1284 = vpop.f32.mrb[0].mxu0
          %v1285 = vadd.f32 %v560, %v1284
          %v1286 = vpop.f32.mrb[0].mxu0
          %1287 = vmatprep.mubr.bf16.mxu0 0
          %1288 = vmatmul.mubr.bf16.gmra.mrb[0].mxu0 %v967
          %v1289 = vpop.f32.mrb[0].mxu0
          %v1290 = vadd.f32 %v560, %v1289
          %v1291 = vpop.f32.mrb[0].mxu0
          %v1292 = vpop.f32.mrb[0].mxu0
          %v1293 = vadd.f32 %v560, %v1292
          %v1294 = vpop.f32.mrb[0].mxu0
          %1295 = vmatprep.mubr.bf16.mxu0 0
          %1296 = vmatmul.mubr.bf16.gmra.mrb[0].mxu0 %v970
          %v1297 = vpop.f32.mrb[0].mxu0
          %v1298 = vadd.f32 %v560, %v1297
          %v1299 = vpop.f32.mrb[0].mxu0
          %v1300 = vpop.f32.mrb[0].mxu0
          %v1301 = vadd.f32 %v560, %v1300
          %v1302 = vpop.f32.mrb[0].mxu0
          %1303 = vmatprep.mubr.bf16.mxu0 0
          %1304 = vmatmul.mubr.bf16.gmra.mrb[0].mxu0 %v973
          %v1305 = vpop.f32.mrb[0].mxu0
          %v1306 = vadd.f32 %v560, %v1305
          %v1307 = vpop.f32.mrb[0].mxu0
          %v1308 = vpop.f32.mrb[0].mxu0
          %v1309 = vadd.f32 %v560, %v1308
          %v1310 = vpop.f32.mrb[0].mxu0
          %1311 = vmatprep.mubr.bf16.mxu0 0
          %1312 = vmatmul.mubr.bf16.gmra.mrb[0].mxu0 %v976
          %v1313 = vpop.f32.mrb[0].mxu0
          %v1314 = vadd.f32 %v560, %v1313
          %v1315 = vpop.f32.mrb[0].mxu0
          %v1316 = vpop.f32.mrb[0].mxu0
          %v1317 = vadd.f32 %v560, %v1316
          %v1318 = vpop.f32.mrb[0].mxu0
          %1319 = vmatprep.mubr.bf16.mxu0 0
          %1320 = vmatmul.mubr.bf16.gmra.mrb[0].mxu0 %v979
          %v1321 = vpop.f32.mrb[0].mxu0
          %v1322 = vadd.f32 %v560, %v1321
          %v1323 = vpop.f32.mrb[0].mxu0
          %v1324 = vpop.f32.mrb[0].mxu0
          %v1325 = vadd.f32 %v560, %v1324
          %v1326 = vpop.f32.mrb[0].mxu0
          %1327 = vmatprep.mubr.bf16.mxu0 0
          %1328 = vmatmul.mubr.bf16.gmra.mrb[0].mxu0 %v982
          %v1329 = vpop.f32.mrb[0].mxu0
          %v1330 = vadd.f32 %v560, %v1329
          %v1331 = vpop.f32.mrb[0].mxu0
          %v1332 = vpop.f32.mrb[0].mxu0
          %v1333 = vadd.f32 %v560, %v1332
          %v1334 = vpop.f32.mrb[0].mxu0
          %1335 = vmatprep.mubr.bf16.mxu0 0
          %1336 = vmatmul.mubr.bf16.gmra.mrb[0].mxu0 %v985
          %v1337 = vpop.f32.mrb[0].mxu0
          %v1338 = vadd.f32 %v560, %v1337
          %v1339 = vpop.f32.mrb[0].mxu0
          %v1340 = vpop.f32.mrb[0].mxu0
          %v1341 = vadd.f32 %v560, %v1340
          %v1342 = vpop.f32.mrb[0].mxu0
          %1343 = vmatprep.mubr.bf16.mxu0 0
          %1344 = vmatmul.mubr.bf16.gmra.mrb[0].mxu0 %v988
          %v1345 = vpop.f32.mrb[0].mxu0
          %v1346 = vadd.f32 %v560, %v1345
          %v1347 = vpop.f32.mrb[0].mxu0
          %v1348 = vpop.f32.mrb[0].mxu0
          %v1349 = vadd.f32 %v560, %v1348
          %v1350 = vpop.f32.mrb[0].mxu0
          %1351 = vmatprep.mubr.bf16.mxu0 0
          %1352 = vmatmul.mubr.bf16.gmra.mrb[0].mxu0 %v991
          %v1353 = vpop.f32.mrb[0].mxu0
          %v1354 = vadd.f32 %v560, %v1353
          %v1355 = vpop.f32.mrb[0].mxu0
          %v1356 = vpop.f32.mrb[0].mxu0
          %v1357 = vadd.f32 %v560, %v1356
          %v1358 = vpop.f32.mrb[0].mxu0
          %1359 = vmatprep.mubr.bf16.mxu0 0
          %1360 = vmatmul.mubr.bf16.gmra.mrb[0].mxu0 %v994
          %v1361 = vpop.f32.mrb[0].mxu0
          %v1362 = vadd.f32 %v560, %v1361
          %v1363 = vpop.f32.mrb[0].mxu0
          %v1364 = vpop.f32.mrb[0].mxu0
          %v1365 = vadd.f32 %v560, %v1364
          %v1366 = vpop.f32.mrb[0].mxu0
          %1367 = vmatprep.mubr.bf16.mxu0 0
          %1368 = vmatmul.mubr.bf16.gmra.mrb[0].mxu0 %v997
          %v1369 = vpop.f32.mrb[0].mxu0
          %v1370 = vadd.f32 %v560, %v1369
          %v1371 = vpop.f32.mrb[0].mxu0
          %v1372 = vpop.f32.mrb[0].mxu0
          %v1373 = vadd.f32 %v560, %v1372
          %v1374 = vpop.f32.mrb[0].mxu0
          %1375 = vmatprep.mubr.bf16.mxu0 0
          %1376 = vmatmul.mubr.bf16.gmra.mrb[0].mxu0 %v1000
          %v1377 = vpop.f32.mrb[0].mxu0
          %v1378 = vadd.f32 %v560, %v1377
          %v1379 = vpop.f32.mrb[0].mxu0
          %v1380 = vpop.f32.mrb[0].mxu0
          %v1381 = vadd.f32 %v560, %v1380
          %v1382 = vpop.f32.mrb[0].mxu0
          %1383 = vmatprep.mubr.bf16.mxu0 0
          %1384 = vmatmul.mubr.bf16.gmra.mrb[0].mxu0 %v1003
          %v1385 = vpop.f32.mrb[0].mxu0
          %v1386 = vadd.f32 %v560, %v1385
          %v1387 = vpop.f32.mrb[0].mxu0
          %v1388 = vpop.f32.mrb[0].mxu0
          %v1389 = vadd.f32 %v560, %v1388
          %v1390 = vpop.f32.mrb[0].mxu0
          %1391 = vmatprep.mubr.bf16.mxu0 0
          %1392 = vmatmul.mubr.bf16.gmra.mrb[0].mxu0 %v1006
          %v1393 = vpop.f32.mrb[0].mxu0
          %v1394 = vadd.f32 %v560, %v1393
          %v1395 = vpop.f32.mrb[0].mxu0
          %v1396 = vpop.f32.mrb[0].mxu0
          %v1397 = vadd.f32 %v560, %v1396
          %v1398 = vpop.f32.mrb[0].mxu0
          %1399 = vmatprep.mubr.bf16.mxu0 0
          %1400 = vmatmul.mubr.bf16.gmra.mrb[0].mxu0 %v1009
          %v1401 = vpop.f32.mrb[0].mxu0
          %v1402 = vadd.f32 %v560, %v1401
          %v1403 = vpop.f32.mrb[0].mxu0
          %v1404 = vpop.f32.mrb[0].mxu0
          %v1405 = vadd.f32 %v560, %v1404
          %v1406 = vpop.f32.mrb[0].mxu0
          %1407 = vmatprep.mubr.bf16.mxu0 0
          %1408 = vmatmul.mubr.bf16.gmra.mrb[0].mxu0 %v1012
          %v1409 = vpop.f32.mrb[0].mxu0
          %v1410 = vadd.f32 %v560, %v1409
          %v1411 = vpop.f32.mrb[0].mxu0
          %v1412 = vpop.f32.mrb[0].mxu0
          %v1413 = vadd.f32 %v560, %v1412
          %v1414 = vpop.f32.mrb[0].mxu0
          %1415 = vmatprep.mubr.bf16.mxu0 0
          %1416 = vmatmul.mubr.bf16.gmra.mrb[0].mxu0 %v1015
          %v1417 = vpop.f32.mrb[0].mxu0
          %v1418 = vadd.f32 %v560, %v1417
          %v1419 = vpop.f32.mrb[0].mxu0
          %v1420 = vpop.f32.mrb[0].mxu0
          %v1421 = vadd.f32 %v560, %v1420
          %v1422 = vpop.f32.mrb[0].mxu0
          %1423 = vmatprep.mubr.bf16.mxu0 0
          %1424 = vmatmul.mubr.bf16.gmra.mrb[0].mxu0 %v1018
          %v1425 = vpop.f32.mrb[0].mxu0
          %v1426 = vadd.f32 %v560, %v1425
          %v1427 = vpop.f32.mrb[0].mxu0
          %v1428 = vpop.f32.mrb[0].mxu0
          %v1429 = vadd.f32 %v560, %v1428
          %v1430 = vpop.f32.mrb[0].mxu0
          %1431 = vmatprep.mubr.bf16.mxu0 0
          %1432 = vmatmul.mubr.bf16.gmra.mrb[0].mxu0 %v1021
          %v1433 = vpop.f32.mrb[0].mxu0
          %v1434 = vadd.f32 %v560, %v1433
          %v1435 = vpop.f32.mrb[0].mxu0
          %v1436 = vpop.f32.mrb[0].mxu0
          %v1437 = vadd.f32 %v560, %v1436
          %v1438 = vpop.f32.mrb[0].mxu0
          %1439 = vmatprep.mubr.bf16.mxu0 0
          %1440 = vmatmul.mubr.bf16.gmra.mrb[0].mxu0 %v1024
          %v1441 = vpop.f32.mrb[0].mxu0
          %v1442 = vadd.f32 %v560, %v1441
          %v1443 = vpop.f32.mrb[0].mxu0
          %v1444 = vpop.f32.mrb[0].mxu0
          %v1445 = vadd.f32 %v560, %v1444
          %v1446 = vpop.f32.mrb[0].mxu0
          %1447 = vmatprep.mubr.bf16.mxu0 0
          %1448 = vmatmul.mubr.bf16.gmra.mrb[0].mxu0 %v1027
          %v1449 = vpop.f32.mrb[0].mxu0
          %v1450 = vadd.f32 %v560, %v1449
          %v1451 = vpop.f32.mrb[0].mxu0
          %v1452 = vpop.f32.mrb[0].mxu0
          %v1453 = vadd.f32 %v560, %v1452
          %v1454 = vpop.f32.mrb[0].mxu0
          %1455 = vmatprep.mubr.bf16.mxu0 0
          %1456 = vmatmul.mubr.bf16.gmra.mrb[0].mxu0 %v1030
          %v1457 = vpop.f32.mrb[0].mxu0
          %v1458 = vadd.f32 %v560, %v1457
          %v1459 = vpop.f32.mrb[0].mxu0
          %v1460 = vpop.f32.mrb[0].mxu0
          %v1461 = vadd.f32 %v560, %v1460
          %v1462 = vpop.f32.mrb[0].mxu0
          %1463 = vmatprep.mubr.bf16.mxu0 0
          %1464 = vmatmul.mubr.bf16.gmra.mrb[0].mxu0 %v1033
          %v1465 = vpop.f32.mrb[0].mxu0
          %v1466 = vadd.f32 %v560, %v1465
          %v1467 = vpop.f32.mrb[0].mxu0
          %v1468 = vpop.f32.mrb[0].mxu0
          %v1469 = vadd.f32 %v560, %v1468
          %v1470 = vpop.f32.mrb[0].mxu0
          %1471 = vmatprep.mubr.bf16.mxu0 0
          %1472 = vmatmul.mubr.bf16.gmra.mrb[0].mxu0 %v1036
          %v1473 = vpop.f32.mrb[0].mxu0
          %v1474 = vadd.f32 %v560, %v1473
          %v1475 = vpop.f32.mrb[0].mxu0
          %v1476 = vpop.f32.mrb[0].mxu0
          %v1477 = vadd.f32 %v560, %v1476
          %v1478 = vpop.f32.mrb[0].mxu0
          %1479 = vmatprep.mubr.bf16.mxu0 0
          %1480 = vmatmul.mubr.bf16.gmra.mrb[0].mxu0 %v1039
          %v1481 = vpop.f32.mrb[0].mxu0
          %v1482 = vadd.f32 %v560, %v1481
          %v1483 = vpop.f32.mrb[0].mxu0
          %v1484 = vpop.f32.mrb[0].mxu0
          %v1485 = vadd.f32 %v560, %v1484
          %v1486 = vpop.f32.mrb[0].mxu0
          %1487 = vmatprep.mubr.bf16.mxu0 0
          %1488 = vmatmul.mubr.bf16.gmra.mrb[0].mxu0 %v1042
          %v1489 = vpop.f32.mrb[0].mxu0
          %v1490 = vadd.f32 %v560, %v1489
          %v1491 = vpop.f32.mrb[0].mxu0
          %v1492 = vpop.f32.mrb[0].mxu0
          %v1493 = vadd.f32 %v560, %v1492
          %v1494 = vpop.f32.mrb[0].mxu0
          %1495 = vmatprep.mubr.bf16.mxu0 0
          %1496 = vmatmul.mubr.bf16.gmra.mrb[0].mxu0 %v1045
          %v1497 = vpop.f32.mrb[0].mxu0
          %v1498 = vadd.f32 %v560, %v1497
          %v1499 = vpop.f32.mrb[0].mxu0
          %v1500 = vpop.f32.mrb[0].mxu0
          %v1501 = vadd.f32 %v560, %v1500
          %v1502 = vpop.f32.mrb[0].mxu0
          %1503 = vmatprep.mubr.bf16.mxu0 0
          %1504 = vmatmul.mubr.bf16.gmra.mrb[0].mxu0 %v1048
          %v1505 = vpop.f32.mrb[0].mxu0
          %v1506 = vadd.f32 %v560, %v1505
          %v1507 = vpop.f32.mrb[0].mxu0
          %v1508 = vpop.f32.mrb[0].mxu0
          %v1509 = vadd.f32 %v560, %v1508
          %v1510 = vpop.f32.mrb[0].mxu0
          %1511 = vmatprep.mubr.bf16.mxu0 0
          %1512 = vmatmul.mubr.bf16.gmra.mrb[0].mxu0 %v1051
          %v1513 = vpop.f32.mrb[0].mxu0
          %v1514 = vadd.f32 %v560, %v1513
          %v1515 = vpop.f32.mrb[0].mxu0
          %v1516 = vpop.f32.mrb[0].mxu0
          %v1517 = vadd.f32 %v560, %v1516
          %v1518 = vpop.f32.mrb[0].mxu0
          %1519 = vmatprep.mubr.bf16.mxu0 0
          %1520 = vmatmul.mubr.bf16.gmra.mrb[0].mxu0 %v1054
          %v1521 = vpop.f32.mrb[0].mxu0
          %v1522 = vadd.f32 %v560, %v1521
          %v1523 = vpop.f32.mrb[0].mxu0
          %v1524 = vpop.f32.mrb[0].mxu0
          %v1525 = vadd.f32 %v560, %v1524
          %v1526 = vpop.f32.mrb[0].mxu0
          %1527 = vmatprep.mubr.bf16.mxu0 0
          %1528 = vmatmul.mubr.bf16.gmra.mrb[0].mxu0 %v1057
          %v1529 = vpop.f32.mrb[0].mxu0
          %v1530 = vadd.f32 %v560, %v1529
          %v1531 = vpop.f32.mrb[0].mxu0
          %v1532 = vpop.f32.mrb[0].mxu0
          %v1533 = vadd.f32 %v560, %v1532
          %v1534 = vpop.f32.mrb[0].mxu0
          %1535 = vmatprep.mubr.bf16.mxu0 0
          %1536 = vmatmul.mubr.bf16.gmra.mrb[0].mxu0 %v1060
          %v1537 = vpop.f32.mrb[0].mxu0
          %v1538 = vadd.f32 %v560, %v1537
          %v1539 = vpop.f32.mrb[0].mxu0
          %v1540 = vpop.f32.mrb[0].mxu0
          %v1541 = vadd.f32 %v560, %v1540
          %v1542 = vpop.f32.mrb[0].mxu0
          %1543 = vmatprep.mubr.bf16.mxu0 0
          %1544 = vmatmul.mubr.bf16.gmra.mrb[0].mxu0 %v1063
          %v1545 = vpop.f32.mrb[0].mxu0
          %v1546 = vadd.f32 %v560, %v1545
          %v1547 = vpop.f32.mrb[0].mxu0
          %v1548 = vpop.f32.mrb[0].mxu0
          %v1549 = vadd.f32 %v560, %v1548
          %v1550 = vpop.f32.mrb[0].mxu0
          %1551 = vmatprep.mubr.bf16.mxu0 0
          %1552 = vmatmul.mubr.bf16.gmra.mrb[0].mxu0 %v1066
          %v1553 = vpop.f32.mrb[0].mxu0
          %v1554 = vadd.f32 %v560, %v1553
          %v1555 = vpop.f32.mrb[0].mxu0
          %v1556 = vpop.f32.mrb[0].mxu0
          %v1557 = vadd.f32 %v560, %v1556
          %v1558 = vpop.f32.mrb[0].mxu0
          %1559 = vmatprep.mubr.bf16.mxu0 0
          %1560 = vmatmul.mubr.bf16.gmra.mrb[0].mxu0 %v1069
          %v1561 = vpop.f32.mrb[0].mxu0
          %v1562 = vadd.f32 %v560, %v1561
          %v1563 = vpop.f32.mrb[0].mxu0
          %v1564 = vpop.f32.mrb[0].mxu0
          %v1565 = vadd.f32 %v560, %v1564
          %v1566 = vpop.f32.mrb[0].mxu0
          %1567 = vmatprep.mubr.bf16.mxu0 0
          %1568 = vmatmul.mubr.bf16.gmra.mrb[0].mxu0 %v1072
          %v1569 = vpop.f32.mrb[0].mxu0
          %v1570 = vadd.f32 %v560, %v1569
          %v1571 = vpop.f32.mrb[0].mxu0
          %v1572 = vpop.f32.mrb[0].mxu0
          %v1573 = vadd.f32 %v560, %v1572
          %v1574 = vpop.f32.mrb[0].mxu0
          %1575 = vmatprep.mubr.bf16.mxu0 0
          %1576 = vmatmul.mubr.bf16.gmra.mrb[0].mxu0 %v1075
          %v1577 = vpop.f32.mrb[0].mxu0
          %v1578 = vadd.f32 %v560, %v1577
          %v1579 = vpop.f32.mrb[0].mxu0
          %v1580 = vpop.f32.mrb[0].mxu0
          %v1581 = vadd.f32 %v560, %v1580
          %v1582 = vpop.f32.mrb[0].mxu0
          %1583 = vmatprep.mubr.bf16.mxu0 0
          %1584 = vmatmul.mubr.bf16.gmra.mrb[0].mxu0 %v1078
          %v1585 = vpop.f32.mrb[0].mxu0
          %v1586 = vadd.f32 %v560, %v1585
          %v1587 = vpop.f32.mrb[0].mxu0
          %v1588 = vpop.f32.mrb[0].mxu0
          %v1589 = vadd.f32 %v560, %v1588
          %v1590 = vpop.f32.mrb[0].mxu0
          %1591 = vmatprep.mubr.bf16.mxu0 0
          %1592 = vmatmul.mubr.bf16.gmra.mrb[0].mxu0 %v1081
          %v1593 = vpop.f32.mrb[0].mxu0
          %v1594 = vadd.f32 %v560, %v1593
          %v1595 = vpop.f32.mrb[0].mxu0
          %v1596 = vpop.f32.mrb[0].mxu0
          %v1597 = vadd.f32 %v560, %v1596
          %v1598 = vpop.f32.mrb[0].mxu0
          %1599 = vmatprep.mubr.bf16.mxu0 0
          %1600 = vmatmul.mubr.bf16.gmra.mrb[0].mxu0 %v1084
          %v1601 = vpop.f32.mrb[0].mxu0
          %v1602 = vadd.f32 %v560, %v1601
          %v1603 = vpop.f32.mrb[0].mxu0
          %v1604 = vpop.f32.mrb[0].mxu0
          %v1605 = vadd.f32 %v560, %v1604
          %v1606 = vpop.f32.mrb[0].mxu0
          %1607 = vmatprep.mubr.bf16.mxu0 0
          %1608 = vmatmul.mubr.bf16.gmra.mrb[0].mxu0 %v1087
          %v1609 = vpop.f32.mrb[0].mxu0
          %v1610 = vadd.f32 %v560, %v1609
          %v1611 = vpop.f32.mrb[0].mxu0
          %v1612 = vpop.f32.mrb[0].mxu0
          %v1613 = vadd.f32 %v560, %v1612
          %v1614 = vpop.f32.mrb[0].mxu0
          %1615 = vmatprep.mubr.bf16.mxu0 0
          %1616 = vmatmul.mubr.bf16.gmra.mrb[0].mxu0 %v1090
          %v1617 = vpop.f32.mrb[0].mxu0
          %v1618 = vadd.f32 %v560, %v1617
          %v1619 = vpop.f32.mrb[0].mxu0
          %v1620 = vpop.f32.mrb[0].mxu0
          %v1621 = vadd.f32 %v560, %v1620
          %v1622 = vpop.f32.mrb[0].mxu0
          %1623 = vmatprep.mubr.bf16.mxu0 0
          %1624 = vmatmul.mubr.bf16.gmra.mrb[0].mxu0 %v1093
          %v1625 = vpop.f32.mrb[0].mxu0
          %v1626 = vadd.f32 %v560, %v1625
          %v1627 = vpop.f32.mrb[0].mxu0
          %v1628 = vpop.f32.mrb[0].mxu0
          %v1629 = vadd.f32 %v560, %v1628
          %v1630 = vpop.f32.mrb[0].mxu0
          %1631 = vmatprep.mubr.bf16.mxu0 0
          %1632 = vmatmul.mubr.bf16.gmra.mrb[0].mxu0 %v1096
          %v1633 = vpop.f32.mrb[0].mxu0
          %v1634 = vadd.f32 %v560, %v1633
          %v1635 = vpop.f32.mrb[0].mxu0
          %v1636 = vpop.f32.mrb[0].mxu0
          %v1637 = vadd.f32 %v560, %v1636
          %v1638 = vpop.f32.mrb[0].mxu0
          %1639 = vmatprep.mubr.bf16.mxu0 0
          %1640 = vmatmul.mubr.bf16.gmra.mrb[0].mxu0 %v1099
          %v1641 = vpop.f32.mrb[0].mxu0
          %v1642 = vadd.f32 %v560, %v1641
          %v1643 = vpop.f32.mrb[0].mxu0
          %v1644 = vpop.f32.mrb[0].mxu0
          %v1645 = vadd.f32 %v560, %v1644
          %v1646 = vpop.f32.mrb[0].mxu0
          %1647 = vmatprep.mubr.bf16.mxu0 0
          %1648 = vmatmul.mubr.bf16.gmra.mrb[0].mxu0 %v1102
          %v1649 = vpop.f32.mrb[0].mxu0
          %v1650 = vadd.f32 %v560, %v1649
          %v1651 = vpop.f32.mrb[0].mxu0
          %v1652 = vpop.f32.mrb[0].mxu0
          %v1653 = vadd.f32 %v560, %v1652
          %v1654 = vpop.f32.mrb[0].mxu0
          %1655 = vdwg.mxu0
          %1656 = vst.msk [vmem:[#allocation2] sm:$0xff] %vm391, %v1146
          %1657 = vst.msk [vmem:[#allocation2 + $0x8] sm:$0xff] %vm391, %v1149
          %1658 = vst.msk [vmem:[#allocation2 + $0x10] sm:$0xff] %vm391, %v1154
          %1659 = vst.msk [vmem:[#allocation2 + $0x18] sm:$0xff] %vm391, %v1157
          %1660 = vst.msk [vmem:[#allocation2 + $0x20] sm:$0xff] %vm391, %v1162
          %1661 = vst.msk [vmem:[#allocation2 + $0x28] sm:$0xff] %vm391, %v1165
          %1662 = vst.msk [vmem:[#allocation2 + $0x30] sm:$0xff] %vm391, %v1170
          %1663 = vst.msk [vmem:[#allocation2 + $0x38] sm:$0xff] %vm391, %v1173
          %1664 = vst.msk [vmem:[#allocation2 + $0x40] sm:$0xff] %vm391, %v1178
          %1665 = vst.msk [vmem:[#allocation2 + $0x48] sm:$0xff] %vm391, %v1181
          %1666 = vst.msk [vmem:[#allocation2 + $0x50] sm:$0xff] %vm391, %v1186
          %1667 = vst.msk [vmem:[#allocation2 + $0x58] sm:$0xff] %vm391, %v1189
          %1668 = vst.msk [vmem:[#allocation2 + $0x60] sm:$0xff] %vm391, %v1194
          %1669 = vst.msk [vmem:[#allocation2 + $0x68] sm:$0xff] %vm391, %v1197
          %1670 = vst.msk [vmem:[#allocation2 + $0x70] sm:$0xff] %vm391, %v1202
          %1671 = vst.msk [vmem:[#allocation2 + $0x78] sm:$0xff] %vm391, %v1205
          %1672 = vst.msk [vmem:[#allocation2 + $0x80] sm:$0xff] %vm391, %v1210
          %1673 = vst.msk [vmem:[#allocation2 + $0x88] sm:$0xff] %vm391, %v1213
          %1674 = vst.msk [vmem:[#allocation2 + $0x90] sm:$0xff] %vm391, %v1218
          %1675 = vst.msk [vmem:[#allocation2 + $0x98] sm:$0xff] %vm391, %v1221
          %1676 = vst.msk [vmem:[#allocation2 + $0xa0] sm:$0xff] %vm391, %v1226
          %1677 = vst.msk [vmem:[#allocation2 + $0xa8] sm:$0xff] %vm391, %v1229
          %1678 = vst.msk [vmem:[#allocation2 + $0xb0] sm:$0xff] %vm391, %v1234
          %1679 = vst.msk [vmem:[#allocation2 + $0xb8] sm:$0xff] %vm391, %v1237
          %1680 = vst.msk [vmem:[#allocation2 + $0xc0] sm:$0xff] %vm391, %v1242
          %1681 = vst.msk [vmem:[#allocation2 + $0xc8] sm:$0xff] %vm391, %v1245
          %1682 = vst.msk [vmem:[#allocation2 + $0xd0] sm:$0xff] %vm391, %v1250
          %1683 = vst.msk [vmem:[#allocation2 + $0xd8] sm:$0xff] %vm391, %v1253
          %1684 = vst.msk [vmem:[#allocation2 + $0xe0] sm:$0xff] %vm391, %v1258
          %1685 = vst.msk [vmem:[#allocation2 + $0xe8] sm:$0xff] %vm391, %v1261
          %1686 = vst.msk [vmem:[#allocation2 + $0xf0] sm:$0xff] %vm391, %v1266
          %1687 = vst.msk [vmem:[#allocation2 + $0xf8] sm:$0xff] %vm391, %v1269
          %1688 = vst.msk [vmem:[#allocation2 + $0x100] sm:$0xff] %vm391, %v1274
          %1689 = vst.msk [vmem:[#allocation2 + $0x108] sm:$0xff] %vm391, %v1277
          %1690 = vst.msk [vmem:[#allocation2 + $0x110] sm:$0xff] %vm391, %v1282
          %1691 = vst.msk [vmem:[#allocation2 + $0x118] sm:$0xff] %vm391, %v1285
          %1692 = vst.msk [vmem:[#allocation2 + $0x120] sm:$0xff] %vm391, %v1290
          %1693 = vst.msk [vmem:[#allocation2 + $0x128] sm:$0xff] %vm391, %v1293
          %1694 = vst.msk [vmem:[#allocation2 + $0x130] sm:$0xff] %vm391, %v1298
          %1695 = vst.msk [vmem:[#allocation2 + $0x138] sm:$0xff] %vm391, %v1301
          %1696 = vst.msk [vmem:[#allocation2 + $0x140] sm:$0xff] %vm391, %v1306
          %1697 = vst.msk [vmem:[#allocation2 + $0x148] sm:$0xff] %vm391, %v1309
          %1698 = vst.msk [vmem:[#allocation2 + $0x150] sm:$0xff] %vm391, %v1314
          %1699 = vst.msk [vmem:[#allocation2 + $0x158] sm:$0xff] %vm391, %v1317
          %1700 = vst.msk [vmem:[#allocation2 + $0x160] sm:$0xff] %vm391, %v1322
          %1701 = vst.msk [vmem:[#allocation2 + $0x168] sm:$0xff] %vm391, %v1325
          %1702 = vst.msk [vmem:[#allocation2 + $0x170] sm:$0xff] %vm391, %v1330
          %1703 = vst.msk [vmem:[#allocation2 + $0x178] sm:$0xff] %vm391, %v1333
          %1704 = vst.msk [vmem:[#allocation2 + $0x180] sm:$0xff] %vm391, %v1338
          %1705 = vst.msk [vmem:[#allocation2 + $0x188] sm:$0xff] %vm391, %v1341
          %1706 = vst.msk [vmem:[#allocation2 + $0x190] sm:$0xff] %vm391, %v1346
          %1707 = vst.msk [vmem:[#allocation2 + $0x198] sm:$0xff] %vm391, %v1349
          %1708 = vst.msk [vmem:[#allocation2 + $0x1a0] sm:$0xff] %vm391, %v1354
          %1709 = vst.msk [vmem:[#allocation2 + $0x1a8] sm:$0xff] %vm391, %v1357
          %1710 = vst.msk [vmem:[#allocation2 + $0x1b0] sm:$0xff] %vm391, %v1362
          %1711 = vst.msk [vmem:[#allocation2 + $0x1b8] sm:$0xff] %vm391, %v1365
          %1712 = vst.msk [vmem:[#allocation2 + $0x1c0] sm:$0xff] %vm391, %v1370
          %1713 = vst.msk [vmem:[#allocation2 + $0x1c8] sm:$0xff] %vm391, %v1373
          %1714 = vst.msk [vmem:[#allocation2 + $0x1d0] sm:$0xff] %vm391, %v1378
          %1715 = vst.msk [vmem:[#allocation2 + $0x1d8] sm:$0xff] %vm391, %v1381
          %1716 = vst.msk [vmem:[#allocation2 + $0x1e0] sm:$0xff] %vm391, %v1386
          %1717 = vst.msk [vmem:[#allocation2 + $0x1e8] sm:$0xff] %vm391, %v1389
          %1718 = vst.msk [vmem:[#allocation2 + $0x1f0] sm:$0xff] %vm391, %v1394
          %1719 = vst.msk [vmem:[#allocation2 + $0x1f8] sm:$0xff] %vm391, %v1397
          %1720 = vst.msk [vmem:[#allocation2 + $0x200] sm:$0xff] %vm391, %v1402
          %1721 = vst.msk [vmem:[#allocation2 + $0x208] sm:$0xff] %vm391, %v1405
          %1722 = vst.msk [vmem:[#allocation2 + $0x210] sm:$0xff] %vm391, %v1410
          %1723 = vst.msk [vmem:[#allocation2 + $0x218] sm:$0xff] %vm391, %v1413
          %1724 = vst.msk [vmem:[#allocation2 + $0x220] sm:$0xff] %vm391, %v1418
          %1725 = vst.msk [vmem:[#allocation2 + $0x228] sm:$0xff] %vm391, %v1421
          %1726 = vst.msk [vmem:[#allocation2 + $0x230] sm:$0xff] %vm391, %v1426
          %1727 = vst.msk [vmem:[#allocation2 + $0x238] sm:$0xff] %vm391, %v1429
          %1728 = vst.msk [vmem:[#allocation2 + $0x240] sm:$0xff] %vm391, %v1434
          %1729 = vst.msk [vmem:[#allocation2 + $0x248] sm:$0xff] %vm391, %v1437
          %1730 = vst.msk [vmem:[#allocation2 + $0x250] sm:$0xff] %vm391, %v1442
          %1731 = vst.msk [vmem:[#allocation2 + $0x258] sm:$0xff] %vm391, %v1445
          %1732 = vst.msk [vmem:[#allocation2 + $0x260] sm:$0xff] %vm391, %v1450
          %1733 = vst.msk [vmem:[#allocation2 + $0x268] sm:$0xff] %vm391, %v1453
          %1734 = vst.msk [vmem:[#allocation2 + $0x270] sm:$0xff] %vm391, %v1458
          %1735 = vst.msk [vmem:[#allocation2 + $0x278] sm:$0xff] %vm391, %v1461
          %1736 = vst.msk [vmem:[#allocation2 + $0x280] sm:$0xff] %vm391, %v1466
          %1737 = vst.msk [vmem:[#allocation2 + $0x288] sm:$0xff] %vm391, %v1469
          %1738 = vst.msk [vmem:[#allocation2 + $0x290] sm:$0xff] %vm391, %v1474
          %1739 = vst.msk [vmem:[#allocation2 + $0x298] sm:$0xff] %vm391, %v1477
          %1740 = vst.msk [vmem:[#allocation2 + $0x2a0] sm:$0xff] %vm391, %v1482
          %1741 = vst.msk [vmem:[#allocation2 + $0x2a8] sm:$0xff] %vm391, %v1485
          %1742 = vst.msk [vmem:[#allocation2 + $0x2b0] sm:$0xff] %vm391, %v1490
          %1743 = vst.msk [vmem:[#allocation2 + $0x2b8] sm:$0xff] %vm391, %v1493
          %1744 = vst.msk [vmem:[#allocation2 + $0x2c0] sm:$0xff] %vm391, %v1498
          %1745 = vst.msk [vmem:[#allocation2 + $0x2c8] sm:$0xff] %vm391, %v1501
          %1746 = vst.msk [vmem:[#allocation2 + $0x2d0] sm:$0xff] %vm391, %v1506
          %1747 = vst.msk [vmem:[#allocation2 + $0x2d8] sm:$0xff] %vm391, %v1509
          %1748 = vst.msk [vmem:[#allocation2 + $0x2e0] sm:$0xff] %vm391, %v1514
          %1749 = vst.msk [vmem:[#allocation2 + $0x2e8] sm:$0xff] %vm391, %v1517
          %1750 = vst.msk [vmem:[#allocation2 + $0x2f0] sm:$0xff] %vm391, %v1522
          %1751 = vst.msk [vmem:[#allocation2 + $0x2f8] sm:$0xff] %vm391, %v1525
          %1752 = vst.msk [vmem:[#allocation2 + $0x300] sm:$0xff] %vm391, %v1530
          %1753 = vst.msk [vmem:[#allocation2 + $0x308] sm:$0xff] %vm391, %v1533
          %1754 = vst.msk [vmem:[#allocation2 + $0x310] sm:$0xff] %vm391, %v1538
          %1755 = vst.msk [vmem:[#allocation2 + $0x318] sm:$0xff] %vm391, %v1541
          %1756 = vst.msk [vmem:[#allocation2 + $0x320] sm:$0xff] %vm391, %v1546
          %1757 = vst.msk [vmem:[#allocation2 + $0x328] sm:$0xff] %vm391, %v1549
          %1758 = vst.msk [vmem:[#allocation2 + $0x330] sm:$0xff] %vm391, %v1554
          %1759 = vst.msk [vmem:[#allocation2 + $0x338] sm:$0xff] %vm391, %v1557
          %1760 = vst.msk [vmem:[#allocation2 + $0x340] sm:$0xff] %vm391, %v1562
          %1761 = vst.msk [vmem:[#allocation2 + $0x348] sm:$0xff] %vm391, %v1565
          %1762 = vst.msk [vmem:[#allocation2 + $0x350] sm:$0xff] %vm391, %v1570
          %1763 = vst.msk [vmem:[#allocation2 + $0x358] sm:$0xff] %vm391, %v1573
          %1764 = vst.msk [vmem:[#allocation2 + $0x360] sm:$0xff] %vm391, %v1578
          %1765 = vst.msk [vmem:[#allocation2 + $0x368] sm:$0xff] %vm391, %v1581
          %1766 = vst.msk [vmem:[#allocation2 + $0x370] sm:$0xff] %vm391, %v1586
          %1767 = vst.msk [vmem:[#allocation2 + $0x378] sm:$0xff] %vm391, %v1589
          %1768 = vst.msk [vmem:[#allocation2 + $0x380] sm:$0xff] %vm391, %v1594
          %1769 = vst.msk [vmem:[#allocation2 + $0x388] sm:$0xff] %vm391, %v1597
          %1770 = vst.msk [vmem:[#allocation2 + $0x390] sm:$0xff] %vm391, %v1602
          %1771 = vst.msk [vmem:[#allocation2 + $0x398] sm:$0xff] %vm391, %v1605
          %1772 = vst.msk [vmem:[#allocation2 + $0x3a0] sm:$0xff] %vm391, %v1610
          %1773 = vst.msk [vmem:[#allocation2 + $0x3a8] sm:$0xff] %vm391, %v1613
          %1774 = vst.msk [vmem:[#allocation2 + $0x3b0] sm:$0xff] %vm391, %v1618
          %1775 = vst.msk [vmem:[#allocation2 + $0x3b8] sm:$0xff] %vm391, %v1621
          %1776 = vst.msk [vmem:[#allocation2 + $0x3c0] sm:$0xff] %vm391, %v1626
          %1777 = vst.msk [vmem:[#allocation2 + $0x3c8] sm:$0xff] %vm391, %v1629
          %1778 = vst.msk [vmem:[#allocation2 + $0x3d0] sm:$0xff] %vm391, %v1634
          %1779 = vst.msk [vmem:[#allocation2 + $0x3d8] sm:$0xff] %vm391, %v1637
          %1780 = vst.msk [vmem:[#allocation2 + $0x3e0] sm:$0xff] %vm391, %v1642
          %1781 = vst.msk [vmem:[#allocation2 + $0x3e8] sm:$0xff] %vm391, %v1645
          %1782 = vst.msk [vmem:[#allocation2 + $0x3f0] sm:$0xff] %vm391, %v1650
          %1783 = vst.msk [vmem:[#allocation2 + $0x3f8] sm:$0xff] %vm391, %v1653
          %v1784 = vld [vmem:[#allocation2] ss:$2 sm:$0xff]
          %s1785 = scalar_lea.vmem [#allocation2], 16
          %v1786 = vld [vmem:[%s1785] ss:$2 sm:$0xff]
          %s1787 = scalar_lea.vmem [#allocation2], 1
          %v1788 = vld [vmem:[%s1787] ss:$2 sm:$0xff]
          %s1789 = scalar_lea.vmem [#allocation2], 17
          %v1790 = vld [vmem:[%s1789] ss:$2 sm:$0xff]
          %s1791 = scalar_lea.vmem [#allocation2], 32
          %v1792 = vld [vmem:[%s1791] ss:$2 sm:$0xff]
          %s1793 = scalar_lea.vmem [#allocation2], 48
          %v1794 = vld [vmem:[%s1793] ss:$2 sm:$0xff]
          %s1795 = scalar_lea.vmem [#allocation2], 33
          %v1796 = vld [vmem:[%s1795] ss:$2 sm:$0xff]
          %s1797 = scalar_lea.vmem [#allocation2], 49
          %v1798 = vld [vmem:[%s1797] ss:$2 sm:$0xff]
          %v1799 = vmax.f32 %v1784, %v1788
          %v1800 = vmax.f32 %v1786, %v1790
          %v1801 = vmax.f32 %v1792, %v1796
          %v1802 = vmax.f32 %v1794, %v1798
          %v1803 = vmax.f32 %v1799, %v1801
          %v1804 = vmax.f32 %v1800, %v1802
          %1805 = vst.msk [vmem:[#allocation3 + $0x28] sm:$0xff] %vm391, %v1803
          %1806 = vst.msk [vmem:[#allocation3 + $0x30] sm:$0xff] %vm391, %v1804
          %s1807 = scalar_lea.vmem [#allocation2], 64
          %v1808 = vld [vmem:[%s1807] ss:$2 sm:$0xff]
          %s1809 = scalar_lea.vmem [#allocation2], 80
          %v1810 = vld [vmem:[%s1809] ss:$2 sm:$0xff]
          %s1811 = scalar_lea.vmem [#allocation2], 65
          %v1812 = vld [vmem:[%s1811] ss:$2 sm:$0xff]
          %s1813 = scalar_lea.vmem [#allocation2], 81
          %v1814 = vld [vmem:[%s1813] ss:$2 sm:$0xff]
          %s1815 = scalar_lea.vmem [#allocation2], 96
          %v1816 = vld [vmem:[%s1815] ss:$2 sm:$0xff]
          %s1817 = scalar_lea.vmem [#allocation2], 112
          %v1818 = vld [vmem:[%s1817] ss:$2 sm:$0xff]
          %s1819 = scalar_lea.vmem [#allocation2], 97
          %v1820 = vld [vmem:[%s1819] ss:$2 sm:$0xff]
          %s1821 = scalar_lea.vmem [#allocation2], 113
          %v1822 = vld [vmem:[%s1821] ss:$2 sm:$0xff]
          %v1823 = vmax.f32 %v1808, %v1812
          %v1824 = vmax.f32 %v1810, %v1814
          %v1825 = vmax.f32 %v1816, %v1820
          %v1826 = vmax.f32 %v1818, %v1822
          %v1827 = vmax.f32 %v1823, %v1825
          %v1828 = vmax.f32 %v1824, %v1826
          %1829 = vst.msk [vmem:[#allocation3 + $0x38] sm:$0xff] %vm391, %v1827
          %1830 = vst.msk [vmem:[#allocation3 + $0x40] sm:$0xff] %vm391, %v1828
          %s1831 = scalar_lea.vmem [#allocation2], 128
          %v1832 = vld [vmem:[%s1831] ss:$2 sm:$0xff]
          %s1833 = scalar_lea.vmem [#allocation2], 144
          %v1834 = vld [vmem:[%s1833] ss:$2 sm:$0xff]
          %s1835 = scalar_lea.vmem [#allocation2], 129
          %v1836 = vld [vmem:[%s1835] ss:$2 sm:$0xff]
          %s1837 = scalar_lea.vmem [#allocation2], 145
          %v1838 = vld [vmem:[%s1837] ss:$2 sm:$0xff]
          %s1839 = scalar_lea.vmem [#allocation2], 160
          %v1840 = vld [vmem:[%s1839] ss:$2 sm:$0xff]
          %s1841 = scalar_lea.vmem [#allocation2], 176
          %v1842 = vld [vmem:[%s1841] ss:$2 sm:$0xff]
          %s1843 = scalar_lea.vmem [#allocation2], 161
          %v1844 = vld [vmem:[%s1843] ss:$2 sm:$0xff]
          %s1845 = scalar_lea.vmem [#allocation2], 177
          %v1846 = vld [vmem:[%s1845] ss:$2 sm:$0xff]
          %v1847 = vmax.f32 %v1832, %v1836
          %v1848 = vmax.f32 %v1834, %v1838
          %v1849 = vmax.f32 %v1840, %v1844
          %v1850 = vmax.f32 %v1842, %v1846
          %v1851 = vmax.f32 %v1847, %v1849
          %v1852 = vmax.f32 %v1848, %v1850
          %1853 = vst.msk [vmem:[#allocation3 + $0x48] sm:$0xff] %vm391, %v1851
          %1854 = vst.msk [vmem:[#allocation3 + $0x50] sm:$0xff] %vm391, %v1852
          %s1855 = scalar_lea.vmem [#allocation2], 192
          %v1856 = vld [vmem:[%s1855] ss:$2 sm:$0xff]
          %s1857 = scalar_lea.vmem [#allocation2], 208
          %v1858 = vld [vmem:[%s1857] ss:$2 sm:$0xff]
          %s1859 = scalar_lea.vmem [#allocation2], 193
          %v1860 = vld [vmem:[%s1859] ss:$2 sm:$0xff]
          %s1861 = scalar_lea.vmem [#allocation2], 209
          %v1862 = vld [vmem:[%s1861] ss:$2 sm:$0xff]
          %s1863 = scalar_lea.vmem [#allocation2], 224
          %v1864 = vld [vmem:[%s1863] ss:$2 sm:$0xff]
          %s1865 = scalar_lea.vmem [#allocation2], 240
          %v1866 = vld [vmem:[%s1865] ss:$2 sm:$0xff]
          %s1867 = scalar_lea.vmem [#allocation2], 225
          %v1868 = vld [vmem:[%s1867] ss:$2 sm:$0xff]
          %s1869 = scalar_lea.vmem [#allocation2], 241
          %v1870 = vld [vmem:[%s1869] ss:$2 sm:$0xff]
          %v1871 = vmax.f32 %v1856, %v1860
          %v1872 = vmax.f32 %v1858, %v1862
          %v1873 = vmax.f32 %v1864, %v1868
          %v1874 = vmax.f32 %v1866, %v1870
          %v1875 = vmax.f32 %v1871, %v1873
          %v1876 = vmax.f32 %v1872, %v1874
          %1877 = vst.msk [vmem:[#allocation3 + $0x58] sm:$0xff] %vm391, %v1875
          %1878 = vst.msk [vmem:[#allocation3 + $0x60] sm:$0xff] %vm391, %v1876
          %s1879 = scalar_lea.vmem [#allocation2], 256
          %v1880 = vld [vmem:[%s1879] ss:$2 sm:$0xff]
          %s1881 = scalar_lea.vmem [#allocation2], 272
          %v1882 = vld [vmem:[%s1881] ss:$2 sm:$0xff]
          %s1883 = scalar_lea.vmem [#allocation2], 257
          %v1884 = vld [vmem:[%s1883] ss:$2 sm:$0xff]
          %s1885 = scalar_lea.vmem [#allocation2], 273
          %v1886 = vld [vmem:[%s1885] ss:$2 sm:$0xff]
          %s1887 = scalar_lea.vmem [#allocation2], 288
          %v1888 = vld [vmem:[%s1887] ss:$2 sm:$0xff]
          %s1889 = scalar_lea.vmem [#allocation2], 304
          %v1890 = vld [vmem:[%s1889] ss:$2 sm:$0xff]
          %s1891 = scalar_lea.vmem [#allocation2], 289
          %v1892 = vld [vmem:[%s1891] ss:$2 sm:$0xff]
          %s1893 = scalar_lea.vmem [#allocation2], 305
          %v1894 = vld [vmem:[%s1893] ss:$2 sm:$0xff]
          %v1895 = vmax.f32 %v1880, %v1884
          %v1896 = vmax.f32 %v1882, %v1886
          %v1897 = vmax.f32 %v1888, %v1892
          %v1898 = vmax.f32 %v1890, %v1894
          %v1899 = vmax.f32 %v1895, %v1897
          %v1900 = vmax.f32 %v1896, %v1898
          %1901 = vst.msk [vmem:[#allocation3 + $0x68] sm:$0xff] %vm391, %v1899
          %1902 = vst.msk [vmem:[#allocation3 + $0x70] sm:$0xff] %vm391, %v1900
          %s1903 = scalar_lea.vmem [#allocation2], 320
          %v1904 = vld [vmem:[%s1903] ss:$2 sm:$0xff]
          %s1905 = scalar_lea.vmem [#allocation2], 336
          %v1906 = vld [vmem:[%s1905] ss:$2 sm:$0xff]
          %s1907 = scalar_lea.vmem [#allocation2], 321
          %v1908 = vld [vmem:[%s1907] ss:$2 sm:$0xff]
          %s1909 = scalar_lea.vmem [#allocation2], 337
          %v1910 = vld [vmem:[%s1909] ss:$2 sm:$0xff]
          %s1911 = scalar_lea.vmem [#allocation2], 352
          %v1912 = vld [vmem:[%s1911] ss:$2 sm:$0xff]
          %s1913 = scalar_lea.vmem [#allocation2], 368
          %v1914 = vld [vmem:[%s1913] ss:$2 sm:$0xff]
          %s1915 = scalar_lea.vmem [#allocation2], 353
          %v1916 = vld [vmem:[%s1915] ss:$2 sm:$0xff]
          %s1917 = scalar_lea.vmem [#allocation2], 369
          %v1918 = vld [vmem:[%s1917] ss:$2 sm:$0xff]
          %v1919 = vmax.f32 %v1904, %v1908
          %v1920 = vmax.f32 %v1906, %v1910
          %v1921 = vmax.f32 %v1912, %v1916
          %v1922 = vmax.f32 %v1914, %v1918
          %v1923 = vmax.f32 %v1919, %v1921
          %v1924 = vmax.f32 %v1920, %v1922
          %1925 = vst.msk [vmem:[#allocation3 + $0x78] sm:$0xff] %vm391, %v1923
          %1926 = vst.msk [vmem:[#allocation3 + $0x80] sm:$0xff] %vm391, %v1924
          %s1927 = scalar_lea.vmem [#allocation2], 384
          %v1928 = vld [vmem:[%s1927] ss:$2 sm:$0xff]
          %s1929 = scalar_lea.vmem [#allocation2], 400
          %v1930 = vld [vmem:[%s1929] ss:$2 sm:$0xff]
          %s1931 = scalar_lea.vmem [#allocation2], 385
          %v1932 = vld [vmem:[%s1931] ss:$2 sm:$0xff]
          %s1933 = scalar_lea.vmem [#allocation2], 401
          %v1934 = vld [vmem:[%s1933] ss:$2 sm:$0xff]
          %s1935 = scalar_lea.vmem [#allocation2], 416
          %v1936 = vld [vmem:[%s1935] ss:$2 sm:$0xff]
          %s1937 = scalar_lea.vmem [#allocation2], 432
          %v1938 = vld [vmem:[%s1937] ss:$2 sm:$0xff]
          %s1939 = scalar_lea.vmem [#allocation2], 417
          %v1940 = vld [vmem:[%s1939] ss:$2 sm:$0xff]
          %s1941 = scalar_lea.vmem [#allocation2], 433
          %v1942 = vld [vmem:[%s1941] ss:$2 sm:$0xff]
          %v1943 = vmax.f32 %v1928, %v1932
          %v1944 = vmax.f32 %v1930, %v1934
          %v1945 = vmax.f32 %v1936, %v1940
          %v1946 = vmax.f32 %v1938, %v1942
          %v1947 = vmax.f32 %v1943, %v1945
          %v1948 = vmax.f32 %v1944, %v1946
          %1949 = vst.msk [vmem:[#allocation3 + $0x88] sm:$0xff] %vm391, %v1947
          %1950 = vst.msk [vmem:[#allocation3 + $0x90] sm:$0xff] %vm391, %v1948
          %s1951 = scalar_lea.vmem [#allocation2], 448
          %v1952 = vld [vmem:[%s1951] ss:$2 sm:$0xff]
          %s1953 = scalar_lea.vmem [#allocation2], 464
          %v1954 = vld [vmem:[%s1953] ss:$2 sm:$0xff]
          %s1955 = scalar_lea.vmem [#allocation2], 449
          %v1956 = vld [vmem:[%s1955] ss:$2 sm:$0xff]
          %s1957 = scalar_lea.vmem [#allocation2], 465
          %v1958 = vld [vmem:[%s1957] ss:$2 sm:$0xff]
          %s1959 = scalar_lea.vmem [#allocation2], 480
          %v1960 = vld [vmem:[%s1959] ss:$2 sm:$0xff]
          %s1961 = scalar_lea.vmem [#allocation2], 496
          %v1962 = vld [vmem:[%s1961] ss:$2 sm:$0xff]
          %s1963 = scalar_lea.vmem [#allocation2], 481
          %v1964 = vld [vmem:[%s1963] ss:$2 sm:$0xff]
          %s1965 = scalar_lea.vmem [#allocation2], 497
          %v1966 = vld [vmem:[%s1965] ss:$2 sm:$0xff]
          %v1967 = vmax.f32 %v1952, %v1956
          %v1968 = vmax.f32 %v1954, %v1958
          %v1969 = vmax.f32 %v1960, %v1964
          %v1970 = vmax.f32 %v1962, %v1966
          %v1971 = vmax.f32 %v1967, %v1969
          %v1972 = vmax.f32 %v1968, %v1970
          %1973 = vst.msk [vmem:[#allocation3 + $0x98] sm:$0xff] %vm391, %v1971
          %1974 = vst.msk [vmem:[#allocation3 + $0xa0] sm:$0xff] %vm391, %v1972
          %s1975 = scalar_lea.vmem [#allocation2], 512
          %v1976 = vld [vmem:[%s1975] ss:$2 sm:$0xff]
          %s1977 = scalar_lea.vmem [#allocation2], 528
          %v1978 = vld [vmem:[%s1977] ss:$2 sm:$0xff]
          %s1979 = scalar_lea.vmem [#allocation2], 513
          %v1980 = vld [vmem:[%s1979] ss:$2 sm:$0xff]
          %s1981 = scalar_lea.vmem [#allocation2], 529
          %v1982 = vld [vmem:[%s1981] ss:$2 sm:$0xff]
          %s1983 = scalar_lea.vmem [#allocation2], 544
          %v1984 = vld [vmem:[%s1983] ss:$2 sm:$0xff]
          %s1985 = scalar_lea.vmem [#allocation2], 560
          %v1986 = vld [vmem:[%s1985] ss:$2 sm:$0xff]
          %s1987 = scalar_lea.vmem [#allocation2], 545
          %v1988 = vld [vmem:[%s1987] ss:$2 sm:$0xff]
          %s1989 = scalar_lea.vmem [#allocation2], 561
          %v1990 = vld [vmem:[%s1989] ss:$2 sm:$0xff]
          %v1991 = vmax.f32 %v1976, %v1980
          %v1992 = vmax.f32 %v1978, %v1982
          %v1993 = vmax.f32 %v1984, %v1988
          %v1994 = vmax.f32 %v1986, %v1990
          %v1995 = vmax.f32 %v1991, %v1993
          %v1996 = vmax.f32 %v1992, %v1994
          %1997 = vst.msk [vmem:[#allocation3 + $0xa8] sm:$0xff] %vm391, %v1995
          %1998 = vst.msk [vmem:[#allocation3 + $0xb0] sm:$0xff] %vm391, %v1996
          %s1999 = scalar_lea.vmem [#allocation2], 576
          %v2000 = vld [vmem:[%s1999] ss:$2 sm:$0xff]
          %s2001 = scalar_lea.vmem [#allocation2], 592
          %v2002 = vld [vmem:[%s2001] ss:$2 sm:$0xff]
          %s2003 = scalar_lea.vmem [#allocation2], 577
          %v2004 = vld [vmem:[%s2003] ss:$2 sm:$0xff]
          %s2005 = scalar_lea.vmem [#allocation2], 593
          %v2006 = vld [vmem:[%s2005] ss:$2 sm:$0xff]
          %s2007 = scalar_lea.vmem [#allocation2], 608
          %v2008 = vld [vmem:[%s2007] ss:$2 sm:$0xff]
          %s2009 = scalar_lea.vmem [#allocation2], 624
          %v2010 = vld [vmem:[%s2009] ss:$2 sm:$0xff]
          %s2011 = scalar_lea.vmem [#allocation2], 609
          %v2012 = vld [vmem:[%s2011] ss:$2 sm:$0xff]
          %s2013 = scalar_lea.vmem [#allocation2], 625
          %v2014 = vld [vmem:[%s2013] ss:$2 sm:$0xff]
          %v2015 = vmax.f32 %v2000, %v2004
          %v2016 = vmax.f32 %v2002, %v2006
          %v2017 = vmax.f32 %v2008, %v2012
          %v2018 = vmax.f32 %v2010, %v2014
          %v2019 = vmax.f32 %v2015, %v2017
          %v2020 = vmax.f32 %v2016, %v2018
          %2021 = vst.msk [vmem:[#allocation3 + $0xb8] sm:$0xff] %vm391, %v2019
          %2022 = vst.msk [vmem:[#allocation3 + $0xc0] sm:$0xff] %vm391, %v2020
          %s2023 = scalar_lea.vmem [#allocation2], 640
          %v2024 = vld [vmem:[%s2023] ss:$2 sm:$0xff]
          %s2025 = scalar_lea.vmem [#allocation2], 656
          %v2026 = vld [vmem:[%s2025] ss:$2 sm:$0xff]
          %s2027 = scalar_lea.vmem [#allocation2], 641
          %v2028 = vld [vmem:[%s2027] ss:$2 sm:$0xff]
          %s2029 = scalar_lea.vmem [#allocation2], 657
          %v2030 = vld [vmem:[%s2029] ss:$2 sm:$0xff]
          %s2031 = scalar_lea.vmem [#allocation2], 672
          %v2032 = vld [vmem:[%s2031] ss:$2 sm:$0xff]
          %s2033 = scalar_lea.vmem [#allocation2], 688
          %v2034 = vld [vmem:[%s2033] ss:$2 sm:$0xff]
          %s2035 = scalar_lea.vmem [#allocation2], 673
          %v2036 = vld [vmem:[%s2035] ss:$2 sm:$0xff]
          %s2037 = scalar_lea.vmem [#allocation2], 689
          %v2038 = vld [vmem:[%s2037] ss:$2 sm:$0xff]
          %v2039 = vmax.f32 %v2024, %v2028
          %v2040 = vmax.f32 %v2026, %v2030
          %v2041 = vmax.f32 %v2032, %v2036
          %v2042 = vmax.f32 %v2034, %v2038
          %v2043 = vmax.f32 %v2039, %v2041
          %v2044 = vmax.f32 %v2040, %v2042
          %2045 = vst.msk [vmem:[#allocation3 + $0xc8] sm:$0xff] %vm391, %v2043
          %2046 = vst.msk [vmem:[#allocation3 + $0xd0] sm:$0xff] %vm391, %v2044
          %s2047 = scalar_lea.vmem [#allocation2], 704
          %v2048 = vld [vmem:[%s2047] ss:$2 sm:$0xff]
          %s2049 = scalar_lea.vmem [#allocation2], 720
          %v2050 = vld [vmem:[%s2049] ss:$2 sm:$0xff]
          %s2051 = scalar_lea.vmem [#allocation2], 705
          %v2052 = vld [vmem:[%s2051] ss:$2 sm:$0xff]
          %s2053 = scalar_lea.vmem [#allocation2], 721
          %v2054 = vld [vmem:[%s2053] ss:$2 sm:$0xff]
          %s2055 = scalar_lea.vmem [#allocation2], 736
          %v2056 = vld [vmem:[%s2055] ss:$2 sm:$0xff]
          %s2057 = scalar_lea.vmem [#allocation2], 752
          %v2058 = vld [vmem:[%s2057] ss:$2 sm:$0xff]
          %s2059 = scalar_lea.vmem [#allocation2], 737
          %v2060 = vld [vmem:[%s2059] ss:$2 sm:$0xff]
          %s2061 = scalar_lea.vmem [#allocation2], 753
          %v2062 = vld [vmem:[%s2061] ss:$2 sm:$0xff]
          %v2063 = vmax.f32 %v2048, %v2052
          %v2064 = vmax.f32 %v2050, %v2054
          %v2065 = vmax.f32 %v2056, %v2060
          %v2066 = vmax.f32 %v2058, %v2062
          %v2067 = vmax.f32 %v2063, %v2065
          %v2068 = vmax.f32 %v2064, %v2066
          %2069 = vst.msk [vmem:[#allocation3 + $0xd8] sm:$0xff] %vm391, %v2067
          %2070 = vst.msk [vmem:[#allocation3 + $0xe0] sm:$0xff] %vm391, %v2068
          %s2071 = scalar_lea.vmem [#allocation2], 768
          %v2072 = vld [vmem:[%s2071] ss:$2 sm:$0xff]
          %s2073 = scalar_lea.vmem [#allocation2], 784
          %v2074 = vld [vmem:[%s2073] ss:$2 sm:$0xff]
          %s2075 = scalar_lea.vmem [#allocation2], 769
          %v2076 = vld [vmem:[%s2075] ss:$2 sm:$0xff]
          %s2077 = scalar_lea.vmem [#allocation2], 785
          %v2078 = vld [vmem:[%s2077] ss:$2 sm:$0xff]
          %s2079 = scalar_lea.vmem [#allocation2], 800
          %v2080 = vld [vmem:[%s2079] ss:$2 sm:$0xff]
          %s2081 = scalar_lea.vmem [#allocation2], 816
          %v2082 = vld [vmem:[%s2081] ss:$2 sm:$0xff]
          %s2083 = scalar_lea.vmem [#allocation2], 801
          %v2084 = vld [vmem:[%s2083] ss:$2 sm:$0xff]
          %s2085 = scalar_lea.vmem [#allocation2], 817
          %v2086 = vld [vmem:[%s2085] ss:$2 sm:$0xff]
          %v2087 = vmax.f32 %v2072, %v2076
          %v2088 = vmax.f32 %v2074, %v2078
          %v2089 = vmax.f32 %v2080, %v2084
          %v2090 = vmax.f32 %v2082, %v2086
          %v2091 = vmax.f32 %v2087, %v2089
          %v2092 = vmax.f32 %v2088, %v2090
          %2093 = vst.msk [vmem:[#allocation3 + $0xe8] sm:$0xff] %vm391, %v2091
          %2094 = vst.msk [vmem:[#allocation3 + $0xf0] sm:$0xff] %vm391, %v2092
          %s2095 = scalar_lea.vmem [#allocation2], 832
          %v2096 = vld [vmem:[%s2095] ss:$2 sm:$0xff]
          %s2097 = scalar_lea.vmem [#allocation2], 848
          %v2098 = vld [vmem:[%s2097] ss:$2 sm:$0xff]
          %s2099 = scalar_lea.vmem [#allocation2], 833
          %v2100 = vld [vmem:[%s2099] ss:$2 sm:$0xff]
          %s2101 = scalar_lea.vmem [#allocation2], 849
          %v2102 = vld [vmem:[%s2101] ss:$2 sm:$0xff]
          %s2103 = scalar_lea.vmem [#allocation2], 864
          %v2104 = vld [vmem:[%s2103] ss:$2 sm:$0xff]
          %s2105 = scalar_lea.vmem [#allocation2], 880
          %v2106 = vld [vmem:[%s2105] ss:$2 sm:$0xff]
          %s2107 = scalar_lea.vmem [#allocation2], 865
          %v2108 = vld [vmem:[%s2107] ss:$2 sm:$0xff]
          %s2109 = scalar_lea.vmem [#allocation2], 881
          %v2110 = vld [vmem:[%s2109] ss:$2 sm:$0xff]
          %v2111 = vmax.f32 %v2096, %v2100
          %v2112 = vmax.f32 %v2098, %v2102
          %v2113 = vmax.f32 %v2104, %v2108
          %v2114 = vmax.f32 %v2106, %v2110
          %v2115 = vmax.f32 %v2111, %v2113
          %v2116 = vmax.f32 %v2112, %v2114
          %2117 = vst.msk [vmem:[#allocation3 + $0xf8] sm:$0xff] %vm391, %v2115
          %2118 = vst.msk [vmem:[#allocation3 + $0x100] sm:$0xff] %vm391, %v2116
          %s2119 = scalar_lea.vmem [#allocation2], 896
          %v2120 = vld [vmem:[%s2119] ss:$2 sm:$0xff]
          %s2121 = scalar_lea.vmem [#allocation2], 912
          %v2122 = vld [vmem:[%s2121] ss:$2 sm:$0xff]
          %s2123 = scalar_lea.vmem [#allocation2], 897
          %v2124 = vld [vmem:[%s2123] ss:$2 sm:$0xff]
          %s2125 = scalar_lea.vmem [#allocation2], 913
          %v2126 = vld [vmem:[%s2125] ss:$2 sm:$0xff]
          %s2127 = scalar_lea.vmem [#allocation2], 928
          %v2128 = vld [vmem:[%s2127] ss:$2 sm:$0xff]
          %s2129 = scalar_lea.vmem [#allocation2], 944
          %v2130 = vld [vmem:[%s2129] ss:$2 sm:$0xff]
          %s2131 = scalar_lea.vmem [#allocation2], 929
          %v2132 = vld [vmem:[%s2131] ss:$2 sm:$0xff]
          %s2133 = scalar_lea.vmem [#allocation2], 945
          %v2134 = vld [vmem:[%s2133] ss:$2 sm:$0xff]
          %v2135 = vmax.f32 %v2120, %v2124
          %v2136 = vmax.f32 %v2122, %v2126
          %v2137 = vmax.f32 %v2128, %v2132
          %v2138 = vmax.f32 %v2130, %v2134
          %v2139 = vmax.f32 %v2135, %v2137
          %v2140 = vmax.f32 %v2136, %v2138
          %2141 = vst.msk [vmem:[#allocation3 + $0x108] sm:$0xff] %vm391, %v2139
          %2142 = vst.msk [vmem:[#allocation3 + $0x110] sm:$0xff] %vm391, %v2140
          %s2143 = scalar_lea.vmem [#allocation2], 960
          %v2144 = vld [vmem:[%s2143] ss:$2 sm:$0xff]
          %s2145 = scalar_lea.vmem [#allocation2], 976
          %v2146 = vld [vmem:[%s2145] ss:$2 sm:$0xff]
          %s2147 = scalar_lea.vmem [#allocation2], 961
          %v2148 = vld [vmem:[%s2147] ss:$2 sm:$0xff]
          %s2149 = scalar_lea.vmem [#allocation2], 977
          %v2150 = vld [vmem:[%s2149] ss:$2 sm:$0xff]
          %s2151 = scalar_lea.vmem [#allocation2], 992
          %v2152 = vld [vmem:[%s2151] ss:$2 sm:$0xff]
          %s2153 = scalar_lea.vmem [#allocation2], 1008
          %v2154 = vld [vmem:[%s2153] ss:$2 sm:$0xff]
          %s2155 = scalar_lea.vmem [#allocation2], 993
          %v2156 = vld [vmem:[%s2155] ss:$2 sm:$0xff]
          %s2157 = scalar_lea.vmem [#allocation2], 1009
          %v2158 = vld [vmem:[%s2157] ss:$2 sm:$0xff]
          %v2159 = vmax.f32 %v2144, %v2148
          %v2160 = vmax.f32 %v2146, %v2150
          %v2161 = vmax.f32 %v2152, %v2156
          %v2162 = vmax.f32 %v2154, %v2158
          %v2163 = vmax.f32 %v2159, %v2161
          %v2164 = vmax.f32 %v2160, %v2162
          %2165 = vst.msk [vmem:[#allocation3 + $0x118] sm:$0xff] %vm391, %v2163
          %2166 = vst.msk [vmem:[#allocation3 + $0x120] sm:$0xff] %vm391, %v2164
          %v2167 = vlaneseq
          %v2168 = vshrl.u32 %v2167, 7
          %v2169 = vadd.s32 %v2168, 8
          %v2170 = vadd.s32 %v2168, 16
          %v2171 = vadd.s32 %v2168, 24
          %v2172 = vadd.s32 %v2168, 32
          %v2173 = vadd.s32 %v2168, 40
          %v2174 = vadd.s32 %v2168, 48
          %v2175 = vadd.s32 %v2168, 56
          %v2176 = vadd.s32 %v2168, 64
          %v2177 = vadd.s32 %v2168, 72
          %v2178 = vadd.s32 %v2168, 80
          %v2179 = vadd.s32 %v2168, 88
          %v2180 = vadd.s32 %v2168, 96
          %v2181 = vadd.s32 %v2168, 104
          %v2182 = vadd.s32 %v2168, 112
          %v2183 = vadd.s32 %v2168, 120
          %v2184 = vadd.s32 %v2168, 128
          %v2185 = vadd.s32 %v2168, 136
          %v2186 = vadd.s32 %v2168, 144
          %v2187 = vadd.s32 %v2168, 152
          %v2188 = vadd.s32 %v2168, 160
          %v2189 = vadd.s32 %v2168, 168
          %v2190 = vadd.s32 %v2168, 176
          %v2191 = vadd.s32 %v2168, 184
          %v2192 = vadd.s32 %v2168, 192
          %v2193 = vadd.s32 %v2168, 200
          %v2194 = vadd.s32 %v2168, 208
          %v2195 = vadd.s32 %v2168, 216
          %v2196 = vadd.s32 %v2168, 224
          %v2197 = vadd.s32 %v2168, 232
          %v2198 = vadd.s32 %v2168, 240
          %v2199 = vadd.s32 %v2168, 248
          %v2200 = vand.u32 %v2168, 15
          %v2201 = vand.u32 %v2169, 15
          %v2202 = vand.u32 %v2170, 15
          %v2203 = vand.u32 %v2171, 15
          %v2204 = vand.u32 %v2172, 15
          %v2205 = vand.u32 %v2173, 15
          %v2206 = vand.u32 %v2174, 15
          %v2207 = vand.u32 %v2175, 15
          %v2208 = vand.u32 %v2176, 15
          %v2209 = vand.u32 %v2177, 15
          %v2210 = vand.u32 %v2178, 15
          %v2211 = vand.u32 %v2179, 15
          %v2212 = vand.u32 %v2180, 15
          %v2213 = vand.u32 %v2181, 15
          %v2214 = vand.u32 %v2182, 15
          %v2215 = vand.u32 %v2183, 15
          %v2216 = vand.u32 %v2184, 15
          %v2217 = vand.u32 %v2185, 15
          %v2218 = vand.u32 %v2186, 15
          %v2219 = vand.u32 %v2187, 15
          %v2220 = vand.u32 %v2188, 15
          %v2221 = vand.u32 %v2189, 15
          %v2222 = vand.u32 %v2190, 15
          %v2223 = vand.u32 %v2191, 15
          %v2224 = vand.u32 %v2192, 15
          %v2225 = vand.u32 %v2193, 15
          %v2226 = vand.u32 %v2194, 15
          %v2227 = vand.u32 %v2195, 15
          %v2228 = vand.u32 %v2196, 15
          %v2229 = vand.u32 %v2197, 15
          %v2230 = vand.u32 %v2198, 15
          %v2231 = vand.u32 %v2199, 15
          %v2232 = vld [vmem:[#allocation3 + $0x6] sm:$0xff]
          %v2233 = vld [vmem:[#allocation3 + $0xe] sm:$0xff]
          %v2234 = vld [vmem:[#allocation3 + $0x16] sm:$0xff]
          %v2235 = vld [vmem:[#allocation3 + $0x1e] sm:$0xff]
          %v2236 = vld [vmem:[#allocation3 + $0x26] sm:$0xff]
          %v2237 = vld [vmem:[#allocation3 + $0x2e] sm:$0xff]
          %v2238 = vld [vmem:[#allocation3 + $0x36] sm:$0xff]
          %v2239 = vld [vmem:[#allocation3 + $0x3e] sm:$0xff]
          %v2240 = vld [vmem:[#allocation3 + $0x46] sm:$0xff]
          %v2241 = vld [vmem:[#allocation3 + $0x4e] sm:$0xff]
          %v2242 = vld [vmem:[#allocation3 + $0x56] sm:$0xff]
          %v2243 = vld [vmem:[#allocation3 + $0x5e] sm:$0xff]
          %v2244 = vld [vmem:[#allocation3 + $0x66] sm:$0xff]
          %v2245 = vld [vmem:[#allocation3 + $0x6e] sm:$0xff]
          %v2246 = vld [vmem:[#allocation3 + $0x76] sm:$0xff]
          %v2247 = vld [vmem:[#allocation3 + $0x7e] sm:$0xff]
          %v2248 = vld [vmem:[#allocation3 + $0x86] sm:$0xff]
          %v2249 = vld [vmem:[#allocation3 + $0x8e] sm:$0xff]
          %v2250 = vld [vmem:[#allocation3 + $0x96] sm:$0xff]
          %v2251 = vld [vmem:[#allocation3 + $0x9e] sm:$0xff]
          %v2252 = vld [vmem:[#allocation3 + $0xa6] sm:$0xff]
          %v2253 = vld [vmem:[#allocation3 + $0xae] sm:$0xff]
          %v2254 = vld [vmem:[#allocation3 + $0xb6] sm:$0xff]
          %v2255 = vld [vmem:[#allocation3 + $0xbe] sm:$0xff]
          %v2256 = vld [vmem:[#allocation3 + $0xc6] sm:$0xff]
          %v2257 = vld [vmem:[#allocation3 + $0xce] sm:$0xff]
          %v2258 = vld [vmem:[#allocation3 + $0xd6] sm:$0xff]
          %v2259 = vld [vmem:[#allocation3 + $0xde] sm:$0xff]
          %v2260 = vld [vmem:[#allocation3 + $0xe6] sm:$0xff]
          %v2261 = vld [vmem:[#allocation3 + $0xee] sm:$0xff]
          %v2262 = vld [vmem:[#allocation3 + $0xf6] sm:$0xff]
          %v2263 = vld [vmem:[#allocation3 + $0xfe] sm:$0xff]
          %v2264 = vld [vmem:[#allocation3 + $0x106] sm:$0xff]
          %v2265 = vld [vmem:[#allocation3 + $0x10e] sm:$0xff]
          %v2266 = vld [vmem:[#allocation3 + $0x116] sm:$0xff]
          %v2267 = vld [vmem:[#allocation3 + $0x11e] sm:$0xff]
          %v2268 = vld [vmem:[#allocation3 + $0x126] sm:$0xff]
          %v2269 = vld [vmem:[#allocation3 + $0x12e] sm:$0xff]
          %v2270 = vld [vmem:[#allocation3 + $0x136] sm:$0xff]
          %v2271 = vld [vmem:[#allocation3 + $0x13e] sm:$0xff]
          %v2272 = vpack.c.bf16 %v2233, %v2232
          %v2273 = vpack.c.bf16 %v2235, %v2234
          %v2274 = vpack.c.bf16 %v2237, %v2236
          %v2275 = vpack.c.bf16 %v2239, %v2238
          %v2276 = vpack.c.bf16 %v2241, %v2240
          %v2277 = vpack.c.bf16 %v2243, %v2242
          %v2278 = vpack.c.bf16 %v2245, %v2244
          %v2279 = vpack.c.bf16 %v2247, %v2246
          %v2280 = vpack.c.bf16 %v2249, %v2248
          %v2281 = vpack.c.bf16 %v2251, %v2250
          %v2282 = vpack.c.bf16 %v2253, %v2252
          %v2283 = vpack.c.bf16 %v2255, %v2254
          %v2284 = vpack.c.bf16 %v2257, %v2256
          %v2285 = vpack.c.bf16 %v2259, %v2258
          %v2286 = vpack.c.bf16 %v2261, %v2260
          %v2287 = vpack.c.bf16 %v2263, %v2262
          %v2288 = vpack.c.bf16 %v2265, %v2264
          %v2289 = vpack.c.bf16 %v2267, %v2266
          %v2290 = vpack.c.bf16 %v2269, %v2268
          %v2291 = vpack.c.bf16 %v2271, %v2270
          %2308 = vrot.lane.b32.xlu0 %v2273, 32
          %v2309 = vpop.permute.xlu0 %2308
          %2310 = vrot.lane.b32.xlu0 %v2274, 32
          %v2311 = vpop.permute.xlu0 %2310
          %2312 = vrot.lane.b32.xlu0 %v2275, 32
          %v2313 = vpop.permute.xlu0 %2312
          %2314 = vrot.lane.b32.xlu0 %v2276, 32
          %v2315 = vpop.permute.xlu0 %2314
          %2316 = vrot.lane.b32.xlu0 %v2277, 32
          %v2317 = vpop.permute.xlu0 %2316
          %2318 = vrot.lane.b32.xlu0 %v2278, 32
          %v2319 = vpop.permute.xlu0 %2318
          %2320 = vrot.lane.b32.xlu0 %v2279, 32
          %v2321 = vpop.permute.xlu0 %2320
          %2322 = vrot.lane.b32.xlu0 %v2280, 32
          %v2323 = vpop.permute.xlu0 %2322
          %2324 = vrot.lane.b32.xlu0 %v2281, 32
          %v2325 = vpop.permute.xlu0 %2324
          %2326 = vrot.lane.b32.xlu0 %v2282, 32
          %v2327 = vpop.permute.xlu0 %2326
          %2328 = vrot.lane.b32.xlu0 %v2283, 32
          %v2329 = vpop.permute.xlu0 %2328
          %2330 = vrot.lane.b32.xlu0 %v2284, 32
          %v2331 = vpop.permute.xlu0 %2330
          %2332 = vrot.lane.b32.xlu0 %v2285, 32
          %v2333 = vpop.permute.xlu0 %2332
          %2334 = vrot.lane.b32.xlu0 %v2286, 32
          %v2335 = vpop.permute.xlu0 %2334
          %2336 = vrot.lane.b32.xlu0 %v2287, 32
          %v2337 = vpop.permute.xlu0 %2336
          %2338 = vrot.lane.b32.xlu0 %v2288, 32
          %v2339 = vpop.permute.xlu0 %2338
          %2341 = vrot.lane.b32.xlu0 %v2274, 64
          %v2342 = vpop.permute.xlu0 %2341
          %2343 = vrot.lane.b32.xlu0 %v2275, 64
          %v2344 = vpop.permute.xlu0 %2343
          %2345 = vrot.lane.b32.xlu0 %v2276, 64
          %v2346 = vpop.permute.xlu0 %2345
          %2347 = vrot.lane.b32.xlu0 %v2277, 64
          %v2348 = vpop.permute.xlu0 %2347
          %2349 = vrot.lane.b32.xlu0 %v2278, 64
          %v2350 = vpop.permute.xlu0 %2349
          %2351 = vrot.lane.b32.xlu0 %v2279, 64
          %v2352 = vpop.permute.xlu0 %2351
          %2353 = vrot.lane.b32.xlu0 %v2280, 64
          %v2354 = vpop.permute.xlu0 %2353
          %2355 = vrot.lane.b32.xlu0 %v2281, 64
          %v2356 = vpop.permute.xlu0 %2355
          %2357 = vrot.lane.b32.xlu0 %v2282, 64
          %v2358 = vpop.permute.xlu0 %2357
          %2359 = vrot.lane.b32.xlu0 %v2283, 64
          %v2360 = vpop.permute.xlu0 %2359
          %2361 = vrot.lane.b32.xlu0 %v2284, 64
          %v2362 = vpop.permute.xlu0 %2361
          %2363 = vrot.lane.b32.xlu0 %v2285, 64
          %v2364 = vpop.permute.xlu0 %2363
          %2365 = vrot.lane.b32.xlu0 %v2286, 64
          %v2366 = vpop.permute.xlu0 %2365
          %2367 = vrot.lane.b32.xlu0 %v2287, 64
          %v2368 = vpop.permute.xlu0 %2367
          %2369 = vrot.lane.b32.xlu0 %v2288, 64
          %v2370 = vpop.permute.xlu0 %2369
          %2371 = vrot.lane.b32.xlu0 %v2289, 64
          %v2372 = vpop.permute.xlu0 %2371
          %2374 = vrot.lane.b32.xlu0 %v2275, 96
          %v2375 = vpop.permute.xlu0 %2374
          %2376 = vrot.lane.b32.xlu0 %v2276, 96
          %v2377 = vpop.permute.xlu0 %2376
          %2378 = vrot.lane.b32.xlu0 %v2277, 96
          %v2379 = vpop.permute.xlu0 %2378
          %2380 = vrot.lane.b32.xlu0 %v2278, 96
          %v2381 = vpop.permute.xlu0 %2380
          %2382 = vrot.lane.b32.xlu0 %v2279, 96
          %v2383 = vpop.permute.xlu0 %2382
          %2384 = vrot.lane.b32.xlu0 %v2280, 96
          %v2385 = vpop.permute.xlu0 %2384
          %2386 = vrot.lane.b32.xlu0 %v2281, 96
          %v2387 = vpop.permute.xlu0 %2386
          %2388 = vrot.lane.b32.xlu0 %v2282, 96
          %v2389 = vpop.permute.xlu0 %2388
          %2390 = vrot.lane.b32.xlu0 %v2283, 96
          %v2391 = vpop.permute.xlu0 %2390
          %2392 = vrot.lane.b32.xlu0 %v2284, 96
          %v2393 = vpop.permute.xlu0 %2392
          %2394 = vrot.lane.b32.xlu0 %v2285, 96
          %v2395 = vpop.permute.xlu0 %2394
          %2396 = vrot.lane.b32.xlu0 %v2286, 96
          %v2397 = vpop.permute.xlu0 %2396
          %2398 = vrot.lane.b32.xlu0 %v2287, 96
          %v2399 = vpop.permute.xlu0 %2398
          %2400 = vrot.lane.b32.xlu0 %v2288, 96
          %v2401 = vpop.permute.xlu0 %2400
          %2402 = vrot.lane.b32.xlu0 %v2289, 96
          %v2403 = vpop.permute.xlu0 %2402
          %2404 = vrot.lane.b32.xlu0 %v2290, 96
          %v2405 = vpop.permute.xlu0 %2404
          %v2408 = vsel %vm391, %v2272, %v2309
          %v2411 = vsel %vm391, %v2273, %v2311
          %v2414 = vsel %vm391, %v2274, %v2313
          %v2417 = vsel %vm391, %v2275, %v2315
          %v2420 = vsel %vm391, %v2276, %v2317
          %v2423 = vsel %vm391, %v2277, %v2319
          %v2426 = vsel %vm391, %v2278, %v2321
          %v2429 = vsel %vm391, %v2279, %v2323
          %v2432 = vsel %vm391, %v2280, %v2325
          %v2435 = vsel %vm391, %v2281, %v2327
          %v2438 = vsel %vm391, %v2282, %v2329
          %v2441 = vsel %vm391, %v2283, %v2331
          %v2444 = vsel %vm391, %v2284, %v2333
          %v2447 = vsel %vm391, %v2285, %v2335
          %v2450 = vsel %vm391, %v2286, %v2337
          %v2453 = vsel %vm391, %v2287, %v2339
          %vm2454 = vcmask 523264
          %v2456 = vsel %vm2454, %v2408, %v2342
          %v2458 = vsel %vm2454, %v2411, %v2344
          %v2460 = vsel %vm2454, %v2414, %v2346
          %v2462 = vsel %vm2454, %v2417, %v2348
          %v2464 = vsel %vm2454, %v2420, %v2350
          %v2466 = vsel %vm2454, %v2423, %v2352
          %v2468 = vsel %vm2454, %v2426, %v2354
          %v2470 = vsel %vm2454, %v2429, %v2356
          %v2472 = vsel %vm2454, %v2432, %v2358
          %v2474 = vsel %vm2454, %v2435, %v2360
          %v2476 = vsel %vm2454, %v2438, %v2362
          %v2478 = vsel %vm2454, %v2441, %v2364
          %v2480 = vsel %vm2454, %v2444, %v2366
          %v2482 = vsel %vm2454, %v2447, %v2368
          %v2484 = vsel %vm2454, %v2450, %v2370
          %v2486 = vsel %vm2454, %v2453, %v2372
          %vm2487 = vcmask 785408
          %v2489 = vsel %vm2487, %v2456, %v2375
          %v2492 = vsel %vm2487, %v2458, %v2377
          %v2495 = vsel %vm2487, %v2460, %v2379
          %v2498 = vsel %vm2487, %v2462, %v2381
          %v2501 = vsel %vm2487, %v2464, %v2383
          %v2504 = vsel %vm2487, %v2466, %v2385
          %v2507 = vsel %vm2487, %v2468, %v2387
          %v2510 = vsel %vm2487, %v2470, %v2389
          %v2513 = vsel %vm2487, %v2472, %v2391
          %v2516 = vsel %vm2487, %v2474, %v2393
          %v2519 = vsel %vm2487, %v2476, %v2395
          %v2522 = vsel %vm2487, %v2478, %v2397
          %v2525 = vsel %vm2487, %v2480, %v2399
          %v2528 = vsel %vm2487, %v2482, %v2401
          %v2531 = vsel %vm2487, %v2484, %v2403
          %v2534 = vsel %vm2487, %v2486, %v2405
          %v2536 = vld [vmem:[%s3] sm:$0xf]
          %v2537 = vld [vmem:[%s3 + $0x4] sm:$0xf]
          %v2538 = vld [vmem:[%s3 + $0x8] sm:$0xf]
          %v2539 = vld [vmem:[%s3 + $0xc] sm:$0xf]
          %v2540 = vld [vmem:[%s3 + $0x10] sm:$0xf]
          %v2541 = vld [vmem:[%s3 + $0x14] sm:$0xf]
          %v2542 = vld [vmem:[%s3 + $0x18] sm:$0xf]
          %v2543 = vld [vmem:[%s3 + $0x1c] sm:$0xf]
          %v2544 = vld [vmem:[%s3 + $0x20] sm:$0xf]
          %v2545 = vld [vmem:[%s3 + $0x24] sm:$0xf]
          %v2546 = vld [vmem:[%s3 + $0x28] sm:$0xf]
          %v2547 = vld [vmem:[%s3 + $0x2c] sm:$0xf]
          %v2548 = vld [vmem:[%s3 + $0x30] sm:$0xf]
          %v2549 = vld [vmem:[%s3 + $0x34] sm:$0xf]
          %v2550 = vld [vmem:[%s3 + $0x38] sm:$0xf]
          %v2551 = vld [vmem:[%s3 + $0x3c] sm:$0xf]
          %v2552 = vld [vmem:[%s3 + $0x40] sm:$0xf]
          %v2553 = vld [vmem:[%s3 + $0x44] sm:$0xf]
          %v2554 = vld [vmem:[%s3 + $0x48] sm:$0xf]
          %v2555 = vld [vmem:[%s3 + $0x4c] sm:$0xf]
          %v2576 = vunpack.c.l.b16 %v2536
          %v2577 = vunpack.c.l.b16 %v2537
          %v2578 = vunpack.c.l.b16 %v2538
          %v2579 = vunpack.c.l.b16 %v2539
          %v2580 = vunpack.c.l.b16 %v2540
          %v2581 = vunpack.c.l.b16 %v2541
          %v2582 = vunpack.c.l.b16 %v2542
          %v2583 = vunpack.c.l.b16 %v2543
          %v2584 = vunpack.c.l.b16 %v2544
          %v2585 = vunpack.c.l.b16 %v2545
          %v2586 = vunpack.c.l.b16 %v2546
          %v2587 = vunpack.c.l.b16 %v2547
          %v2588 = vunpack.c.l.b16 %v2548
          %v2589 = vunpack.c.l.b16 %v2549
          %v2590 = vunpack.c.l.b16 %v2550
          %v2591 = vunpack.c.l.b16 %v2551
          %v2592 = vunpack.c.l.b16 %v2552
          %v2593 = vunpack.c.l.b16 %v2553
          %v2594 = vunpack.c.l.b16 %v2554
          %v2595 = vunpack.c.l.b16 %v2555
          %v2596 = vpack.c.b16 %v2577, %v2576
          %v2597 = vpack.c.b16 %v2579, %v2578
          %v2598 = vpack.c.b16 %v2581, %v2580
          %v2599 = vpack.c.b16 %v2583, %v2582
          %v2600 = vpack.c.b16 %v2585, %v2584
          %v2601 = vpack.c.b16 %v2587, %v2586
          %v2602 = vpack.c.b16 %v2589, %v2588
          %v2603 = vpack.c.b16 %v2591, %v2590
          %v2604 = vpack.c.b16 %v2593, %v2592
          %v2605 = vpack.c.b16 %v2595, %v2594
          %v2616 = vsel %vm391, %v2276, 0
          %v2618 = vsel %vm391, %v2277, 0
          %v2620 = vsel %vm391, %v2278, 0
          %v2622 = vsel %vm391, %v2279, 0
          %v2624 = vsel %vm391, %v2280, 0
          %v2626 = vsel %vm391, %v2281, 0
          %v2628 = vsel %vm391, %v2282, 0
          %v2630 = vsel %vm391, %v2283, 0
          %v2632 = vsel %vm391, %v2284, 0
          %v2634 = vsel %vm391, %v2285, 0
          %v2636 = vsel %vm391, %v2286, 0
          %v2638 = vsel %vm391, %v2287, 0
          %v2641 = vsel %vm391, %v2288, 0
          %v2644 = vsel %vm391, %v2289, 0
          %v2647 = vsel %vm391, %v2290, 0
          %v2650 = vsel %vm391, %v2291, 0
          %2652 = vmatprep.subr.bf16.mxu0 0
          %2653 = vmatpush1.bf16.msra.mxu0 %v2596
          %2654 = vmatprep.subr.bf16.mxu0 0
          %2655 = vmatpush1.bf16.msra.mxu0 %v2597
          %2656 = vmatprep.subr.bf16.mxu0 0
          %2657 = vmatpush1.bf16.msra.mxu0 %v2598
          %2658 = vmatprep.subr.bf16.mxu0 0
          %2659 = vmatpush1.bf16.msra.mxu0 %v2599
          %2660 = vmatprep.subr.bf16.mxu0 0
          %2661 = vmatpush1.bf16.msra.mxu0 %v2600
          %2662 = vmatprep.subr.bf16.mxu0 0
          %2663 = vmatpush1.bf16.msra.mxu0 %v2601
          %2664 = vmatprep.subr.bf16.mxu0 0
          %2665 = vmatpush1.bf16.msra.mxu0 %v2602
          %2666 = vmatprep.subr.bf16.mxu0 0
          %2667 = vmatpush1.bf16.msra.mxu0 %v2603
          %2668 = vmatprep.subr.bf16.mxu0 0
          %2669 = vmatpush1.bf16.msra.mxu0 %v2604
          %2670 = vmatprep.subr.bf16.mxu0 0
          %2671 = vmatpush1.bf16.msra.mxu0 %v2605
          %2672 = vmatprep.subr.bf16.mxu0 0
          %2673 = vmatpush1.bf16.msra.mxu0 0
          %2674 = vmatprep.subr.bf16.mxu0 0
          %2675 = vmatpush1.bf16.msra.mxu0 0
          %2676 = vmatprep.subr.bf16.mxu0 0
          %2677 = vmatpush1.bf16.msra.mxu0 0
          %2678 = vmatprep.subr.bf16.mxu0 0
          %2679 = vmatpush1.bf16.msra.mxu0 0
          %2680 = vmatprep.subr.bf16.mxu0 0
          %2681 = vmatpush1.bf16.msra.mxu0 0
          %2682 = vmatprep.subr.bf16.mxu0 0
          %2683 = vmatpush1.bf16.msra.mxu0 0
          %2684 = vmatprep.mubr.bf16.mxu0 %v2616
          %2685 = vmatmul.mubr.bf16.gmra.mrb[0].mxu0 %v2489
          %v2686 = vpop.f32.mrb[0].mxu0
          %v2687 = vadd.f32 0.0, %v2686
          %v2688 = vpop.f32.mrb[0].mxu0
          %v2689 = vpop.f32.mrb[0].mxu0
          %v2690 = vadd.f32 0.0, %v2689
          %v2691 = vpop.f32.mrb[0].mxu0
          %2692 = vmatprep.mubr.bf16.mxu0 %v2618
          %2693 = vmatmul.mubr.bf16.gmra.mrb[0].mxu0 %v2492
          %v2694 = vpop.f32.mrb[0].mxu0
          %v2695 = vadd.f32 0.0, %v2694
          %v2696 = vpop.f32.mrb[0].mxu0
          %v2697 = vpop.f32.mrb[0].mxu0
          %v2698 = vadd.f32 0.0, %v2697
          %v2699 = vpop.f32.mrb[0].mxu0
          %2700 = vmatprep.mubr.bf16.mxu0 %v2620
          %2701 = vmatmul.mubr.bf16.gmra.mrb[0].mxu0 %v2495
          %v2702 = vpop.f32.mrb[0].mxu0
          %v2703 = vadd.f32 0.0, %v2702
          %v2704 = vpop.f32.mrb[0].mxu0
          %v2705 = vpop.f32.mrb[0].mxu0
          %v2706 = vadd.f32 0.0, %v2705
          %v2707 = vpop.f32.mrb[0].mxu0
          %2708 = vmatprep.mubr.bf16.mxu0 %v2622
          %2709 = vmatmul.mubr.bf16.gmra.mrb[0].mxu0 %v2498
          %v2710 = vpop.f32.mrb[0].mxu0
          %v2711 = vadd.f32 0.0, %v2710
          %v2712 = vpop.f32.mrb[0].mxu0
          %v2713 = vpop.f32.mrb[0].mxu0
          %v2714 = vadd.f32 0.0, %v2713
          %v2715 = vpop.f32.mrb[0].mxu0
          %2716 = vmatprep.mubr.bf16.mxu0 %v2624
          %2717 = vmatmul.mubr.bf16.gmra.mrb[0].mxu0 %v2501
          %v2718 = vpop.f32.mrb[0].mxu0
          %v2719 = vadd.f32 0.0, %v2718
          %v2720 = vpop.f32.mrb[0].mxu0
          %v2721 = vpop.f32.mrb[0].mxu0
          %v2722 = vadd.f32 0.0, %v2721
          %v2723 = vpop.f32.mrb[0].mxu0
          %2724 = vmatprep.mubr.bf16.mxu0 %v2626
          %2725 = vmatmul.mubr.bf16.gmra.mrb[0].mxu0 %v2504
          %v2726 = vpop.f32.mrb[0].mxu0
          %v2727 = vadd.f32 0.0, %v2726
          %v2728 = vpop.f32.mrb[0].mxu0
          %v2729 = vpop.f32.mrb[0].mxu0
          %v2730 = vadd.f32 0.0, %v2729
          %v2731 = vpop.f32.mrb[0].mxu0
          %2732 = vmatprep.mubr.bf16.mxu0 %v2628
          %2733 = vmatmul.mubr.bf16.gmra.mrb[0].mxu0 %v2507
          %v2734 = vpop.f32.mrb[0].mxu0
          %v2735 = vadd.f32 0.0, %v2734
          %v2736 = vpop.f32.mrb[0].mxu0
          %v2737 = vpop.f32.mrb[0].mxu0
          %v2738 = vadd.f32 0.0, %v2737
          %v2739 = vpop.f32.mrb[0].mxu0
          %2740 = vmatprep.mubr.bf16.mxu0 %v2630
          %2741 = vmatmul.mubr.bf16.gmra.mrb[0].mxu0 %v2510
          %v2742 = vpop.f32.mrb[0].mxu0
          %v2743 = vadd.f32 0.0, %v2742
          %v2744 = vpop.f32.mrb[0].mxu0
          %v2745 = vpop.f32.mrb[0].mxu0
          %v2746 = vadd.f32 0.0, %v2745
          %v2747 = vpop.f32.mrb[0].mxu0
          %2748 = vmatprep.mubr.bf16.mxu0 %v2632
          %2749 = vmatmul.mubr.bf16.gmra.mrb[0].mxu0 %v2513
          %v2750 = vpop.f32.mrb[0].mxu0
          %v2751 = vadd.f32 0.0, %v2750
          %v2752 = vpop.f32.mrb[0].mxu0
          %v2753 = vpop.f32.mrb[0].mxu0
          %v2754 = vadd.f32 0.0, %v2753
          %v2755 = vpop.f32.mrb[0].mxu0
          %2756 = vmatprep.mubr.bf16.mxu0 %v2634
          %2757 = vmatmul.mubr.bf16.gmra.mrb[0].mxu0 %v2516
          %v2758 = vpop.f32.mrb[0].mxu0
          %v2759 = vadd.f32 0.0, %v2758
          %v2760 = vpop.f32.mrb[0].mxu0
          %v2761 = vpop.f32.mrb[0].mxu0
          %v2762 = vadd.f32 0.0, %v2761
          %v2763 = vpop.f32.mrb[0].mxu0
          %2764 = vmatprep.mubr.bf16.mxu0 %v2636
          %2765 = vmatmul.mubr.bf16.gmra.mrb[0].mxu0 %v2519
          %v2766 = vpop.f32.mrb[0].mxu0
          %v2767 = vadd.f32 0.0, %v2766
          %v2768 = vpop.f32.mrb[0].mxu0
          %v2769 = vpop.f32.mrb[0].mxu0
          %v2770 = vadd.f32 0.0, %v2769
          %v2771 = vpop.f32.mrb[0].mxu0
          %2772 = vmatprep.mubr.bf16.mxu0 %v2638
          %2773 = vmatmul.mubr.bf16.gmra.mrb[0].mxu0 %v2522
          %v2774 = vpop.f32.mrb[0].mxu0
          %v2775 = vadd.f32 0.0, %v2774
          %v2776 = vpop.f32.mrb[0].mxu0
          %v2777 = vpop.f32.mrb[0].mxu0
          %v2778 = vadd.f32 0.0, %v2777
          %v2779 = vpop.f32.mrb[0].mxu0
          %2780 = vmatprep.mubr.bf16.mxu0 %v2641
          %2781 = vmatmul.mubr.bf16.gmra.mrb[0].mxu0 %v2525
          %v2782 = vpop.f32.mrb[0].mxu0
          %v2783 = vadd.f32 0.0, %v2782
          %v2784 = vpop.f32.mrb[0].mxu0
          %v2785 = vpop.f32.mrb[0].mxu0
          %v2786 = vadd.f32 0.0, %v2785
          %v2787 = vpop.f32.mrb[0].mxu0
          %2788 = vmatprep.mubr.bf16.mxu0 %v2644
          %2789 = vmatmul.mubr.bf16.gmra.mrb[0].mxu0 %v2528
          %v2790 = vpop.f32.mrb[0].mxu0
          %v2791 = vadd.f32 0.0, %v2790
          %v2792 = vpop.f32.mrb[0].mxu0
          %v2793 = vpop.f32.mrb[0].mxu0
          %v2794 = vadd.f32 0.0, %v2793
          %v2795 = vpop.f32.mrb[0].mxu0
          %2796 = vmatprep.mubr.bf16.mxu0 %v2647
          %2797 = vmatmul.mubr.bf16.gmra.mrb[0].mxu0 %v2531
          %v2798 = vpop.f32.mrb[0].mxu0
          %v2799 = vadd.f32 0.0, %v2798
          %v2800 = vpop.f32.mrb[0].mxu0
          %v2801 = vpop.f32.mrb[0].mxu0
          %v2802 = vadd.f32 0.0, %v2801
          %v2803 = vpop.f32.mrb[0].mxu0
          %2804 = vmatprep.mubr.bf16.mxu0 %v2650
          %2805 = vmatmul.mubr.bf16.gmra.mrb[0].mxu0 %v2534
          %v2806 = vpop.f32.mrb[0].mxu0
          %v2807 = vadd.f32 0.0, %v2806
          %v2808 = vpop.f32.mrb[0].mxu0
          %v2809 = vpop.f32.mrb[0].mxu0
          %v2810 = vadd.f32 0.0, %v2809
          %v2811 = vpop.f32.mrb[0].mxu0
          %2812 = vdwg.mxu0
          %v2813 = vadd.s32 %v2200, 4294967294
          %v2814 = vadd.s32 %v2201, 4294967294
          %v2815 = vadd.s32 %v2202, 4294967294
          %v2816 = vadd.s32 %v2203, 4294967294
          %v2817 = vadd.s32 %v2204, 4294967294
          %v2818 = vadd.s32 %v2205, 4294967294
          %v2819 = vadd.s32 %v2206, 4294967294
          %v2820 = vadd.s32 %v2207, 4294967294
          %v2821 = vadd.s32 %v2208, 4294967294
          %v2822 = vadd.s32 %v2209, 4294967294
          %v2823 = vadd.s32 %v2210, 4294967294
          %v2824 = vadd.s32 %v2211, 4294967294
          %v2825 = vadd.s32 %v2212, 4294967294
          %v2826 = vadd.s32 %v2213, 4294967294
          %v2827 = vadd.s32 %v2214, 4294967294
          %v2828 = vadd.s32 %v2215, 4294967294
          %v2829 = vadd.s32 %v2216, 4294967294
          %v2830 = vadd.s32 %v2217, 4294967294
          %v2831 = vadd.s32 %v2218, 4294967294
          %v2832 = vadd.s32 %v2219, 4294967294
          %v2833 = vadd.s32 %v2220, 4294967294
          %v2834 = vadd.s32 %v2221, 4294967294
          %v2835 = vadd.s32 %v2222, 4294967294
          %v2836 = vadd.s32 %v2223, 4294967294
          %v2837 = vadd.s32 %v2224, 4294967294
          %v2838 = vadd.s32 %v2225, 4294967294
          %v2839 = vadd.s32 %v2226, 4294967294
          %v2840 = vadd.s32 %v2227, 4294967294
          %v2841 = vadd.s32 %v2228, 4294967294
          %v2842 = vadd.s32 %v2229, 4294967294
          %v2843 = vadd.s32 %v2230, 4294967294
          %v2844 = vadd.s32 %v2231, 4294967294
          %vm2845 = vcmp.ge.s32.totalorder %v2813, 0
          %vm2846 = vcmp.ge.s32.totalorder %v2814, 0
          %vm2847 = vcmp.ge.s32.totalorder %v2815, 0
          %vm2848 = vcmp.ge.s32.totalorder %v2816, 0
          %vm2849 = vcmp.ge.s32.totalorder %v2817, 0
          %vm2850 = vcmp.ge.s32.totalorder %v2818, 0
          %vm2851 = vcmp.ge.s32.totalorder %v2819, 0
          %vm2852 = vcmp.ge.s32.totalorder %v2820, 0
          %vm2853 = vcmp.ge.s32.totalorder %v2821, 0
          %vm2854 = vcmp.ge.s32.totalorder %v2822, 0
          %vm2855 = vcmp.ge.s32.totalorder %v2823, 0
          %vm2856 = vcmp.ge.s32.totalorder %v2824, 0
          %vm2857 = vcmp.ge.s32.totalorder %v2825, 0
          %vm2858 = vcmp.ge.s32.totalorder %v2826, 0
          %vm2859 = vcmp.ge.s32.totalorder %v2827, 0
          %vm2860 = vcmp.ge.s32.totalorder %v2828, 0
          %vm2861 = vcmp.ge.s32.totalorder %v2829, 0
          %vm2862 = vcmp.ge.s32.totalorder %v2830, 0
          %vm2863 = vcmp.ge.s32.totalorder %v2831, 0
          %vm2864 = vcmp.ge.s32.totalorder %v2832, 0
          %vm2865 = vcmp.ge.s32.totalorder %v2833, 0
          %vm2866 = vcmp.ge.s32.totalorder %v2834, 0
          %vm2867 = vcmp.ge.s32.totalorder %v2835, 0
          %vm2868 = vcmp.ge.s32.totalorder %v2836, 0
          %vm2869 = vcmp.ge.s32.totalorder %v2837, 0
          %vm2870 = vcmp.ge.s32.totalorder %v2838, 0
          %vm2871 = vcmp.ge.s32.totalorder %v2839, 0
          %vm2872 = vcmp.ge.s32.totalorder %v2840, 0
          %vm2873 = vcmp.ge.s32.totalorder %v2841, 0
          %vm2874 = vcmp.ge.s32.totalorder %v2842, 0
          %vm2875 = vcmp.ge.s32.totalorder %v2843, 0
          %vm2876 = vcmp.ge.s32.totalorder %v2844, 0
          %vm2877 = vcmp.lt.s32.totalorder %v2813, 16
          %vm2878 = vcmp.lt.s32.totalorder %v2814, 16
          %vm2879 = vcmp.lt.s32.totalorder %v2815, 16
          %vm2880 = vcmp.lt.s32.totalorder %v2816, 16
          %vm2881 = vcmp.lt.s32.totalorder %v2817, 16
          %vm2882 = vcmp.lt.s32.totalorder %v2818, 16
          %vm2883 = vcmp.lt.s32.totalorder %v2819, 16
          %vm2884 = vcmp.lt.s32.totalorder %v2820, 16
          %vm2885 = vcmp.lt.s32.totalorder %v2821, 16
          %vm2886 = vcmp.lt.s32.totalorder %v2822, 16
          %vm2887 = vcmp.lt.s32.totalorder %v2823, 16
          %vm2888 = vcmp.lt.s32.totalorder %v2824, 16
          %vm2889 = vcmp.lt.s32.totalorder %v2825, 16
          %vm2890 = vcmp.lt.s32.totalorder %v2826, 16
          %vm2891 = vcmp.lt.s32.totalorder %v2827, 16
          %vm2892 = vcmp.lt.s32.totalorder %v2828, 16
          %vm2893 = vcmp.lt.s32.totalorder %v2829, 16
          %vm2894 = vcmp.lt.s32.totalorder %v2830, 16
          %vm2895 = vcmp.lt.s32.totalorder %v2831, 16
          %vm2896 = vcmp.lt.s32.totalorder %v2832, 16
          %vm2897 = vcmp.lt.s32.totalorder %v2833, 16
          %vm2898 = vcmp.lt.s32.totalorder %v2834, 16
          %vm2899 = vcmp.lt.s32.totalorder %v2835, 16
          %vm2900 = vcmp.lt.s32.totalorder %v2836, 16
          %vm2901 = vcmp.lt.s32.totalorder %v2837, 16
          %vm2902 = vcmp.lt.s32.totalorder %v2838, 16
          %vm2903 = vcmp.lt.s32.totalorder %v2839, 16
          %vm2904 = vcmp.lt.s32.totalorder %v2840, 16
          %vm2905 = vcmp.lt.s32.totalorder %v2841, 16
          %vm2906 = vcmp.lt.s32.totalorder %v2842, 16
          %vm2907 = vcmp.lt.s32.totalorder %v2843, 16
          %vm2908 = vcmp.lt.s32.totalorder %v2844, 16
          %vm2909 = vmand %vm2845, %vm2877
          %vm2910 = vmand %vm2846, %vm2878
          %vm2911 = vmand %vm2847, %vm2879
          %vm2912 = vmand %vm2848, %vm2880
          %vm2913 = vmand %vm2849, %vm2881
          %vm2914 = vmand %vm2850, %vm2882
          %vm2915 = vmand %vm2851, %vm2883
          %vm2916 = vmand %vm2852, %vm2884
          %vm2917 = vmand %vm2853, %vm2885
          %vm2918 = vmand %vm2854, %vm2886
          %vm2919 = vmand %vm2855, %vm2887
          %vm2920 = vmand %vm2856, %vm2888
          %vm2921 = vmand %vm2857, %vm2889
          %vm2922 = vmand %vm2858, %vm2890
          %vm2923 = vmand %vm2859, %vm2891
          %vm2924 = vmand %vm2860, %vm2892
          %vm2925 = vmand %vm2861, %vm2893
          %vm2926 = vmand %vm2862, %vm2894
          %vm2927 = vmand %vm2863, %vm2895
          %vm2928 = vmand %vm2864, %vm2896
          %vm2929 = vmand %vm2865, %vm2897
          %vm2930 = vmand %vm2866, %vm2898
          %vm2931 = vmand %vm2867, %vm2899
          %vm2932 = vmand %vm2868, %vm2900
          %vm2933 = vmand %vm2869, %vm2901
          %vm2934 = vmand %vm2870, %vm2902
          %vm2935 = vmand %vm2871, %vm2903
          %vm2936 = vmand %vm2872, %vm2904
          %vm2937 = vmand %vm2873, %vm2905
          %vm2938 = vmand %vm2874, %vm2906
          %vm2939 = vmand %vm2875, %vm2907
          %vm2940 = vmand %vm2876, %vm2908
          %v2941 = vsel %vm2909, 1, 0
          %v2942 = vsel %vm2910, 1, 0
          %v2943 = vsel %vm2911, 1, 0
          %v2944 = vsel %vm2912, 1, 0
          %v2945 = vsel %vm2913, 1, 0
          %v2946 = vsel %vm2914, 1, 0
          %v2947 = vsel %vm2915, 1, 0
          %v2948 = vsel %vm2916, 1, 0
          %v2949 = vsel %vm2917, 1, 0
          %v2950 = vsel %vm2918, 1, 0
          %v2951 = vsel %vm2919, 1, 0
          %v2952 = vsel %vm2920, 1, 0
          %v2953 = vsel %vm2921, 1, 0
          %v2954 = vsel %vm2922, 1, 0
          %v2955 = vsel %vm2923, 1, 0
          %v2956 = vsel %vm2924, 1, 0
          %v2957 = vsel %vm2925, 1, 0
          %v2958 = vsel %vm2926, 1, 0
          %v2959 = vsel %vm2927, 1, 0
          %v2960 = vsel %vm2928, 1, 0
          %v2961 = vsel %vm2929, 1, 0
          %v2962 = vsel %vm2930, 1, 0
          %v2963 = vsel %vm2931, 1, 0
          %v2964 = vsel %vm2932, 1, 0
          %v2965 = vsel %vm2933, 1, 0
          %v2966 = vsel %vm2934, 1, 0
          %v2967 = vsel %vm2935, 1, 0
          %v2968 = vsel %vm2936, 1, 0
          %v2969 = vsel %vm2937, 1, 0
          %v2970 = vsel %vm2938, 1, 0
          %v2971 = vsel %vm2939, 1, 0
          %v2972 = vsel %vm2940, 1, 0
          %v2973 = vcvt.s32.f32 %v2941
          %v2974 = vcvt.s32.f32 %v2942
          %v2975 = vcvt.s32.f32 %v2943
          %v2976 = vcvt.s32.f32 %v2944
          %v2977 = vcvt.s32.f32 %v2945
          %v2978 = vcvt.s32.f32 %v2946
          %v2979 = vcvt.s32.f32 %v2947
          %v2980 = vcvt.s32.f32 %v2948
          %v2981 = vcvt.s32.f32 %v2949
          %v2982 = vcvt.s32.f32 %v2950
          %v2983 = vcvt.s32.f32 %v2951
          %v2984 = vcvt.s32.f32 %v2952
          %v2985 = vcvt.s32.f32 %v2953
          %v2986 = vcvt.s32.f32 %v2954
          %v2987 = vcvt.s32.f32 %v2955
          %v2988 = vcvt.s32.f32 %v2956
          %v2989 = vcvt.s32.f32 %v2957
          %v2990 = vcvt.s32.f32 %v2958
          %v2991 = vcvt.s32.f32 %v2959
          %v2992 = vcvt.s32.f32 %v2960
          %v2993 = vcvt.s32.f32 %v2961
          %v2994 = vcvt.s32.f32 %v2962
          %v2995 = vcvt.s32.f32 %v2963
          %v2996 = vcvt.s32.f32 %v2964
          %v2997 = vcvt.s32.f32 %v2965
          %v2998 = vcvt.s32.f32 %v2966
          %v2999 = vcvt.s32.f32 %v2967
          %v3000 = vcvt.s32.f32 %v2968
          %v3001 = vcvt.s32.f32 %v2969
          %v3002 = vcvt.s32.f32 %v2970
          %v3003 = vcvt.s32.f32 %v2971
          %v3004 = vcvt.s32.f32 %v2972
          %v3005 = vmul.f32 %v2687, %v2973
          %v3006 = vmul.f32 %v2690, %v2974
          %v3007 = vmul.f32 %v2695, %v2975
          %v3008 = vmul.f32 %v2698, %v2976
          %v3009 = vmul.f32 %v2703, %v2977
          %v3010 = vmul.f32 %v2706, %v2978
          %v3011 = vmul.f32 %v2711, %v2979
          %v3012 = vmul.f32 %v2714, %v2980
          %v3013 = vmul.f32 %v2719, %v2981
          %v3014 = vmul.f32 %v2722, %v2982
          %v3015 = vmul.f32 %v2727, %v2983
          %v3016 = vmul.f32 %v2730, %v2984
          %v3017 = vmul.f32 %v2735, %v2985
          %v3018 = vmul.f32 %v2738, %v2986
          %v3019 = vmul.f32 %v2743, %v2987
          %v3020 = vmul.f32 %v2746, %v2988
          %v3021 = vmul.f32 %v2751, %v2989
          %v3022 = vmul.f32 %v2754, %v2990
          %v3023 = vmul.f32 %v2759, %v2991
          %v3024 = vmul.f32 %v2762, %v2992
          %v3025 = vmul.f32 %v2767, %v2993
          %v3026 = vmul.f32 %v2770, %v2994
          %v3027 = vmul.f32 %v2775, %v2995
          %v3028 = vmul.f32 %v2778, %v2996
          %v3029 = vmul.f32 %v2783, %v2997
          %v3030 = vmul.f32 %v2786, %v2998
          %v3031 = vmul.f32 %v2791, %v2999
          %v3032 = vmul.f32 %v2794, %v3000
          %v3033 = vmul.f32 %v2799, %v3001
          %v3034 = vmul.f32 %v2802, %v3002
          %v3035 = vmul.f32 %v2807, %v3003
          %v3036 = vmul.f32 %v2810, %v3004
          %v3037 = vadd.f32 %v3005, 0.0
          %v3038 = vadd.f32 %v3006, 0.0
          %v3039 = vadd.f32 %v3007, 0.0
          %v3040 = vadd.f32 %v3008, 0.0
          %v3041 = vadd.f32 %v3009, 0.0
          %v3042 = vadd.f32 %v3010, 0.0
          %v3043 = vadd.f32 %v3011, 0.0
          %v3044 = vadd.f32 %v3012, 0.0
          %v3045 = vadd.f32 %v3013, 0.0
          %v3046 = vadd.f32 %v3014, 0.0
          %v3047 = vadd.f32 %v3015, 0.0
          %v3048 = vadd.f32 %v3016, 0.0
          %v3049 = vadd.f32 %v3017, 0.0
          %v3050 = vadd.f32 %v3018, 0.0
          %v3051 = vadd.f32 %v3019, 0.0
          %v3052 = vadd.f32 %v3020, 0.0
          %v3053 = vadd.f32 %v3021, 0.0
          %v3054 = vadd.f32 %v3022, 0.0
          %v3055 = vadd.f32 %v3023, 0.0
          %v3056 = vadd.f32 %v3024, 0.0
          %v3057 = vadd.f32 %v3025, 0.0
          %v3058 = vadd.f32 %v3026, 0.0
          %v3059 = vadd.f32 %v3027, 0.0
          %v3060 = vadd.f32 %v3028, 0.0
          %v3061 = vadd.f32 %v3029, 0.0
          %v3062 = vadd.f32 %v3030, 0.0
          %v3063 = vadd.f32 %v3031, 0.0
          %v3064 = vadd.f32 %v3032, 0.0
          %v3065 = vadd.f32 %v3033, 0.0
          %v3066 = vadd.f32 %v3034, 0.0
          %v3067 = vadd.f32 %v3035, 0.0
          %v3068 = vadd.f32 %v3036, 0.0
          %v3069 = vld [vmem:[#allocation3 + $0x7] sm:$0xff]
          %v3070 = vld [vmem:[#allocation3 + $0xf] sm:$0xff]
          %v3071 = vld [vmem:[#allocation3 + $0x17] sm:$0xff]
          %v3072 = vld [vmem:[#allocation3 + $0x1f] sm:$0xff]
          %v3073 = vld [vmem:[#allocation3 + $0x27] sm:$0xff]
          %v3074 = vld [vmem:[#allocation3 + $0x2f] sm:$0xff]
          %v3075 = vld [vmem:[#allocation3 + $0x37] sm:$0xff]
          %v3076 = vld [vmem:[#allocation3 + $0x3f] sm:$0xff]
          %v3077 = vld [vmem:[#allocation3 + $0x47] sm:$0xff]
          %v3078 = vld [vmem:[#allocation3 + $0x4f] sm:$0xff]
          %v3079 = vld [vmem:[#allocation3 + $0x57] sm:$0xff]
          %v3080 = vld [vmem:[#allocation3 + $0x5f] sm:$0xff]
          %v3081 = vld [vmem:[#allocation3 + $0x67] sm:$0xff]
          %v3082 = vld [vmem:[#allocation3 + $0x6f] sm:$0xff]
          %v3083 = vld [vmem:[#allocation3 + $0x77] sm:$0xff]
          %v3084 = vld [vmem:[#allocation3 + $0x7f] sm:$0xff]
          %v3085 = vld [vmem:[#allocation3 + $0x87] sm:$0xff]
          %v3086 = vld [vmem:[#allocation3 + $0x8f] sm:$0xff]
          %v3087 = vld [vmem:[#allocation3 + $0x97] sm:$0xff]
          %v3088 = vld [vmem:[#allocation3 + $0x9f] sm:$0xff]
          %v3089 = vld [vmem:[#allocation3 + $0xa7] sm:$0xff]
          %v3090 = vld [vmem:[#allocation3 + $0xaf] sm:$0xff]
          %v3091 = vld [vmem:[#allocation3 + $0xb7] sm:$0xff]
          %v3092 = vld [vmem:[#allocation3 + $0xbf] sm:$0xff]
          %v3093 = vld [vmem:[#allocation3 + $0xc7] sm:$0xff]
          %v3094 = vld [vmem:[#allocation3 + $0xcf] sm:$0xff]
          %v3095 = vld [vmem:[#allocation3 + $0xd7] sm:$0xff]
          %v3096 = vld [vmem:[#allocation3 + $0xdf] sm:$0xff]
          %v3097 = vld [vmem:[#allocation3 + $0xe7] sm:$0xff]
          %v3098 = vld [vmem:[#allocation3 + $0xef] sm:$0xff]
          %v3099 = vld [vmem:[#allocation3 + $0xf7] sm:$0xff]
          %v3100 = vld [vmem:[#allocation3 + $0xff] sm:$0xff]
          %v3101 = vld [vmem:[#allocation3 + $0x107] sm:$0xff]
          %v3102 = vld [vmem:[#allocation3 + $0x10f] sm:$0xff]
          %v3103 = vld [vmem:[#allocation3 + $0x117] sm:$0xff]
          %v3104 = vld [vmem:[#allocation3 + $0x11f] sm:$0xff]
          %v3105 = vld [vmem:[#allocation3 + $0x127] sm:$0xff]
          %v3106 = vld [vmem:[#allocation3 + $0x12f] sm:$0xff]
          %v3107 = vld [vmem:[#allocation3 + $0x137] sm:$0xff]
          %v3108 = vld [vmem:[#allocation3 + $0x13f] sm:$0xff]
          %v3109 = vpack.c.bf16 %v3070, %v3069
          %v3110 = vpack.c.bf16 %v3072, %v3071
          %v3111 = vpack.c.bf16 %v3074, %v3073
          %v3112 = vpack.c.bf16 %v3076, %v3075
          %v3113 = vpack.c.bf16 %v3078, %v3077
          %v3114 = vpack.c.bf16 %v3080, %v3079
          %v3115 = vpack.c.bf16 %v3082, %v3081
          %v3116 = vpack.c.bf16 %v3084, %v3083
          %v3117 = vpack.c.bf16 %v3086, %v3085
          %v3118 = vpack.c.bf16 %v3088, %v3087
          %v3119 = vpack.c.bf16 %v3090, %v3089
          %v3120 = vpack.c.bf16 %v3092, %v3091
          %v3121 = vpack.c.bf16 %v3094, %v3093
          %v3122 = vpack.c.bf16 %v3096, %v3095
          %v3123 = vpack.c.bf16 %v3098, %v3097
          %v3124 = vpack.c.bf16 %v3100, %v3099
          %v3125 = vpack.c.bf16 %v3102, %v3101
          %v3126 = vpack.c.bf16 %v3104, %v3103
          %v3127 = vpack.c.bf16 %v3106, %v3105
          %v3128 = vpack.c.bf16 %v3108, %v3107
          %3145 = vrot.lane.b32.xlu0 %v3110, 32
          %v3146 = vpop.permute.xlu0 %3145
          %3147 = vrot.lane.b32.xlu0 %v3111, 32
          %v3148 = vpop.permute.xlu0 %3147
          %3149 = vrot.lane.b32.xlu0 %v3112, 32
          %v3150 = vpop.permute.xlu0 %3149
          %3151 = vrot.lane.b32.xlu0 %v3113, 32
          %v3152 = vpop.permute.xlu0 %3151
          %3153 = vrot.lane.b32.xlu0 %v3114, 32
          %v3154 = vpop.permute.xlu0 %3153
          %3155 = vrot.lane.b32.xlu0 %v3115, 32
          %v3156 = vpop.permute.xlu0 %3155
          %3157 = vrot.lane.b32.xlu0 %v3116, 32
          %v3158 = vpop.permute.xlu0 %3157
          %3159 = vrot.lane.b32.xlu0 %v3117, 32
          %v3160 = vpop.permute.xlu0 %3159
          %3161 = vrot.lane.b32.xlu0 %v3118, 32
          %v3162 = vpop.permute.xlu0 %3161
          %3163 = vrot.lane.b32.xlu0 %v3119, 32
          %v3164 = vpop.permute.xlu0 %3163
          %3165 = vrot.lane.b32.xlu0 %v3120, 32
          %v3166 = vpop.permute.xlu0 %3165
          %3167 = vrot.lane.b32.xlu0 %v3121, 32
          %v3168 = vpop.permute.xlu0 %3167
          %3169 = vrot.lane.b32.xlu0 %v3122, 32
          %v3170 = vpop.permute.xlu0 %3169
          %3171 = vrot.lane.b32.xlu0 %v3123, 32
          %v3172 = vpop.permute.xlu0 %3171
          %3173 = vrot.lane.b32.xlu0 %v3124, 32
          %v3174 = vpop.permute.xlu0 %3173
          %3175 = vrot.lane.b32.xlu0 %v3125, 32
          %v3176 = vpop.permute.xlu0 %3175
          %3178 = vrot.lane.b32.xlu0 %v3111, 64
          %v3179 = vpop.permute.xlu0 %3178
          %3180 = vrot.lane.b32.xlu0 %v3112, 64
          %v3181 = vpop.permute.xlu0 %3180
          %3182 = vrot.lane.b32.xlu0 %v3113, 64
          %v3183 = vpop.permute.xlu0 %3182
          %3184 = vrot.lane.b32.xlu0 %v3114, 64
          %v3185 = vpop.permute.xlu0 %3184
          %3186 = vrot.lane.b32.xlu0 %v3115, 64
          %v3187 = vpop.permute.xlu0 %3186
          %3188 = vrot.lane.b32.xlu0 %v3116, 64
          %v3189 = vpop.permute.xlu0 %3188
          %3190 = vrot.lane.b32.xlu0 %v3117, 64
          %v3191 = vpop.permute.xlu0 %3190
          %3192 = vrot.lane.b32.xlu0 %v3118, 64
          %v3193 = vpop.permute.xlu0 %3192
          %3194 = vrot.lane.b32.xlu0 %v3119, 64
          %v3195 = vpop.permute.xlu0 %3194
          %3196 = vrot.lane.b32.xlu0 %v3120, 64
          %v3197 = vpop.permute.xlu0 %3196
          %3198 = vrot.lane.b32.xlu0 %v3121, 64
          %v3199 = vpop.permute.xlu0 %3198
          %3200 = vrot.lane.b32.xlu0 %v3122, 64
          %v3201 = vpop.permute.xlu0 %3200
          %3202 = vrot.lane.b32.xlu0 %v3123, 64
          %v3203 = vpop.permute.xlu0 %3202
          %3204 = vrot.lane.b32.xlu0 %v3124, 64
          %v3205 = vpop.permute.xlu0 %3204
          %3206 = vrot.lane.b32.xlu0 %v3125, 64
          %v3207 = vpop.permute.xlu0 %3206
          %3208 = vrot.lane.b32.xlu0 %v3126, 64
          %v3209 = vpop.permute.xlu0 %3208
          %3211 = vrot.lane.b32.xlu0 %v3112, 96
          %v3212 = vpop.permute.xlu0 %3211
          %3213 = vrot.lane.b32.xlu0 %v3113, 96
          %v3214 = vpop.permute.xlu0 %3213
          %3215 = vrot.lane.b32.xlu0 %v3114, 96
          %v3216 = vpop.permute.xlu0 %3215
          %3217 = vrot.lane.b32.xlu0 %v3115, 96
          %v3218 = vpop.permute.xlu0 %3217
          %3219 = vrot.lane.b32.xlu0 %v3116, 96
          %v3220 = vpop.permute.xlu0 %3219
          %3221 = vrot.lane.b32.xlu0 %v3117, 96
          %v3222 = vpop.permute.xlu0 %3221
          %3223 = vrot.lane.b32.xlu0 %v3118, 96
          %v3224 = vpop.permute.xlu0 %3223
          %3225 = vrot.lane.b32.xlu0 %v3119, 96
          %v3226 = vpop.permute.xlu0 %3225
          %3227 = vrot.lane.b32.xlu0 %v3120, 96
          %v3228 = vpop.permute.xlu0 %3227
          %3229 = vrot.lane.b32.xlu0 %v3121, 96
          %v3230 = vpop.permute.xlu0 %3229
          %3231 = vrot.lane.b32.xlu0 %v3122, 96
          %v3232 = vpop.permute.xlu0 %3231
          %3233 = vrot.lane.b32.xlu0 %v3123, 96
          %v3234 = vpop.permute.xlu0 %3233
          %3235 = vrot.lane.b32.xlu0 %v3124, 96
          %v3236 = vpop.permute.xlu0 %3235
          %3237 = vrot.lane.b32.xlu0 %v3125, 96
          %v3238 = vpop.permute.xlu0 %3237
          %3239 = vrot.lane.b32.xlu0 %v3126, 96
          %v3240 = vpop.permute.xlu0 %3239
          %3241 = vrot.lane.b32.xlu0 %v3127, 96
          %v3242 = vpop.permute.xlu0 %3241
          %v3245 = vsel %vm391, %v3109, %v3146
          %v3248 = vsel %vm391, %v3110, %v3148
          %v3251 = vsel %vm391, %v3111, %v3150
          %v3254 = vsel %vm391, %v3112, %v3152
          %v3257 = vsel %vm391, %v3113, %v3154
          %v3260 = vsel %vm391, %v3114, %v3156
          %v3263 = vsel %vm391, %v3115, %v3158
          %v3266 = vsel %vm391, %v3116, %v3160
          %v3269 = vsel %vm391, %v3117, %v3162
          %v3272 = vsel %vm391, %v3118, %v3164
          %v3275 = vsel %vm391, %v3119, %v3166
          %v3278 = vsel %vm391, %v3120, %v3168
          %v3281 = vsel %vm391, %v3121, %v3170
          %v3284 = vsel %vm391, %v3122, %v3172
          %v3287 = vsel %vm391, %v3123, %v3174
          %v3290 = vsel %vm391, %v3124, %v3176
          %v3292 = vsel %vm2454, %v3245, %v3179
          %v3294 = vsel %vm2454, %v3248, %v3181
          %v3296 = vsel %vm2454, %v3251, %v3183
          %v3298 = vsel %vm2454, %v3254, %v3185
          %v3300 = vsel %vm2454, %v3257, %v3187
          %v3302 = vsel %vm2454, %v3260, %v3189
          %v3304 = vsel %vm2454, %v3263, %v3191
          %v3306 = vsel %vm2454, %v3266, %v3193
          %v3308 = vsel %vm2454, %v3269, %v3195
          %v3310 = vsel %vm2454, %v3272, %v3197
          %v3312 = vsel %vm2454, %v3275, %v3199
          %v3314 = vsel %vm2454, %v3278, %v3201
          %v3316 = vsel %vm2454, %v3281, %v3203
          %v3318 = vsel %vm2454, %v3284, %v3205
          %v3320 = vsel %vm2454, %v3287, %v3207
          %v3322 = vsel %vm2454, %v3290, %v3209
          %v3324 = vsel %vm2487, %v3292, %v3212
          %v3327 = vsel %vm2487, %v3294, %v3214
          %v3330 = vsel %vm2487, %v3296, %v3216
          %v3333 = vsel %vm2487, %v3298, %v3218
          %v3336 = vsel %vm2487, %v3300, %v3220
          %v3339 = vsel %vm2487, %v3302, %v3222
          %v3342 = vsel %vm2487, %v3304, %v3224
          %v3345 = vsel %vm2487, %v3306, %v3226
          %v3348 = vsel %vm2487, %v3308, %v3228
          %v3351 = vsel %vm2487, %v3310, %v3230
          %v3354 = vsel %vm2487, %v3312, %v3232
          %v3357 = vsel %vm2487, %v3314, %v3234
          %v3360 = vsel %vm2487, %v3316, %v3236
          %v3363 = vsel %vm2487, %v3318, %v3238
          %v3366 = vsel %vm2487, %v3320, %v3240
          %v3369 = vsel %vm2487, %v3322, %v3242
          %s3371 = scalar_lea.vmem %s3, 80
          %v3372 = vld [vmem:[%s3371] sm:$0xf]
          %v3373 = vld [vmem:[%s3371 + $0x4] sm:$0xf]
          %v3374 = vld [vmem:[%s3371 + $0x8] sm:$0xf]
          %v3375 = vld [vmem:[%s3371 + $0xc] sm:$0xf]
          %v3376 = vld [vmem:[%s3371 + $0x10] sm:$0xf]
          %v3377 = vld [vmem:[%s3371 + $0x14] sm:$0xf]
          %v3378 = vld [vmem:[%s3371 + $0x18] sm:$0xf]
          %v3379 = vld [vmem:[%s3371 + $0x1c] sm:$0xf]
          %v3380 = vld [vmem:[%s3371 + $0x20] sm:$0xf]
          %v3381 = vld [vmem:[%s3371 + $0x24] sm:$0xf]
          %v3382 = vld [vmem:[%s3371 + $0x28] sm:$0xf]
          %v3383 = vld [vmem:[%s3371 + $0x2c] sm:$0xf]
          %v3384 = vld [vmem:[%s3371 + $0x30] sm:$0xf]
          %v3385 = vld [vmem:[%s3371 + $0x34] sm:$0xf]
          %v3386 = vld [vmem:[%s3371 + $0x38] sm:$0xf]
          %v3387 = vld [vmem:[%s3371 + $0x3c] sm:$0xf]
          %v3388 = vld [vmem:[%s3371 + $0x40] sm:$0xf]
          %v3389 = vld [vmem:[%s3371 + $0x44] sm:$0xf]
          %v3390 = vld [vmem:[%s3371 + $0x48] sm:$0xf]
          %v3391 = vld [vmem:[%s3371 + $0x4c] sm:$0xf]
          %v3412 = vunpack.c.l.b16 %v3372
          %v3413 = vunpack.c.l.b16 %v3373
          %v3414 = vunpack.c.l.b16 %v3374
          %v3415 = vunpack.c.l.b16 %v3375
          %v3416 = vunpack.c.l.b16 %v3376
          %v3417 = vunpack.c.l.b16 %v3377
          %v3418 = vunpack.c.l.b16 %v3378
          %v3419 = vunpack.c.l.b16 %v3379
          %v3420 = vunpack.c.l.b16 %v3380
          %v3421 = vunpack.c.l.b16 %v3381
          %v3422 = vunpack.c.l.b16 %v3382
          %v3423 = vunpack.c.l.b16 %v3383
          %v3424 = vunpack.c.l.b16 %v3384
          %v3425 = vunpack.c.l.b16 %v3385
          %v3426 = vunpack.c.l.b16 %v3386
          %v3427 = vunpack.c.l.b16 %v3387
          %v3428 = vunpack.c.l.b16 %v3388
          %v3429 = vunpack.c.l.b16 %v3389
          %v3430 = vunpack.c.l.b16 %v3390
          %v3431 = vunpack.c.l.b16 %v3391
          %v3432 = vpack.c.b16 %v3413, %v3412
          %v3433 = vpack.c.b16 %v3415, %v3414
          %v3434 = vpack.c.b16 %v3417, %v3416
          %v3435 = vpack.c.b16 %v3419, %v3418
          %v3436 = vpack.c.b16 %v3421, %v3420
          %v3437 = vpack.c.b16 %v3423, %v3422
          %v3438 = vpack.c.b16 %v3425, %v3424
          %v3439 = vpack.c.b16 %v3427, %v3426
          %v3440 = vpack.c.b16 %v3429, %v3428
          %v3441 = vpack.c.b16 %v3431, %v3430
          %v3452 = vsel %vm391, %v3113, 0
          %v3454 = vsel %vm391, %v3114, 0
          %v3456 = vsel %vm391, %v3115, 0
          %v3458 = vsel %vm391, %v3116, 0
          %v3460 = vsel %vm391, %v3117, 0
          %v3462 = vsel %vm391, %v3118, 0
          %v3464 = vsel %vm391, %v3119, 0
          %v3466 = vsel %vm391, %v3120, 0
          %v3468 = vsel %vm391, %v3121, 0
          %v3470 = vsel %vm391, %v3122, 0
          %v3472 = vsel %vm391, %v3123, 0
          %v3474 = vsel %vm391, %v3124, 0
          %v3477 = vsel %vm391, %v3125, 0
          %v3480 = vsel %vm391, %v3126, 0
          %v3483 = vsel %vm391, %v3127, 0
          %v3486 = vsel %vm391, %v3128, 0
          %3488 = vmatprep.subr.bf16.mxu0 0
          %3489 = vmatpush1.bf16.msra.mxu0 %v3432
          %3490 = vmatprep.subr.bf16.mxu0 0
          %3491 = vmatpush1.bf16.msra.mxu0 %v3433
          %3492 = vmatprep.subr.bf16.mxu0 0
          %3493 = vmatpush1.bf16.msra.mxu0 %v3434
          %3494 = vmatprep.subr.bf16.mxu0 0
          %3495 = vmatpush1.bf16.msra.mxu0 %v3435
          %3496 = vmatprep.subr.bf16.mxu0 0
          %3497 = vmatpush1.bf16.msra.mxu0 %v3436
          %3498 = vmatprep.subr.bf16.mxu0 0
          %3499 = vmatpush1.bf16.msra.mxu0 %v3437
          %3500 = vmatprep.subr.bf16.mxu0 0
          %3501 = vmatpush1.bf16.msra.mxu0 %v3438
          %3502 = vmatprep.subr.bf16.mxu0 0
          %3503 = vmatpush1.bf16.msra.mxu0 %v3439
          %3504 = vmatprep.subr.bf16.mxu0 0
          %3505 = vmatpush1.bf16.msra.mxu0 %v3440
          %3506 = vmatprep.subr.bf16.mxu0 0
          %3507 = vmatpush1.bf16.msra.mxu0 %v3441
          %3508 = vmatprep.subr.bf16.mxu0 0
          %3509 = vmatpush1.bf16.msra.mxu0 0
          %3510 = vmatprep.subr.bf16.mxu0 0
          %3511 = vmatpush1.bf16.msra.mxu0 0
          %3512 = vmatprep.subr.bf16.mxu0 0
          %3513 = vmatpush1.bf16.msra.mxu0 0
          %3514 = vmatprep.subr.bf16.mxu0 0
          %3515 = vmatpush1.bf16.msra.mxu0 0
          %3516 = vmatprep.subr.bf16.mxu0 0
          %3517 = vmatpush1.bf16.msra.mxu0 0
          %3518 = vmatprep.subr.bf16.mxu0 0
          %3519 = vmatpush1.bf16.msra.mxu0 0
          %3520 = vmatprep.mubr.bf16.mxu0 %v3452
          %3521 = vmatmul.mubr.bf16.gmra.mrb[0].mxu0 %v3324
          %v3522 = vpop.f32.mrb[0].mxu0
          %v3523 = vadd.f32 0.0, %v3522
          %v3524 = vpop.f32.mrb[0].mxu0
          %v3525 = vpop.f32.mrb[0].mxu0
          %v3526 = vadd.f32 0.0, %v3525
          %v3527 = vpop.f32.mrb[0].mxu0
          %3528 = vmatprep.mubr.bf16.mxu0 %v3454
          %3529 = vmatmul.mubr.bf16.gmra.mrb[0].mxu0 %v3327
          %v3530 = vpop.f32.mrb[0].mxu0
          %v3531 = vadd.f32 0.0, %v3530
          %v3532 = vpop.f32.mrb[0].mxu0
          %v3533 = vpop.f32.mrb[0].mxu0
          %v3534 = vadd.f32 0.0, %v3533
          %v3535 = vpop.f32.mrb[0].mxu0
          %3536 = vmatprep.mubr.bf16.mxu0 %v3456
          %3537 = vmatmul.mubr.bf16.gmra.mrb[0].mxu0 %v3330
          %v3538 = vpop.f32.mrb[0].mxu0
          %v3539 = vadd.f32 0.0, %v3538
          %v3540 = vpop.f32.mrb[0].mxu0
          %v3541 = vpop.f32.mrb[0].mxu0
          %v3542 = vadd.f32 0.0, %v3541
          %v3543 = vpop.f32.mrb[0].mxu0
          %3544 = vmatprep.mubr.bf16.mxu0 %v3458
          %3545 = vmatmul.mubr.bf16.gmra.mrb[0].mxu0 %v3333
          %v3546 = vpop.f32.mrb[0].mxu0
          %v3547 = vadd.f32 0.0, %v3546
          %v3548 = vpop.f32.mrb[0].mxu0
          %v3549 = vpop.f32.mrb[0].mxu0
          %v3550 = vadd.f32 0.0, %v3549
          %v3551 = vpop.f32.mrb[0].mxu0
          %3552 = vmatprep.mubr.bf16.mxu0 %v3460
          %3553 = vmatmul.mubr.bf16.gmra.mrb[0].mxu0 %v3336
          %v3554 = vpop.f32.mrb[0].mxu0
          %v3555 = vadd.f32 0.0, %v3554
          %v3556 = vpop.f32.mrb[0].mxu0
          %v3557 = vpop.f32.mrb[0].mxu0
          %v3558 = vadd.f32 0.0, %v3557
          %v3559 = vpop.f32.mrb[0].mxu0
          %3560 = vmatprep.mubr.bf16.mxu0 %v3462
          %3561 = vmatmul.mubr.bf16.gmra.mrb[0].mxu0 %v3339
          %v3562 = vpop.f32.mrb[0].mxu0
          %v3563 = vadd.f32 0.0, %v3562
          %v3564 = vpop.f32.mrb[0].mxu0
          %v3565 = vpop.f32.mrb[0].mxu0
          %v3566 = vadd.f32 0.0, %v3565
          %v3567 = vpop.f32.mrb[0].mxu0
          %3568 = vmatprep.mubr.bf16.mxu0 %v3464
          %3569 = vmatmul.mubr.bf16.gmra.mrb[0].mxu0 %v3342
          %v3570 = vpop.f32.mrb[0].mxu0
          %v3571 = vadd.f32 0.0, %v3570
          %v3572 = vpop.f32.mrb[0].mxu0
          %v3573 = vpop.f32.mrb[0].mxu0
          %v3574 = vadd.f32 0.0, %v3573
          %v3575 = vpop.f32.mrb[0].mxu0
          %3576 = vmatprep.mubr.bf16.mxu0 %v3466
          %3577 = vmatmul.mubr.bf16.gmra.mrb[0].mxu0 %v3345
          %v3578 = vpop.f32.mrb[0].mxu0
          %v3579 = vadd.f32 0.0, %v3578
          %v3580 = vpop.f32.mrb[0].mxu0
          %v3581 = vpop.f32.mrb[0].mxu0
          %v3582 = vadd.f32 0.0, %v3581
          %v3583 = vpop.f32.mrb[0].mxu0
          %3584 = vmatprep.mubr.bf16.mxu0 %v3468
          %3585 = vmatmul.mubr.bf16.gmra.mrb[0].mxu0 %v3348
          %v3586 = vpop.f32.mrb[0].mxu0
          %v3587 = vadd.f32 0.0, %v3586
          %v3588 = vpop.f32.mrb[0].mxu0
          %v3589 = vpop.f32.mrb[0].mxu0
          %v3590 = vadd.f32 0.0, %v3589
          %v3591 = vpop.f32.mrb[0].mxu0
          %3592 = vmatprep.mubr.bf16.mxu0 %v3470
          %3593 = vmatmul.mubr.bf16.gmra.mrb[0].mxu0 %v3351
          %v3594 = vpop.f32.mrb[0].mxu0
          %v3595 = vadd.f32 0.0, %v3594
          %v3596 = vpop.f32.mrb[0].mxu0
          %v3597 = vpop.f32.mrb[0].mxu0
          %v3598 = vadd.f32 0.0, %v3597
          %v3599 = vpop.f32.mrb[0].mxu0
          %3600 = vmatprep.mubr.bf16.mxu0 %v3472
          %3601 = vmatmul.mubr.bf16.gmra.mrb[0].mxu0 %v3354
          %v3602 = vpop.f32.mrb[0].mxu0
          %v3603 = vadd.f32 0.0, %v3602
          %v3604 = vpop.f32.mrb[0].mxu0
          %v3605 = vpop.f32.mrb[0].mxu0
          %v3606 = vadd.f32 0.0, %v3605
          %v3607 = vpop.f32.mrb[0].mxu0
          %3608 = vmatprep.mubr.bf16.mxu0 %v3474
          %3609 = vmatmul.mubr.bf16.gmra.mrb[0].mxu0 %v3357
          %v3610 = vpop.f32.mrb[0].mxu0
          %v3611 = vadd.f32 0.0, %v3610
          %v3612 = vpop.f32.mrb[0].mxu0
          %v3613 = vpop.f32.mrb[0].mxu0
          %v3614 = vadd.f32 0.0, %v3613
          %v3615 = vpop.f32.mrb[0].mxu0
          %3616 = vmatprep.mubr.bf16.mxu0 %v3477
          %3617 = vmatmul.mubr.bf16.gmra.mrb[0].mxu0 %v3360
          %v3618 = vpop.f32.mrb[0].mxu0
          %v3619 = vadd.f32 0.0, %v3618
          %v3620 = vpop.f32.mrb[0].mxu0
          %v3621 = vpop.f32.mrb[0].mxu0
          %v3622 = vadd.f32 0.0, %v3621
          %v3623 = vpop.f32.mrb[0].mxu0
          %3624 = vmatprep.mubr.bf16.mxu0 %v3480
          %3625 = vmatmul.mubr.bf16.gmra.mrb[0].mxu0 %v3363
          %v3626 = vpop.f32.mrb[0].mxu0
          %v3627 = vadd.f32 0.0, %v3626
          %v3628 = vpop.f32.mrb[0].mxu0
          %v3629 = vpop.f32.mrb[0].mxu0
          %v3630 = vadd.f32 0.0, %v3629
          %v3631 = vpop.f32.mrb[0].mxu0
          %3632 = vmatprep.mubr.bf16.mxu0 %v3483
          %3633 = vmatmul.mubr.bf16.gmra.mrb[0].mxu0 %v3366
          %v3634 = vpop.f32.mrb[0].mxu0
          %v3635 = vadd.f32 0.0, %v3634
          %v3636 = vpop.f32.mrb[0].mxu0
          %v3637 = vpop.f32.mrb[0].mxu0
          %v3638 = vadd.f32 0.0, %v3637
          %v3639 = vpop.f32.mrb[0].mxu0
          %3640 = vmatprep.mubr.bf16.mxu0 %v3486
          %3641 = vmatmul.mubr.bf16.gmra.mrb[0].mxu0 %v3369
          %v3642 = vpop.f32.mrb[0].mxu0
          %v3643 = vadd.f32 0.0, %v3642
          %v3644 = vpop.f32.mrb[0].mxu0
          %v3645 = vpop.f32.mrb[0].mxu0
          %v3646 = vadd.f32 0.0, %v3645
          %v3647 = vpop.f32.mrb[0].mxu0
          %3648 = vdwg.mxu0
          %v3649 = vadd.s32 %v2200, 4294967295
          %v3650 = vadd.s32 %v2201, 4294967295
          %v3651 = vadd.s32 %v2202, 4294967295
          %v3652 = vadd.s32 %v2203, 4294967295
          %v3653 = vadd.s32 %v2204, 4294967295
          %v3654 = vadd.s32 %v2205, 4294967295
          %v3655 = vadd.s32 %v2206, 4294967295
          %v3656 = vadd.s32 %v2207, 4294967295
          %v3657 = vadd.s32 %v2208, 4294967295
          %v3658 = vadd.s32 %v2209, 4294967295
          %v3659 = vadd.s32 %v2210, 4294967295
          %v3660 = vadd.s32 %v2211, 4294967295
          %v3661 = vadd.s32 %v2212, 4294967295
          %v3662 = vadd.s32 %v2213, 4294967295
          %v3663 = vadd.s32 %v2214, 4294967295
          %v3664 = vadd.s32 %v2215, 4294967295
          %v3665 = vadd.s32 %v2216, 4294967295
          %v3666 = vadd.s32 %v2217, 4294967295
          %v3667 = vadd.s32 %v2218, 4294967295
          %v3668 = vadd.s32 %v2219, 4294967295
          %v3669 = vadd.s32 %v2220, 4294967295
          %v3670 = vadd.s32 %v2221, 4294967295
          %v3671 = vadd.s32 %v2222, 4294967295
          %v3672 = vadd.s32 %v2223, 4294967295
          %v3673 = vadd.s32 %v2224, 4294967295
          %v3674 = vadd.s32 %v2225, 4294967295
          %v3675 = vadd.s32 %v2226, 4294967295
          %v3676 = vadd.s32 %v2227, 4294967295
          %v3677 = vadd.s32 %v2228, 4294967295
          %v3678 = vadd.s32 %v2229, 4294967295
          %v3679 = vadd.s32 %v2230, 4294967295
          %v3680 = vadd.s32 %v2231, 4294967295
          %vm3681 = vcmp.ge.s32.totalorder %v3649, 0
          %vm3682 = vcmp.ge.s32.totalorder %v3650, 0
          %vm3683 = vcmp.ge.s32.totalorder %v3651, 0
          %vm3684 = vcmp.ge.s32.totalorder %v3652, 0
          %vm3685 = vcmp.ge.s32.totalorder %v3653, 0
          %vm3686 = vcmp.ge.s32.totalorder %v3654, 0
          %vm3687 = vcmp.ge.s32.totalorder %v3655, 0
          %vm3688 = vcmp.ge.s32.totalorder %v3656, 0
          %vm3689 = vcmp.ge.s32.totalorder %v3657, 0
          %vm3690 = vcmp.ge.s32.totalorder %v3658, 0
          %vm3691 = vcmp.ge.s32.totalorder %v3659, 0
          %vm3692 = vcmp.ge.s32.totalorder %v3660, 0
          %vm3693 = vcmp.ge.s32.totalorder %v3661, 0
          %vm3694 = vcmp.ge.s32.totalorder %v3662, 0
          %vm3695 = vcmp.ge.s32.totalorder %v3663, 0
          %vm3696 = vcmp.ge.s32.totalorder %v3664, 0
          %vm3697 = vcmp.ge.s32.totalorder %v3665, 0
          %vm3698 = vcmp.ge.s32.totalorder %v3666, 0
          %vm3699 = vcmp.ge.s32.totalorder %v3667, 0
          %vm3700 = vcmp.ge.s32.totalorder %v3668, 0
          %vm3701 = vcmp.ge.s32.totalorder %v3669, 0
          %vm3702 = vcmp.ge.s32.totalorder %v3670, 0
          %vm3703 = vcmp.ge.s32.totalorder %v3671, 0
          %vm3704 = vcmp.ge.s32.totalorder %v3672, 0
          %vm3705 = vcmp.ge.s32.totalorder %v3673, 0
          %vm3706 = vcmp.ge.s32.totalorder %v3674, 0
          %vm3707 = vcmp.ge.s32.totalorder %v3675, 0
          %vm3708 = vcmp.ge.s32.totalorder %v3676, 0
          %vm3709 = vcmp.ge.s32.totalorder %v3677, 0
          %vm3710 = vcmp.ge.s32.totalorder %v3678, 0
          %vm3711 = vcmp.ge.s32.totalorder %v3679, 0
          %vm3712 = vcmp.ge.s32.totalorder %v3680, 0
          %vm3713 = vcmp.lt.s32.totalorder %v3649, 16
          %vm3714 = vcmp.lt.s32.totalorder %v3650, 16
          %vm3715 = vcmp.lt.s32.totalorder %v3651, 16
          %vm3716 = vcmp.lt.s32.totalorder %v3652, 16
          %vm3717 = vcmp.lt.s32.totalorder %v3653, 16
          %vm3718 = vcmp.lt.s32.totalorder %v3654, 16
          %vm3719 = vcmp.lt.s32.totalorder %v3655, 16
          %vm3720 = vcmp.lt.s32.totalorder %v3656, 16
          %vm3721 = vcmp.lt.s32.totalorder %v3657, 16
          %vm3722 = vcmp.lt.s32.totalorder %v3658, 16
          %vm3723 = vcmp.lt.s32.totalorder %v3659, 16
          %vm3724 = vcmp.lt.s32.totalorder %v3660, 16
          %vm3725 = vcmp.lt.s32.totalorder %v3661, 16
          %vm3726 = vcmp.lt.s32.totalorder %v3662, 16
          %vm3727 = vcmp.lt.s32.totalorder %v3663, 16
          %vm3728 = vcmp.lt.s32.totalorder %v3664, 16
          %vm3729 = vcmp.lt.s32.totalorder %v3665, 16
          %vm3730 = vcmp.lt.s32.totalorder %v3666, 16
          %vm3731 = vcmp.lt.s32.totalorder %v3667, 16
          %vm3732 = vcmp.lt.s32.totalorder %v3668, 16
          %vm3733 = vcmp.lt.s32.totalorder %v3669, 16
          %vm3734 = vcmp.lt.s32.totalorder %v3670, 16
          %vm3735 = vcmp.lt.s32.totalorder %v3671, 16
          %vm3736 = vcmp.lt.s32.totalorder %v3672, 16
          %vm3737 = vcmp.lt.s32.totalorder %v3673, 16
          %vm3738 = vcmp.lt.s32.totalorder %v3674, 16
          %vm3739 = vcmp.lt.s32.totalorder %v3675, 16
          %vm3740 = vcmp.lt.s32.totalorder %v3676, 16
          %vm3741 = vcmp.lt.s32.totalorder %v3677, 16
          %vm3742 = vcmp.lt.s32.totalorder %v3678, 16
          %vm3743 = vcmp.lt.s32.totalorder %v3679, 16
          %vm3744 = vcmp.lt.s32.totalorder %v3680, 16
          %vm3745 = vmand %vm3681, %vm3713
          %vm3746 = vmand %vm3682, %vm3714
          %vm3747 = vmand %vm3683, %vm3715
          %vm3748 = vmand %vm3684, %vm3716
          %vm3749 = vmand %vm3685, %vm3717
          %vm3750 = vmand %vm3686, %vm3718
          %vm3751 = vmand %vm3687, %vm3719
          %vm3752 = vmand %vm3688, %vm3720
          %vm3753 = vmand %vm3689, %vm3721
          %vm3754 = vmand %vm3690, %vm3722
          %vm3755 = vmand %vm3691, %vm3723
          %vm3756 = vmand %vm3692, %vm3724
          %vm3757 = vmand %vm3693, %vm3725
          %vm3758 = vmand %vm3694, %vm3726
          %vm3759 = vmand %vm3695, %vm3727
          %vm3760 = vmand %vm3696, %vm3728
          %vm3761 = vmand %vm3697, %vm3729
          %vm3762 = vmand %vm3698, %vm3730
          %vm3763 = vmand %vm3699, %vm3731
          %vm3764 = vmand %vm3700, %vm3732
          %vm3765 = vmand %vm3701, %vm3733
          %vm3766 = vmand %vm3702, %vm3734
          %vm3767 = vmand %vm3703, %vm3735
          %vm3768 = vmand %vm3704, %vm3736
          %vm3769 = vmand %vm3705, %vm3737
          %vm3770 = vmand %vm3706, %vm3738
          %vm3771 = vmand %vm3707, %vm3739
          %vm3772 = vmand %vm3708, %vm3740
          %vm3773 = vmand %vm3709, %vm3741
          %vm3774 = vmand %vm3710, %vm3742
          %vm3775 = vmand %vm3711, %vm3743
          %vm3776 = vmand %vm3712, %vm3744
          %v3777 = vsel %vm3745, 1, 0
          %v3778 = vsel %vm3746, 1, 0
          %v3779 = vsel %vm3747, 1, 0
          %v3780 = vsel %vm3748, 1, 0
          %v3781 = vsel %vm3749, 1, 0
          %v3782 = vsel %vm3750, 1, 0
          %v3783 = vsel %vm3751, 1, 0
          %v3784 = vsel %vm3752, 1, 0
          %v3785 = vsel %vm3753, 1, 0
          %v3786 = vsel %vm3754, 1, 0
          %v3787 = vsel %vm3755, 1, 0
          %v3788 = vsel %vm3756, 1, 0
          %v3789 = vsel %vm3757, 1, 0
          %v3790 = vsel %vm3758, 1, 0
          %v3791 = vsel %vm3759, 1, 0
          %v3792 = vsel %vm3760, 1, 0
          %v3793 = vsel %vm3761, 1, 0
          %v3794 = vsel %vm3762, 1, 0
          %v3795 = vsel %vm3763, 1, 0
          %v3796 = vsel %vm3764, 1, 0
          %v3797 = vsel %vm3765, 1, 0
          %v3798 = vsel %vm3766, 1, 0
          %v3799 = vsel %vm3767, 1, 0
          %v3800 = vsel %vm3768, 1, 0
          %v3801 = vsel %vm3769, 1, 0
          %v3802 = vsel %vm3770, 1, 0
          %v3803 = vsel %vm3771, 1, 0
          %v3804 = vsel %vm3772, 1, 0
          %v3805 = vsel %vm3773, 1, 0
          %v3806 = vsel %vm3774, 1, 0
          %v3807 = vsel %vm3775, 1, 0
          %v3808 = vsel %vm3776, 1, 0
          %v3809 = vcvt.s32.f32 %v3777
          %v3810 = vcvt.s32.f32 %v3778
          %v3811 = vcvt.s32.f32 %v3779
          %v3812 = vcvt.s32.f32 %v3780
          %v3813 = vcvt.s32.f32 %v3781
          %v3814 = vcvt.s32.f32 %v3782
          %v3815 = vcvt.s32.f32 %v3783
          %v3816 = vcvt.s32.f32 %v3784
          %v3817 = vcvt.s32.f32 %v3785
          %v3818 = vcvt.s32.f32 %v3786
          %v3819 = vcvt.s32.f32 %v3787
          %v3820 = vcvt.s32.f32 %v3788
          %v3821 = vcvt.s32.f32 %v3789
          %v3822 = vcvt.s32.f32 %v3790
          %v3823 = vcvt.s32.f32 %v3791
          %v3824 = vcvt.s32.f32 %v3792
          %v3825 = vcvt.s32.f32 %v3793
          %v3826 = vcvt.s32.f32 %v3794
          %v3827 = vcvt.s32.f32 %v3795
          %v3828 = vcvt.s32.f32 %v3796
          %v3829 = vcvt.s32.f32 %v3797
          %v3830 = vcvt.s32.f32 %v3798
          %v3831 = vcvt.s32.f32 %v3799
          %v3832 = vcvt.s32.f32 %v3800
          %v3833 = vcvt.s32.f32 %v3801
          %v3834 = vcvt.s32.f32 %v3802
          %v3835 = vcvt.s32.f32 %v3803
          %v3836 = vcvt.s32.f32 %v3804
          %v3837 = vcvt.s32.f32 %v3805
          %v3838 = vcvt.s32.f32 %v3806
          %v3839 = vcvt.s32.f32 %v3807
          %v3840 = vcvt.s32.f32 %v3808
          %v3841 = vmul.f32 %v3523, %v3809
          %v3842 = vmul.f32 %v3526, %v3810
          %v3843 = vmul.f32 %v3531, %v3811
          %v3844 = vmul.f32 %v3534, %v3812
          %v3845 = vmul.f32 %v3539, %v3813
          %v3846 = vmul.f32 %v3542, %v3814
          %v3847 = vmul.f32 %v3547, %v3815
          %v3848 = vmul.f32 %v3550, %v3816
          %v3849 = vmul.f32 %v3555, %v3817
          %v3850 = vmul.f32 %v3558, %v3818
          %v3851 = vmul.f32 %v3563, %v3819
          %v3852 = vmul.f32 %v3566, %v3820
          %v3853 = vmul.f32 %v3571, %v3821
          %v3854 = vmul.f32 %v3574, %v3822
          %v3855 = vmul.f32 %v3579, %v3823
          %v3856 = vmul.f32 %v3582, %v3824
          %v3857 = vmul.f32 %v3587, %v3825
          %v3858 = vmul.f32 %v3590, %v3826
          %v3859 = vmul.f32 %v3595, %v3827
          %v3860 = vmul.f32 %v3598, %v3828
          %v3861 = vmul.f32 %v3603, %v3829
          %v3862 = vmul.f32 %v3606, %v3830
          %v3863 = vmul.f32 %v3611, %v3831
          %v3864 = vmul.f32 %v3614, %v3832
          %v3865 = vmul.f32 %v3619, %v3833
          %v3866 = vmul.f32 %v3622, %v3834
          %v3867 = vmul.f32 %v3627, %v3835
          %v3868 = vmul.f32 %v3630, %v3836
          %v3869 = vmul.f32 %v3635, %v3837
          %v3870 = vmul.f32 %v3638, %v3838
          %v3871 = vmul.f32 %v3643, %v3839
          %v3872 = vmul.f32 %v3646, %v3840
          %v3873 = vadd.f32 %v3037, %v3841
          %v3874 = vadd.f32 %v3038, %v3842
          %v3875 = vadd.f32 %v3039, %v3843
          %v3876 = vadd.f32 %v3040, %v3844
          %v3877 = vadd.f32 %v3041, %v3845
          %v3878 = vadd.f32 %v3042, %v3846
          %v3879 = vadd.f32 %v3043, %v3847
          %v3880 = vadd.f32 %v3044, %v3848
          %v3881 = vadd.f32 %v3045, %v3849
          %v3882 = vadd.f32 %v3046, %v3850
          %v3883 = vadd.f32 %v3047, %v3851
          %v3884 = vadd.f32 %v3048, %v3852
          %v3885 = vadd.f32 %v3049, %v3853
          %v3886 = vadd.f32 %v3050, %v3854
          %v3887 = vadd.f32 %v3051, %v3855
          %v3888 = vadd.f32 %v3052, %v3856
          %v3889 = vadd.f32 %v3053, %v3857
          %v3890 = vadd.f32 %v3054, %v3858
          %v3891 = vadd.f32 %v3055, %v3859
          %v3892 = vadd.f32 %v3056, %v3860
          %v3893 = vadd.f32 %v3057, %v3861
          %v3894 = vadd.f32 %v3058, %v3862
          %v3895 = vadd.f32 %v3059, %v3863
          %v3896 = vadd.f32 %v3060, %v3864
          %v3897 = vadd.f32 %v3061, %v3865
          %v3898 = vadd.f32 %v3062, %v3866
          %v3899 = vadd.f32 %v3063, %v3867
          %v3900 = vadd.f32 %v3064, %v3868
          %v3901 = vadd.f32 %v3065, %v3869
          %v3902 = vadd.f32 %v3066, %v3870
          %v3903 = vadd.f32 %v3067, %v3871
          %v3904 = vadd.f32 %v3068, %v3872
          %v3905 = vld [vmem:[#allocation3 + $0x8] sm:$0xff]
          %v3906 = vld [vmem:[#allocation3 + $0x10] sm:$0xff]
          %v3907 = vld [vmem:[#allocation3 + $0x18] sm:$0xff]
          %v3908 = vld [vmem:[#allocation3 + $0x20] sm:$0xff]
          %v3909 = vld [vmem:[#allocation3 + $0x28] sm:$0xff]
          %v3910 = vld [vmem:[#allocation3 + $0x30] sm:$0xff]
          %v3911 = vld [vmem:[#allocation3 + $0x38] sm:$0xff]
          %v3912 = vld [vmem:[#allocation3 + $0x40] sm:$0xff]
          %v3913 = vld [vmem:[#allocation3 + $0x48] sm:$0xff]
          %v3914 = vld [vmem:[#allocation3 + $0x50] sm:$0xff]
          %v3915 = vld [vmem:[#allocation3 + $0x58] sm:$0xff]
          %v3916 = vld [vmem:[#allocation3 + $0x60] sm:$0xff]
          %v3917 = vld [vmem:[#allocation3 + $0x68] sm:$0xff]
          %v3918 = vld [vmem:[#allocation3 + $0x70] sm:$0xff]
          %v3919 = vld [vmem:[#allocation3 + $0x78] sm:$0xff]
          %v3920 = vld [vmem:[#allocation3 + $0x80] sm:$0xff]
          %v3921 = vld [vmem:[#allocation3 + $0x88] sm:$0xff]
          %v3922 = vld [vmem:[#allocation3 + $0x90] sm:$0xff]
          %v3923 = vld [vmem:[#allocation3 + $0x98] sm:$0xff]
          %v3924 = vld [vmem:[#allocation3 + $0xa0] sm:$0xff]
          %v3925 = vld [vmem:[#allocation3 + $0xa8] sm:$0xff]
          %v3926 = vld [vmem:[#allocation3 + $0xb0] sm:$0xff]
          %v3927 = vld [vmem:[#allocation3 + $0xb8] sm:$0xff]
          %v3928 = vld [vmem:[#allocation3 + $0xc0] sm:$0xff]
          %v3929 = vld [vmem:[#allocation3 + $0xc8] sm:$0xff]
          %v3930 = vld [vmem:[#allocation3 + $0xd0] sm:$0xff]
          %v3931 = vld [vmem:[#allocation3 + $0xd8] sm:$0xff]
          %v3932 = vld [vmem:[#allocation3 + $0xe0] sm:$0xff]
          %v3933 = vld [vmem:[#allocation3 + $0xe8] sm:$0xff]
          %v3934 = vld [vmem:[#allocation3 + $0xf0] sm:$0xff]
          %v3935 = vld [vmem:[#allocation3 + $0xf8] sm:$0xff]
          %v3936 = vld [vmem:[#allocation3 + $0x100] sm:$0xff]
          %v3937 = vld [vmem:[#allocation3 + $0x108] sm:$0xff]
          %v3938 = vld [vmem:[#allocation3 + $0x110] sm:$0xff]
          %v3939 = vld [vmem:[#allocation3 + $0x118] sm:$0xff]
          %v3940 = vld [vmem:[#allocation3 + $0x120] sm:$0xff]
          %v3941 = vld [vmem:[#allocation3 + $0x128] sm:$0xff]
          %v3942 = vld [vmem:[#allocation3 + $0x130] sm:$0xff]
          %v3943 = vld [vmem:[#allocation3 + $0x138] sm:$0xff]
          %v3944 = vld [vmem:[#allocation3 + $0x140] sm:$0xff]
          %v3945 = vpack.c.bf16 %v3906, %v3905
          %v3946 = vpack.c.bf16 %v3908, %v3907
          %v3947 = vpack.c.bf16 %v3910, %v3909
          %v3948 = vpack.c.bf16 %v3912, %v3911
          %v3949 = vpack.c.bf16 %v3914, %v3913
          %v3950 = vpack.c.bf16 %v3916, %v3915
          %v3951 = vpack.c.bf16 %v3918, %v3917
          %v3952 = vpack.c.bf16 %v3920, %v3919
          %v3953 = vpack.c.bf16 %v3922, %v3921
          %v3954 = vpack.c.bf16 %v3924, %v3923
          %v3955 = vpack.c.bf16 %v3926, %v3925
          %v3956 = vpack.c.bf16 %v3928, %v3927
          %v3957 = vpack.c.bf16 %v3930, %v3929
          %v3958 = vpack.c.bf16 %v3932, %v3931
          %v3959 = vpack.c.bf16 %v3934, %v3933
          %v3960 = vpack.c.bf16 %v3936, %v3935
          %v3961 = vpack.c.bf16 %v3938, %v3937
          %v3962 = vpack.c.bf16 %v3940, %v3939
          %v3963 = vpack.c.bf16 %v3942, %v3941
          %v3964 = vpack.c.bf16 %v3944, %v3943
          %3981 = vrot.lane.b32.xlu0 %v3946, 32
          %v3982 = vpop.permute.xlu0 %3981
          %3983 = vrot.lane.b32.xlu0 %v3947, 32
          %v3984 = vpop.permute.xlu0 %3983
          %3985 = vrot.lane.b32.xlu0 %v3948, 32
          %v3986 = vpop.permute.xlu0 %3985
          %3987 = vrot.lane.b32.xlu0 %v3949, 32
          %v3988 = vpop.permute.xlu0 %3987
          %3989 = vrot.lane.b32.xlu0 %v3950, 32
          %v3990 = vpop.permute.xlu0 %3989
          %3991 = vrot.lane.b32.xlu0 %v3951, 32
          %v3992 = vpop.permute.xlu0 %3991
          %3993 = vrot.lane.b32.xlu0 %v3952, 32
          %v3994 = vpop.permute.xlu0 %3993
          %3995 = vrot.lane.b32.xlu0 %v3953, 32
          %v3996 = vpop.permute.xlu0 %3995
          %3997 = vrot.lane.b32.xlu0 %v3954, 32
          %v3998 = vpop.permute.xlu0 %3997
          %3999 = vrot.lane.b32.xlu0 %v3955, 32
          %v4000 = vpop.permute.xlu0 %3999
          %4001 = vrot.lane.b32.xlu0 %v3956, 32
          %v4002 = vpop.permute.xlu0 %4001
          %4003 = vrot.lane.b32.xlu0 %v3957, 32
          %v4004 = vpop.permute.xlu0 %4003
          %4005 = vrot.lane.b32.xlu0 %v3958, 32
          %v4006 = vpop.permute.xlu0 %4005
          %4007 = vrot.lane.b32.xlu0 %v3959, 32
          %v4008 = vpop.permute.xlu0 %4007
          %4009 = vrot.lane.b32.xlu0 %v3960, 32
          %v4010 = vpop.permute.xlu0 %4009
          %4011 = vrot.lane.b32.xlu0 %v3961, 32
          %v4012 = vpop.permute.xlu0 %4011
          %4014 = vrot.lane.b32.xlu0 %v3947, 64
          %v4015 = vpop.permute.xlu0 %4014
          %4016 = vrot.lane.b32.xlu0 %v3948, 64
          %v4017 = vpop.permute.xlu0 %4016
          %4018 = vrot.lane.b32.xlu0 %v3949, 64
          %v4019 = vpop.permute.xlu0 %4018
          %4020 = vrot.lane.b32.xlu0 %v3950, 64
          %v4021 = vpop.permute.xlu0 %4020
          %4022 = vrot.lane.b32.xlu0 %v3951, 64
          %v4023 = vpop.permute.xlu0 %4022
          %4024 = vrot.lane.b32.xlu0 %v3952, 64
          %v4025 = vpop.permute.xlu0 %4024
          %4026 = vrot.lane.b32.xlu0 %v3953, 64
          %v4027 = vpop.permute.xlu0 %4026
          %4028 = vrot.lane.b32.xlu0 %v3954, 64
          %v4029 = vpop.permute.xlu0 %4028
          %4030 = vrot.lane.b32.xlu0 %v3955, 64
          %v4031 = vpop.permute.xlu0 %4030
          %4032 = vrot.lane.b32.xlu0 %v3956, 64
          %v4033 = vpop.permute.xlu0 %4032
          %4034 = vrot.lane.b32.xlu0 %v3957, 64
          %v4035 = vpop.permute.xlu0 %4034
          %4036 = vrot.lane.b32.xlu0 %v3958, 64
          %v4037 = vpop.permute.xlu0 %4036
          %4038 = vrot.lane.b32.xlu0 %v3959, 64
          %v4039 = vpop.permute.xlu0 %4038
          %4040 = vrot.lane.b32.xlu0 %v3960, 64
          %v4041 = vpop.permute.xlu0 %4040
          %4042 = vrot.lane.b32.xlu0 %v3961, 64
          %v4043 = vpop.permute.xlu0 %4042
          %4044 = vrot.lane.b32.xlu0 %v3962, 64
          %v4045 = vpop.permute.xlu0 %4044
          %4047 = vrot.lane.b32.xlu0 %v3948, 96
          %v4048 = vpop.permute.xlu0 %4047
          %4049 = vrot.lane.b32.xlu0 %v3949, 96
          %v4050 = vpop.permute.xlu0 %4049
          %4051 = vrot.lane.b32.xlu0 %v3950, 96
          %v4052 = vpop.permute.xlu0 %4051
          %4053 = vrot.lane.b32.xlu0 %v3951, 96
          %v4054 = vpop.permute.xlu0 %4053
          %4055 = vrot.lane.b32.xlu0 %v3952, 96
          %v4056 = vpop.permute.xlu0 %4055
          %4057 = vrot.lane.b32.xlu0 %v3953, 96
          %v4058 = vpop.permute.xlu0 %4057
          %4059 = vrot.lane.b32.xlu0 %v3954, 96
          %v4060 = vpop.permute.xlu0 %4059
          %4061 = vrot.lane.b32.xlu0 %v3955, 96
          %v4062 = vpop.permute.xlu0 %4061
          %4063 = vrot.lane.b32.xlu0 %v3956, 96
          %v4064 = vpop.permute.xlu0 %4063
          %4065 = vrot.lane.b32.xlu0 %v3957, 96
          %v4066 = vpop.permute.xlu0 %4065
          %4067 = vrot.lane.b32.xlu0 %v3958, 96
          %v4068 = vpop.permute.xlu0 %4067
          %4069 = vrot.lane.b32.xlu0 %v3959, 96
          %v4070 = vpop.permute.xlu0 %4069
          %4071 = vrot.lane.b32.xlu0 %v3960, 96
          %v4072 = vpop.permute.xlu0 %4071
          %4073 = vrot.lane.b32.xlu0 %v3961, 96
          %v4074 = vpop.permute.xlu0 %4073
          %4075 = vrot.lane.b32.xlu0 %v3962, 96
          %v4076 = vpop.permute.xlu0 %4075
          %4077 = vrot.lane.b32.xlu0 %v3963, 96
          %v4078 = vpop.permute.xlu0 %4077
          %v4081 = vsel %vm391, %v3945, %v3982
          %v4084 = vsel %vm391, %v3946, %v3984
          %v4087 = vsel %vm391, %v3947, %v3986
          %v4090 = vsel %vm391, %v3948, %v3988
          %v4093 = vsel %vm391, %v3949, %v3990
          %v4096 = vsel %vm391, %v3950, %v3992
          %v4099 = vsel %vm391, %v3951, %v3994
          %v4102 = vsel %vm391, %v3952, %v3996
          %v4105 = vsel %vm391, %v3953, %v3998
          %v4108 = vsel %vm391, %v3954, %v4000
          %v4111 = vsel %vm391, %v3955, %v4002
          %v4114 = vsel %vm391, %v3956, %v4004
          %v4117 = vsel %vm391, %v3957, %v4006
          %v4120 = vsel %vm391, %v3958, %v4008
          %v4123 = vsel %vm391, %v3959, %v4010
          %v4126 = vsel %vm391, %v3960, %v4012
          %v4128 = vsel %vm2454, %v4081, %v4015
          %v4130 = vsel %vm2454, %v4084, %v4017
          %v4132 = vsel %vm2454, %v4087, %v4019
          %v4134 = vsel %vm2454, %v4090, %v4021
          %v4136 = vsel %vm2454, %v4093, %v4023
          %v4138 = vsel %vm2454, %v4096, %v4025
          %v4140 = vsel %vm2454, %v4099, %v4027
          %v4142 = vsel %vm2454, %v4102, %v4029
          %v4144 = vsel %vm2454, %v4105, %v4031
          %v4146 = vsel %vm2454, %v4108, %v4033
          %v4148 = vsel %vm2454, %v4111, %v4035
          %v4150 = vsel %vm2454, %v4114, %v4037
          %v4152 = vsel %vm2454, %v4117, %v4039
          %v4154 = vsel %vm2454, %v4120, %v4041
          %v4156 = vsel %vm2454, %v4123, %v4043
          %v4158 = vsel %vm2454, %v4126, %v4045
          %v4160 = vsel %vm2487, %v4128, %v4048
          %v4163 = vsel %vm2487, %v4130, %v4050
          %v4166 = vsel %vm2487, %v4132, %v4052
          %v4169 = vsel %vm2487, %v4134, %v4054
          %v4172 = vsel %vm2487, %v4136, %v4056
          %v4175 = vsel %vm2487, %v4138, %v4058
          %v4178 = vsel %vm2487, %v4140, %v4060
          %v4181 = vsel %vm2487, %v4142, %v4062
          %v4184 = vsel %vm2487, %v4144, %v4064
          %v4187 = vsel %vm2487, %v4146, %v4066
          %v4190 = vsel %vm2487, %v4148, %v4068
          %v4193 = vsel %vm2487, %v4150, %v4070
          %v4196 = vsel %vm2487, %v4152, %v4072
          %v4199 = vsel %vm2487, %v4154, %v4074
          %v4202 = vsel %vm2487, %v4156, %v4076
          %v4205 = vsel %vm2487, %v4158, %v4078
          %s4207 = scalar_lea.vmem %s3, 160
          %v4208 = vld [vmem:[%s4207] sm:$0xf]
          %v4209 = vld [vmem:[%s4207 + $0x4] sm:$0xf]
          %v4210 = vld [vmem:[%s4207 + $0x8] sm:$0xf]
          %v4211 = vld [vmem:[%s4207 + $0xc] sm:$0xf]
          %v4212 = vld [vmem:[%s4207 + $0x10] sm:$0xf]
          %v4213 = vld [vmem:[%s4207 + $0x14] sm:$0xf]
          %v4214 = vld [vmem:[%s4207 + $0x18] sm:$0xf]
          %v4215 = vld [vmem:[%s4207 + $0x1c] sm:$0xf]
          %v4216 = vld [vmem:[%s4207 + $0x20] sm:$0xf]
          %v4217 = vld [vmem:[%s4207 + $0x24] sm:$0xf]
          %v4218 = vld [vmem:[%s4207 + $0x28] sm:$0xf]
          %v4219 = vld [vmem:[%s4207 + $0x2c] sm:$0xf]
          %v4220 = vld [vmem:[%s4207 + $0x30] sm:$0xf]
          %v4221 = vld [vmem:[%s4207 + $0x34] sm:$0xf]
          %v4222 = vld [vmem:[%s4207 + $0x38] sm:$0xf]
          %v4223 = vld [vmem:[%s4207 + $0x3c] sm:$0xf]
          %v4224 = vld [vmem:[%s4207 + $0x40] sm:$0xf]
          %v4225 = vld [vmem:[%s4207 + $0x44] sm:$0xf]
          %v4226 = vld [vmem:[%s4207 + $0x48] sm:$0xf]
          %v4227 = vld [vmem:[%s4207 + $0x4c] sm:$0xf]
          %v4248 = vunpack.c.l.b16 %v4208
          %v4249 = vunpack.c.l.b16 %v4209
          %v4250 = vunpack.c.l.b16 %v4210
          %v4251 = vunpack.c.l.b16 %v4211
          %v4252 = vunpack.c.l.b16 %v4212
          %v4253 = vunpack.c.l.b16 %v4213
          %v4254 = vunpack.c.l.b16 %v4214
          %v4255 = vunpack.c.l.b16 %v4215
          %v4256 = vunpack.c.l.b16 %v4216
          %v4257 = vunpack.c.l.b16 %v4217
          %v4258 = vunpack.c.l.b16 %v4218
          %v4259 = vunpack.c.l.b16 %v4219
          %v4260 = vunpack.c.l.b16 %v4220
          %v4261 = vunpack.c.l.b16 %v4221
          %v4262 = vunpack.c.l.b16 %v4222
          %v4263 = vunpack.c.l.b16 %v4223
          %v4264 = vunpack.c.l.b16 %v4224
          %v4265 = vunpack.c.l.b16 %v4225
          %v4266 = vunpack.c.l.b16 %v4226
          %v4267 = vunpack.c.l.b16 %v4227
          %v4268 = vpack.c.b16 %v4249, %v4248
          %v4269 = vpack.c.b16 %v4251, %v4250
          %v4270 = vpack.c.b16 %v4253, %v4252
          %v4271 = vpack.c.b16 %v4255, %v4254
          %v4272 = vpack.c.b16 %v4257, %v4256
          %v4273 = vpack.c.b16 %v4259, %v4258
          %v4274 = vpack.c.b16 %v4261, %v4260
          %v4275 = vpack.c.b16 %v4263, %v4262
          %v4276 = vpack.c.b16 %v4265, %v4264
          %v4277 = vpack.c.b16 %v4267, %v4266
          %v4288 = vsel %vm391, %v3949, 0
          %v4290 = vsel %vm391, %v3950, 0
          %v4292 = vsel %vm391, %v3951, 0
          %v4294 = vsel %vm391, %v3952, 0
          %v4296 = vsel %vm391, %v3953, 0
          %v4298 = vsel %vm391, %v3954, 0
          %v4300 = vsel %vm391, %v3955, 0
          %v4302 = vsel %vm391, %v3956, 0
          %v4304 = vsel %vm391, %v3957, 0
          %v4306 = vsel %vm391, %v3958, 0
          %v4308 = vsel %vm391, %v3959, 0
          %v4310 = vsel %vm391, %v3960, 0
          %v4313 = vsel %vm391, %v3961, 0
          %v4316 = vsel %vm391, %v3962, 0
          %v4319 = vsel %vm391, %v3963, 0
          %v4322 = vsel %vm391, %v3964, 0
          %4324 = vmatprep.subr.bf16.mxu0 0
          %4325 = vmatpush1.bf16.msra.mxu0 %v4268
          %4326 = vmatprep.subr.bf16.mxu0 0
          %4327 = vmatpush1.bf16.msra.mxu0 %v4269
          %4328 = vmatprep.subr.bf16.mxu0 0
          %4329 = vmatpush1.bf16.msra.mxu0 %v4270
          %4330 = vmatprep.subr.bf16.mxu0 0
          %4331 = vmatpush1.bf16.msra.mxu0 %v4271
          %4332 = vmatprep.subr.bf16.mxu0 0
          %4333 = vmatpush1.bf16.msra.mxu0 %v4272
          %4334 = vmatprep.subr.bf16.mxu0 0
          %4335 = vmatpush1.bf16.msra.mxu0 %v4273
          %4336 = vmatprep.subr.bf16.mxu0 0
          %4337 = vmatpush1.bf16.msra.mxu0 %v4274
          %4338 = vmatprep.subr.bf16.mxu0 0
          %4339 = vmatpush1.bf16.msra.mxu0 %v4275
          %4340 = vmatprep.subr.bf16.mxu0 0
          %4341 = vmatpush1.bf16.msra.mxu0 %v4276
          %4342 = vmatprep.subr.bf16.mxu0 0
          %4343 = vmatpush1.bf16.msra.mxu0 %v4277
          %4344 = vmatprep.subr.bf16.mxu0 0
          %4345 = vmatpush1.bf16.msra.mxu0 0
          %4346 = vmatprep.subr.bf16.mxu0 0
          %4347 = vmatpush1.bf16.msra.mxu0 0
          %4348 = vmatprep.subr.bf16.mxu0 0
          %4349 = vmatpush1.bf16.msra.mxu0 0
          %4350 = vmatprep.subr.bf16.mxu0 0
          %4351 = vmatpush1.bf16.msra.mxu0 0
          %4352 = vmatprep.subr.bf16.mxu0 0
          %4353 = vmatpush1.bf16.msra.mxu0 0
          %4354 = vmatprep.subr.bf16.mxu0 0
          %4355 = vmatpush1.bf16.msra.mxu0 0
          %4356 = vmatprep.mubr.bf16.mxu0 %v4288
          %4357 = vmatmul.mubr.bf16.gmra.mrb[0].mxu0 %v4160
          %v4358 = vpop.f32.mrb[0].mxu0
          %v4359 = vadd.f32 0.0, %v4358
          %v4360 = vpop.f32.mrb[0].mxu0
          %v4361 = vpop.f32.mrb[0].mxu0
          %v4362 = vadd.f32 0.0, %v4361
          %v4363 = vpop.f32.mrb[0].mxu0
          %4364 = vmatprep.mubr.bf16.mxu0 %v4290
          %4365 = vmatmul.mubr.bf16.gmra.mrb[0].mxu0 %v4163
          %v4366 = vpop.f32.mrb[0].mxu0
          %v4367 = vadd.f32 0.0, %v4366
          %v4368 = vpop.f32.mrb[0].mxu0
          %v4369 = vpop.f32.mrb[0].mxu0
          %v4370 = vadd.f32 0.0, %v4369
          %v4371 = vpop.f32.mrb[0].mxu0
          %4372 = vmatprep.mubr.bf16.mxu0 %v4292
          %4373 = vmatmul.mubr.bf16.gmra.mrb[0].mxu0 %v4166
          %v4374 = vpop.f32.mrb[0].mxu0
          %v4375 = vadd.f32 0.0, %v4374
          %v4376 = vpop.f32.mrb[0].mxu0
          %v4377 = vpop.f32.mrb[0].mxu0
          %v4378 = vadd.f32 0.0, %v4377
          %v4379 = vpop.f32.mrb[0].mxu0
          %4380 = vmatprep.mubr.bf16.mxu0 %v4294
          %4381 = vmatmul.mubr.bf16.gmra.mrb[0].mxu0 %v4169
          %v4382 = vpop.f32.mrb[0].mxu0
          %v4383 = vadd.f32 0.0, %v4382
          %v4384 = vpop.f32.mrb[0].mxu0
          %v4385 = vpop.f32.mrb[0].mxu0
          %v4386 = vadd.f32 0.0, %v4385
          %v4387 = vpop.f32.mrb[0].mxu0
          %4388 = vmatprep.mubr.bf16.mxu0 %v4296
          %4389 = vmatmul.mubr.bf16.gmra.mrb[0].mxu0 %v4172
          %v4390 = vpop.f32.mrb[0].mxu0
          %v4391 = vadd.f32 0.0, %v4390
          %v4392 = vpop.f32.mrb[0].mxu0
          %v4393 = vpop.f32.mrb[0].mxu0
          %v4394 = vadd.f32 0.0, %v4393
          %v4395 = vpop.f32.mrb[0].mxu0
          %4396 = vmatprep.mubr.bf16.mxu0 %v4298
          %4397 = vmatmul.mubr.bf16.gmra.mrb[0].mxu0 %v4175
          %v4398 = vpop.f32.mrb[0].mxu0
          %v4399 = vadd.f32 0.0, %v4398
          %v4400 = vpop.f32.mrb[0].mxu0
          %v4401 = vpop.f32.mrb[0].mxu0
          %v4402 = vadd.f32 0.0, %v4401
          %v4403 = vpop.f32.mrb[0].mxu0
          %4404 = vmatprep.mubr.bf16.mxu0 %v4300
          %4405 = vmatmul.mubr.bf16.gmra.mrb[0].mxu0 %v4178
          %v4406 = vpop.f32.mrb[0].mxu0
          %v4407 = vadd.f32 0.0, %v4406
          %v4408 = vpop.f32.mrb[0].mxu0
          %v4409 = vpop.f32.mrb[0].mxu0
          %v4410 = vadd.f32 0.0, %v4409
          %v4411 = vpop.f32.mrb[0].mxu0
          %4412 = vmatprep.mubr.bf16.mxu0 %v4302
          %4413 = vmatmul.mubr.bf16.gmra.mrb[0].mxu0 %v4181
          %v4414 = vpop.f32.mrb[0].mxu0
          %v4415 = vadd.f32 0.0, %v4414
          %v4416 = vpop.f32.mrb[0].mxu0
          %v4417 = vpop.f32.mrb[0].mxu0
          %v4418 = vadd.f32 0.0, %v4417
          %v4419 = vpop.f32.mrb[0].mxu0
          %4420 = vmatprep.mubr.bf16.mxu0 %v4304
          %4421 = vmatmul.mubr.bf16.gmra.mrb[0].mxu0 %v4184
          %v4422 = vpop.f32.mrb[0].mxu0
          %v4423 = vadd.f32 0.0, %v4422
          %v4424 = vpop.f32.mrb[0].mxu0
          %v4425 = vpop.f32.mrb[0].mxu0
          %v4426 = vadd.f32 0.0, %v4425
          %v4427 = vpop.f32.mrb[0].mxu0
          %4428 = vmatprep.mubr.bf16.mxu0 %v4306
          %4429 = vmatmul.mubr.bf16.gmra.mrb[0].mxu0 %v4187
          %v4430 = vpop.f32.mrb[0].mxu0
          %v4431 = vadd.f32 0.0, %v4430
          %v4432 = vpop.f32.mrb[0].mxu0
          %v4433 = vpop.f32.mrb[0].mxu0
          %v4434 = vadd.f32 0.0, %v4433
          %v4435 = vpop.f32.mrb[0].mxu0
          %4436 = vmatprep.mubr.bf16.mxu0 %v4308
          %4437 = vmatmul.mubr.bf16.gmra.mrb[0].mxu0 %v4190
          %v4438 = vpop.f32.mrb[0].mxu0
          %v4439 = vadd.f32 0.0, %v4438
          %v4440 = vpop.f32.mrb[0].mxu0
          %v4441 = vpop.f32.mrb[0].mxu0
          %v4442 = vadd.f32 0.0, %v4441
          %v4443 = vpop.f32.mrb[0].mxu0
          %4444 = vmatprep.mubr.bf16.mxu0 %v4310
          %4445 = vmatmul.mubr.bf16.gmra.mrb[0].mxu0 %v4193
          %v4446 = vpop.f32.mrb[0].mxu0
          %v4447 = vadd.f32 0.0, %v4446
          %v4448 = vpop.f32.mrb[0].mxu0
          %v4449 = vpop.f32.mrb[0].mxu0
          %v4450 = vadd.f32 0.0, %v4449
          %v4451 = vpop.f32.mrb[0].mxu0
          %4452 = vmatprep.mubr.bf16.mxu0 %v4313
          %4453 = vmatmul.mubr.bf16.gmra.mrb[0].mxu0 %v4196
          %v4454 = vpop.f32.mrb[0].mxu0
          %v4455 = vadd.f32 0.0, %v4454
          %v4456 = vpop.f32.mrb[0].mxu0
          %v4457 = vpop.f32.mrb[0].mxu0
          %v4458 = vadd.f32 0.0, %v4457
          %v4459 = vpop.f32.mrb[0].mxu0
          %4460 = vmatprep.mubr.bf16.mxu0 %v4316
          %4461 = vmatmul.mubr.bf16.gmra.mrb[0].mxu0 %v4199
          %v4462 = vpop.f32.mrb[0].mxu0
          %v4463 = vadd.f32 0.0, %v4462
          %v4464 = vpop.f32.mrb[0].mxu0
          %v4465 = vpop.f32.mrb[0].mxu0
          %v4466 = vadd.f32 0.0, %v4465
          %v4467 = vpop.f32.mrb[0].mxu0
          %4468 = vmatprep.mubr.bf16.mxu0 %v4319
          %4469 = vmatmul.mubr.bf16.gmra.mrb[0].mxu0 %v4202
          %v4470 = vpop.f32.mrb[0].mxu0
          %v4471 = vadd.f32 0.0, %v4470
          %v4472 = vpop.f32.mrb[0].mxu0
          %v4473 = vpop.f32.mrb[0].mxu0
          %v4474 = vadd.f32 0.0, %v4473
          %v4475 = vpop.f32.mrb[0].mxu0
          %4476 = vmatprep.mubr.bf16.mxu0 %v4322
          %4477 = vmatmul.mubr.bf16.gmra.mrb[0].mxu0 %v4205
          %v4478 = vpop.f32.mrb[0].mxu0
          %v4479 = vadd.f32 0.0, %v4478
          %v4480 = vpop.f32.mrb[0].mxu0
          %v4481 = vpop.f32.mrb[0].mxu0
          %v4482 = vadd.f32 0.0, %v4481
          %v4483 = vpop.f32.mrb[0].mxu0
          %4484 = vdwg.mxu0
          %v4485 = vadd.f32 %v3873, %v4359
          %v4486 = vadd.f32 %v3874, %v4362
          %v4487 = vadd.f32 %v3875, %v4367
          %v4488 = vadd.f32 %v3876, %v4370
          %v4489 = vadd.f32 %v3877, %v4375
          %v4490 = vadd.f32 %v3878, %v4378
          %v4491 = vadd.f32 %v3879, %v4383
          %v4492 = vadd.f32 %v3880, %v4386
          %v4493 = vadd.f32 %v3881, %v4391
          %v4494 = vadd.f32 %v3882, %v4394
          %v4495 = vadd.f32 %v3883, %v4399
          %v4496 = vadd.f32 %v3884, %v4402
          %v4497 = vadd.f32 %v3885, %v4407
          %v4498 = vadd.f32 %v3886, %v4410
          %v4499 = vadd.f32 %v3887, %v4415
          %v4500 = vadd.f32 %v3888, %v4418
          %v4501 = vadd.f32 %v3889, %v4423
          %v4502 = vadd.f32 %v3890, %v4426
          %v4503 = vadd.f32 %v3891, %v4431
          %v4504 = vadd.f32 %v3892, %v4434
          %v4505 = vadd.f32 %v3893, %v4439
          %v4506 = vadd.f32 %v3894, %v4442
          %v4507 = vadd.f32 %v3895, %v4447
          %v4508 = vadd.f32 %v3896, %v4450
          %v4509 = vadd.f32 %v3897, %v4455
          %v4510 = vadd.f32 %v3898, %v4458
          %v4511 = vadd.f32 %v3899, %v4463
          %v4512 = vadd.f32 %v3900, %v4466
          %v4513 = vadd.f32 %v3901, %v4471
          %v4514 = vadd.f32 %v3902, %v4474
          %v4515 = vadd.f32 %v3903, %v4479
          %v4516 = vadd.f32 %v3904, %v4482
          %v4517 = vld [vmem:[#allocation3 + $0x9] sm:$0xff]
          %v4518 = vld [vmem:[#allocation3 + $0x11] sm:$0xff]
          %v4519 = vld [vmem:[#allocation3 + $0x19] sm:$0xff]
          %v4520 = vld [vmem:[#allocation3 + $0x21] sm:$0xff]
          %v4521 = vld [vmem:[#allocation3 + $0x29] sm:$0xff]
          %v4522 = vld [vmem:[#allocation3 + $0x31] sm:$0xff]
          %v4523 = vld [vmem:[#allocation3 + $0x39] sm:$0xff]
          %v4524 = vld [vmem:[#allocation3 + $0x41] sm:$0xff]
          %v4525 = vld [vmem:[#allocation3 + $0x49] sm:$0xff]
          %v4526 = vld [vmem:[#allocation3 + $0x51] sm:$0xff]
          %v4527 = vld [vmem:[#allocation3 + $0x59] sm:$0xff]
          %v4528 = vld [vmem:[#allocation3 + $0x61] sm:$0xff]
          %v4529 = vld [vmem:[#allocation3 + $0x69] sm:$0xff]
          %v4530 = vld [vmem:[#allocation3 + $0x71] sm:$0xff]
          %v4531 = vld [vmem:[#allocation3 + $0x79] sm:$0xff]
          %v4532 = vld [vmem:[#allocation3 + $0x81] sm:$0xff]
          %v4533 = vld [vmem:[#allocation3 + $0x89] sm:$0xff]
          %v4534 = vld [vmem:[#allocation3 + $0x91] sm:$0xff]
          %v4535 = vld [vmem:[#allocation3 + $0x99] sm:$0xff]
          %v4536 = vld [vmem:[#allocation3 + $0xa1] sm:$0xff]
          %v4537 = vld [vmem:[#allocation3 + $0xa9] sm:$0xff]
          %v4538 = vld [vmem:[#allocation3 + $0xb1] sm:$0xff]
          %v4539 = vld [vmem:[#allocation3 + $0xb9] sm:$0xff]
          %v4540 = vld [vmem:[#allocation3 + $0xc1] sm:$0xff]
          %v4541 = vld [vmem:[#allocation3 + $0xc9] sm:$0xff]
          %v4542 = vld [vmem:[#allocation3 + $0xd1] sm:$0xff]
          %v4543 = vld [vmem:[#allocation3 + $0xd9] sm:$0xff]
          %v4544 = vld [vmem:[#allocation3 + $0xe1] sm:$0xff]
          %v4545 = vld [vmem:[#allocation3 + $0xe9] sm:$0xff]
          %v4546 = vld [vmem:[#allocation3 + $0xf1] sm:$0xff]
          %v4547 = vld [vmem:[#allocation3 + $0xf9] sm:$0xff]
          %v4548 = vld [vmem:[#allocation3 + $0x101] sm:$0xff]
          %v4549 = vld [vmem:[#allocation3 + $0x109] sm:$0xff]
          %v4550 = vld [vmem:[#allocation3 + $0x111] sm:$0xff]
          %v4551 = vld [vmem:[#allocation3 + $0x119] sm:$0xff]
          %v4552 = vld [vmem:[#allocation3 + $0x121] sm:$0xff]
          %v4553 = vld [vmem:[#allocation3 + $0x129] sm:$0xff]
          %v4554 = vld [vmem:[#allocation3 + $0x131] sm:$0xff]
          %v4555 = vld [vmem:[#allocation3 + $0x139] sm:$0xff]
          %v4556 = vld [vmem:[#allocation3 + $0x141] sm:$0xff]
          %v4557 = vpack.c.bf16 %v4518, %v4517
          %v4558 = vpack.c.bf16 %v4520, %v4519
          %v4559 = vpack.c.bf16 %v4522, %v4521
          %v4560 = vpack.c.bf16 %v4524, %v4523
          %v4561 = vpack.c.bf16 %v4526, %v4525
          %v4562 = vpack.c.bf16 %v4528, %v4527
          %v4563 = vpack.c.bf16 %v4530, %v4529
          %v4564 = vpack.c.bf16 %v4532, %v4531
          %v4565 = vpack.c.bf16 %v4534, %v4533
          %v4566 = vpack.c.bf16 %v4536, %v4535
          %v4567 = vpack.c.bf16 %v4538, %v4537
          %v4568 = vpack.c.bf16 %v4540, %v4539
          %v4569 = vpack.c.bf16 %v4542, %v4541
          %v4570 = vpack.c.bf16 %v4544, %v4543
          %v4571 = vpack.c.bf16 %v4546, %v4545
          %v4572 = vpack.c.bf16 %v4548, %v4547
          %v4573 = vpack.c.bf16 %v4550, %v4549
          %v4574 = vpack.c.bf16 %v4552, %v4551
          %v4575 = vpack.c.bf16 %v4554, %v4553
          %v4576 = vpack.c.bf16 %v4556, %v4555
          %4593 = vrot.lane.b32.xlu0 %v4558, 32
          %v4594 = vpop.permute.xlu0 %4593
          %4595 = vrot.lane.b32.xlu0 %v4559, 32
          %v4596 = vpop.permute.xlu0 %4595
          %4597 = vrot.lane.b32.xlu0 %v4560, 32
          %v4598 = vpop.permute.xlu0 %4597
          %4599 = vrot.lane.b32.xlu0 %v4561, 32
          %v4600 = vpop.permute.xlu0 %4599
          %4601 = vrot.lane.b32.xlu0 %v4562, 32
          %v4602 = vpop.permute.xlu0 %4601
          %4603 = vrot.lane.b32.xlu0 %v4563, 32
          %v4604 = vpop.permute.xlu0 %4603
          %4605 = vrot.lane.b32.xlu0 %v4564, 32
          %v4606 = vpop.permute.xlu0 %4605
          %4607 = vrot.lane.b32.xlu0 %v4565, 32
          %v4608 = vpop.permute.xlu0 %4607
          %4609 = vrot.lane.b32.xlu0 %v4566, 32
          %v4610 = vpop.permute.xlu0 %4609
          %4611 = vrot.lane.b32.xlu0 %v4567, 32
          %v4612 = vpop.permute.xlu0 %4611
          %4613 = vrot.lane.b32.xlu0 %v4568, 32
          %v4614 = vpop.permute.xlu0 %4613
          %4615 = vrot.lane.b32.xlu0 %v4569, 32
          %v4616 = vpop.permute.xlu0 %4615
          %4617 = vrot.lane.b32.xlu0 %v4570, 32
          %v4618 = vpop.permute.xlu0 %4617
          %4619 = vrot.lane.b32.xlu0 %v4571, 32
          %v4620 = vpop.permute.xlu0 %4619
          %4621 = vrot.lane.b32.xlu0 %v4572, 32
          %v4622 = vpop.permute.xlu0 %4621
          %4623 = vrot.lane.b32.xlu0 %v4573, 32
          %v4624 = vpop.permute.xlu0 %4623
          %4626 = vrot.lane.b32.xlu0 %v4559, 64
          %v4627 = vpop.permute.xlu0 %4626
          %4628 = vrot.lane.b32.xlu0 %v4560, 64
          %v4629 = vpop.permute.xlu0 %4628
          %4630 = vrot.lane.b32.xlu0 %v4561, 64
          %v4631 = vpop.permute.xlu0 %4630
          %4632 = vrot.lane.b32.xlu0 %v4562, 64
          %v4633 = vpop.permute.xlu0 %4632
          %4634 = vrot.lane.b32.xlu0 %v4563, 64
          %v4635 = vpop.permute.xlu0 %4634
          %4636 = vrot.lane.b32.xlu0 %v4564, 64
          %v4637 = vpop.permute.xlu0 %4636
          %4638 = vrot.lane.b32.xlu0 %v4565, 64
          %v4639 = vpop.permute.xlu0 %4638
          %4640 = vrot.lane.b32.xlu0 %v4566, 64
          %v4641 = vpop.permute.xlu0 %4640
          %4642 = vrot.lane.b32.xlu0 %v4567, 64
          %v4643 = vpop.permute.xlu0 %4642
          %4644 = vrot.lane.b32.xlu0 %v4568, 64
          %v4645 = vpop.permute.xlu0 %4644
          %4646 = vrot.lane.b32.xlu0 %v4569, 64
          %v4647 = vpop.permute.xlu0 %4646
          %4648 = vrot.lane.b32.xlu0 %v4570, 64
          %v4649 = vpop.permute.xlu0 %4648
          %4650 = vrot.lane.b32.xlu0 %v4571, 64
          %v4651 = vpop.permute.xlu0 %4650
          %4652 = vrot.lane.b32.xlu0 %v4572, 64
          %v4653 = vpop.permute.xlu0 %4652
          %4654 = vrot.lane.b32.xlu0 %v4573, 64
          %v4655 = vpop.permute.xlu0 %4654
          %4656 = vrot.lane.b32.xlu0 %v4574, 64
          %v4657 = vpop.permute.xlu0 %4656
          %4659 = vrot.lane.b32.xlu0 %v4560, 96
          %v4660 = vpop.permute.xlu0 %4659
          %4661 = vrot.lane.b32.xlu0 %v4561, 96
          %v4662 = vpop.permute.xlu0 %4661
          %4663 = vrot.lane.b32.xlu0 %v4562, 96
          %v4664 = vpop.permute.xlu0 %4663
          %4665 = vrot.lane.b32.xlu0 %v4563, 96
          %v4666 = vpop.permute.xlu0 %4665
          %4667 = vrot.lane.b32.xlu0 %v4564, 96
          %v4668 = vpop.permute.xlu0 %4667
          %4669 = vrot.lane.b32.xlu0 %v4565, 96
          %v4670 = vpop.permute.xlu0 %4669
          %4671 = vrot.lane.b32.xlu0 %v4566, 96
          %v4672 = vpop.permute.xlu0 %4671
          %4673 = vrot.lane.b32.xlu0 %v4567, 96
          %v4674 = vpop.permute.xlu0 %4673
          %4675 = vrot.lane.b32.xlu0 %v4568, 96
          %v4676 = vpop.permute.xlu0 %4675
          %4677 = vrot.lane.b32.xlu0 %v4569, 96
          %v4678 = vpop.permute.xlu0 %4677
          %4679 = vrot.lane.b32.xlu0 %v4570, 96
          %v4680 = vpop.permute.xlu0 %4679
          %4681 = vrot.lane.b32.xlu0 %v4571, 96
          %v4682 = vpop.permute.xlu0 %4681
          %4683 = vrot.lane.b32.xlu0 %v4572, 96
          %v4684 = vpop.permute.xlu0 %4683
          %4685 = vrot.lane.b32.xlu0 %v4573, 96
          %v4686 = vpop.permute.xlu0 %4685
          %4687 = vrot.lane.b32.xlu0 %v4574, 96
          %v4688 = vpop.permute.xlu0 %4687
          %4689 = vrot.lane.b32.xlu0 %v4575, 96
          %v4690 = vpop.permute.xlu0 %4689
          %v4693 = vsel %vm391, %v4557, %v4594
          %v4696 = vsel %vm391, %v4558, %v4596
          %v4699 = vsel %vm391, %v4559, %v4598
          %v4702 = vsel %vm391, %v4560, %v4600
          %v4705 = vsel %vm391, %v4561, %v4602
          %v4708 = vsel %vm391, %v4562, %v4604
          %v4711 = vsel %vm391, %v4563, %v4606
          %v4714 = vsel %vm391, %v4564, %v4608
          %v4717 = vsel %vm391, %v4565, %v4610
          %v4720 = vsel %vm391, %v4566, %v4612
          %v4723 = vsel %vm391, %v4567, %v4614
          %v4726 = vsel %vm391, %v4568, %v4616
          %v4729 = vsel %vm391, %v4569, %v4618
          %v4732 = vsel %vm391, %v4570, %v4620
          %v4735 = vsel %vm391, %v4571, %v4622
          %v4738 = vsel %vm391, %v4572, %v4624
          %v4740 = vsel %vm2454, %v4693, %v4627
          %v4742 = vsel %vm2454, %v4696, %v4629
          %v4744 = vsel %vm2454, %v4699, %v4631
          %v4746 = vsel %vm2454, %v4702, %v4633
          %v4748 = vsel %vm2454, %v4705, %v4635
          %v4750 = vsel %vm2454, %v4708, %v4637
          %v4752 = vsel %vm2454, %v4711, %v4639
          %v4754 = vsel %vm2454, %v4714, %v4641
          %v4756 = vsel %vm2454, %v4717, %v4643
          %v4758 = vsel %vm2454, %v4720, %v4645
          %v4760 = vsel %vm2454, %v4723, %v4647
          %v4762 = vsel %vm2454, %v4726, %v4649
          %v4764 = vsel %vm2454, %v4729, %v4651
          %v4766 = vsel %vm2454, %v4732, %v4653
          %v4768 = vsel %vm2454, %v4735, %v4655
          %v4770 = vsel %vm2454, %v4738, %v4657
          %v4772 = vsel %vm2487, %v4740, %v4660
          %v4775 = vsel %vm2487, %v4742, %v4662
          %v4778 = vsel %vm2487, %v4744, %v4664
          %v4781 = vsel %vm2487, %v4746, %v4666
          %v4784 = vsel %vm2487, %v4748, %v4668
          %v4787 = vsel %vm2487, %v4750, %v4670
          %v4790 = vsel %vm2487, %v4752, %v4672
          %v4793 = vsel %vm2487, %v4754, %v4674
          %v4796 = vsel %vm2487, %v4756, %v4676
          %v4799 = vsel %vm2487, %v4758, %v4678
          %v4802 = vsel %vm2487, %v4760, %v4680
          %v4805 = vsel %vm2487, %v4762, %v4682
          %v4808 = vsel %vm2487, %v4764, %v4684
          %v4811 = vsel %vm2487, %v4766, %v4686
          %v4814 = vsel %vm2487, %v4768, %v4688
          %v4817 = vsel %vm2487, %v4770, %v4690
          %s4819 = scalar_lea.vmem %s3, 240
          %v4820 = vld [vmem:[%s4819] sm:$0xf]
          %v4821 = vld [vmem:[%s4819 + $0x4] sm:$0xf]
          %v4822 = vld [vmem:[%s4819 + $0x8] sm:$0xf]
          %v4823 = vld [vmem:[%s4819 + $0xc] sm:$0xf]
          %v4824 = vld [vmem:[%s4819 + $0x10] sm:$0xf]
          %v4825 = vld [vmem:[%s4819 + $0x14] sm:$0xf]
          %v4826 = vld [vmem:[%s4819 + $0x18] sm:$0xf]
          %v4827 = vld [vmem:[%s4819 + $0x1c] sm:$0xf]
          %v4828 = vld [vmem:[%s4819 + $0x20] sm:$0xf]
          %v4829 = vld [vmem:[%s4819 + $0x24] sm:$0xf]
          %v4830 = vld [vmem:[%s4819 + $0x28] sm:$0xf]
          %v4831 = vld [vmem:[%s4819 + $0x2c] sm:$0xf]
          %v4832 = vld [vmem:[%s4819 + $0x30] sm:$0xf]
          %v4833 = vld [vmem:[%s4819 + $0x34] sm:$0xf]
          %v4834 = vld [vmem:[%s4819 + $0x38] sm:$0xf]
          %v4835 = vld [vmem:[%s4819 + $0x3c] sm:$0xf]
          %v4836 = vld [vmem:[%s4819 + $0x40] sm:$0xf]
          %v4837 = vld [vmem:[%s4819 + $0x44] sm:$0xf]
          %v4838 = vld [vmem:[%s4819 + $0x48] sm:$0xf]
          %v4839 = vld [vmem:[%s4819 + $0x4c] sm:$0xf]
          %v4860 = vunpack.c.l.b16 %v4820
          %v4861 = vunpack.c.l.b16 %v4821
          %v4862 = vunpack.c.l.b16 %v4822
          %v4863 = vunpack.c.l.b16 %v4823
          %v4864 = vunpack.c.l.b16 %v4824
          %v4865 = vunpack.c.l.b16 %v4825
          %v4866 = vunpack.c.l.b16 %v4826
          %v4867 = vunpack.c.l.b16 %v4827
          %v4868 = vunpack.c.l.b16 %v4828
          %v4869 = vunpack.c.l.b16 %v4829
          %v4870 = vunpack.c.l.b16 %v4830
          %v4871 = vunpack.c.l.b16 %v4831
          %v4872 = vunpack.c.l.b16 %v4832
          %v4873 = vunpack.c.l.b16 %v4833
          %v4874 = vunpack.c.l.b16 %v4834
          %v4875 = vunpack.c.l.b16 %v4835
          %v4876 = vunpack.c.l.b16 %v4836
          %v4877 = vunpack.c.l.b16 %v4837
          %v4878 = vunpack.c.l.b16 %v4838
          %v4879 = vunpack.c.l.b16 %v4839
          %v4880 = vpack.c.b16 %v4861, %v4860
          %v4881 = vpack.c.b16 %v4863, %v4862
          %v4882 = vpack.c.b16 %v4865, %v4864
          %v4883 = vpack.c.b16 %v4867, %v4866
          %v4884 = vpack.c.b16 %v4869, %v4868
          %v4885 = vpack.c.b16 %v4871, %v4870
          %v4886 = vpack.c.b16 %v4873, %v4872
          %v4887 = vpack.c.b16 %v4875, %v4874
          %v4888 = vpack.c.b16 %v4877, %v4876
          %v4889 = vpack.c.b16 %v4879, %v4878
          %v4900 = vsel %vm391, %v4561, 0
          %v4902 = vsel %vm391, %v4562, 0
          %v4904 = vsel %vm391, %v4563, 0
          %v4906 = vsel %vm391, %v4564, 0
          %v4908 = vsel %vm391, %v4565, 0
          %v4910 = vsel %vm391, %v4566, 0
          %v4912 = vsel %vm391, %v4567, 0
          %v4914 = vsel %vm391, %v4568, 0
          %v4916 = vsel %vm391, %v4569, 0
          %v4918 = vsel %vm391, %v4570, 0
          %v4920 = vsel %vm391, %v4571, 0
          %v4922 = vsel %vm391, %v4572, 0
          %v4925 = vsel %vm391, %v4573, 0
          %v4928 = vsel %vm391, %v4574, 0
          %v4931 = vsel %vm391, %v4575, 0
          %v4934 = vsel %vm391, %v4576, 0
          %4936 = vmatprep.subr.bf16.mxu0 0
          %4937 = vmatpush1.bf16.msra.mxu0 %v4880
          %4938 = vmatprep.subr.bf16.mxu0 0
          %4939 = vmatpush1.bf16.msra.mxu0 %v4881
          %4940 = vmatprep.subr.bf16.mxu0 0
          %4941 = vmatpush1.bf16.msra.mxu0 %v4882
          %4942 = vmatprep.subr.bf16.mxu0 0
          %4943 = vmatpush1.bf16.msra.mxu0 %v4883
          %4944 = vmatprep.subr.bf16.mxu0 0
          %4945 = vmatpush1.bf16.msra.mxu0 %v4884
          %4946 = vmatprep.subr.bf16.mxu0 0
          %4947 = vmatpush1.bf16.msra.mxu0 %v4885
          %4948 = vmatprep.subr.bf16.mxu0 0
          %4949 = vmatpush1.bf16.msra.mxu0 %v4886
          %4950 = vmatprep.subr.bf16.mxu0 0
          %4951 = vmatpush1.bf16.msra.mxu0 %v4887
          %4952 = vmatprep.subr.bf16.mxu0 0
          %4953 = vmatpush1.bf16.msra.mxu0 %v4888
          %4954 = vmatprep.subr.bf16.mxu0 0
          %4955 = vmatpush1.bf16.msra.mxu0 %v4889
          %4956 = vmatprep.subr.bf16.mxu0 0
          %4957 = vmatpush1.bf16.msra.mxu0 0
          %4958 = vmatprep.subr.bf16.mxu0 0
          %4959 = vmatpush1.bf16.msra.mxu0 0
          %4960 = vmatprep.subr.bf16.mxu0 0
          %4961 = vmatpush1.bf16.msra.mxu0 0
          %4962 = vmatprep.subr.bf16.mxu0 0
          %4963 = vmatpush1.bf16.msra.mxu0 0
          %4964 = vmatprep.subr.bf16.mxu0 0
          %4965 = vmatpush1.bf16.msra.mxu0 0
          %4966 = vmatprep.subr.bf16.mxu0 0
          %4967 = vmatpush1.bf16.msra.mxu0 0
          %4968 = vmatprep.mubr.bf16.mxu0 %v4900
          %4969 = vmatmul.mubr.bf16.gmra.mrb[0].mxu0 %v4772
          %v4970 = vpop.f32.mrb[0].mxu0
          %v4971 = vadd.f32 0.0, %v4970
          %v4972 = vpop.f32.mrb[0].mxu0
          %v4973 = vpop.f32.mrb[0].mxu0
          %v4974 = vadd.f32 0.0, %v4973
          %v4975 = vpop.f32.mrb[0].mxu0
          %4976 = vmatprep.mubr.bf16.mxu0 %v4902
          %4977 = vmatmul.mubr.bf16.gmra.mrb[0].mxu0 %v4775
          %v4978 = vpop.f32.mrb[0].mxu0
          %v4979 = vadd.f32 0.0, %v4978
          %v4980 = vpop.f32.mrb[0].mxu0
          %v4981 = vpop.f32.mrb[0].mxu0
          %v4982 = vadd.f32 0.0, %v4981
          %v4983 = vpop.f32.mrb[0].mxu0
          %4984 = vmatprep.mubr.bf16.mxu0 %v4904
          %4985 = vmatmul.mubr.bf16.gmra.mrb[0].mxu0 %v4778
          %v4986 = vpop.f32.mrb[0].mxu0
          %v4987 = vadd.f32 0.0, %v4986
          %v4988 = vpop.f32.mrb[0].mxu0
          %v4989 = vpop.f32.mrb[0].mxu0
          %v4990 = vadd.f32 0.0, %v4989
          %v4991 = vpop.f32.mrb[0].mxu0
          %4992 = vmatprep.mubr.bf16.mxu0 %v4906
          %4993 = vmatmul.mubr.bf16.gmra.mrb[0].mxu0 %v4781
          %v4994 = vpop.f32.mrb[0].mxu0
          %v4995 = vadd.f32 0.0, %v4994
          %v4996 = vpop.f32.mrb[0].mxu0
          %v4997 = vpop.f32.mrb[0].mxu0
          %v4998 = vadd.f32 0.0, %v4997
          %v4999 = vpop.f32.mrb[0].mxu0
          %5000 = vmatprep.mubr.bf16.mxu0 %v4908
          %5001 = vmatmul.mubr.bf16.gmra.mrb[0].mxu0 %v4784
          %v5002 = vpop.f32.mrb[0].mxu0
          %v5003 = vadd.f32 0.0, %v5002
          %v5004 = vpop.f32.mrb[0].mxu0
          %v5005 = vpop.f32.mrb[0].mxu0
          %v5006 = vadd.f32 0.0, %v5005
          %v5007 = vpop.f32.mrb[0].mxu0
          %5008 = vmatprep.mubr.bf16.mxu0 %v4910
          %5009 = vmatmul.mubr.bf16.gmra.mrb[0].mxu0 %v4787
          %v5010 = vpop.f32.mrb[0].mxu0
          %v5011 = vadd.f32 0.0, %v5010
          %v5012 = vpop.f32.mrb[0].mxu0
          %v5013 = vpop.f32.mrb[0].mxu0
          %v5014 = vadd.f32 0.0, %v5013
          %v5015 = vpop.f32.mrb[0].mxu0
          %5016 = vmatprep.mubr.bf16.mxu0 %v4912
          %5017 = vmatmul.mubr.bf16.gmra.mrb[0].mxu0 %v4790
          %v5018 = vpop.f32.mrb[0].mxu0
          %v5019 = vadd.f32 0.0, %v5018
          %v5020 = vpop.f32.mrb[0].mxu0
          %v5021 = vpop.f32.mrb[0].mxu0
          %v5022 = vadd.f32 0.0, %v5021
          %v5023 = vpop.f32.mrb[0].mxu0
          %5024 = vmatprep.mubr.bf16.mxu0 %v4914
          %5025 = vmatmul.mubr.bf16.gmra.mrb[0].mxu0 %v4793
          %v5026 = vpop.f32.mrb[0].mxu0
          %v5027 = vadd.f32 0.0, %v5026
          %v5028 = vpop.f32.mrb[0].mxu0
          %v5029 = vpop.f32.mrb[0].mxu0
          %v5030 = vadd.f32 0.0, %v5029
          %v5031 = vpop.f32.mrb[0].mxu0
          %5032 = vmatprep.mubr.bf16.mxu0 %v4916
          %5033 = vmatmul.mubr.bf16.gmra.mrb[0].mxu0 %v4796
          %v5034 = vpop.f32.mrb[0].mxu0
          %v5035 = vadd.f32 0.0, %v5034
          %v5036 = vpop.f32.mrb[0].mxu0
          %v5037 = vpop.f32.mrb[0].mxu0
          %v5038 = vadd.f32 0.0, %v5037
          %v5039 = vpop.f32.mrb[0].mxu0
          %5040 = vmatprep.mubr.bf16.mxu0 %v4918
          %5041 = vmatmul.mubr.bf16.gmra.mrb[0].mxu0 %v4799
          %v5042 = vpop.f32.mrb[0].mxu0
          %v5043 = vadd.f32 0.0, %v5042
          %v5044 = vpop.f32.mrb[0].mxu0
          %v5045 = vpop.f32.mrb[0].mxu0
          %v5046 = vadd.f32 0.0, %v5045
          %v5047 = vpop.f32.mrb[0].mxu0
          %5048 = vmatprep.mubr.bf16.mxu0 %v4920
          %5049 = vmatmul.mubr.bf16.gmra.mrb[0].mxu0 %v4802
          %v5050 = vpop.f32.mrb[0].mxu0
          %v5051 = vadd.f32 0.0, %v5050
          %v5052 = vpop.f32.mrb[0].mxu0
          %v5053 = vpop.f32.mrb[0].mxu0
          %v5054 = vadd.f32 0.0, %v5053
          %v5055 = vpop.f32.mrb[0].mxu0
          %5056 = vmatprep.mubr.bf16.mxu0 %v4922
          %5057 = vmatmul.mubr.bf16.gmra.mrb[0].mxu0 %v4805
          %v5058 = vpop.f32.mrb[0].mxu0
          %v5059 = vadd.f32 0.0, %v5058
          %v5060 = vpop.f32.mrb[0].mxu0
          %v5061 = vpop.f32.mrb[0].mxu0
          %v5062 = vadd.f32 0.0, %v5061
          %v5063 = vpop.f32.mrb[0].mxu0
          %5064 = vmatprep.mubr.bf16.mxu0 %v4925
          %5065 = vmatmul.mubr.bf16.gmra.mrb[0].mxu0 %v4808
          %v5066 = vpop.f32.mrb[0].mxu0
          %v5067 = vadd.f32 0.0, %v5066
          %v5068 = vpop.f32.mrb[0].mxu0
          %v5069 = vpop.f32.mrb[0].mxu0
          %v5070 = vadd.f32 0.0, %v5069
          %v5071 = vpop.f32.mrb[0].mxu0
          %5072 = vmatprep.mubr.bf16.mxu0 %v4928
          %5073 = vmatmul.mubr.bf16.gmra.mrb[0].mxu0 %v4811
          %v5074 = vpop.f32.mrb[0].mxu0
          %v5075 = vadd.f32 0.0, %v5074
          %v5076 = vpop.f32.mrb[0].mxu0
          %v5077 = vpop.f32.mrb[0].mxu0
          %v5078 = vadd.f32 0.0, %v5077
          %v5079 = vpop.f32.mrb[0].mxu0
          %5080 = vmatprep.mubr.bf16.mxu0 %v4931
          %5081 = vmatmul.mubr.bf16.gmra.mrb[0].mxu0 %v4814
          %v5082 = vpop.f32.mrb[0].mxu0
          %v5083 = vadd.f32 0.0, %v5082
          %v5084 = vpop.f32.mrb[0].mxu0
          %v5085 = vpop.f32.mrb[0].mxu0
          %v5086 = vadd.f32 0.0, %v5085
          %v5087 = vpop.f32.mrb[0].mxu0
          %5088 = vmatprep.mubr.bf16.mxu0 %v4934
          %5089 = vmatmul.mubr.bf16.gmra.mrb[0].mxu0 %v4817
          %v5090 = vpop.f32.mrb[0].mxu0
          %v5091 = vadd.f32 0.0, %v5090
          %v5092 = vpop.f32.mrb[0].mxu0
          %v5093 = vpop.f32.mrb[0].mxu0
          %v5094 = vadd.f32 0.0, %v5093
          %v5095 = vpop.f32.mrb[0].mxu0
          %5096 = vdwg.mxu0
          %v5097 = vadd.s32 %v2200, 1
          %v5098 = vadd.s32 %v2201, 1
          %v5099 = vadd.s32 %v2202, 1
          %v5100 = vadd.s32 %v2203, 1
          %v5101 = vadd.s32 %v2204, 1
          %v5102 = vadd.s32 %v2205, 1
          %v5103 = vadd.s32 %v2206, 1
          %v5104 = vadd.s32 %v2207, 1
          %v5105 = vadd.s32 %v2208, 1
          %v5106 = vadd.s32 %v2209, 1
          %v5107 = vadd.s32 %v2210, 1
          %v5108 = vadd.s32 %v2211, 1
          %v5109 = vadd.s32 %v2212, 1
          %v5110 = vadd.s32 %v2213, 1
          %v5111 = vadd.s32 %v2214, 1
          %v5112 = vadd.s32 %v2215, 1
          %v5113 = vadd.s32 %v2216, 1
          %v5114 = vadd.s32 %v2217, 1
          %v5115 = vadd.s32 %v2218, 1
          %v5116 = vadd.s32 %v2219, 1
          %v5117 = vadd.s32 %v2220, 1
          %v5118 = vadd.s32 %v2221, 1
          %v5119 = vadd.s32 %v2222, 1
          %v5120 = vadd.s32 %v2223, 1
          %v5121 = vadd.s32 %v2224, 1
          %v5122 = vadd.s32 %v2225, 1
          %v5123 = vadd.s32 %v2226, 1
          %v5124 = vadd.s32 %v2227, 1
          %v5125 = vadd.s32 %v2228, 1
          %v5126 = vadd.s32 %v2229, 1
          %v5127 = vadd.s32 %v2230, 1
          %v5128 = vadd.s32 %v2231, 1
          %vm5129 = vcmp.ge.s32.totalorder %v5097, 0
          %vm5130 = vcmp.ge.s32.totalorder %v5098, 0
          %vm5131 = vcmp.ge.s32.totalorder %v5099, 0
          %vm5132 = vcmp.ge.s32.totalorder %v5100, 0
          %vm5133 = vcmp.ge.s32.totalorder %v5101, 0
          %vm5134 = vcmp.ge.s32.totalorder %v5102, 0
          %vm5135 = vcmp.ge.s32.totalorder %v5103, 0
          %vm5136 = vcmp.ge.s32.totalorder %v5104, 0
          %vm5137 = vcmp.ge.s32.totalorder %v5105, 0
          %vm5138 = vcmp.ge.s32.totalorder %v5106, 0
          %vm5139 = vcmp.ge.s32.totalorder %v5107, 0
          %vm5140 = vcmp.ge.s32.totalorder %v5108, 0
          %vm5141 = vcmp.ge.s32.totalorder %v5109, 0
          %vm5142 = vcmp.ge.s32.totalorder %v5110, 0
          %vm5143 = vcmp.ge.s32.totalorder %v5111, 0
          %vm5144 = vcmp.ge.s32.totalorder %v5112, 0
          %vm5145 = vcmp.ge.s32.totalorder %v5113, 0
          %vm5146 = vcmp.ge.s32.totalorder %v5114, 0
          %vm5147 = vcmp.ge.s32.totalorder %v5115, 0
          %vm5148 = vcmp.ge.s32.totalorder %v5116, 0
          %vm5149 = vcmp.ge.s32.totalorder %v5117, 0
          %vm5150 = vcmp.ge.s32.totalorder %v5118, 0
          %vm5151 = vcmp.ge.s32.totalorder %v5119, 0
          %vm5152 = vcmp.ge.s32.totalorder %v5120, 0
          %vm5153 = vcmp.ge.s32.totalorder %v5121, 0
          %vm5154 = vcmp.ge.s32.totalorder %v5122, 0
          %vm5155 = vcmp.ge.s32.totalorder %v5123, 0
          %vm5156 = vcmp.ge.s32.totalorder %v5124, 0
          %vm5157 = vcmp.ge.s32.totalorder %v5125, 0
          %vm5158 = vcmp.ge.s32.totalorder %v5126, 0
          %vm5159 = vcmp.ge.s32.totalorder %v5127, 0
          %vm5160 = vcmp.ge.s32.totalorder %v5128, 0
          %vm5161 = vcmp.lt.s32.totalorder %v5097, 16
          %vm5162 = vcmp.lt.s32.totalorder %v5098, 16
          %vm5163 = vcmp.lt.s32.totalorder %v5099, 16
          %vm5164 = vcmp.lt.s32.totalorder %v5100, 16
          %vm5165 = vcmp.lt.s32.totalorder %v5101, 16
          %vm5166 = vcmp.lt.s32.totalorder %v5102, 16
          %vm5167 = vcmp.lt.s32.totalorder %v5103, 16
          %vm5168 = vcmp.lt.s32.totalorder %v5104, 16
          %vm5169 = vcmp.lt.s32.totalorder %v5105, 16
          %vm5170 = vcmp.lt.s32.totalorder %v5106, 16
          %vm5171 = vcmp.lt.s32.totalorder %v5107, 16
          %vm5172 = vcmp.lt.s32.totalorder %v5108, 16
          %vm5173 = vcmp.lt.s32.totalorder %v5109, 16
          %vm5174 = vcmp.lt.s32.totalorder %v5110, 16
          %vm5175 = vcmp.lt.s32.totalorder %v5111, 16
          %vm5176 = vcmp.lt.s32.totalorder %v5112, 16
          %vm5177 = vcmp.lt.s32.totalorder %v5113, 16
          %vm5178 = vcmp.lt.s32.totalorder %v5114, 16
          %vm5179 = vcmp.lt.s32.totalorder %v5115, 16
          %vm5180 = vcmp.lt.s32.totalorder %v5116, 16
          %vm5181 = vcmp.lt.s32.totalorder %v5117, 16
          %vm5182 = vcmp.lt.s32.totalorder %v5118, 16
          %vm5183 = vcmp.lt.s32.totalorder %v5119, 16
          %vm5184 = vcmp.lt.s32.totalorder %v5120, 16
          %vm5185 = vcmp.lt.s32.totalorder %v5121, 16
          %vm5186 = vcmp.lt.s32.totalorder %v5122, 16
          %vm5187 = vcmp.lt.s32.totalorder %v5123, 16
          %vm5188 = vcmp.lt.s32.totalorder %v5124, 16
          %vm5189 = vcmp.lt.s32.totalorder %v5125, 16
          %vm5190 = vcmp.lt.s32.totalorder %v5126, 16
          %vm5191 = vcmp.lt.s32.totalorder %v5127, 16
          %vm5192 = vcmp.lt.s32.totalorder %v5128, 16
          %vm5193 = vmand %vm5129, %vm5161
          %vm5194 = vmand %vm5130, %vm5162
          %vm5195 = vmand %vm5131, %vm5163
          %vm5196 = vmand %vm5132, %vm5164
          %vm5197 = vmand %vm5133, %vm5165
          %vm5198 = vmand %vm5134, %vm5166
          %vm5199 = vmand %vm5135, %vm5167
          %vm5200 = vmand %vm5136, %vm5168
          %vm5201 = vmand %vm5137, %vm5169
          %vm5202 = vmand %vm5138, %vm5170
          %vm5203 = vmand %vm5139, %vm5171
          %vm5204 = vmand %vm5140, %vm5172
          %vm5205 = vmand %vm5141, %vm5173
          %vm5206 = vmand %vm5142, %vm5174
          %vm5207 = vmand %vm5143, %vm5175
          %vm5208 = vmand %vm5144, %vm5176
          %vm5209 = vmand %vm5145, %vm5177
          %vm5210 = vmand %vm5146, %vm5178
          %vm5211 = vmand %vm5147, %vm5179
          %vm5212 = vmand %vm5148, %vm5180
          %vm5213 = vmand %vm5149, %vm5181
          %vm5214 = vmand %vm5150, %vm5182
          %vm5215 = vmand %vm5151, %vm5183
          %vm5216 = vmand %vm5152, %vm5184
          %vm5217 = vmand %vm5153, %vm5185
          %vm5218 = vmand %vm5154, %vm5186
          %vm5219 = vmand %vm5155, %vm5187
          %vm5220 = vmand %vm5156, %vm5188
          %vm5221 = vmand %vm5157, %vm5189
          %vm5222 = vmand %vm5158, %vm5190
          %vm5223 = vmand %vm5159, %vm5191
          %vm5224 = vmand %vm5160, %vm5192
          %v5225 = vsel %vm5193, 1, 0
          %v5226 = vsel %vm5194, 1, 0
          %v5227 = vsel %vm5195, 1, 0
          %v5228 = vsel %vm5196, 1, 0
          %v5229 = vsel %vm5197, 1, 0
          %v5230 = vsel %vm5198, 1, 0
          %v5231 = vsel %vm5199, 1, 0
          %v5232 = vsel %vm5200, 1, 0
          %v5233 = vsel %vm5201, 1, 0
          %v5234 = vsel %vm5202, 1, 0
          %v5235 = vsel %vm5203, 1, 0
          %v5236 = vsel %vm5204, 1, 0
          %v5237 = vsel %vm5205, 1, 0
          %v5238 = vsel %vm5206, 1, 0
          %v5239 = vsel %vm5207, 1, 0
          %v5240 = vsel %vm5208, 1, 0
          %v5241 = vsel %vm5209, 1, 0
          %v5242 = vsel %vm5210, 1, 0
          %v5243 = vsel %vm5211, 1, 0
          %v5244 = vsel %vm5212, 1, 0
          %v5245 = vsel %vm5213, 1, 0
          %v5246 = vsel %vm5214, 1, 0
          %v5247 = vsel %vm5215, 1, 0
          %v5248 = vsel %vm5216, 1, 0
          %v5249 = vsel %vm5217, 1, 0
          %v5250 = vsel %vm5218, 1, 0
          %v5251 = vsel %vm5219, 1, 0
          %v5252 = vsel %vm5220, 1, 0
          %v5253 = vsel %vm5221, 1, 0
          %v5254 = vsel %vm5222, 1, 0
          %v5255 = vsel %vm5223, 1, 0
          %v5256 = vsel %vm5224, 1, 0
          %v5257 = vcvt.s32.f32 %v5225
          %v5258 = vcvt.s32.f32 %v5226
          %v5259 = vcvt.s32.f32 %v5227
          %v5260 = vcvt.s32.f32 %v5228
          %v5261 = vcvt.s32.f32 %v5229
          %v5262 = vcvt.s32.f32 %v5230
          %v5263 = vcvt.s32.f32 %v5231
          %v5264 = vcvt.s32.f32 %v5232
          %v5265 = vcvt.s32.f32 %v5233
          %v5266 = vcvt.s32.f32 %v5234
          %v5267 = vcvt.s32.f32 %v5235
          %v5268 = vcvt.s32.f32 %v5236
          %v5269 = vcvt.s32.f32 %v5237
          %v5270 = vcvt.s32.f32 %v5238
          %v5271 = vcvt.s32.f32 %v5239
          %v5272 = vcvt.s32.f32 %v5240
          %v5273 = vcvt.s32.f32 %v5241
          %v5274 = vcvt.s32.f32 %v5242
          %v5275 = vcvt.s32.f32 %v5243
          %v5276 = vcvt.s32.f32 %v5244
          %v5277 = vcvt.s32.f32 %v5245
          %v5278 = vcvt.s32.f32 %v5246
          %v5279 = vcvt.s32.f32 %v5247
          %v5280 = vcvt.s32.f32 %v5248
          %v5281 = vcvt.s32.f32 %v5249
          %v5282 = vcvt.s32.f32 %v5250
          %v5283 = vcvt.s32.f32 %v5251
          %v5284 = vcvt.s32.f32 %v5252
          %v5285 = vcvt.s32.f32 %v5253
          %v5286 = vcvt.s32.f32 %v5254
          %v5287 = vcvt.s32.f32 %v5255
          %v5288 = vcvt.s32.f32 %v5256
          %v5289 = vmul.f32 %v4971, %v5257
          %v5290 = vmul.f32 %v4974, %v5258
          %v5291 = vmul.f32 %v4979, %v5259
          %v5292 = vmul.f32 %v4982, %v5260
          %v5293 = vmul.f32 %v4987, %v5261
          %v5294 = vmul.f32 %v4990, %v5262
          %v5295 = vmul.f32 %v4995, %v5263
          %v5296 = vmul.f32 %v4998, %v5264
          %v5297 = vmul.f32 %v5003, %v5265
          %v5298 = vmul.f32 %v5006, %v5266
          %v5299 = vmul.f32 %v5011, %v5267
          %v5300 = vmul.f32 %v5014, %v5268
          %v5301 = vmul.f32 %v5019, %v5269
          %v5302 = vmul.f32 %v5022, %v5270
          %v5303 = vmul.f32 %v5027, %v5271
          %v5304 = vmul.f32 %v5030, %v5272
          %v5305 = vmul.f32 %v5035, %v5273
          %v5306 = vmul.f32 %v5038, %v5274
          %v5307 = vmul.f32 %v5043, %v5275
          %v5308 = vmul.f32 %v5046, %v5276
          %v5309 = vmul.f32 %v5051, %v5277
          %v5310 = vmul.f32 %v5054, %v5278
          %v5311 = vmul.f32 %v5059, %v5279
          %v5312 = vmul.f32 %v5062, %v5280
          %v5313 = vmul.f32 %v5067, %v5281
          %v5314 = vmul.f32 %v5070, %v5282
          %v5315 = vmul.f32 %v5075, %v5283
          %v5316 = vmul.f32 %v5078, %v5284
          %v5317 = vmul.f32 %v5083, %v5285
          %v5318 = vmul.f32 %v5086, %v5286
          %v5319 = vmul.f32 %v5091, %v5287
          %v5320 = vmul.f32 %v5094, %v5288
          %v5321 = vadd.f32 %v4485, %v5289
          %v5322 = vadd.f32 %v4486, %v5290
          %v5323 = vadd.f32 %v4487, %v5291
          %v5324 = vadd.f32 %v4488, %v5292
          %v5325 = vadd.f32 %v4489, %v5293
          %v5326 = vadd.f32 %v4490, %v5294
          %v5327 = vadd.f32 %v4491, %v5295
          %v5328 = vadd.f32 %v4492, %v5296
          %v5329 = vadd.f32 %v4493, %v5297
          %v5330 = vadd.f32 %v4494, %v5298
          %v5331 = vadd.f32 %v4495, %v5299
          %v5332 = vadd.f32 %v4496, %v5300
          %v5333 = vadd.f32 %v4497, %v5301
          %v5334 = vadd.f32 %v4498, %v5302
          %v5335 = vadd.f32 %v4499, %v5303
          %v5336 = vadd.f32 %v4500, %v5304
          %v5337 = vadd.f32 %v4501, %v5305
          %v5338 = vadd.f32 %v4502, %v5306
          %v5339 = vadd.f32 %v4503, %v5307
          %v5340 = vadd.f32 %v4504, %v5308
          %v5341 = vadd.f32 %v4505, %v5309
          %v5342 = vadd.f32 %v4506, %v5310
          %v5343 = vadd.f32 %v4507, %v5311
          %v5344 = vadd.f32 %v4508, %v5312
          %v5345 = vadd.f32 %v4509, %v5313
          %v5346 = vadd.f32 %v4510, %v5314
          %v5347 = vadd.f32 %v4511, %v5315
          %v5348 = vadd.f32 %v4512, %v5316
          %v5349 = vadd.f32 %v4513, %v5317
          %v5350 = vadd.f32 %v4514, %v5318
          %v5351 = vadd.f32 %v4515, %v5319
          %v5352 = vadd.f32 %v4516, %v5320
          %v5353 = vld [vmem:[#allocation3 + $0xa] sm:$0xff]
          %v5354 = vld [vmem:[#allocation3 + $0x12] sm:$0xff]
          %v5355 = vld [vmem:[#allocation3 + $0x1a] sm:$0xff]
          %v5356 = vld [vmem:[#allocation3 + $0x22] sm:$0xff]
          %v5357 = vld [vmem:[#allocation3 + $0x2a] sm:$0xff]
          %v5358 = vld [vmem:[#allocation3 + $0x32] sm:$0xff]
          %v5359 = vld [vmem:[#allocation3 + $0x3a] sm:$0xff]
          %v5360 = vld [vmem:[#allocation3 + $0x42] sm:$0xff]
          %v5361 = vld [vmem:[#allocation3 + $0x4a] sm:$0xff]
          %v5362 = vld [vmem:[#allocation3 + $0x52] sm:$0xff]
          %v5363 = vld [vmem:[#allocation3 + $0x5a] sm:$0xff]
          %v5364 = vld [vmem:[#allocation3 + $0x62] sm:$0xff]
          %v5365 = vld [vmem:[#allocation3 + $0x6a] sm:$0xff]
          %v5366 = vld [vmem:[#allocation3 + $0x72] sm:$0xff]
          %v5367 = vld [vmem:[#allocation3 + $0x7a] sm:$0xff]
          %v5368 = vld [vmem:[#allocation3 + $0x82] sm:$0xff]
          %v5369 = vld [vmem:[#allocation3 + $0x8a] sm:$0xff]
          %v5370 = vld [vmem:[#allocation3 + $0x92] sm:$0xff]
          %v5371 = vld [vmem:[#allocation3 + $0x9a] sm:$0xff]
          %v5372 = vld [vmem:[#allocation3 + $0xa2] sm:$0xff]
          %v5373 = vld [vmem:[#allocation3 + $0xaa] sm:$0xff]
          %v5374 = vld [vmem:[#allocation3 + $0xb2] sm:$0xff]
          %v5375 = vld [vmem:[#allocation3 + $0xba] sm:$0xff]
          %v5376 = vld [vmem:[#allocation3 + $0xc2] sm:$0xff]
          %v5377 = vld [vmem:[#allocation3 + $0xca] sm:$0xff]
          %v5378 = vld [vmem:[#allocation3 + $0xd2] sm:$0xff]
          %v5379 = vld [vmem:[#allocation3 + $0xda] sm:$0xff]
          %v5380 = vld [vmem:[#allocation3 + $0xe2] sm:$0xff]
          %v5381 = vld [vmem:[#allocation3 + $0xea] sm:$0xff]
          %v5382 = vld [vmem:[#allocation3 + $0xf2] sm:$0xff]
          %v5383 = vld [vmem:[#allocation3 + $0xfa] sm:$0xff]
          %v5384 = vld [vmem:[#allocation3 + $0x102] sm:$0xff]
          %v5385 = vld [vmem:[#allocation3 + $0x10a] sm:$0xff]
          %v5386 = vld [vmem:[#allocation3 + $0x112] sm:$0xff]
          %v5387 = vld [vmem:[#allocation3 + $0x11a] sm:$0xff]
          %v5388 = vld [vmem:[#allocation3 + $0x122] sm:$0xff]
          %v5389 = vld [vmem:[#allocation3 + $0x12a] sm:$0xff]
          %v5390 = vld [vmem:[#allocation3 + $0x132] sm:$0xff]
          %v5391 = vld [vmem:[#allocation3 + $0x13a] sm:$0xff]
          %v5392 = vld [vmem:[#allocation3 + $0x142] sm:$0xff]
          %v5393 = vpack.c.bf16 %v5354, %v5353
          %v5394 = vpack.c.bf16 %v5356, %v5355
          %v5395 = vpack.c.bf16 %v5358, %v5357
          %v5396 = vpack.c.bf16 %v5360, %v5359
          %v5397 = vpack.c.bf16 %v5362, %v5361
          %v5398 = vpack.c.bf16 %v5364, %v5363
          %v5399 = vpack.c.bf16 %v5366, %v5365
          %v5400 = vpack.c.bf16 %v5368, %v5367
          %v5401 = vpack.c.bf16 %v5370, %v5369
          %v5402 = vpack.c.bf16 %v5372, %v5371
          %v5403 = vpack.c.bf16 %v5374, %v5373
          %v5404 = vpack.c.bf16 %v5376, %v5375
          %v5405 = vpack.c.bf16 %v5378, %v5377
          %v5406 = vpack.c.bf16 %v5380, %v5379
          %v5407 = vpack.c.bf16 %v5382, %v5381
          %v5408 = vpack.c.bf16 %v5384, %v5383
          %v5409 = vpack.c.bf16 %v5386, %v5385
          %v5410 = vpack.c.bf16 %v5388, %v5387
          %v5411 = vpack.c.bf16 %v5390, %v5389
          %v5412 = vpack.c.bf16 %v5392, %v5391
          %5429 = vrot.lane.b32.xlu0 %v5394, 32
          %v5430 = vpop.permute.xlu0 %5429
          %5431 = vrot.lane.b32.xlu0 %v5395, 32
          %v5432 = vpop.permute.xlu0 %5431
          %5433 = vrot.lane.b32.xlu0 %v5396, 32
          %v5434 = vpop.permute.xlu0 %5433
          %5435 = vrot.lane.b32.xlu0 %v5397, 32
          %v5436 = vpop.permute.xlu0 %5435
          %5437 = vrot.lane.b32.xlu0 %v5398, 32
          %v5438 = vpop.permute.xlu0 %5437
          %5439 = vrot.lane.b32.xlu0 %v5399, 32
          %v5440 = vpop.permute.xlu0 %5439
          %5441 = vrot.lane.b32.xlu0 %v5400, 32
          %v5442 = vpop.permute.xlu0 %5441
          %5443 = vrot.lane.b32.xlu0 %v5401, 32
          %v5444 = vpop.permute.xlu0 %5443
          %5445 = vrot.lane.b32.xlu0 %v5402, 32
          %v5446 = vpop.permute.xlu0 %5445
          %5447 = vrot.lane.b32.xlu0 %v5403, 32
          %v5448 = vpop.permute.xlu0 %5447
          %5449 = vrot.lane.b32.xlu0 %v5404, 32
          %v5450 = vpop.permute.xlu0 %5449
          %5451 = vrot.lane.b32.xlu0 %v5405, 32
          %v5452 = vpop.permute.xlu0 %5451
          %5453 = vrot.lane.b32.xlu0 %v5406, 32
          %v5454 = vpop.permute.xlu0 %5453
          %5455 = vrot.lane.b32.xlu0 %v5407, 32
          %v5456 = vpop.permute.xlu0 %5455
          %5457 = vrot.lane.b32.xlu0 %v5408, 32
          %v5458 = vpop.permute.xlu0 %5457
          %5459 = vrot.lane.b32.xlu0 %v5409, 32
          %v5460 = vpop.permute.xlu0 %5459
          %5462 = vrot.lane.b32.xlu0 %v5395, 64
          %v5463 = vpop.permute.xlu0 %5462
          %5464 = vrot.lane.b32.xlu0 %v5396, 64
          %v5465 = vpop.permute.xlu0 %5464
          %5466 = vrot.lane.b32.xlu0 %v5397, 64
          %v5467 = vpop.permute.xlu0 %5466
          %5468 = vrot.lane.b32.xlu0 %v5398, 64
          %v5469 = vpop.permute.xlu0 %5468
          %5470 = vrot.lane.b32.xlu0 %v5399, 64
          %v5471 = vpop.permute.xlu0 %5470
          %5472 = vrot.lane.b32.xlu0 %v5400, 64
          %v5473 = vpop.permute.xlu0 %5472
          %5474 = vrot.lane.b32.xlu0 %v5401, 64
          %v5475 = vpop.permute.xlu0 %5474
          %5476 = vrot.lane.b32.xlu0 %v5402, 64
          %v5477 = vpop.permute.xlu0 %5476
          %5478 = vrot.lane.b32.xlu0 %v5403, 64
          %v5479 = vpop.permute.xlu0 %5478
          %5480 = vrot.lane.b32.xlu0 %v5404, 64
          %v5481 = vpop.permute.xlu0 %5480
          %5482 = vrot.lane.b32.xlu0 %v5405, 64
          %v5483 = vpop.permute.xlu0 %5482
          %5484 = vrot.lane.b32.xlu0 %v5406, 64
          %v5485 = vpop.permute.xlu0 %5484
          %5486 = vrot.lane.b32.xlu0 %v5407, 64
          %v5487 = vpop.permute.xlu0 %5486
          %5488 = vrot.lane.b32.xlu0 %v5408, 64
          %v5489 = vpop.permute.xlu0 %5488
          %5490 = vrot.lane.b32.xlu0 %v5409, 64
          %v5491 = vpop.permute.xlu0 %5490
          %5492 = vrot.lane.b32.xlu0 %v5410, 64
          %v5493 = vpop.permute.xlu0 %5492
          %5495 = vrot.lane.b32.xlu0 %v5396, 96
          %v5496 = vpop.permute.xlu0 %5495
          %5497 = vrot.lane.b32.xlu0 %v5397, 96
          %v5498 = vpop.permute.xlu0 %5497
          %5499 = vrot.lane.b32.xlu0 %v5398, 96
          %v5500 = vpop.permute.xlu0 %5499
          %5501 = vrot.lane.b32.xlu0 %v5399, 96
          %v5502 = vpop.permute.xlu0 %5501
          %5503 = vrot.lane.b32.xlu0 %v5400, 96
          %v5504 = vpop.permute.xlu0 %5503
          %5505 = vrot.lane.b32.xlu0 %v5401, 96
          %v5506 = vpop.permute.xlu0 %5505
          %5507 = vrot.lane.b32.xlu0 %v5402, 96
          %v5508 = vpop.permute.xlu0 %5507
          %5509 = vrot.lane.b32.xlu0 %v5403, 96
          %v5510 = vpop.permute.xlu0 %5509
          %5511 = vrot.lane.b32.xlu0 %v5404, 96
          %v5512 = vpop.permute.xlu0 %5511
          %5513 = vrot.lane.b32.xlu0 %v5405, 96
          %v5514 = vpop.permute.xlu0 %5513
          %5515 = vrot.lane.b32.xlu0 %v5406, 96
          %v5516 = vpop.permute.xlu0 %5515
          %5517 = vrot.lane.b32.xlu0 %v5407, 96
          %v5518 = vpop.permute.xlu0 %5517
          %5519 = vrot.lane.b32.xlu0 %v5408, 96
          %v5520 = vpop.permute.xlu0 %5519
          %5521 = vrot.lane.b32.xlu0 %v5409, 96
          %v5522 = vpop.permute.xlu0 %5521
          %5523 = vrot.lane.b32.xlu0 %v5410, 96
          %v5524 = vpop.permute.xlu0 %5523
          %5525 = vrot.lane.b32.xlu0 %v5411, 96
          %v5526 = vpop.permute.xlu0 %5525
          %v5529 = vsel %vm391, %v5393, %v5430
          %v5532 = vsel %vm391, %v5394, %v5432
          %v5535 = vsel %vm391, %v5395, %v5434
          %v5538 = vsel %vm391, %v5396, %v5436
          %v5541 = vsel %vm391, %v5397, %v5438
          %v5544 = vsel %vm391, %v5398, %v5440
          %v5547 = vsel %vm391, %v5399, %v5442
          %v5550 = vsel %vm391, %v5400, %v5444
          %v5553 = vsel %vm391, %v5401, %v5446
          %v5556 = vsel %vm391, %v5402, %v5448
          %v5559 = vsel %vm391, %v5403, %v5450
          %v5562 = vsel %vm391, %v5404, %v5452
          %v5565 = vsel %vm391, %v5405, %v5454
          %v5568 = vsel %vm391, %v5406, %v5456
          %v5571 = vsel %vm391, %v5407, %v5458
          %v5574 = vsel %vm391, %v5408, %v5460
          %v5576 = vsel %vm2454, %v5529, %v5463
          %v5578 = vsel %vm2454, %v5532, %v5465
          %v5580 = vsel %vm2454, %v5535, %v5467
          %v5582 = vsel %vm2454, %v5538, %v5469
          %v5584 = vsel %vm2454, %v5541, %v5471
          %v5586 = vsel %vm2454, %v5544, %v5473
          %v5588 = vsel %vm2454, %v5547, %v5475
          %v5590 = vsel %vm2454, %v5550, %v5477
          %v5592 = vsel %vm2454, %v5553, %v5479
          %v5594 = vsel %vm2454, %v5556, %v5481
          %v5596 = vsel %vm2454, %v5559, %v5483
          %v5598 = vsel %vm2454, %v5562, %v5485
          %v5600 = vsel %vm2454, %v5565, %v5487
          %v5602 = vsel %vm2454, %v5568, %v5489
          %v5604 = vsel %vm2454, %v5571, %v5491
          %v5606 = vsel %vm2454, %v5574, %v5493
          %v5608 = vsel %vm2487, %v5576, %v5496
          %v5611 = vsel %vm2487, %v5578, %v5498
          %v5614 = vsel %vm2487, %v5580, %v5500
          %v5617 = vsel %vm2487, %v5582, %v5502
          %v5620 = vsel %vm2487, %v5584, %v5504
          %v5623 = vsel %vm2487, %v5586, %v5506
          %v5626 = vsel %vm2487, %v5588, %v5508
          %v5629 = vsel %vm2487, %v5590, %v5510
          %v5632 = vsel %vm2487, %v5592, %v5512
          %v5635 = vsel %vm2487, %v5594, %v5514
          %v5638 = vsel %vm2487, %v5596, %v5516
          %v5641 = vsel %vm2487, %v5598, %v5518
          %v5644 = vsel %vm2487, %v5600, %v5520
          %v5647 = vsel %vm2487, %v5602, %v5522
          %v5650 = vsel %vm2487, %v5604, %v5524
          %v5653 = vsel %vm2487, %v5606, %v5526
          %s5655 = scalar_lea.vmem %s3, 320
          %v5656 = vld [vmem:[%s5655] sm:$0xf]
          %v5657 = vld [vmem:[%s5655 + $0x4] sm:$0xf]
          %v5658 = vld [vmem:[%s5655 + $0x8] sm:$0xf]
          %v5659 = vld [vmem:[%s5655 + $0xc] sm:$0xf]
          %v5660 = vld [vmem:[%s5655 + $0x10] sm:$0xf]
          %v5661 = vld [vmem:[%s5655 + $0x14] sm:$0xf]
          %v5662 = vld [vmem:[%s5655 + $0x18] sm:$0xf]
          %v5663 = vld [vmem:[%s5655 + $0x1c] sm:$0xf]
          %v5664 = vld [vmem:[%s5655 + $0x20] sm:$0xf]
          %v5665 = vld [vmem:[%s5655 + $0x24] sm:$0xf]
          %v5666 = vld [vmem:[%s5655 + $0x28] sm:$0xf]
          %v5667 = vld [vmem:[%s5655 + $0x2c] sm:$0xf]
          %v5668 = vld [vmem:[%s5655 + $0x30] sm:$0xf]
          %v5669 = vld [vmem:[%s5655 + $0x34] sm:$0xf]
          %v5670 = vld [vmem:[%s5655 + $0x38] sm:$0xf]
          %v5671 = vld [vmem:[%s5655 + $0x3c] sm:$0xf]
          %v5672 = vld [vmem:[%s5655 + $0x40] sm:$0xf]
          %v5673 = vld [vmem:[%s5655 + $0x44] sm:$0xf]
          %v5674 = vld [vmem:[%s5655 + $0x48] sm:$0xf]
          %v5675 = vld [vmem:[%s5655 + $0x4c] sm:$0xf]
          %v5696 = vunpack.c.l.b16 %v5656
          %v5697 = vunpack.c.l.b16 %v5657
          %v5698 = vunpack.c.l.b16 %v5658
          %v5699 = vunpack.c.l.b16 %v5659
          %v5700 = vunpack.c.l.b16 %v5660
          %v5701 = vunpack.c.l.b16 %v5661
          %v5702 = vunpack.c.l.b16 %v5662
          %v5703 = vunpack.c.l.b16 %v5663
          %v5704 = vunpack.c.l.b16 %v5664
          %v5705 = vunpack.c.l.b16 %v5665
          %v5706 = vunpack.c.l.b16 %v5666
          %v5707 = vunpack.c.l.b16 %v5667
          %v5708 = vunpack.c.l.b16 %v5668
          %v5709 = vunpack.c.l.b16 %v5669
          %v5710 = vunpack.c.l.b16 %v5670
          %v5711 = vunpack.c.l.b16 %v5671
          %v5712 = vunpack.c.l.b16 %v5672
          %v5713 = vunpack.c.l.b16 %v5673
          %v5714 = vunpack.c.l.b16 %v5674
          %v5715 = vunpack.c.l.b16 %v5675
          %v5716 = vpack.c.b16 %v5697, %v5696
          %v5717 = vpack.c.b16 %v5699, %v5698
          %v5718 = vpack.c.b16 %v5701, %v5700
          %v5719 = vpack.c.b16 %v5703, %v5702
          %v5720 = vpack.c.b16 %v5705, %v5704
          %v5721 = vpack.c.b16 %v5707, %v5706
          %v5722 = vpack.c.b16 %v5709, %v5708
          %v5723 = vpack.c.b16 %v5711, %v5710
          %v5724 = vpack.c.b16 %v5713, %v5712
          %v5725 = vpack.c.b16 %v5715, %v5714
          %v5736 = vsel %vm391, %v5397, 0
          %v5738 = vsel %vm391, %v5398, 0
          %v5740 = vsel %vm391, %v5399, 0
          %v5742 = vsel %vm391, %v5400, 0
          %v5744 = vsel %vm391, %v5401, 0
          %v5746 = vsel %vm391, %v5402, 0
          %v5748 = vsel %vm391, %v5403, 0
          %v5750 = vsel %vm391, %v5404, 0
          %v5752 = vsel %vm391, %v5405, 0
          %v5754 = vsel %vm391, %v5406, 0
          %v5756 = vsel %vm391, %v5407, 0
          %v5758 = vsel %vm391, %v5408, 0
          %v5761 = vsel %vm391, %v5409, 0
          %v5764 = vsel %vm391, %v5410, 0
          %v5767 = vsel %vm391, %v5411, 0
          %v5770 = vsel %vm391, %v5412, 0
          %5772 = vmatprep.subr.bf16.mxu0 0
          %5773 = vmatpush1.bf16.msra.mxu0 %v5716
          %5774 = vmatprep.subr.bf16.mxu0 0
          %5775 = vmatpush1.bf16.msra.mxu0 %v5717
          %5776 = vmatprep.subr.bf16.mxu0 0
          %5777 = vmatpush1.bf16.msra.mxu0 %v5718
          %5778 = vmatprep.subr.bf16.mxu0 0
          %5779 = vmatpush1.bf16.msra.mxu0 %v5719
          %5780 = vmatprep.subr.bf16.mxu0 0
          %5781 = vmatpush1.bf16.msra.mxu0 %v5720
          %5782 = vmatprep.subr.bf16.mxu0 0
          %5783 = vmatpush1.bf16.msra.mxu0 %v5721
          %5784 = vmatprep.subr.bf16.mxu0 0
          %5785 = vmatpush1.bf16.msra.mxu0 %v5722
          %5786 = vmatprep.subr.bf16.mxu0 0
          %5787 = vmatpush1.bf16.msra.mxu0 %v5723
          %5788 = vmatprep.subr.bf16.mxu0 0
          %5789 = vmatpush1.bf16.msra.mxu0 %v5724
          %5790 = vmatprep.subr.bf16.mxu0 0
          %5791 = vmatpush1.bf16.msra.mxu0 %v5725
          %5792 = vmatprep.subr.bf16.mxu0 0
          %5793 = vmatpush1.bf16.msra.mxu0 0
          %5794 = vmatprep.subr.bf16.mxu0 0
          %5795 = vmatpush1.bf16.msra.mxu0 0
          %5796 = vmatprep.subr.bf16.mxu0 0
          %5797 = vmatpush1.bf16.msra.mxu0 0
          %5798 = vmatprep.subr.bf16.mxu0 0
          %5799 = vmatpush1.bf16.msra.mxu0 0
          %5800 = vmatprep.subr.bf16.mxu0 0
          %5801 = vmatpush1.bf16.msra.mxu0 0
          %5802 = vmatprep.subr.bf16.mxu0 0
          %5803 = vmatpush1.bf16.msra.mxu0 0
          %5804 = vmatprep.mubr.bf16.mxu0 %v5736
          %5805 = vmatmul.mubr.bf16.gmra.mrb[0].mxu0 %v5608
          %v5806 = vpop.f32.mrb[0].mxu0
          %v5807 = vadd.f32 0.0, %v5806
          %v5808 = vpop.f32.mrb[0].mxu0
          %v5809 = vpop.f32.mrb[0].mxu0
          %v5810 = vadd.f32 0.0, %v5809
          %v5811 = vpop.f32.mrb[0].mxu0
          %5812 = vmatprep.mubr.bf16.mxu0 %v5738
          %5813 = vmatmul.mubr.bf16.gmra.mrb[0].mxu0 %v5611
          %v5814 = vpop.f32.mrb[0].mxu0
          %v5815 = vadd.f32 0.0, %v5814
          %v5816 = vpop.f32.mrb[0].mxu0
          %v5817 = vpop.f32.mrb[0].mxu0
          %v5818 = vadd.f32 0.0, %v5817
          %v5819 = vpop.f32.mrb[0].mxu0
          %5820 = vmatprep.mubr.bf16.mxu0 %v5740
          %5821 = vmatmul.mubr.bf16.gmra.mrb[0].mxu0 %v5614
          %v5822 = vpop.f32.mrb[0].mxu0
          %v5823 = vadd.f32 0.0, %v5822
          %v5824 = vpop.f32.mrb[0].mxu0
          %v5825 = vpop.f32.mrb[0].mxu0
          %v5826 = vadd.f32 0.0, %v5825
          %v5827 = vpop.f32.mrb[0].mxu0
          %5828 = vmatprep.mubr.bf16.mxu0 %v5742
          %5829 = vmatmul.mubr.bf16.gmra.mrb[0].mxu0 %v5617
          %v5830 = vpop.f32.mrb[0].mxu0
          %v5831 = vadd.f32 0.0, %v5830
          %v5832 = vpop.f32.mrb[0].mxu0
          %v5833 = vpop.f32.mrb[0].mxu0
          %v5834 = vadd.f32 0.0, %v5833
          %v5835 = vpop.f32.mrb[0].mxu0
          %5836 = vmatprep.mubr.bf16.mxu0 %v5744
          %5837 = vmatmul.mubr.bf16.gmra.mrb[0].mxu0 %v5620
          %v5838 = vpop.f32.mrb[0].mxu0
          %v5839 = vadd.f32 0.0, %v5838
          %v5840 = vpop.f32.mrb[0].mxu0
          %v5841 = vpop.f32.mrb[0].mxu0
          %v5842 = vadd.f32 0.0, %v5841
          %v5843 = vpop.f32.mrb[0].mxu0
          %5844 = vmatprep.mubr.bf16.mxu0 %v5746
          %5845 = vmatmul.mubr.bf16.gmra.mrb[0].mxu0 %v5623
          %v5846 = vpop.f32.mrb[0].mxu0
          %v5847 = vadd.f32 0.0, %v5846
          %v5848 = vpop.f32.mrb[0].mxu0
          %v5849 = vpop.f32.mrb[0].mxu0
          %v5850 = vadd.f32 0.0, %v5849
          %v5851 = vpop.f32.mrb[0].mxu0
          %5852 = vmatprep.mubr.bf16.mxu0 %v5748
          %5853 = vmatmul.mubr.bf16.gmra.mrb[0].mxu0 %v5626
          %v5854 = vpop.f32.mrb[0].mxu0
          %v5855 = vadd.f32 0.0, %v5854
          %v5856 = vpop.f32.mrb[0].mxu0
          %v5857 = vpop.f32.mrb[0].mxu0
          %v5858 = vadd.f32 0.0, %v5857
          %v5859 = vpop.f32.mrb[0].mxu0
          %5860 = vmatprep.mubr.bf16.mxu0 %v5750
          %5861 = vmatmul.mubr.bf16.gmra.mrb[0].mxu0 %v5629
          %v5862 = vpop.f32.mrb[0].mxu0
          %v5863 = vadd.f32 0.0, %v5862
          %v5864 = vpop.f32.mrb[0].mxu0
          %v5865 = vpop.f32.mrb[0].mxu0
          %v5866 = vadd.f32 0.0, %v5865
          %v5867 = vpop.f32.mrb[0].mxu0
          %5868 = vmatprep.mubr.bf16.mxu0 %v5752
          %5869 = vmatmul.mubr.bf16.gmra.mrb[0].mxu0 %v5632
          %v5870 = vpop.f32.mrb[0].mxu0
          %v5871 = vadd.f32 0.0, %v5870
          %v5872 = vpop.f32.mrb[0].mxu0
          %v5873 = vpop.f32.mrb[0].mxu0
          %v5874 = vadd.f32 0.0, %v5873
          %v5875 = vpop.f32.mrb[0].mxu0
          %5876 = vmatprep.mubr.bf16.mxu0 %v5754
          %5877 = vmatmul.mubr.bf16.gmra.mrb[0].mxu0 %v5635
          %v5878 = vpop.f32.mrb[0].mxu0
          %v5879 = vadd.f32 0.0, %v5878
          %v5880 = vpop.f32.mrb[0].mxu0
          %v5881 = vpop.f32.mrb[0].mxu0
          %v5882 = vadd.f32 0.0, %v5881
          %v5883 = vpop.f32.mrb[0].mxu0
          %5884 = vmatprep.mubr.bf16.mxu0 %v5756
          %5885 = vmatmul.mubr.bf16.gmra.mrb[0].mxu0 %v5638
          %v5886 = vpop.f32.mrb[0].mxu0
          %v5887 = vadd.f32 0.0, %v5886
          %v5888 = vpop.f32.mrb[0].mxu0
          %v5889 = vpop.f32.mrb[0].mxu0
          %v5890 = vadd.f32 0.0, %v5889
          %v5891 = vpop.f32.mrb[0].mxu0
          %5892 = vmatprep.mubr.bf16.mxu0 %v5758
          %5893 = vmatmul.mubr.bf16.gmra.mrb[0].mxu0 %v5641
          %v5894 = vpop.f32.mrb[0].mxu0
          %v5895 = vadd.f32 0.0, %v5894
          %v5896 = vpop.f32.mrb[0].mxu0
          %v5897 = vpop.f32.mrb[0].mxu0
          %v5898 = vadd.f32 0.0, %v5897
          %v5899 = vpop.f32.mrb[0].mxu0
          %5900 = vmatprep.mubr.bf16.mxu0 %v5761
          %5901 = vmatmul.mubr.bf16.gmra.mrb[0].mxu0 %v5644
          %v5902 = vpop.f32.mrb[0].mxu0
          %v5903 = vadd.f32 0.0, %v5902
          %v5904 = vpop.f32.mrb[0].mxu0
          %v5905 = vpop.f32.mrb[0].mxu0
          %v5906 = vadd.f32 0.0, %v5905
          %v5907 = vpop.f32.mrb[0].mxu0
          %5908 = vmatprep.mubr.bf16.mxu0 %v5764
          %5909 = vmatmul.mubr.bf16.gmra.mrb[0].mxu0 %v5647
          %v5910 = vpop.f32.mrb[0].mxu0
          %v5911 = vadd.f32 0.0, %v5910
          %v5912 = vpop.f32.mrb[0].mxu0
          %v5913 = vpop.f32.mrb[0].mxu0
          %v5914 = vadd.f32 0.0, %v5913
          %v5915 = vpop.f32.mrb[0].mxu0
          %5916 = vmatprep.mubr.bf16.mxu0 %v5767
          %5917 = vmatmul.mubr.bf16.gmra.mrb[0].mxu0 %v5650
          %v5918 = vpop.f32.mrb[0].mxu0
          %v5919 = vadd.f32 0.0, %v5918
          %v5920 = vpop.f32.mrb[0].mxu0
          %v5921 = vpop.f32.mrb[0].mxu0
          %v5922 = vadd.f32 0.0, %v5921
          %v5923 = vpop.f32.mrb[0].mxu0
          %5924 = vmatprep.mubr.bf16.mxu0 %v5770
          %5925 = vmatmul.mubr.bf16.gmra.mrb[0].mxu0 %v5653
          %v5926 = vpop.f32.mrb[0].mxu0
          %v5927 = vadd.f32 0.0, %v5926
          %v5928 = vpop.f32.mrb[0].mxu0
          %v5929 = vpop.f32.mrb[0].mxu0
          %v5930 = vadd.f32 0.0, %v5929
          %v5931 = vpop.f32.mrb[0].mxu0
          %5932 = vdwg.mxu0
          %v5933 = vadd.s32 %v2200, 2
          %v5934 = vadd.s32 %v2201, 2
          %v5935 = vadd.s32 %v2202, 2
          %v5936 = vadd.s32 %v2203, 2
          %v5937 = vadd.s32 %v2204, 2
          %v5938 = vadd.s32 %v2205, 2
          %v5939 = vadd.s32 %v2206, 2
          %v5940 = vadd.s32 %v2207, 2
          %v5941 = vadd.s32 %v2208, 2
          %v5942 = vadd.s32 %v2209, 2
          %v5943 = vadd.s32 %v2210, 2
          %v5944 = vadd.s32 %v2211, 2
          %v5945 = vadd.s32 %v2212, 2
          %v5946 = vadd.s32 %v2213, 2
          %v5947 = vadd.s32 %v2214, 2
          %v5948 = vadd.s32 %v2215, 2
          %v5949 = vadd.s32 %v2216, 2
          %v5950 = vadd.s32 %v2217, 2
          %v5951 = vadd.s32 %v2218, 2
          %v5952 = vadd.s32 %v2219, 2
          %v5953 = vadd.s32 %v2220, 2
          %v5954 = vadd.s32 %v2221, 2
          %v5955 = vadd.s32 %v2222, 2
          %v5956 = vadd.s32 %v2223, 2
          %v5957 = vadd.s32 %v2224, 2
          %v5958 = vadd.s32 %v2225, 2
          %v5959 = vadd.s32 %v2226, 2
          %v5960 = vadd.s32 %v2227, 2
          %v5961 = vadd.s32 %v2228, 2
          %v5962 = vadd.s32 %v2229, 2
          %v5963 = vadd.s32 %v2230, 2
          %v5964 = vadd.s32 %v2231, 2
          %vm5965 = vcmp.ge.s32.totalorder %v5933, 0
          %vm5966 = vcmp.ge.s32.totalorder %v5934, 0
          %vm5967 = vcmp.ge.s32.totalorder %v5935, 0
          %vm5968 = vcmp.ge.s32.totalorder %v5936, 0
          %vm5969 = vcmp.ge.s32.totalorder %v5937, 0
          %vm5970 = vcmp.ge.s32.totalorder %v5938, 0
          %vm5971 = vcmp.ge.s32.totalorder %v5939, 0
          %vm5972 = vcmp.ge.s32.totalorder %v5940, 0
          %vm5973 = vcmp.ge.s32.totalorder %v5941, 0
          %vm5974 = vcmp.ge.s32.totalorder %v5942, 0
          %vm5975 = vcmp.ge.s32.totalorder %v5943, 0
          %vm5976 = vcmp.ge.s32.totalorder %v5944, 0
          %vm5977 = vcmp.ge.s32.totalorder %v5945, 0
          %vm5978 = vcmp.ge.s32.totalorder %v5946, 0
          %vm5979 = vcmp.ge.s32.totalorder %v5947, 0
          %vm5980 = vcmp.ge.s32.totalorder %v5948, 0
          %vm5981 = vcmp.ge.s32.totalorder %v5949, 0
          %vm5982 = vcmp.ge.s32.totalorder %v5950, 0
          %vm5983 = vcmp.ge.s32.totalorder %v5951, 0
          %vm5984 = vcmp.ge.s32.totalorder %v5952, 0
          %vm5985 = vcmp.ge.s32.totalorder %v5953, 0
          %vm5986 = vcmp.ge.s32.totalorder %v5954, 0
          %vm5987 = vcmp.ge.s32.totalorder %v5955, 0
          %vm5988 = vcmp.ge.s32.totalorder %v5956, 0
          %vm5989 = vcmp.ge.s32.totalorder %v5957, 0
          %vm5990 = vcmp.ge.s32.totalorder %v5958, 0
          %vm5991 = vcmp.ge.s32.totalorder %v5959, 0
          %vm5992 = vcmp.ge.s32.totalorder %v5960, 0
          %vm5993 = vcmp.ge.s32.totalorder %v5961, 0
          %vm5994 = vcmp.ge.s32.totalorder %v5962, 0
          %vm5995 = vcmp.ge.s32.totalorder %v5963, 0
          %vm5996 = vcmp.ge.s32.totalorder %v5964, 0
          %vm5997 = vcmp.lt.s32.totalorder %v5933, 16
          %vm5998 = vcmp.lt.s32.totalorder %v5934, 16
          %vm5999 = vcmp.lt.s32.totalorder %v5935, 16
          %vm6000 = vcmp.lt.s32.totalorder %v5936, 16
          %vm6001 = vcmp.lt.s32.totalorder %v5937, 16
          %vm6002 = vcmp.lt.s32.totalorder %v5938, 16
          %vm6003 = vcmp.lt.s32.totalorder %v5939, 16
          %vm6004 = vcmp.lt.s32.totalorder %v5940, 16
          %vm6005 = vcmp.lt.s32.totalorder %v5941, 16
          %vm6006 = vcmp.lt.s32.totalorder %v5942, 16
          %vm6007 = vcmp.lt.s32.totalorder %v5943, 16
          %vm6008 = vcmp.lt.s32.totalorder %v5944, 16
          %vm6009 = vcmp.lt.s32.totalorder %v5945, 16
          %vm6010 = vcmp.lt.s32.totalorder %v5946, 16
          %vm6011 = vcmp.lt.s32.totalorder %v5947, 16
          %vm6012 = vcmp.lt.s32.totalorder %v5948, 16
          %vm6013 = vcmp.lt.s32.totalorder %v5949, 16
          %vm6014 = vcmp.lt.s32.totalorder %v5950, 16
          %vm6015 = vcmp.lt.s32.totalorder %v5951, 16
          %vm6016 = vcmp.lt.s32.totalorder %v5952, 16
          %vm6017 = vcmp.lt.s32.totalorder %v5953, 16
          %vm6018 = vcmp.lt.s32.totalorder %v5954, 16
          %vm6019 = vcmp.lt.s32.totalorder %v5955, 16
          %vm6020 = vcmp.lt.s32.totalorder %v5956, 16
          %vm6021 = vcmp.lt.s32.totalorder %v5957, 16
          %vm6022 = vcmp.lt.s32.totalorder %v5958, 16
          %vm6023 = vcmp.lt.s32.totalorder %v5959, 16
          %vm6024 = vcmp.lt.s32.totalorder %v5960, 16
          %vm6025 = vcmp.lt.s32.totalorder %v5961, 16
          %vm6026 = vcmp.lt.s32.totalorder %v5962, 16
          %vm6027 = vcmp.lt.s32.totalorder %v5963, 16
          %vm6028 = vcmp.lt.s32.totalorder %v5964, 16
          %vm6029 = vmand %vm5965, %vm5997
          %vm6030 = vmand %vm5966, %vm5998
          %vm6031 = vmand %vm5967, %vm5999
          %vm6032 = vmand %vm5968, %vm6000
          %vm6033 = vmand %vm5969, %vm6001
          %vm6034 = vmand %vm5970, %vm6002
          %vm6035 = vmand %vm5971, %vm6003
          %vm6036 = vmand %vm5972, %vm6004
          %vm6037 = vmand %vm5973, %vm6005
          %vm6038 = vmand %vm5974, %vm6006
          %vm6039 = vmand %vm5975, %vm6007
          %vm6040 = vmand %vm5976, %vm6008
          %vm6041 = vmand %vm5977, %vm6009
          %vm6042 = vmand %vm5978, %vm6010
          %vm6043 = vmand %vm5979, %vm6011
          %vm6044 = vmand %vm5980, %vm6012
          %vm6045 = vmand %vm5981, %vm6013
          %vm6046 = vmand %vm5982, %vm6014
          %vm6047 = vmand %vm5983, %vm6015
          %vm6048 = vmand %vm5984, %vm6016
          %vm6049 = vmand %vm5985, %vm6017
          %vm6050 = vmand %vm5986, %vm6018
          %vm6051 = vmand %vm5987, %vm6019
          %vm6052 = vmand %vm5988, %vm6020
          %vm6053 = vmand %vm5989, %vm6021
          %vm6054 = vmand %vm5990, %vm6022
          %vm6055 = vmand %vm5991, %vm6023
          %vm6056 = vmand %vm5992, %vm6024
          %vm6057 = vmand %vm5993, %vm6025
          %vm6058 = vmand %vm5994, %vm6026
          %vm6059 = vmand %vm5995, %vm6027
          %vm6060 = vmand %vm5996, %vm6028
          %v6061 = vsel %vm6029, 1, 0
          %v6062 = vsel %vm6030, 1, 0
          %v6063 = vsel %vm6031, 1, 0
          %v6064 = vsel %vm6032, 1, 0
          %v6065 = vsel %vm6033, 1, 0
          %v6066 = vsel %vm6034, 1, 0
          %v6067 = vsel %vm6035, 1, 0
          %v6068 = vsel %vm6036, 1, 0
          %v6069 = vsel %vm6037, 1, 0
          %v6070 = vsel %vm6038, 1, 0
          %v6071 = vsel %vm6039, 1, 0
          %v6072 = vsel %vm6040, 1, 0
          %v6073 = vsel %vm6041, 1, 0
          %v6074 = vsel %vm6042, 1, 0
          %v6075 = vsel %vm6043, 1, 0
          %v6076 = vsel %vm6044, 1, 0
          %v6077 = vsel %vm6045, 1, 0
          %v6078 = vsel %vm6046, 1, 0
          %v6079 = vsel %vm6047, 1, 0
          %v6080 = vsel %vm6048, 1, 0
          %v6081 = vsel %vm6049, 1, 0
          %v6082 = vsel %vm6050, 1, 0
          %v6083 = vsel %vm6051, 1, 0
          %v6084 = vsel %vm6052, 1, 0
          %v6085 = vsel %vm6053, 1, 0
          %v6086 = vsel %vm6054, 1, 0
          %v6087 = vsel %vm6055, 1, 0
          %v6088 = vsel %vm6056, 1, 0
          %v6089 = vsel %vm6057, 1, 0
          %v6090 = vsel %vm6058, 1, 0
          %v6091 = vsel %vm6059, 1, 0
          %v6092 = vsel %vm6060, 1, 0
          %v6093 = vcvt.s32.f32 %v6061
          %v6094 = vcvt.s32.f32 %v6062
          %v6095 = vcvt.s32.f32 %v6063
          %v6096 = vcvt.s32.f32 %v6064
          %v6097 = vcvt.s32.f32 %v6065
          %v6098 = vcvt.s32.f32 %v6066
          %v6099 = vcvt.s32.f32 %v6067
          %v6100 = vcvt.s32.f32 %v6068
          %v6101 = vcvt.s32.f32 %v6069
          %v6102 = vcvt.s32.f32 %v6070
          %v6103 = vcvt.s32.f32 %v6071
          %v6104 = vcvt.s32.f32 %v6072
          %v6105 = vcvt.s32.f32 %v6073
          %v6106 = vcvt.s32.f32 %v6074
          %v6107 = vcvt.s32.f32 %v6075
          %v6108 = vcvt.s32.f32 %v6076
          %v6109 = vcvt.s32.f32 %v6077
          %v6110 = vcvt.s32.f32 %v6078
          %v6111 = vcvt.s32.f32 %v6079
          %v6112 = vcvt.s32.f32 %v6080
          %v6113 = vcvt.s32.f32 %v6081
          %v6114 = vcvt.s32.f32 %v6082
          %v6115 = vcvt.s32.f32 %v6083
          %v6116 = vcvt.s32.f32 %v6084
          %v6117 = vcvt.s32.f32 %v6085
          %v6118 = vcvt.s32.f32 %v6086
          %v6119 = vcvt.s32.f32 %v6087
          %v6120 = vcvt.s32.f32 %v6088
          %v6121 = vcvt.s32.f32 %v6089
          %v6122 = vcvt.s32.f32 %v6090
          %v6123 = vcvt.s32.f32 %v6091
          %v6124 = vcvt.s32.f32 %v6092
          %v6125 = vmul.f32 %v5807, %v6093
          %v6126 = vmul.f32 %v5810, %v6094
          %v6127 = vmul.f32 %v5815, %v6095
          %v6128 = vmul.f32 %v5818, %v6096
          %v6129 = vmul.f32 %v5823, %v6097
          %v6130 = vmul.f32 %v5826, %v6098
          %v6131 = vmul.f32 %v5831, %v6099
          %v6132 = vmul.f32 %v5834, %v6100
          %v6133 = vmul.f32 %v5839, %v6101
          %v6134 = vmul.f32 %v5842, %v6102
          %v6135 = vmul.f32 %v5847, %v6103
          %v6136 = vmul.f32 %v5850, %v6104
          %v6137 = vmul.f32 %v5855, %v6105
          %v6138 = vmul.f32 %v5858, %v6106
          %v6139 = vmul.f32 %v5863, %v6107
          %v6140 = vmul.f32 %v5866, %v6108
          %v6141 = vmul.f32 %v5871, %v6109
          %v6142 = vmul.f32 %v5874, %v6110
          %v6143 = vmul.f32 %v5879, %v6111
          %v6144 = vmul.f32 %v5882, %v6112
          %v6145 = vmul.f32 %v5887, %v6113
          %v6146 = vmul.f32 %v5890, %v6114
          %v6147 = vmul.f32 %v5895, %v6115
          %v6148 = vmul.f32 %v5898, %v6116
          %v6149 = vmul.f32 %v5903, %v6117
          %v6150 = vmul.f32 %v5906, %v6118
          %v6151 = vmul.f32 %v5911, %v6119
          %v6152 = vmul.f32 %v5914, %v6120
          %v6153 = vmul.f32 %v5919, %v6121
          %v6154 = vmul.f32 %v5922, %v6122
          %v6155 = vmul.f32 %v5927, %v6123
          %v6156 = vmul.f32 %v5930, %v6124
          %v6157 = vadd.f32 %v5321, %v6125
          %v6158 = vadd.f32 %v5322, %v6126
          %v6159 = vadd.f32 %v5323, %v6127
          %v6160 = vadd.f32 %v5324, %v6128
          %v6161 = vadd.f32 %v5325, %v6129
          %v6162 = vadd.f32 %v5326, %v6130
          %v6163 = vadd.f32 %v5327, %v6131
          %v6164 = vadd.f32 %v5328, %v6132
          %v6165 = vadd.f32 %v5329, %v6133
          %v6166 = vadd.f32 %v5330, %v6134
          %v6167 = vadd.f32 %v5331, %v6135
          %v6168 = vadd.f32 %v5332, %v6136
          %v6169 = vadd.f32 %v5333, %v6137
          %v6170 = vadd.f32 %v5334, %v6138
          %v6171 = vadd.f32 %v5335, %v6139
          %v6172 = vadd.f32 %v5336, %v6140
          %v6173 = vadd.f32 %v5337, %v6141
          %v6174 = vadd.f32 %v5338, %v6142
          %v6175 = vadd.f32 %v5339, %v6143
          %v6176 = vadd.f32 %v5340, %v6144
          %v6177 = vadd.f32 %v5341, %v6145
          %v6178 = vadd.f32 %v5342, %v6146
          %v6179 = vadd.f32 %v5343, %v6147
          %v6180 = vadd.f32 %v5344, %v6148
          %v6181 = vadd.f32 %v5345, %v6149
          %v6182 = vadd.f32 %v5346, %v6150
          %v6183 = vadd.f32 %v5347, %v6151
          %v6184 = vadd.f32 %v5348, %v6152
          %v6185 = vadd.f32 %v5349, %v6153
          %v6186 = vadd.f32 %v5350, %v6154
          %v6187 = vadd.f32 %v5351, %v6155
          %v6188 = vadd.f32 %v5352, %v6156
          %v6189 = vld [vmem:[%s4] sm:$0x1]
          %v6191 = vlaneseq
          %v6192 = vshrl.u32 %v6191, 7
          %v6193 = vsub.s32 0, %v6192
          %v6194 = vrot.slane %v6189, %v6193
          %v6196 = vadd.f32 %v6157, %v6194
          %v6197 = vadd.f32 %v6158, %v6194
          %v6198 = vadd.f32 %v6159, %v6194
          %v6199 = vadd.f32 %v6160, %v6194
          %v6200 = vadd.f32 %v6161, %v6194
          %v6201 = vadd.f32 %v6162, %v6194
          %v6202 = vadd.f32 %v6163, %v6194
          %v6203 = vadd.f32 %v6164, %v6194
          %v6204 = vadd.f32 %v6165, %v6194
          %v6205 = vadd.f32 %v6166, %v6194
          %v6206 = vadd.f32 %v6167, %v6194
          %v6207 = vadd.f32 %v6168, %v6194
          %v6208 = vadd.f32 %v6169, %v6194
          %v6209 = vadd.f32 %v6170, %v6194
          %v6210 = vadd.f32 %v6171, %v6194
          %v6211 = vadd.f32 %v6172, %v6194
          %v6212 = vadd.f32 %v6173, %v6194
          %v6213 = vadd.f32 %v6174, %v6194
          %v6214 = vadd.f32 %v6175, %v6194
          %v6215 = vadd.f32 %v6176, %v6194
          %v6216 = vadd.f32 %v6177, %v6194
          %v6217 = vadd.f32 %v6178, %v6194
          %v6218 = vadd.f32 %v6179, %v6194
          %v6219 = vadd.f32 %v6180, %v6194
          %v6220 = vadd.f32 %v6181, %v6194
          %v6221 = vadd.f32 %v6182, %v6194
          %v6222 = vadd.f32 %v6183, %v6194
          %v6223 = vadd.f32 %v6184, %v6194
          %v6224 = vadd.f32 %v6185, %v6194
          %v6225 = vadd.f32 %v6186, %v6194
          %v6226 = vadd.f32 %v6187, %v6194
          %v6227 = vadd.f32 %v6188, %v6194
          %6228 = vst.msk [vmem:[#allocation4] sm:$0xff] %vm391, %v6196
          %6229 = vst.msk [vmem:[#allocation4 + $0x8] sm:$0xff] %vm391, %v6197
          %6230 = vst.msk [vmem:[#allocation4 + $0x10] sm:$0xff] %vm391, %v6198
          %6231 = vst.msk [vmem:[#allocation4 + $0x18] sm:$0xff] %vm391, %v6199
          %6232 = vst.msk [vmem:[#allocation4 + $0x20] sm:$0xff] %vm391, %v6200
          %6233 = vst.msk [vmem:[#allocation4 + $0x28] sm:$0xff] %vm391, %v6201
          %6234 = vst.msk [vmem:[#allocation4 + $0x30] sm:$0xff] %vm391, %v6202
          %6235 = vst.msk [vmem:[#allocation4 + $0x38] sm:$0xff] %vm391, %v6203
          %6236 = vst.msk [vmem:[#allocation4 + $0x40] sm:$0xff] %vm391, %v6204
          %6237 = vst.msk [vmem:[#allocation4 + $0x48] sm:$0xff] %vm391, %v6205
          %6238 = vst.msk [vmem:[#allocation4 + $0x50] sm:$0xff] %vm391, %v6206
          %6239 = vst.msk [vmem:[#allocation4 + $0x58] sm:$0xff] %vm391, %v6207
          %6240 = vst.msk [vmem:[#allocation4 + $0x60] sm:$0xff] %vm391, %v6208
          %6241 = vst.msk [vmem:[#allocation4 + $0x68] sm:$0xff] %vm391, %v6209
          %6242 = vst.msk [vmem:[#allocation4 + $0x70] sm:$0xff] %vm391, %v6210
          %6243 = vst.msk [vmem:[#allocation4 + $0x78] sm:$0xff] %vm391, %v6211
          %6244 = vst.msk [vmem:[#allocation4 + $0x80] sm:$0xff] %vm391, %v6212
          %6245 = vst.msk [vmem:[#allocation4 + $0x88] sm:$0xff] %vm391, %v6213
          %6246 = vst.msk [vmem:[#allocation4 + $0x90] sm:$0xff] %vm391, %v6214
          %6247 = vst.msk [vmem:[#allocation4 + $0x98] sm:$0xff] %vm391, %v6215
          %6248 = vst.msk [vmem:[#allocation4 + $0xa0] sm:$0xff] %vm391, %v6216
          %6249 = vst.msk [vmem:[#allocation4 + $0xa8] sm:$0xff] %vm391, %v6217
          %6250 = vst.msk [vmem:[#allocation4 + $0xb0] sm:$0xff] %vm391, %v6218
          %6251 = vst.msk [vmem:[#allocation4 + $0xb8] sm:$0xff] %vm391, %v6219
          %6252 = vst.msk [vmem:[#allocation4 + $0xc0] sm:$0xff] %vm391, %v6220
          %6253 = vst.msk [vmem:[#allocation4 + $0xc8] sm:$0xff] %vm391, %v6221
          %6254 = vst.msk [vmem:[#allocation4 + $0xd0] sm:$0xff] %vm391, %v6222
          %6255 = vst.msk [vmem:[#allocation4 + $0xd8] sm:$0xff] %vm391, %v6223
          %6256 = vst.msk [vmem:[#allocation4 + $0xe0] sm:$0xff] %vm391, %v6224
          %6257 = vst.msk [vmem:[#allocation4 + $0xe8] sm:$0xff] %vm391, %v6225
          %6258 = vst.msk [vmem:[#allocation4 + $0xf0] sm:$0xff] %vm391, %v6226
          %6259 = vst.msk [vmem:[#allocation4 + $0xf8] sm:$0xff] %vm391, %v6227
          %v6260 = vld [vmem:[#allocation4] ss:$2 sm:$0xff]
          %s6261 = scalar_lea.vmem [#allocation4], 1
          %v6262 = vld [vmem:[%s6261] ss:$2 sm:$0xff]
          %s6263 = scalar_lea.vmem [#allocation4], 16
          %v6264 = vld [vmem:[%s6263] ss:$2 sm:$0xff]
          %s6265 = scalar_lea.vmem [#allocation4], 17
          %v6266 = vld [vmem:[%s6265] ss:$2 sm:$0xff]
          %v6267 = vmax.f32 %v6260, %v6262
          %v6268 = vmax.f32 %v6264, %v6266
          %v6269 = vmax.f32 %v6267, %v6268
          %6270 = vst.msk [vmem:[#allocation5 + $0x18] sm:$0xff] %vm391, %v6269
          %s6271 = scalar_lea.vmem [#allocation4], 32
          %v6272 = vld [vmem:[%s6271] ss:$2 sm:$0xff]
          %s6273 = scalar_lea.vmem [#allocation4], 33
          %v6274 = vld [vmem:[%s6273] ss:$2 sm:$0xff]
          %s6275 = scalar_lea.vmem [#allocation4], 48
          %v6276 = vld [vmem:[%s6275] ss:$2 sm:$0xff]
          %s6277 = scalar_lea.vmem [#allocation4], 49
          %v6278 = vld [vmem:[%s6277] ss:$2 sm:$0xff]
          %v6279 = vmax.f32 %v6272, %v6274
          %v6280 = vmax.f32 %v6276, %v6278
          %v6281 = vmax.f32 %v6279, %v6280
          %6282 = vst.msk [vmem:[#allocation5 + $0x20] sm:$0xff] %vm391, %v6281
          %s6283 = scalar_lea.vmem [#allocation4], 64
          %v6284 = vld [vmem:[%s6283] ss:$2 sm:$0xff]
          %s6285 = scalar_lea.vmem [#allocation4], 65
          %v6286 = vld [vmem:[%s6285] ss:$2 sm:$0xff]
          %s6287 = scalar_lea.vmem [#allocation4], 80
          %v6288 = vld [vmem:[%s6287] ss:$2 sm:$0xff]
          %s6289 = scalar_lea.vmem [#allocation4], 81
          %v6290 = vld [vmem:[%s6289] ss:$2 sm:$0xff]
          %v6291 = vmax.f32 %v6284, %v6286
          %v6292 = vmax.f32 %v6288, %v6290
          %v6293 = vmax.f32 %v6291, %v6292
          %6294 = vst.msk [vmem:[#allocation5 + $0x28] sm:$0xff] %vm391, %v6293
          %s6295 = scalar_lea.vmem [#allocation4], 96
          %v6296 = vld [vmem:[%s6295] ss:$2 sm:$0xff]
          %s6297 = scalar_lea.vmem [#allocation4], 97
          %v6298 = vld [vmem:[%s6297] ss:$2 sm:$0xff]
          %s6299 = scalar_lea.vmem [#allocation4], 112
          %v6300 = vld [vmem:[%s6299] ss:$2 sm:$0xff]
          %s6301 = scalar_lea.vmem [#allocation4], 113
          %v6302 = vld [vmem:[%s6301] ss:$2 sm:$0xff]
          %v6303 = vmax.f32 %v6296, %v6298
          %v6304 = vmax.f32 %v6300, %v6302
          %v6305 = vmax.f32 %v6303, %v6304
          %6306 = vst.msk [vmem:[#allocation5 + $0x30] sm:$0xff] %vm391, %v6305
          %s6307 = scalar_lea.vmem [#allocation4], 128
          %v6308 = vld [vmem:[%s6307] ss:$2 sm:$0xff]
          %s6309 = scalar_lea.vmem [#allocation4], 129
          %v6310 = vld [vmem:[%s6309] ss:$2 sm:$0xff]
          %s6311 = scalar_lea.vmem [#allocation4], 144
          %v6312 = vld [vmem:[%s6311] ss:$2 sm:$0xff]
          %s6313 = scalar_lea.vmem [#allocation4], 145
          %v6314 = vld [vmem:[%s6313] ss:$2 sm:$0xff]
          %v6315 = vmax.f32 %v6308, %v6310
          %v6316 = vmax.f32 %v6312, %v6314
          %v6317 = vmax.f32 %v6315, %v6316
          %6318 = vst.msk [vmem:[#allocation5 + $0x38] sm:$0xff] %vm391, %v6317
          %s6319 = scalar_lea.vmem [#allocation4], 160
          %v6320 = vld [vmem:[%s6319] ss:$2 sm:$0xff]
          %s6321 = scalar_lea.vmem [#allocation4], 161
          %v6322 = vld [vmem:[%s6321] ss:$2 sm:$0xff]
          %s6323 = scalar_lea.vmem [#allocation4], 176
          %v6324 = vld [vmem:[%s6323] ss:$2 sm:$0xff]
          %s6325 = scalar_lea.vmem [#allocation4], 177
          %v6326 = vld [vmem:[%s6325] ss:$2 sm:$0xff]
          %v6327 = vmax.f32 %v6320, %v6322
          %v6328 = vmax.f32 %v6324, %v6326
          %v6329 = vmax.f32 %v6327, %v6328
          %6330 = vst.msk [vmem:[#allocation5 + $0x40] sm:$0xff] %vm391, %v6329
          %s6331 = scalar_lea.vmem [#allocation4], 192
          %v6332 = vld [vmem:[%s6331] ss:$2 sm:$0xff]
          %s6333 = scalar_lea.vmem [#allocation4], 193
          %v6334 = vld [vmem:[%s6333] ss:$2 sm:$0xff]
          %s6335 = scalar_lea.vmem [#allocation4], 208
          %v6336 = vld [vmem:[%s6335] ss:$2 sm:$0xff]
          %s6337 = scalar_lea.vmem [#allocation4], 209
          %v6338 = vld [vmem:[%s6337] ss:$2 sm:$0xff]
          %v6339 = vmax.f32 %v6332, %v6334
          %v6340 = vmax.f32 %v6336, %v6338
          %v6341 = vmax.f32 %v6339, %v6340
          %6342 = vst.msk [vmem:[#allocation5 + $0x48] sm:$0xff] %vm391, %v6341
          %s6343 = scalar_lea.vmem [#allocation4], 224
          %v6344 = vld [vmem:[%s6343] ss:$2 sm:$0xff]
          %s6345 = scalar_lea.vmem [#allocation4], 225
          %v6346 = vld [vmem:[%s6345] ss:$2 sm:$0xff]
          %s6347 = scalar_lea.vmem [#allocation4], 240
          %v6348 = vld [vmem:[%s6347] ss:$2 sm:$0xff]
          %s6349 = scalar_lea.vmem [#allocation4], 241
          %v6350 = vld [vmem:[%s6349] ss:$2 sm:$0xff]
          %v6351 = vmax.f32 %v6344, %v6346
          %v6352 = vmax.f32 %v6348, %v6350
          %v6353 = vmax.f32 %v6351, %v6352
          %6354 = vst.msk [vmem:[#allocation5 + $0x50] sm:$0xff] %vm391, %v6353
          %v6355 = vand.u32 %v2168, 7
          %v6356 = vand.u32 %v2169, 7
          %v6357 = vand.u32 %v2170, 7
          %v6358 = vand.u32 %v2171, 7
          %v6359 = vand.u32 %v2172, 7
          %v6360 = vand.u32 %v2173, 7
          %v6361 = vand.u32 %v2174, 7
          %v6362 = vand.u32 %v2175, 7
          %v6363 = vld [vmem:[#allocation5 + $0x6] sm:$0xff]
          %v6364 = vld [vmem:[#allocation5 + $0xe] sm:$0xff]
          %v6365 = vld [vmem:[#allocation5 + $0x16] sm:$0xff]
          %v6366 = vld [vmem:[#allocation5 + $0x1e] sm:$0xff]
          %v6367 = vld [vmem:[#allocation5 + $0x26] sm:$0xff]
          %v6368 = vld [vmem:[#allocation5 + $0x2e] sm:$0xff]
          %v6369 = vld [vmem:[#allocation5 + $0x36] sm:$0xff]
          %v6370 = vld [vmem:[#allocation5 + $0x3e] sm:$0xff]
          %v6371 = vld [vmem:[#allocation5 + $0x46] sm:$0xff]
          %v6372 = vld [vmem:[#allocation5 + $0x4e] sm:$0xff]
          %v6373 = vld [vmem:[#allocation5 + $0x56] sm:$0xff]
          %v6374 = vld [vmem:[#allocation5 + $0x5e] sm:$0xff]
          %v6375 = vpack.c.bf16 %v6364, %v6363
          %v6376 = vpack.c.bf16 %v6366, %v6365
          %v6377 = vpack.c.bf16 %v6368, %v6367
          %v6378 = vpack.c.bf16 %v6370, %v6369
          %v6379 = vpack.c.bf16 %v6372, %v6371
          %v6380 = vpack.c.bf16 %v6374, %v6373
          %vm6386 = vcmask 1043456
          %v6387 = vrot.slane %v6375, 4
          %v6388 = vrot.slane %v6376, 4
          %v6389 = vsel %vm6386, %v6387, %v6388
          %v6390 = vrot.slane %v6377, 4
          %v6391 = vsel %vm6386, %v6388, %v6390
          %v6392 = vrot.slane %v6378, 4
          %v6393 = vsel %vm6386, %v6390, %v6392
          %v6394 = vrot.slane %v6379, 4
          %v6395 = vsel %vm6386, %v6392, %v6394
          %6396 = vrot.lane.b32.xlu0 %v6389, 32
          %v6397 = vpop.permute.xlu0 %6396
          %6398 = vrot.lane.b32.xlu0 %v6391, 32
          %v6399 = vpop.permute.xlu0 %6398
          %6400 = vrot.lane.b32.xlu0 %v6393, 32
          %v6401 = vpop.permute.xlu0 %6400
          %6402 = vrot.lane.b32.xlu0 %v6395, 32
          %v6403 = vpop.permute.xlu0 %6402
          %6404 = vrot.lane.b32.xlu0 %v6376, 64
          %v6405 = vpop.permute.xlu0 %6404
          %6406 = vrot.lane.b32.xlu0 %v6377, 64
          %v6407 = vpop.permute.xlu0 %6406
          %6408 = vrot.lane.b32.xlu0 %v6378, 64
          %v6409 = vpop.permute.xlu0 %6408
          %6410 = vrot.lane.b32.xlu0 %v6379, 64
          %v6411 = vpop.permute.xlu0 %6410
          %v6413 = vrot.slane %v6380, 4
          %v6414 = vsel %vm6386, %v6394, %v6413
          %6415 = vrot.lane.b32.xlu0 %v6391, 96
          %v6416 = vpop.permute.xlu0 %6415
          %6417 = vrot.lane.b32.xlu0 %v6393, 96
          %v6418 = vpop.permute.xlu0 %6417
          %6419 = vrot.lane.b32.xlu0 %v6395, 96
          %v6420 = vpop.permute.xlu0 %6419
          %6421 = vrot.lane.b32.xlu0 %v6414, 96
          %v6422 = vpop.permute.xlu0 %6421
          %v6425 = vsel %vm391, %v6375, %v6397
          %v6428 = vsel %vm391, %v6376, %v6399
          %v6431 = vsel %vm391, %v6377, %v6401
          %v6434 = vsel %vm391, %v6378, %v6403
          %v6436 = vsel %vm2454, %v6425, %v6405
          %v6438 = vsel %vm2454, %v6428, %v6407
          %v6440 = vsel %vm2454, %v6431, %v6409
          %v6442 = vsel %vm2454, %v6434, %v6411
          %v6444 = vsel %vm2487, %v6436, %v6416
          %v6447 = vsel %vm2487, %v6438, %v6418
          %v6450 = vsel %vm2487, %v6440, %v6420
          %v6453 = vsel %vm2487, %v6442, %v6422
          %v6455 = vld [vmem:[%s5] sm:$0xf]
          %v6456 = vld [vmem:[%s5 + $0x4] sm:$0xf]
          %v6457 = vld [vmem:[%s5 + $0x8] sm:$0xf]
          %v6458 = vld [vmem:[%s5 + $0xc] sm:$0xf]
          %v6459 = vld [vmem:[%s5 + $0x10] sm:$0xf]
          %v6460 = vld [vmem:[%s5 + $0x14] sm:$0xf]
          %v6461 = vld [vmem:[%s5 + $0x18] sm:$0xf]
          %v6462 = vld [vmem:[%s5 + $0x1c] sm:$0xf]
          %v6463 = vld [vmem:[%s5 + $0x20] sm:$0xf]
          %v6464 = vld [vmem:[%s5 + $0x24] sm:$0xf]
          %v6465 = vld [vmem:[%s5 + $0x28] sm:$0xf]
          %v6466 = vld [vmem:[%s5 + $0x2c] sm:$0xf]
          %v6467 = vld [vmem:[%s5 + $0x30] sm:$0xf]
          %v6468 = vld [vmem:[%s5 + $0x34] sm:$0xf]
          %v6469 = vld [vmem:[%s5 + $0x38] sm:$0xf]
          %v6470 = vld [vmem:[%s5 + $0x3c] sm:$0xf]
          %v6471 = vld [vmem:[%s5 + $0x40] sm:$0xf]
          %v6472 = vld [vmem:[%s5 + $0x44] sm:$0xf]
          %v6473 = vld [vmem:[%s5 + $0x48] sm:$0xf]
          %v6474 = vld [vmem:[%s5 + $0x4c] sm:$0xf]
          %v6495 = vunpack.c.l.b16 %v6455
          %v6496 = vunpack.c.l.b16 %v6456
          %v6497 = vunpack.c.l.b16 %v6457
          %v6498 = vunpack.c.l.b16 %v6458
          %v6499 = vunpack.c.l.b16 %v6459
          %v6500 = vunpack.c.l.b16 %v6460
          %v6501 = vunpack.c.l.b16 %v6461
          %v6502 = vunpack.c.l.b16 %v6462
          %v6503 = vunpack.c.l.b16 %v6463
          %v6504 = vunpack.c.l.b16 %v6464
          %v6505 = vunpack.c.l.b16 %v6465
          %v6506 = vunpack.c.l.b16 %v6466
          %v6507 = vunpack.c.l.b16 %v6467
          %v6508 = vunpack.c.l.b16 %v6468
          %v6509 = vunpack.c.l.b16 %v6469
          %v6510 = vunpack.c.l.b16 %v6470
          %v6511 = vunpack.c.l.b16 %v6471
          %v6512 = vunpack.c.l.b16 %v6472
          %v6513 = vunpack.c.l.b16 %v6473
          %v6514 = vunpack.c.l.b16 %v6474
          %v6515 = vpack.c.b16 %v6496, %v6495
          %v6516 = vpack.c.b16 %v6498, %v6497
          %v6517 = vpack.c.b16 %v6500, %v6499
          %v6518 = vpack.c.b16 %v6502, %v6501
          %v6519 = vpack.c.b16 %v6504, %v6503
          %v6520 = vpack.c.b16 %v6506, %v6505
          %v6521 = vpack.c.b16 %v6508, %v6507
          %v6522 = vpack.c.b16 %v6510, %v6509
          %v6523 = vpack.c.b16 %v6512, %v6511
          %v6524 = vpack.c.b16 %v6514, %v6513
          %v6535 = vsel %vm391, %v6377, 0
          %v6537 = vsel %vm391, %v6378, 0
          %v6540 = vsel %vm391, %v6379, 0
          %v6543 = vsel %vm391, %v6380, 0
          %6545 = vmatprep.subr.bf16.mxu0 0
          %6546 = vmatpush1.bf16.msra.mxu0 %v6515
          %6547 = vmatprep.subr.bf16.mxu0 0
          %6548 = vmatpush1.bf16.msra.mxu0 %v6516
          %6549 = vmatprep.subr.bf16.mxu0 0
          %6550 = vmatpush1.bf16.msra.mxu0 %v6517
          %6551 = vmatprep.subr.bf16.mxu0 0
          %6552 = vmatpush1.bf16.msra.mxu0 %v6518
          %6553 = vmatprep.subr.bf16.mxu0 0
          %6554 = vmatpush1.bf16.msra.mxu0 %v6519
          %6555 = vmatprep.subr.bf16.mxu0 0
          %6556 = vmatpush1.bf16.msra.mxu0 %v6520
          %6557 = vmatprep.subr.bf16.mxu0 0
          %6558 = vmatpush1.bf16.msra.mxu0 %v6521
          %6559 = vmatprep.subr.bf16.mxu0 0
          %6560 = vmatpush1.bf16.msra.mxu0 %v6522
          %6561 = vmatprep.subr.bf16.mxu0 0
          %6562 = vmatpush1.bf16.msra.mxu0 %v6523
          %6563 = vmatprep.subr.bf16.mxu0 0
          %6564 = vmatpush1.bf16.msra.mxu0 %v6524
          %6565 = vmatprep.subr.bf16.mxu0 0
          %6566 = vmatpush1.bf16.msra.mxu0 0
          %6567 = vmatprep.subr.bf16.mxu0 0
          %6568 = vmatpush1.bf16.msra.mxu0 0
          %6569 = vmatprep.subr.bf16.mxu0 0
          %6570 = vmatpush1.bf16.msra.mxu0 0
          %6571 = vmatprep.subr.bf16.mxu0 0
          %6572 = vmatpush1.bf16.msra.mxu0 0
          %6573 = vmatprep.subr.bf16.mxu0 0
          %6574 = vmatpush1.bf16.msra.mxu0 0
          %6575 = vmatprep.subr.bf16.mxu0 0
          %6576 = vmatpush1.bf16.msra.mxu0 0
          %6577 = vmatprep.mubr.bf16.mxu0 %v6535
          %6578 = vmatmul.mubr.bf16.gmra.mrb[0].mxu0 %v6444
          %v6579 = vpop.f32.mrb[0].mxu0
          %v6580 = vadd.f32 0.0, %v6579
          %v6581 = vpop.f32.mrb[0].mxu0
          %v6582 = vpop.f32.mrb[0].mxu0
          %v6583 = vadd.f32 0.0, %v6582
          %v6584 = vpop.f32.mrb[0].mxu0
          %6585 = vmatprep.mubr.bf16.mxu0 %v6537
          %6586 = vmatmul.mubr.bf16.gmra.mrb[0].mxu0 %v6447
          %v6587 = vpop.f32.mrb[0].mxu0
          %v6588 = vadd.f32 0.0, %v6587
          %v6589 = vpop.f32.mrb[0].mxu0
          %v6590 = vpop.f32.mrb[0].mxu0
          %v6591 = vadd.f32 0.0, %v6590
          %v6592 = vpop.f32.mrb[0].mxu0
          %6593 = vmatprep.mubr.bf16.mxu0 %v6540
          %6594 = vmatmul.mubr.bf16.gmra.mrb[0].mxu0 %v6450
          %v6595 = vpop.f32.mrb[0].mxu0
          %v6596 = vadd.f32 0.0, %v6595
          %v6597 = vpop.f32.mrb[0].mxu0
          %v6598 = vpop.f32.mrb[0].mxu0
          %v6599 = vadd.f32 0.0, %v6598
          %v6600 = vpop.f32.mrb[0].mxu0
          %6601 = vmatprep.mubr.bf16.mxu0 %v6543
          %6602 = vmatmul.mubr.bf16.gmra.mrb[0].mxu0 %v6453
          %v6603 = vpop.f32.mrb[0].mxu0
          %v6604 = vadd.f32 0.0, %v6603
          %v6605 = vpop.f32.mrb[0].mxu0
          %v6606 = vpop.f32.mrb[0].mxu0
          %v6607 = vadd.f32 0.0, %v6606
          %v6608 = vpop.f32.mrb[0].mxu0
          %6609 = vdwg.mxu0
          %v6610 = vadd.s32 %v6355, 4294967294
          %v6611 = vadd.s32 %v6356, 4294967294
          %v6612 = vadd.s32 %v6357, 4294967294
          %v6613 = vadd.s32 %v6358, 4294967294
          %v6614 = vadd.s32 %v6359, 4294967294
          %v6615 = vadd.s32 %v6360, 4294967294
          %v6616 = vadd.s32 %v6361, 4294967294
          %v6617 = vadd.s32 %v6362, 4294967294
          %vm6618 = vcmp.ge.s32.totalorder %v6610, 0
          %vm6619 = vcmp.ge.s32.totalorder %v6611, 0
          %vm6620 = vcmp.ge.s32.totalorder %v6612, 0
          %vm6621 = vcmp.ge.s32.totalorder %v6613, 0
          %vm6622 = vcmp.ge.s32.totalorder %v6614, 0
          %vm6623 = vcmp.ge.s32.totalorder %v6615, 0
          %vm6624 = vcmp.ge.s32.totalorder %v6616, 0
          %vm6625 = vcmp.ge.s32.totalorder %v6617, 0
          %vm6626 = vcmp.lt.s32.totalorder %v6610, 8
          %vm6627 = vcmp.lt.s32.totalorder %v6611, 8
          %vm6628 = vcmp.lt.s32.totalorder %v6612, 8
          %vm6629 = vcmp.lt.s32.totalorder %v6613, 8
          %vm6630 = vcmp.lt.s32.totalorder %v6614, 8
          %vm6631 = vcmp.lt.s32.totalorder %v6615, 8
          %vm6632 = vcmp.lt.s32.totalorder %v6616, 8
          %vm6633 = vcmp.lt.s32.totalorder %v6617, 8
          %vm6634 = vmand %vm6618, %vm6626
          %vm6635 = vmand %vm6619, %vm6627
          %vm6636 = vmand %vm6620, %vm6628
          %vm6637 = vmand %vm6621, %vm6629
          %vm6638 = vmand %vm6622, %vm6630
          %vm6639 = vmand %vm6623, %vm6631
          %vm6640 = vmand %vm6624, %vm6632
          %vm6641 = vmand %vm6625, %vm6633
          %v6642 = vsel %vm6634, 1, 0
          %v6643 = vsel %vm6635, 1, 0
          %v6644 = vsel %vm6636, 1, 0
          %v6645 = vsel %vm6637, 1, 0
          %v6646 = vsel %vm6638, 1, 0
          %v6647 = vsel %vm6639, 1, 0
          %v6648 = vsel %vm6640, 1, 0
          %v6649 = vsel %vm6641, 1, 0
          %v6650 = vcvt.s32.f32 %v6642
          %v6651 = vcvt.s32.f32 %v6643
          %v6652 = vcvt.s32.f32 %v6644
          %v6653 = vcvt.s32.f32 %v6645
          %v6654 = vcvt.s32.f32 %v6646
          %v6655 = vcvt.s32.f32 %v6647
          %v6656 = vcvt.s32.f32 %v6648
          %v6657 = vcvt.s32.f32 %v6649
          %v6658 = vmul.f32 %v6580, %v6650
          %v6659 = vmul.f32 %v6583, %v6651
          %v6660 = vmul.f32 %v6588, %v6652
          %v6661 = vmul.f32 %v6591, %v6653
          %v6662 = vmul.f32 %v6596, %v6654
          %v6663 = vmul.f32 %v6599, %v6655
          %v6664 = vmul.f32 %v6604, %v6656
          %v6665 = vmul.f32 %v6607, %v6657
          %v6666 = vadd.f32 %v6658, 0.0
          %v6667 = vadd.f32 %v6659, 0.0
          %v6668 = vadd.f32 %v6660, 0.0
          %v6669 = vadd.f32 %v6661, 0.0
          %v6670 = vadd.f32 %v6662, 0.0
          %v6671 = vadd.f32 %v6663, 0.0
          %v6672 = vadd.f32 %v6664, 0.0
          %v6673 = vadd.f32 %v6665, 0.0
          %v6674 = vld [vmem:[#allocation5 + $0x7] sm:$0xff]
          %v6675 = vld [vmem:[#allocation5 + $0xf] sm:$0xff]
          %v6676 = vld [vmem:[#allocation5 + $0x17] sm:$0xff]
          %v6677 = vld [vmem:[#allocation5 + $0x1f] sm:$0xff]
          %v6678 = vld [vmem:[#allocation5 + $0x27] sm:$0xff]
          %v6679 = vld [vmem:[#allocation5 + $0x2f] sm:$0xff]
          %v6680 = vld [vmem:[#allocation5 + $0x37] sm:$0xff]
          %v6681 = vld [vmem:[#allocation5 + $0x3f] sm:$0xff]
          %v6682 = vld [vmem:[#allocation5 + $0x47] sm:$0xff]
          %v6683 = vld [vmem:[#allocation5 + $0x4f] sm:$0xff]
          %v6684 = vld [vmem:[#allocation5 + $0x57] sm:$0xff]
          %v6685 = vld [vmem:[#allocation5 + $0x5f] sm:$0xff]
          %v6686 = vpack.c.bf16 %v6675, %v6674
          %v6687 = vpack.c.bf16 %v6677, %v6676
          %v6688 = vpack.c.bf16 %v6679, %v6678
          %v6689 = vpack.c.bf16 %v6681, %v6680
          %v6690 = vpack.c.bf16 %v6683, %v6682
          %v6691 = vpack.c.bf16 %v6685, %v6684
          %v6697 = vrot.slane %v6686, 4
          %v6698 = vrot.slane %v6687, 4
          %v6699 = vsel %vm6386, %v6697, %v6698
          %v6700 = vrot.slane %v6688, 4
          %v6701 = vsel %vm6386, %v6698, %v6700
          %v6702 = vrot.slane %v6689, 4
          %v6703 = vsel %vm6386, %v6700, %v6702
          %v6704 = vrot.slane %v6690, 4
          %v6705 = vsel %vm6386, %v6702, %v6704
          %6706 = vrot.lane.b32.xlu0 %v6699, 32
          %v6707 = vpop.permute.xlu0 %6706
          %6708 = vrot.lane.b32.xlu0 %v6701, 32
          %v6709 = vpop.permute.xlu0 %6708
          %6710 = vrot.lane.b32.xlu0 %v6703, 32
          %v6711 = vpop.permute.xlu0 %6710
          %6712 = vrot.lane.b32.xlu0 %v6705, 32
          %v6713 = vpop.permute.xlu0 %6712
          %6714 = vrot.lane.b32.xlu0 %v6687, 64
          %v6715 = vpop.permute.xlu0 %6714
          %6716 = vrot.lane.b32.xlu0 %v6688, 64
          %v6717 = vpop.permute.xlu0 %6716
          %6718 = vrot.lane.b32.xlu0 %v6689, 64
          %v6719 = vpop.permute.xlu0 %6718
          %6720 = vrot.lane.b32.xlu0 %v6690, 64
          %v6721 = vpop.permute.xlu0 %6720
          %v6723 = vrot.slane %v6691, 4
          %v6724 = vsel %vm6386, %v6704, %v6723
          %6725 = vrot.lane.b32.xlu0 %v6701, 96
          %v6726 = vpop.permute.xlu0 %6725
          %6727 = vrot.lane.b32.xlu0 %v6703, 96
          %v6728 = vpop.permute.xlu0 %6727
          %6729 = vrot.lane.b32.xlu0 %v6705, 96
          %v6730 = vpop.permute.xlu0 %6729
          %6731 = vrot.lane.b32.xlu0 %v6724, 96
          %v6732 = vpop.permute.xlu0 %6731
          %v6735 = vsel %vm391, %v6686, %v6707
          %v6738 = vsel %vm391, %v6687, %v6709
          %v6741 = vsel %vm391, %v6688, %v6711
          %v6744 = vsel %vm391, %v6689, %v6713
          %v6746 = vsel %vm2454, %v6735, %v6715
          %v6748 = vsel %vm2454, %v6738, %v6717
          %v6750 = vsel %vm2454, %v6741, %v6719
          %v6752 = vsel %vm2454, %v6744, %v6721
          %v6754 = vsel %vm2487, %v6746, %v6726
          %v6757 = vsel %vm2487, %v6748, %v6728
          %v6760 = vsel %vm2487, %v6750, %v6730
          %v6763 = vsel %vm2487, %v6752, %v6732
          %s6765 = scalar_lea.vmem %s5, 80
          %v6766 = vld [vmem:[%s6765] sm:$0xf]
          %v6767 = vld [vmem:[%s6765 + $0x4] sm:$0xf]
          %v6768 = vld [vmem:[%s6765 + $0x8] sm:$0xf]
          %v6769 = vld [vmem:[%s6765 + $0xc] sm:$0xf]
          %v6770 = vld [vmem:[%s6765 + $0x10] sm:$0xf]
          %v6771 = vld [vmem:[%s6765 + $0x14] sm:$0xf]
          %v6772 = vld [vmem:[%s6765 + $0x18] sm:$0xf]
          %v6773 = vld [vmem:[%s6765 + $0x1c] sm:$0xf]
          %v6774 = vld [vmem:[%s6765 + $0x20] sm:$0xf]
          %v6775 = vld [vmem:[%s6765 + $0x24] sm:$0xf]
          %v6776 = vld [vmem:[%s6765 + $0x28] sm:$0xf]
          %v6777 = vld [vmem:[%s6765 + $0x2c] sm:$0xf]
          %v6778 = vld [vmem:[%s6765 + $0x30] sm:$0xf]
          %v6779 = vld [vmem:[%s6765 + $0x34] sm:$0xf]
          %v6780 = vld [vmem:[%s6765 + $0x38] sm:$0xf]
          %v6781 = vld [vmem:[%s6765 + $0x3c] sm:$0xf]
          %v6782 = vld [vmem:[%s6765 + $0x40] sm:$0xf]
          %v6783 = vld [vmem:[%s6765 + $0x44] sm:$0xf]
          %v6784 = vld [vmem:[%s6765 + $0x48] sm:$0xf]
          %v6785 = vld [vmem:[%s6765 + $0x4c] sm:$0xf]
          %v6806 = vunpack.c.l.b16 %v6766
          %v6807 = vunpack.c.l.b16 %v6767
          %v6808 = vunpack.c.l.b16 %v6768
          %v6809 = vunpack.c.l.b16 %v6769
          %v6810 = vunpack.c.l.b16 %v6770
          %v6811 = vunpack.c.l.b16 %v6771
          %v6812 = vunpack.c.l.b16 %v6772
          %v6813 = vunpack.c.l.b16 %v6773
          %v6814 = vunpack.c.l.b16 %v6774
          %v6815 = vunpack.c.l.b16 %v6775
          %v6816 = vunpack.c.l.b16 %v6776
          %v6817 = vunpack.c.l.b16 %v6777
          %v6818 = vunpack.c.l.b16 %v6778
          %v6819 = vunpack.c.l.b16 %v6779
          %v6820 = vunpack.c.l.b16 %v6780
          %v6821 = vunpack.c.l.b16 %v6781
          %v6822 = vunpack.c.l.b16 %v6782
          %v6823 = vunpack.c.l.b16 %v6783
          %v6824 = vunpack.c.l.b16 %v6784
          %v6825 = vunpack.c.l.b16 %v6785
          %v6826 = vpack.c.b16 %v6807, %v6806
          %v6827 = vpack.c.b16 %v6809, %v6808
          %v6828 = vpack.c.b16 %v6811, %v6810
          %v6829 = vpack.c.b16 %v6813, %v6812
          %v6830 = vpack.c.b16 %v6815, %v6814
          %v6831 = vpack.c.b16 %v6817, %v6816
          %v6832 = vpack.c.b16 %v6819, %v6818
          %v6833 = vpack.c.b16 %v6821, %v6820
          %v6834 = vpack.c.b16 %v6823, %v6822
          %v6835 = vpack.c.b16 %v6825, %v6824
          %v6846 = vsel %vm391, %v6688, 0
          %v6848 = vsel %vm391, %v6689, 0
          %v6851 = vsel %vm391, %v6690, 0
          %v6854 = vsel %vm391, %v6691, 0
          %6856 = vmatprep.subr.bf16.mxu0 0
          %6857 = vmatpush1.bf16.msra.mxu0 %v6826
          %6858 = vmatprep.subr.bf16.mxu0 0
          %6859 = vmatpush1.bf16.msra.mxu0 %v6827
          %6860 = vmatprep.subr.bf16.mxu0 0
          %6861 = vmatpush1.bf16.msra.mxu0 %v6828
          %6862 = vmatprep.subr.bf16.mxu0 0
          %6863 = vmatpush1.bf16.msra.mxu0 %v6829
          %6864 = vmatprep.subr.bf16.mxu0 0
          %6865 = vmatpush1.bf16.msra.mxu0 %v6830
          %6866 = vmatprep.subr.bf16.mxu0 0
          %6867 = vmatpush1.bf16.msra.mxu0 %v6831
          %6868 = vmatprep.subr.bf16.mxu0 0
          %6869 = vmatpush1.bf16.msra.mxu0 %v6832
          %6870 = vmatprep.subr.bf16.mxu0 0
          %6871 = vmatpush1.bf16.msra.mxu0 %v6833
          %6872 = vmatprep.subr.bf16.mxu0 0
          %6873 = vmatpush1.bf16.msra.mxu0 %v6834
          %6874 = vmatprep.subr.bf16.mxu0 0
          %6875 = vmatpush1.bf16.msra.mxu0 %v6835
          %6876 = vmatprep.subr.bf16.mxu0 0
          %6877 = vmatpush1.bf16.msra.mxu0 0
          %6878 = vmatprep.subr.bf16.mxu0 0
          %6879 = vmatpush1.bf16.msra.mxu0 0
          %6880 = vmatprep.subr.bf16.mxu0 0
          %6881 = vmatpush1.bf16.msra.mxu0 0
          %6882 = vmatprep.subr.bf16.mxu0 0
          %6883 = vmatpush1.bf16.msra.mxu0 0
          %6884 = vmatprep.subr.bf16.mxu0 0
          %6885 = vmatpush1.bf16.msra.mxu0 0
          %6886 = vmatprep.subr.bf16.mxu0 0
          %6887 = vmatpush1.bf16.msra.mxu0 0
          %6888 = vmatprep.mubr.bf16.mxu0 %v6846
          %6889 = vmatmul.mubr.bf16.gmra.mrb[0].mxu0 %v6754
          %v6890 = vpop.f32.mrb[0].mxu0
          %v6891 = vadd.f32 0.0, %v6890
          %v6892 = vpop.f32.mrb[0].mxu0
          %v6893 = vpop.f32.mrb[0].mxu0
          %v6894 = vadd.f32 0.0, %v6893
          %v6895 = vpop.f32.mrb[0].mxu0
          %6896 = vmatprep.mubr.bf16.mxu0 %v6848
          %6897 = vmatmul.mubr.bf16.gmra.mrb[0].mxu0 %v6757
          %v6898 = vpop.f32.mrb[0].mxu0
          %v6899 = vadd.f32 0.0, %v6898
          %v6900 = vpop.f32.mrb[0].mxu0
          %v6901 = vpop.f32.mrb[0].mxu0
          %v6902 = vadd.f32 0.0, %v6901
          %v6903 = vpop.f32.mrb[0].mxu0
          %6904 = vmatprep.mubr.bf16.mxu0 %v6851
          %6905 = vmatmul.mubr.bf16.gmra.mrb[0].mxu0 %v6760
          %v6906 = vpop.f32.mrb[0].mxu0
          %v6907 = vadd.f32 0.0, %v6906
          %v6908 = vpop.f32.mrb[0].mxu0
          %v6909 = vpop.f32.mrb[0].mxu0
          %v6910 = vadd.f32 0.0, %v6909
          %v6911 = vpop.f32.mrb[0].mxu0
          %6912 = vmatprep.mubr.bf16.mxu0 %v6854
          %6913 = vmatmul.mubr.bf16.gmra.mrb[0].mxu0 %v6763
          %v6914 = vpop.f32.mrb[0].mxu0
          %v6915 = vadd.f32 0.0, %v6914
          %v6916 = vpop.f32.mrb[0].mxu0
          %v6917 = vpop.f32.mrb[0].mxu0
          %v6918 = vadd.f32 0.0, %v6917
          %v6919 = vpop.f32.mrb[0].mxu0
          %6920 = vdwg.mxu0
          %v6921 = vadd.s32 %v6355, 4294967295
          %v6922 = vadd.s32 %v6356, 4294967295
          %v6923 = vadd.s32 %v6357, 4294967295
          %v6924 = vadd.s32 %v6358, 4294967295
          %v6925 = vadd.s32 %v6359, 4294967295
          %v6926 = vadd.s32 %v6360, 4294967295
          %v6927 = vadd.s32 %v6361, 4294967295
          %v6928 = vadd.s32 %v6362, 4294967295
          %vm6929 = vcmp.ge.s32.totalorder %v6921, 0
          %vm6930 = vcmp.ge.s32.totalorder %v6922, 0
          %vm6931 = vcmp.ge.s32.totalorder %v6923, 0
          %vm6932 = vcmp.ge.s32.totalorder %v6924, 0
          %vm6933 = vcmp.ge.s32.totalorder %v6925, 0
          %vm6934 = vcmp.ge.s32.totalorder %v6926, 0
          %vm6935 = vcmp.ge.s32.totalorder %v6927, 0
          %vm6936 = vcmp.ge.s32.totalorder %v6928, 0
          %vm6937 = vcmp.lt.s32.totalorder %v6921, 8
          %vm6938 = vcmp.lt.s32.totalorder %v6922, 8
          %vm6939 = vcmp.lt.s32.totalorder %v6923, 8
          %vm6940 = vcmp.lt.s32.totalorder %v6924, 8
          %vm6941 = vcmp.lt.s32.totalorder %v6925, 8
          %vm6942 = vcmp.lt.s32.totalorder %v6926, 8
          %vm6943 = vcmp.lt.s32.totalorder %v6927, 8
          %vm6944 = vcmp.lt.s32.totalorder %v6928, 8
          %vm6945 = vmand %vm6929, %vm6937
          %vm6946 = vmand %vm6930, %vm6938
          %vm6947 = vmand %vm6931, %vm6939
          %vm6948 = vmand %vm6932, %vm6940
          %vm6949 = vmand %vm6933, %vm6941
          %vm6950 = vmand %vm6934, %vm6942
          %vm6951 = vmand %vm6935, %vm6943
          %vm6952 = vmand %vm6936, %vm6944
          %v6953 = vsel %vm6945, 1, 0
          %v6954 = vsel %vm6946, 1, 0
          %v6955 = vsel %vm6947, 1, 0
          %v6956 = vsel %vm6948, 1, 0
          %v6957 = vsel %vm6949, 1, 0
          %v6958 = vsel %vm6950, 1, 0
          %v6959 = vsel %vm6951, 1, 0
          %v6960 = vsel %vm6952, 1, 0
          %v6961 = vcvt.s32.f32 %v6953
          %v6962 = vcvt.s32.f32 %v6954
          %v6963 = vcvt.s32.f32 %v6955
          %v6964 = vcvt.s32.f32 %v6956
          %v6965 = vcvt.s32.f32 %v6957
          %v6966 = vcvt.s32.f32 %v6958
          %v6967 = vcvt.s32.f32 %v6959
          %v6968 = vcvt.s32.f32 %v6960
          %v6969 = vmul.f32 %v6891, %v6961
          %v6970 = vmul.f32 %v6894, %v6962
          %v6971 = vmul.f32 %v6899, %v6963
          %v6972 = vmul.f32 %v6902, %v6964
          %v6973 = vmul.f32 %v6907, %v6965
          %v6974 = vmul.f32 %v6910, %v6966
          %v6975 = vmul.f32 %v6915, %v6967
          %v6976 = vmul.f32 %v6918, %v6968
          %v6977 = vadd.f32 %v6666, %v6969
          %v6978 = vadd.f32 %v6667, %v6970
          %v6979 = vadd.f32 %v6668, %v6971
          %v6980 = vadd.f32 %v6669, %v6972
          %v6981 = vadd.f32 %v6670, %v6973
          %v6982 = vadd.f32 %v6671, %v6974
          %v6983 = vadd.f32 %v6672, %v6975
          %v6984 = vadd.f32 %v6673, %v6976
          %v6985 = vld [vmem:[#allocation5 + $0x8] sm:$0xff]
          %v6986 = vld [vmem:[#allocation5 + $0x10] sm:$0xff]
          %v6987 = vld [vmem:[#allocation5 + $0x18] sm:$0xff]
          %v6988 = vld [vmem:[#allocation5 + $0x20] sm:$0xff]
          %v6989 = vld [vmem:[#allocation5 + $0x28] sm:$0xff]
          %v6990 = vld [vmem:[#allocation5 + $0x30] sm:$0xff]
          %v6991 = vld [vmem:[#allocation5 + $0x38] sm:$0xff]
          %v6992 = vld [vmem:[#allocation5 + $0x40] sm:$0xff]
          %v6993 = vld [vmem:[#allocation5 + $0x48] sm:$0xff]
          %v6994 = vld [vmem:[#allocation5 + $0x50] sm:$0xff]
          %v6995 = vld [vmem:[#allocation5 + $0x58] sm:$0xff]
          %v6996 = vld [vmem:[#allocation5 + $0x60] sm:$0xff]
          %v6997 = vpack.c.bf16 %v6986, %v6985
          %v6998 = vpack.c.bf16 %v6988, %v6987
          %v6999 = vpack.c.bf16 %v6990, %v6989
          %v7000 = vpack.c.bf16 %v6992, %v6991
          %v7001 = vpack.c.bf16 %v6994, %v6993
          %v7002 = vpack.c.bf16 %v6996, %v6995
          %v7008 = vrot.slane %v6997, 4
          %v7009 = vrot.slane %v6998, 4
          %v7010 = vsel %vm6386, %v7008, %v7009
          %v7011 = vrot.slane %v6999, 4
          %v7012 = vsel %vm6386, %v7009, %v7011
          %v7013 = vrot.slane %v7000, 4
          %v7014 = vsel %vm6386, %v7011, %v7013
          %v7015 = vrot.slane %v7001, 4
          %v7016 = vsel %vm6386, %v7013, %v7015
          %7017 = vrot.lane.b32.xlu0 %v7010, 32
          %v7018 = vpop.permute.xlu0 %7017
          %7019 = vrot.lane.b32.xlu0 %v7012, 32
          %v7020 = vpop.permute.xlu0 %7019
          %7021 = vrot.lane.b32.xlu0 %v7014, 32
          %v7022 = vpop.permute.xlu0 %7021
          %7023 = vrot.lane.b32.xlu0 %v7016, 32
          %v7024 = vpop.permute.xlu0 %7023
          %7025 = vrot.lane.b32.xlu0 %v6998, 64
          %v7026 = vpop.permute.xlu0 %7025
          %7027 = vrot.lane.b32.xlu0 %v6999, 64
          %v7028 = vpop.permute.xlu0 %7027
          %7029 = vrot.lane.b32.xlu0 %v7000, 64
          %v7030 = vpop.permute.xlu0 %7029
          %7031 = vrot.lane.b32.xlu0 %v7001, 64
          %v7032 = vpop.permute.xlu0 %7031
          %v7034 = vrot.slane %v7002, 4
          %v7035 = vsel %vm6386, %v7015, %v7034
          %7036 = vrot.lane.b32.xlu0 %v7012, 96
          %v7037 = vpop.permute.xlu0 %7036
          %7038 = vrot.lane.b32.xlu0 %v7014, 96
          %v7039 = vpop.permute.xlu0 %7038
          %7040 = vrot.lane.b32.xlu0 %v7016, 96
          %v7041 = vpop.permute.xlu0 %7040
          %7042 = vrot.lane.b32.xlu0 %v7035, 96
          %v7043 = vpop.permute.xlu0 %7042
          %v7046 = vsel %vm391, %v6997, %v7018
          %v7049 = vsel %vm391, %v6998, %v7020
          %v7052 = vsel %vm391, %v6999, %v7022
          %v7055 = vsel %vm391, %v7000, %v7024
          %v7057 = vsel %vm2454, %v7046, %v7026
          %v7059 = vsel %vm2454, %v7049, %v7028
          %v7061 = vsel %vm2454, %v7052, %v7030
          %v7063 = vsel %vm2454, %v7055, %v7032
          %v7065 = vsel %vm2487, %v7057, %v7037
          %v7068 = vsel %vm2487, %v7059, %v7039
          %v7071 = vsel %vm2487, %v7061, %v7041
          %v7074 = vsel %vm2487, %v7063, %v7043
          %s7076 = scalar_lea.vmem %s5, 160
          %v7077 = vld [vmem:[%s7076] sm:$0xf]
          %v7078 = vld [vmem:[%s7076 + $0x4] sm:$0xf]
          %v7079 = vld [vmem:[%s7076 + $0x8] sm:$0xf]
          %v7080 = vld [vmem:[%s7076 + $0xc] sm:$0xf]
          %v7081 = vld [vmem:[%s7076 + $0x10] sm:$0xf]
          %v7082 = vld [vmem:[%s7076 + $0x14] sm:$0xf]
          %v7083 = vld [vmem:[%s7076 + $0x18] sm:$0xf]
          %v7084 = vld [vmem:[%s7076 + $0x1c] sm:$0xf]
          %v7085 = vld [vmem:[%s7076 + $0x20] sm:$0xf]
          %v7086 = vld [vmem:[%s7076 + $0x24] sm:$0xf]
          %v7087 = vld [vmem:[%s7076 + $0x28] sm:$0xf]
          %v7088 = vld [vmem:[%s7076 + $0x2c] sm:$0xf]
          %v7089 = vld [vmem:[%s7076 + $0x30] sm:$0xf]
          %v7090 = vld [vmem:[%s7076 + $0x34] sm:$0xf]
          %v7091 = vld [vmem:[%s7076 + $0x38] sm:$0xf]
          %v7092 = vld [vmem:[%s7076 + $0x3c] sm:$0xf]
          %v7093 = vld [vmem:[%s7076 + $0x40] sm:$0xf]
          %v7094 = vld [vmem:[%s7076 + $0x44] sm:$0xf]
          %v7095 = vld [vmem:[%s7076 + $0x48] sm:$0xf]
          %v7096 = vld [vmem:[%s7076 + $0x4c] sm:$0xf]
          %v7117 = vunpack.c.l.b16 %v7077
          %v7118 = vunpack.c.l.b16 %v7078
          %v7119 = vunpack.c.l.b16 %v7079
          %v7120 = vunpack.c.l.b16 %v7080
          %v7121 = vunpack.c.l.b16 %v7081
          %v7122 = vunpack.c.l.b16 %v7082
          %v7123 = vunpack.c.l.b16 %v7083
          %v7124 = vunpack.c.l.b16 %v7084
          %v7125 = vunpack.c.l.b16 %v7085
          %v7126 = vunpack.c.l.b16 %v7086
          %v7127 = vunpack.c.l.b16 %v7087
          %v7128 = vunpack.c.l.b16 %v7088
          %v7129 = vunpack.c.l.b16 %v7089
          %v7130 = vunpack.c.l.b16 %v7090
          %v7131 = vunpack.c.l.b16 %v7091
          %v7132 = vunpack.c.l.b16 %v7092
          %v7133 = vunpack.c.l.b16 %v7093
          %v7134 = vunpack.c.l.b16 %v7094
          %v7135 = vunpack.c.l.b16 %v7095
          %v7136 = vunpack.c.l.b16 %v7096
          %v7137 = vpack.c.b16 %v7118, %v7117
          %v7138 = vpack.c.b16 %v7120, %v7119
          %v7139 = vpack.c.b16 %v7122, %v7121
          %v7140 = vpack.c.b16 %v7124, %v7123
          %v7141 = vpack.c.b16 %v7126, %v7125
          %v7142 = vpack.c.b16 %v7128, %v7127
          %v7143 = vpack.c.b16 %v7130, %v7129
          %v7144 = vpack.c.b16 %v7132, %v7131
          %v7145 = vpack.c.b16 %v7134, %v7133
          %v7146 = vpack.c.b16 %v7136, %v7135
          %v7157 = vsel %vm391, %v6999, 0
          %v7159 = vsel %vm391, %v7000, 0
          %v7162 = vsel %vm391, %v7001, 0
          %v7165 = vsel %vm391, %v7002, 0
          %7167 = vmatprep.subr.bf16.mxu0 0
          %7168 = vmatpush1.bf16.msra.mxu0 %v7137
          %7169 = vmatprep.subr.bf16.mxu0 0
          %7170 = vmatpush1.bf16.msra.mxu0 %v7138
          %7171 = vmatprep.subr.bf16.mxu0 0
          %7172 = vmatpush1.bf16.msra.mxu0 %v7139
          %7173 = vmatprep.subr.bf16.mxu0 0
          %7174 = vmatpush1.bf16.msra.mxu0 %v7140
          %7175 = vmatprep.subr.bf16.mxu0 0
          %7176 = vmatpush1.bf16.msra.mxu0 %v7141
          %7177 = vmatprep.subr.bf16.mxu0 0
          %7178 = vmatpush1.bf16.msra.mxu0 %v7142
          %7179 = vmatprep.subr.bf16.mxu0 0
          %7180 = vmatpush1.bf16.msra.mxu0 %v7143
          %7181 = vmatprep.subr.bf16.mxu0 0
          %7182 = vmatpush1.bf16.msra.mxu0 %v7144
          %7183 = vmatprep.subr.bf16.mxu0 0
          %7184 = vmatpush1.bf16.msra.mxu0 %v7145
          %7185 = vmatprep.subr.bf16.mxu0 0
          %7186 = vmatpush1.bf16.msra.mxu0 %v7146
          %7187 = vmatprep.subr.bf16.mxu0 0
          %7188 = vmatpush1.bf16.msra.mxu0 0
          %7189 = vmatprep.subr.bf16.mxu0 0
          %7190 = vmatpush1.bf16.msra.mxu0 0
          %7191 = vmatprep.subr.bf16.mxu0 0
          %7192 = vmatpush1.bf16.msra.mxu0 0
          %7193 = vmatprep.subr.bf16.mxu0 0
          %7194 = vmatpush1.bf16.msra.mxu0 0
          %7195 = vmatprep.subr.bf16.mxu0 0
          %7196 = vmatpush1.bf16.msra.mxu0 0
          %7197 = vmatprep.subr.bf16.mxu0 0
          %7198 = vmatpush1.bf16.msra.mxu0 0
          %7199 = vmatprep.mubr.bf16.mxu0 %v7157
          %7200 = vmatmul.mubr.bf16.gmra.mrb[0].mxu0 %v7065
          %v7201 = vpop.f32.mrb[0].mxu0
          %v7202 = vadd.f32 0.0, %v7201
          %v7203 = vpop.f32.mrb[0].mxu0
          %v7204 = vpop.f32.mrb[0].mxu0
          %v7205 = vadd.f32 0.0, %v7204
          %v7206 = vpop.f32.mrb[0].mxu0
          %7207 = vmatprep.mubr.bf16.mxu0 %v7159
          %7208 = vmatmul.mubr.bf16.gmra.mrb[0].mxu0 %v7068
          %v7209 = vpop.f32.mrb[0].mxu0
          %v7210 = vadd.f32 0.0, %v7209
          %v7211 = vpop.f32.mrb[0].mxu0
          %v7212 = vpop.f32.mrb[0].mxu0
          %v7213 = vadd.f32 0.0, %v7212
          %v7214 = vpop.f32.mrb[0].mxu0
          %7215 = vmatprep.mubr.bf16.mxu0 %v7162
          %7216 = vmatmul.mubr.bf16.gmra.mrb[0].mxu0 %v7071
          %v7217 = vpop.f32.mrb[0].mxu0
          %v7218 = vadd.f32 0.0, %v7217
          %v7219 = vpop.f32.mrb[0].mxu0
          %v7220 = vpop.f32.mrb[0].mxu0
          %v7221 = vadd.f32 0.0, %v7220
          %v7222 = vpop.f32.mrb[0].mxu0
          %7223 = vmatprep.mubr.bf16.mxu0 %v7165
          %7224 = vmatmul.mubr.bf16.gmra.mrb[0].mxu0 %v7074
          %v7225 = vpop.f32.mrb[0].mxu0
          %v7226 = vadd.f32 0.0, %v7225
          %v7227 = vpop.f32.mrb[0].mxu0
          %v7228 = vpop.f32.mrb[0].mxu0
          %v7229 = vadd.f32 0.0, %v7228
          %v7230 = vpop.f32.mrb[0].mxu0
          %7231 = vdwg.mxu0
          %v7232 = vadd.f32 %v6977, %v7202
          %v7233 = vadd.f32 %v6978, %v7205
          %v7234 = vadd.f32 %v6979, %v7210
          %v7235 = vadd.f32 %v6980, %v7213
          %v7236 = vadd.f32 %v6981, %v7218
          %v7237 = vadd.f32 %v6982, %v7221
          %v7238 = vadd.f32 %v6983, %v7226
          %v7239 = vadd.f32 %v6984, %v7229
          %v7240 = vld [vmem:[#allocation5 + $0x9] sm:$0xff]
          %v7241 = vld [vmem:[#allocation5 + $0x11] sm:$0xff]
          %v7242 = vld [vmem:[#allocation5 + $0x19] sm:$0xff]
          %v7243 = vld [vmem:[#allocation5 + $0x21] sm:$0xff]
          %v7244 = vld [vmem:[#allocation5 + $0x29] sm:$0xff]
          %v7245 = vld [vmem:[#allocation5 + $0x31] sm:$0xff]
          %v7246 = vld [vmem:[#allocation5 + $0x39] sm:$0xff]
          %v7247 = vld [vmem:[#allocation5 + $0x41] sm:$0xff]
          %v7248 = vld [vmem:[#allocation5 + $0x49] sm:$0xff]
          %v7249 = vld [vmem:[#allocation5 + $0x51] sm:$0xff]
          %v7250 = vld [vmem:[#allocation5 + $0x59] sm:$0xff]
          %v7251 = vld [vmem:[#allocation5 + $0x61] sm:$0xff]
          %v7252 = vpack.c.bf16 %v7241, %v7240
          %v7253 = vpack.c.bf16 %v7243, %v7242
          %v7254 = vpack.c.bf16 %v7245, %v7244
          %v7255 = vpack.c.bf16 %v7247, %v7246
          %v7256 = vpack.c.bf16 %v7249, %v7248
          %v7257 = vpack.c.bf16 %v7251, %v7250
          %v7263 = vrot.slane %v7252, 4
          %v7264 = vrot.slane %v7253, 4
          %v7265 = vsel %vm6386, %v7263, %v7264
          %v7266 = vrot.slane %v7254, 4
          %v7267 = vsel %vm6386, %v7264, %v7266
          %v7268 = vrot.slane %v7255, 4
          %v7269 = vsel %vm6386, %v7266, %v7268
          %v7270 = vrot.slane %v7256, 4
          %v7271 = vsel %vm6386, %v7268, %v7270
          %7272 = vrot.lane.b32.xlu0 %v7265, 32
          %v7273 = vpop.permute.xlu0 %7272
          %7274 = vrot.lane.b32.xlu0 %v7267, 32
          %v7275 = vpop.permute.xlu0 %7274
          %7276 = vrot.lane.b32.xlu0 %v7269, 32
          %v7277 = vpop.permute.xlu0 %7276
          %7278 = vrot.lane.b32.xlu0 %v7271, 32
          %v7279 = vpop.permute.xlu0 %7278
          %7280 = vrot.lane.b32.xlu0 %v7253, 64
          %v7281 = vpop.permute.xlu0 %7280
          %7282 = vrot.lane.b32.xlu0 %v7254, 64
          %v7283 = vpop.permute.xlu0 %7282
          %7284 = vrot.lane.b32.xlu0 %v7255, 64
          %v7285 = vpop.permute.xlu0 %7284
          %7286 = vrot.lane.b32.xlu0 %v7256, 64
          %v7287 = vpop.permute.xlu0 %7286
          %v7289 = vrot.slane %v7257, 4
          %v7290 = vsel %vm6386, %v7270, %v7289
          %7291 = vrot.lane.b32.xlu0 %v7267, 96
          %v7292 = vpop.permute.xlu0 %7291
          %7293 = vrot.lane.b32.xlu0 %v7269, 96
          %v7294 = vpop.permute.xlu0 %7293
          %7295 = vrot.lane.b32.xlu0 %v7271, 96
          %v7296 = vpop.permute.xlu0 %7295
          %7297 = vrot.lane.b32.xlu0 %v7290, 96
          %v7298 = vpop.permute.xlu0 %7297
          %v7301 = vsel %vm391, %v7252, %v7273
          %v7304 = vsel %vm391, %v7253, %v7275
          %v7307 = vsel %vm391, %v7254, %v7277
          %v7310 = vsel %vm391, %v7255, %v7279
          %v7312 = vsel %vm2454, %v7301, %v7281
          %v7314 = vsel %vm2454, %v7304, %v7283
          %v7316 = vsel %vm2454, %v7307, %v7285
          %v7318 = vsel %vm2454, %v7310, %v7287
          %v7320 = vsel %vm2487, %v7312, %v7292
          %v7323 = vsel %vm2487, %v7314, %v7294
          %v7326 = vsel %vm2487, %v7316, %v7296
          %v7329 = vsel %vm2487, %v7318, %v7298
          %s7331 = scalar_lea.vmem %s5, 240
          %v7332 = vld [vmem:[%s7331] sm:$0xf]
          %v7333 = vld [vmem:[%s7331 + $0x4] sm:$0xf]
          %v7334 = vld [vmem:[%s7331 + $0x8] sm:$0xf]
          %v7335 = vld [vmem:[%s7331 + $0xc] sm:$0xf]
          %v7336 = vld [vmem:[%s7331 + $0x10] sm:$0xf]
          %v7337 = vld [vmem:[%s7331 + $0x14] sm:$0xf]
          %v7338 = vld [vmem:[%s7331 + $0x18] sm:$0xf]
          %v7339 = vld [vmem:[%s7331 + $0x1c] sm:$0xf]
          %v7340 = vld [vmem:[%s7331 + $0x20] sm:$0xf]
          %v7341 = vld [vmem:[%s7331 + $0x24] sm:$0xf]
          %v7342 = vld [vmem:[%s7331 + $0x28] sm:$0xf]
          %v7343 = vld [vmem:[%s7331 + $0x2c] sm:$0xf]
          %v7344 = vld [vmem:[%s7331 + $0x30] sm:$0xf]
          %v7345 = vld [vmem:[%s7331 + $0x34] sm:$0xf]
          %v7346 = vld [vmem:[%s7331 + $0x38] sm:$0xf]
          %v7347 = vld [vmem:[%s7331 + $0x3c] sm:$0xf]
          %v7348 = vld [vmem:[%s7331 + $0x40] sm:$0xf]
          %v7349 = vld [vmem:[%s7331 + $0x44] sm:$0xf]
          %v7350 = vld [vmem:[%s7331 + $0x48] sm:$0xf]
          %v7351 = vld [vmem:[%s7331 + $0x4c] sm:$0xf]
          %v7372 = vunpack.c.l.b16 %v7332
          %v7373 = vunpack.c.l.b16 %v7333
          %v7374 = vunpack.c.l.b16 %v7334
          %v7375 = vunpack.c.l.b16 %v7335
          %v7376 = vunpack.c.l.b16 %v7336
          %v7377 = vunpack.c.l.b16 %v7337
          %v7378 = vunpack.c.l.b16 %v7338
          %v7379 = vunpack.c.l.b16 %v7339
          %v7380 = vunpack.c.l.b16 %v7340
          %v7381 = vunpack.c.l.b16 %v7341
          %v7382 = vunpack.c.l.b16 %v7342
          %v7383 = vunpack.c.l.b16 %v7343
          %v7384 = vunpack.c.l.b16 %v7344
          %v7385 = vunpack.c.l.b16 %v7345
          %v7386 = vunpack.c.l.b16 %v7346
          %v7387 = vunpack.c.l.b16 %v7347
          %v7388 = vunpack.c.l.b16 %v7348
          %v7389 = vunpack.c.l.b16 %v7349
          %v7390 = vunpack.c.l.b16 %v7350
          %v7391 = vunpack.c.l.b16 %v7351
          %v7392 = vpack.c.b16 %v7373, %v7372
          %v7393 = vpack.c.b16 %v7375, %v7374
          %v7394 = vpack.c.b16 %v7377, %v7376
          %v7395 = vpack.c.b16 %v7379, %v7378
          %v7396 = vpack.c.b16 %v7381, %v7380
          %v7397 = vpack.c.b16 %v7383, %v7382
          %v7398 = vpack.c.b16 %v7385, %v7384
          %v7399 = vpack.c.b16 %v7387, %v7386
          %v7400 = vpack.c.b16 %v7389, %v7388
          %v7401 = vpack.c.b16 %v7391, %v7390
          %v7412 = vsel %vm391, %v7254, 0
          %v7414 = vsel %vm391, %v7255, 0
          %v7417 = vsel %vm391, %v7256, 0
          %v7420 = vsel %vm391, %v7257, 0
          %7422 = vmatprep.subr.bf16.mxu0 0
          %7423 = vmatpush1.bf16.msra.mxu0 %v7392
          %7424 = vmatprep.subr.bf16.mxu0 0
          %7425 = vmatpush1.bf16.msra.mxu0 %v7393
          %7426 = vmatprep.subr.bf16.mxu0 0
          %7427 = vmatpush1.bf16.msra.mxu0 %v7394
          %7428 = vmatprep.subr.bf16.mxu0 0
          %7429 = vmatpush1.bf16.msra.mxu0 %v7395
          %7430 = vmatprep.subr.bf16.mxu0 0
          %7431 = vmatpush1.bf16.msra.mxu0 %v7396
          %7432 = vmatprep.subr.bf16.mxu0 0
          %7433 = vmatpush1.bf16.msra.mxu0 %v7397
          %7434 = vmatprep.subr.bf16.mxu0 0
          %7435 = vmatpush1.bf16.msra.mxu0 %v7398
          %7436 = vmatprep.subr.bf16.mxu0 0
          %7437 = vmatpush1.bf16.msra.mxu0 %v7399
          %7438 = vmatprep.subr.bf16.mxu0 0
          %7439 = vmatpush1.bf16.msra.mxu0 %v7400
          %7440 = vmatprep.subr.bf16.mxu0 0
          %7441 = vmatpush1.bf16.msra.mxu0 %v7401
          %7442 = vmatprep.subr.bf16.mxu0 0
          %7443 = vmatpush1.bf16.msra.mxu0 0
          %7444 = vmatprep.subr.bf16.mxu0 0
          %7445 = vmatpush1.bf16.msra.mxu0 0
          %7446 = vmatprep.subr.bf16.mxu0 0
          %7447 = vmatpush1.bf16.msra.mxu0 0
          %7448 = vmatprep.subr.bf16.mxu0 0
          %7449 = vmatpush1.bf16.msra.mxu0 0
          %7450 = vmatprep.subr.bf16.mxu0 0
          %7451 = vmatpush1.bf16.msra.mxu0 0
          %7452 = vmatprep.subr.bf16.mxu0 0
          %7453 = vmatpush1.bf16.msra.mxu0 0
          %7454 = vmatprep.mubr.bf16.mxu0 %v7412
          %7455 = vmatmul.mubr.bf16.gmra.mrb[0].mxu0 %v7320
          %v7456 = vpop.f32.mrb[0].mxu0
          %v7457 = vadd.f32 0.0, %v7456
          %v7458 = vpop.f32.mrb[0].mxu0
          %v7459 = vpop.f32.mrb[0].mxu0
          %v7460 = vadd.f32 0.0, %v7459
          %v7461 = vpop.f32.mrb[0].mxu0
          %7462 = vmatprep.mubr.bf16.mxu0 %v7414
          %7463 = vmatmul.mubr.bf16.gmra.mrb[0].mxu0 %v7323
          %v7464 = vpop.f32.mrb[0].mxu0
          %v7465 = vadd.f32 0.0, %v7464
          %v7466 = vpop.f32.mrb[0].mxu0
          %v7467 = vpop.f32.mrb[0].mxu0
          %v7468 = vadd.f32 0.0, %v7467
          %v7469 = vpop.f32.mrb[0].mxu0
          %7470 = vmatprep.mubr.bf16.mxu0 %v7417
          %7471 = vmatmul.mubr.bf16.gmra.mrb[0].mxu0 %v7326
          %v7472 = vpop.f32.mrb[0].mxu0
          %v7473 = vadd.f32 0.0, %v7472
          %v7474 = vpop.f32.mrb[0].mxu0
          %v7475 = vpop.f32.mrb[0].mxu0
          %v7476 = vadd.f32 0.0, %v7475
          %v7477 = vpop.f32.mrb[0].mxu0
          %7478 = vmatprep.mubr.bf16.mxu0 %v7420
          %7479 = vmatmul.mubr.bf16.gmra.mrb[0].mxu0 %v7329
          %v7480 = vpop.f32.mrb[0].mxu0
          %v7481 = vadd.f32 0.0, %v7480
          %v7482 = vpop.f32.mrb[0].mxu0
          %v7483 = vpop.f32.mrb[0].mxu0
          %v7484 = vadd.f32 0.0, %v7483
          %v7485 = vpop.f32.mrb[0].mxu0
          %7486 = vdwg.mxu0
          %v7487 = vadd.s32 %v6355, 1
          %v7488 = vadd.s32 %v6356, 1
          %v7489 = vadd.s32 %v6357, 1
          %v7490 = vadd.s32 %v6358, 1
          %v7491 = vadd.s32 %v6359, 1
          %v7492 = vadd.s32 %v6360, 1
          %v7493 = vadd.s32 %v6361, 1
          %v7494 = vadd.s32 %v6362, 1
          %vm7495 = vcmp.ge.s32.totalorder %v7487, 0
          %vm7496 = vcmp.ge.s32.totalorder %v7488, 0
          %vm7497 = vcmp.ge.s32.totalorder %v7489, 0
          %vm7498 = vcmp.ge.s32.totalorder %v7490, 0
          %vm7499 = vcmp.ge.s32.totalorder %v7491, 0
          %vm7500 = vcmp.ge.s32.totalorder %v7492, 0
          %vm7501 = vcmp.ge.s32.totalorder %v7493, 0
          %vm7502 = vcmp.ge.s32.totalorder %v7494, 0
          %vm7503 = vcmp.lt.s32.totalorder %v7487, 8
          %vm7504 = vcmp.lt.s32.totalorder %v7488, 8
          %vm7505 = vcmp.lt.s32.totalorder %v7489, 8
          %vm7506 = vcmp.lt.s32.totalorder %v7490, 8
          %vm7507 = vcmp.lt.s32.totalorder %v7491, 8
          %vm7508 = vcmp.lt.s32.totalorder %v7492, 8
          %vm7509 = vcmp.lt.s32.totalorder %v7493, 8
          %vm7510 = vcmp.lt.s32.totalorder %v7494, 8
          %vm7511 = vmand %vm7495, %vm7503
          %vm7512 = vmand %vm7496, %vm7504
          %vm7513 = vmand %vm7497, %vm7505
          %vm7514 = vmand %vm7498, %vm7506
          %vm7515 = vmand %vm7499, %vm7507
          %vm7516 = vmand %vm7500, %vm7508
          %vm7517 = vmand %vm7501, %vm7509
          %vm7518 = vmand %vm7502, %vm7510
          %v7519 = vsel %vm7511, 1, 0
          %v7520 = vsel %vm7512, 1, 0
          %v7521 = vsel %vm7513, 1, 0
          %v7522 = vsel %vm7514, 1, 0
          %v7523 = vsel %vm7515, 1, 0
          %v7524 = vsel %vm7516, 1, 0
          %v7525 = vsel %vm7517, 1, 0
          %v7526 = vsel %vm7518, 1, 0
          %v7527 = vcvt.s32.f32 %v7519
          %v7528 = vcvt.s32.f32 %v7520
          %v7529 = vcvt.s32.f32 %v7521
          %v7530 = vcvt.s32.f32 %v7522
          %v7531 = vcvt.s32.f32 %v7523
          %v7532 = vcvt.s32.f32 %v7524
          %v7533 = vcvt.s32.f32 %v7525
          %v7534 = vcvt.s32.f32 %v7526
          %v7535 = vmul.f32 %v7457, %v7527
          %v7536 = vmul.f32 %v7460, %v7528
          %v7537 = vmul.f32 %v7465, %v7529
          %v7538 = vmul.f32 %v7468, %v7530
          %v7539 = vmul.f32 %v7473, %v7531
          %v7540 = vmul.f32 %v7476, %v7532
          %v7541 = vmul.f32 %v7481, %v7533
          %v7542 = vmul.f32 %v7484, %v7534
          %v7543 = vadd.f32 %v7232, %v7535
          %v7544 = vadd.f32 %v7233, %v7536
          %v7545 = vadd.f32 %v7234, %v7537
          %v7546 = vadd.f32 %v7235, %v7538
          %v7547 = vadd.f32 %v7236, %v7539
          %v7548 = vadd.f32 %v7237, %v7540
          %v7549 = vadd.f32 %v7238, %v7541
          %v7550 = vadd.f32 %v7239, %v7542
          %v7551 = vld [vmem:[#allocation5 + $0xa] sm:$0xff]
          %v7552 = vld [vmem:[#allocation5 + $0x12] sm:$0xff]
          %v7553 = vld [vmem:[#allocation5 + $0x1a] sm:$0xff]
          %v7554 = vld [vmem:[#allocation5 + $0x22] sm:$0xff]
          %v7555 = vld [vmem:[#allocation5 + $0x2a] sm:$0xff]
          %v7556 = vld [vmem:[#allocation5 + $0x32] sm:$0xff]
          %v7557 = vld [vmem:[#allocation5 + $0x3a] sm:$0xff]
          %v7558 = vld [vmem:[#allocation5 + $0x42] sm:$0xff]
          %v7559 = vld [vmem:[#allocation5 + $0x4a] sm:$0xff]
          %v7560 = vld [vmem:[#allocation5 + $0x52] sm:$0xff]
          %v7561 = vld [vmem:[#allocation5 + $0x5a] sm:$0xff]
          %v7562 = vld [vmem:[#allocation5 + $0x62] sm:$0xff]
          %v7563 = vpack.c.bf16 %v7552, %v7551
          %v7564 = vpack.c.bf16 %v7554, %v7553
          %v7565 = vpack.c.bf16 %v7556, %v7555
          %v7566 = vpack.c.bf16 %v7558, %v7557
          %v7567 = vpack.c.bf16 %v7560, %v7559
          %v7568 = vpack.c.bf16 %v7562, %v7561
          %v7574 = vrot.slane %v7563, 4
          %v7575 = vrot.slane %v7564, 4
          %v7576 = vsel %vm6386, %v7574, %v7575
          %v7577 = vrot.slane %v7565, 4
          %v7578 = vsel %vm6386, %v7575, %v7577
          %v7579 = vrot.slane %v7566, 4
          %v7580 = vsel %vm6386, %v7577, %v7579
          %v7581 = vrot.slane %v7567, 4
          %v7582 = vsel %vm6386, %v7579, %v7581
          %7583 = vrot.lane.b32.xlu0 %v7576, 32
          %v7584 = vpop.permute.xlu0 %7583
          %7585 = vrot.lane.b32.xlu0 %v7578, 32
          %v7586 = vpop.permute.xlu0 %7585
          %7587 = vrot.lane.b32.xlu0 %v7580, 32
          %v7588 = vpop.permute.xlu0 %7587
          %7589 = vrot.lane.b32.xlu0 %v7582, 32
          %v7590 = vpop.permute.xlu0 %7589
          %7591 = vrot.lane.b32.xlu0 %v7564, 64
          %v7592 = vpop.permute.xlu0 %7591
          %7593 = vrot.lane.b32.xlu0 %v7565, 64
          %v7594 = vpop.permute.xlu0 %7593
          %7595 = vrot.lane.b32.xlu0 %v7566, 64
          %v7596 = vpop.permute.xlu0 %7595
          %7597 = vrot.lane.b32.xlu0 %v7567, 64
          %v7598 = vpop.permute.xlu0 %7597
          %v7600 = vrot.slane %v7568, 4
          %v7601 = vsel %vm6386, %v7581, %v7600
          %7602 = vrot.lane.b32.xlu0 %v7578, 96
          %v7603 = vpop.permute.xlu0 %7602
          %7604 = vrot.lane.b32.xlu0 %v7580, 96
          %v7605 = vpop.permute.xlu0 %7604
          %7606 = vrot.lane.b32.xlu0 %v7582, 96
          %v7607 = vpop.permute.xlu0 %7606
          %7608 = vrot.lane.b32.xlu0 %v7601, 96
          %v7609 = vpop.permute.xlu0 %7608
          %v7612 = vsel %vm391, %v7563, %v7584
          %v7615 = vsel %vm391, %v7564, %v7586
          %v7618 = vsel %vm391, %v7565, %v7588
          %v7621 = vsel %vm391, %v7566, %v7590
          %v7623 = vsel %vm2454, %v7612, %v7592
          %v7625 = vsel %vm2454, %v7615, %v7594
          %v7627 = vsel %vm2454, %v7618, %v7596
          %v7629 = vsel %vm2454, %v7621, %v7598
          %v7631 = vsel %vm2487, %v7623, %v7603
          %v7634 = vsel %vm2487, %v7625, %v7605
          %v7637 = vsel %vm2487, %v7627, %v7607
          %v7640 = vsel %vm2487, %v7629, %v7609
          %s7642 = scalar_lea.vmem %s5, 320
          %v7643 = vld [vmem:[%s7642] sm:$0xf]
          %v7644 = vld [vmem:[%s7642 + $0x4] sm:$0xf]
          %v7645 = vld [vmem:[%s7642 + $0x8] sm:$0xf]
          %v7646 = vld [vmem:[%s7642 + $0xc] sm:$0xf]
          %v7647 = vld [vmem:[%s7642 + $0x10] sm:$0xf]
          %v7648 = vld [vmem:[%s7642 + $0x14] sm:$0xf]
          %v7649 = vld [vmem:[%s7642 + $0x18] sm:$0xf]
          %v7650 = vld [vmem:[%s7642 + $0x1c] sm:$0xf]
          %v7651 = vld [vmem:[%s7642 + $0x20] sm:$0xf]
          %v7652 = vld [vmem:[%s7642 + $0x24] sm:$0xf]
          %v7653 = vld [vmem:[%s7642 + $0x28] sm:$0xf]
          %v7654 = vld [vmem:[%s7642 + $0x2c] sm:$0xf]
          %v7655 = vld [vmem:[%s7642 + $0x30] sm:$0xf]
          %v7656 = vld [vmem:[%s7642 + $0x34] sm:$0xf]
          %v7657 = vld [vmem:[%s7642 + $0x38] sm:$0xf]
          %v7658 = vld [vmem:[%s7642 + $0x3c] sm:$0xf]
          %v7659 = vld [vmem:[%s7642 + $0x40] sm:$0xf]
          %v7660 = vld [vmem:[%s7642 + $0x44] sm:$0xf]
          %v7661 = vld [vmem:[%s7642 + $0x48] sm:$0xf]
          %v7662 = vld [vmem:[%s7642 + $0x4c] sm:$0xf]
          %v7683 = vunpack.c.l.b16 %v7643
          %v7684 = vunpack.c.l.b16 %v7644
          %v7685 = vunpack.c.l.b16 %v7645
          %v7686 = vunpack.c.l.b16 %v7646
          %v7687 = vunpack.c.l.b16 %v7647
          %v7688 = vunpack.c.l.b16 %v7648
          %v7689 = vunpack.c.l.b16 %v7649
          %v7690 = vunpack.c.l.b16 %v7650
          %v7691 = vunpack.c.l.b16 %v7651
          %v7692 = vunpack.c.l.b16 %v7652
          %v7693 = vunpack.c.l.b16 %v7653
          %v7694 = vunpack.c.l.b16 %v7654
          %v7695 = vunpack.c.l.b16 %v7655
          %v7696 = vunpack.c.l.b16 %v7656
          %v7697 = vunpack.c.l.b16 %v7657
          %v7698 = vunpack.c.l.b16 %v7658
          %v7699 = vunpack.c.l.b16 %v7659
          %v7700 = vunpack.c.l.b16 %v7660
          %v7701 = vunpack.c.l.b16 %v7661
          %v7702 = vunpack.c.l.b16 %v7662
          %v7703 = vpack.c.b16 %v7684, %v7683
          %v7704 = vpack.c.b16 %v7686, %v7685
          %v7705 = vpack.c.b16 %v7688, %v7687
          %v7706 = vpack.c.b16 %v7690, %v7689
          %v7707 = vpack.c.b16 %v7692, %v7691
          %v7708 = vpack.c.b16 %v7694, %v7693
          %v7709 = vpack.c.b16 %v7696, %v7695
          %v7710 = vpack.c.b16 %v7698, %v7697
          %v7711 = vpack.c.b16 %v7700, %v7699
          %v7712 = vpack.c.b16 %v7702, %v7701
          %v7723 = vsel %vm391, %v7565, 0
          %v7725 = vsel %vm391, %v7566, 0
          %v7728 = vsel %vm391, %v7567, 0
          %v7731 = vsel %vm391, %v7568, 0
          %7733 = vmatprep.subr.bf16.mxu0 0
          %7734 = vmatpush1.bf16.msra.mxu0 %v7703
          %7735 = vmatprep.subr.bf16.mxu0 0
          %7736 = vmatpush1.bf16.msra.mxu0 %v7704
          %7737 = vmatprep.subr.bf16.mxu0 0
          %7738 = vmatpush1.bf16.msra.mxu0 %v7705
          %7739 = vmatprep.subr.bf16.mxu0 0
          %7740 = vmatpush1.bf16.msra.mxu0 %v7706
          %7741 = vmatprep.subr.bf16.mxu0 0
          %7742 = vmatpush1.bf16.msra.mxu0 %v7707
          %7743 = vmatprep.subr.bf16.mxu0 0
          %7744 = vmatpush1.bf16.msra.mxu0 %v7708
          %7745 = vmatprep.subr.bf16.mxu0 0
          %7746 = vmatpush1.bf16.msra.mxu0 %v7709
          %7747 = vmatprep.subr.bf16.mxu0 0
          %7748 = vmatpush1.bf16.msra.mxu0 %v7710
          %7749 = vmatprep.subr.bf16.mxu0 0
          %7750 = vmatpush1.bf16.msra.mxu0 %v7711
          %7751 = vmatprep.subr.bf16.mxu0 0
          %7752 = vmatpush1.bf16.msra.mxu0 %v7712
          %7753 = vmatprep.subr.bf16.mxu0 0
          %7754 = vmatpush1.bf16.msra.mxu0 0
          %7755 = vmatprep.subr.bf16.mxu0 0
          %7756 = vmatpush1.bf16.msra.mxu0 0
          %7757 = vmatprep.subr.bf16.mxu0 0
          %7758 = vmatpush1.bf16.msra.mxu0 0
          %7759 = vmatprep.subr.bf16.mxu0 0
          %7760 = vmatpush1.bf16.msra.mxu0 0
          %7761 = vmatprep.subr.bf16.mxu0 0
          %7762 = vmatpush1.bf16.msra.mxu0 0
          %7763 = vmatprep.subr.bf16.mxu0 0
          %7764 = vmatpush1.bf16.msra.mxu0 0
          %7765 = vmatprep.mubr.bf16.mxu0 %v7723
          %7766 = vmatmul.mubr.bf16.gmra.mrb[0].mxu0 %v7631
          %v7767 = vpop.f32.mrb[0].mxu0
          %v7768 = vadd.f32 0.0, %v7767
          %v7769 = vpop.f32.mrb[0].mxu0
          %v7770 = vpop.f32.mrb[0].mxu0
          %v7771 = vadd.f32 0.0, %v7770
          %v7772 = vpop.f32.mrb[0].mxu0
          %7773 = vmatprep.mubr.bf16.mxu0 %v7725
          %7774 = vmatmul.mubr.bf16.gmra.mrb[0].mxu0 %v7634
          %v7775 = vpop.f32.mrb[0].mxu0
          %v7776 = vadd.f32 0.0, %v7775
          %v7777 = vpop.f32.mrb[0].mxu0
          %v7778 = vpop.f32.mrb[0].mxu0
          %v7779 = vadd.f32 0.0, %v7778
          %v7780 = vpop.f32.mrb[0].mxu0
          %7781 = vmatprep.mubr.bf16.mxu0 %v7728
          %7782 = vmatmul.mubr.bf16.gmra.mrb[0].mxu0 %v7637
          %v7783 = vpop.f32.mrb[0].mxu0
          %v7784 = vadd.f32 0.0, %v7783
          %v7785 = vpop.f32.mrb[0].mxu0
          %v7786 = vpop.f32.mrb[0].mxu0
          %v7787 = vadd.f32 0.0, %v7786
          %v7788 = vpop.f32.mrb[0].mxu0
          %7789 = vmatprep.mubr.bf16.mxu0 %v7731
          %7790 = vmatmul.mubr.bf16.gmra.mrb[0].mxu0 %v7640
          %v7791 = vpop.f32.mrb[0].mxu0
          %v7792 = vadd.f32 0.0, %v7791
          %v7793 = vpop.f32.mrb[0].mxu0
          %v7794 = vpop.f32.mrb[0].mxu0
          %v7795 = vadd.f32 0.0, %v7794
          %v7796 = vpop.f32.mrb[0].mxu0
          %7797 = vdwg.mxu0
          %v7798 = vadd.s32 %v6355, 2
          %v7799 = vadd.s32 %v6356, 2
          %v7800 = vadd.s32 %v6357, 2
          %v7801 = vadd.s32 %v6358, 2
          %v7802 = vadd.s32 %v6359, 2
          %v7803 = vadd.s32 %v6360, 2
          %v7804 = vadd.s32 %v6361, 2
          %v7805 = vadd.s32 %v6362, 2
          %vm7806 = vcmp.ge.s32.totalorder %v7798, 0
          %vm7807 = vcmp.ge.s32.totalorder %v7799, 0
          %vm7808 = vcmp.ge.s32.totalorder %v7800, 0
          %vm7809 = vcmp.ge.s32.totalorder %v7801, 0
          %vm7810 = vcmp.ge.s32.totalorder %v7802, 0
          %vm7811 = vcmp.ge.s32.totalorder %v7803, 0
          %vm7812 = vcmp.ge.s32.totalorder %v7804, 0
          %vm7813 = vcmp.ge.s32.totalorder %v7805, 0
          %vm7814 = vcmp.lt.s32.totalorder %v7798, 8
          %vm7815 = vcmp.lt.s32.totalorder %v7799, 8
          %vm7816 = vcmp.lt.s32.totalorder %v7800, 8
          %vm7817 = vcmp.lt.s32.totalorder %v7801, 8
          %vm7818 = vcmp.lt.s32.totalorder %v7802, 8
          %vm7819 = vcmp.lt.s32.totalorder %v7803, 8
          %vm7820 = vcmp.lt.s32.totalorder %v7804, 8
          %vm7821 = vcmp.lt.s32.totalorder %v7805, 8
          %vm7822 = vmand %vm7806, %vm7814
          %vm7823 = vmand %vm7807, %vm7815
          %vm7824 = vmand %vm7808, %vm7816
          %vm7825 = vmand %vm7809, %vm7817
          %vm7826 = vmand %vm7810, %vm7818
          %vm7827 = vmand %vm7811, %vm7819
          %vm7828 = vmand %vm7812, %vm7820
          %vm7829 = vmand %vm7813, %vm7821
          %v7830 = vsel %vm7822, 1, 0
          %v7831 = vsel %vm7823, 1, 0
          %v7832 = vsel %vm7824, 1, 0
          %v7833 = vsel %vm7825, 1, 0
          %v7834 = vsel %vm7826, 1, 0
          %v7835 = vsel %vm7827, 1, 0
          %v7836 = vsel %vm7828, 1, 0
          %v7837 = vsel %vm7829, 1, 0
          %v7838 = vcvt.s32.f32 %v7830
          %v7839 = vcvt.s32.f32 %v7831
          %v7840 = vcvt.s32.f32 %v7832
          %v7841 = vcvt.s32.f32 %v7833
          %v7842 = vcvt.s32.f32 %v7834
          %v7843 = vcvt.s32.f32 %v7835
          %v7844 = vcvt.s32.f32 %v7836
          %v7845 = vcvt.s32.f32 %v7837
          %v7846 = vmul.f32 %v7768, %v7838
          %v7847 = vmul.f32 %v7771, %v7839
          %v7848 = vmul.f32 %v7776, %v7840
          %v7849 = vmul.f32 %v7779, %v7841
          %v7850 = vmul.f32 %v7784, %v7842
          %v7851 = vmul.f32 %v7787, %v7843
          %v7852 = vmul.f32 %v7792, %v7844
          %v7853 = vmul.f32 %v7795, %v7845
          %v7854 = vadd.f32 %v7543, %v7846
          %v7855 = vadd.f32 %v7544, %v7847
          %v7856 = vadd.f32 %v7545, %v7848
          %v7857 = vadd.f32 %v7546, %v7849
          %v7858 = vadd.f32 %v7547, %v7850
          %v7859 = vadd.f32 %v7548, %v7851
          %v7860 = vadd.f32 %v7549, %v7852
          %v7861 = vadd.f32 %v7550, %v7853
          %v7862 = vld [vmem:[%s6] sm:$0x1]
          %v7864 = vlaneseq
          %v7865 = vshrl.u32 %v7864, 7
          %v7866 = vsub.s32 0, %v7865
          %v7867 = vrot.slane %v7862, %v7866
          %v7869 = vadd.f32 %v7854, %v7867
          %v7870 = vadd.f32 %v7855, %v7867
          %v7871 = vadd.f32 %v7856, %v7867
          %v7872 = vadd.f32 %v7857, %v7867
          %v7873 = vadd.f32 %v7858, %v7867
          %v7874 = vadd.f32 %v7859, %v7867
          %v7875 = vadd.f32 %v7860, %v7867
          %v7876 = vadd.f32 %v7861, %v7867
          %7877 = vst.msk [vmem:[#allocation6] sm:$0xff] %vm2454, %v7869
          %7878 = vst.msk [vmem:[#allocation6 + $0x8] sm:$0xff] %vm2454, %v7870
          %7879 = vst.msk [vmem:[#allocation6 + $0x10] sm:$0xff] %vm2454, %v7871
          %7880 = vst.msk [vmem:[#allocation6 + $0x18] sm:$0xff] %vm2454, %v7872
          %7881 = vst.msk [vmem:[#allocation6 + $0x20] sm:$0xff] %vm2454, %v7873
          %7882 = vst.msk [vmem:[#allocation6 + $0x28] sm:$0xff] %vm2454, %v7874
          %7883 = vst.msk [vmem:[#allocation6 + $0x30] sm:$0xff] %vm2454, %v7875
          %7884 = vst.msk [vmem:[#allocation6 + $0x38] sm:$0xff] %vm2454, %v7876
          %v7885 = vld [vmem:[#allocation6] ss:$2 sm:$0xf]
          %s7886 = scalar_lea.vmem [#allocation6], 1
          %v7887 = vld [vmem:[%s7886] ss:$2 sm:$0xf]
          %s7888 = scalar_lea.vmem [#allocation6], 8
          %v7889 = vld [vmem:[%s7888] ss:$2 sm:$0xf]
          %s7890 = scalar_lea.vmem [#allocation6], 9
          %v7891 = vld [vmem:[%s7890] ss:$2 sm:$0xf]
          %v7892 = vmax.f32 %v7885, %v7887
          %v7893 = vmax.f32 %v7889, %v7891
          %v7894 = vmax.f32 %v7892, %v7893
          %s7895 = smul.u32 %s409, 16
          %s7896 = scalar_lea.vmem [#allocation7], %s7895
          %vm7897 = vcmask 519168
          %7898 = vst.msk [vmem:[%s7896] sm:$0xf] %vm7897, %v7894
          %s7899 = scalar_lea.vmem [#allocation6], 16
          %v7900 = vld [vmem:[%s7899] ss:$2 sm:$0xf]
          %s7901 = scalar_lea.vmem [#allocation6], 17
          %v7902 = vld [vmem:[%s7901] ss:$2 sm:$0xf]
          %s7903 = scalar_lea.vmem [#allocation6], 24
          %v7904 = vld [vmem:[%s7903] ss:$2 sm:$0xf]
          %s7905 = scalar_lea.vmem [#allocation6], 25
          %v7906 = vld [vmem:[%s7905] ss:$2 sm:$0xf]
          %v7907 = vmax.f32 %v7900, %v7902
          %v7908 = vmax.f32 %v7904, %v7906
          %v7909 = vmax.f32 %v7907, %v7908
          %s7910 = sadd.s32 %s7895, 4
          %s7911 = scalar_lea.vmem [#allocation7], %s7910
          %7912 = vst.msk [vmem:[%s7911] sm:$0xf] %vm7897, %v7909
          %s7913 = scalar_lea.vmem [#allocation6], 32
          %v7914 = vld [vmem:[%s7913] ss:$2 sm:$0xf]
          %s7915 = scalar_lea.vmem [#allocation6], 33
          %v7916 = vld [vmem:[%s7915] ss:$2 sm:$0xf]
          %s7917 = scalar_lea.vmem [#allocation6], 40
          %v7918 = vld [vmem:[%s7917] ss:$2 sm:$0xf]
          %s7919 = scalar_lea.vmem [#allocation6], 41
          %v7920 = vld [vmem:[%s7919] ss:$2 sm:$0xf]
          %v7921 = vmax.f32 %v7914, %v7916
          %v7922 = vmax.f32 %v7918, %v7920
          %v7923 = vmax.f32 %v7921, %v7922
          %s7924 = sadd.s32 %s7895, 8
          %s7925 = scalar_lea.vmem [#allocation7], %s7924
          %7926 = vst.msk [vmem:[%s7925] sm:$0xf] %vm7897, %v7923
          %s7927 = scalar_lea.vmem [#allocation6], 48
          %v7928 = vld [vmem:[%s7927] ss:$2 sm:$0xf]
          %s7929 = scalar_lea.vmem [#allocation6], 49
          %v7930 = vld [vmem:[%s7929] ss:$2 sm:$0xf]
          %s7931 = scalar_lea.vmem [#allocation6], 56
          %v7932 = vld [vmem:[%s7931] ss:$2 sm:$0xf]
          %s7933 = scalar_lea.vmem [#allocation6], 57
          %v7934 = vld [vmem:[%s7933] ss:$2 sm:$0xf]
          %v7935 = vmax.f32 %v7928, %v7930
          %v7936 = vmax.f32 %v7932, %v7934
          %v7937 = vmax.f32 %v7935, %v7936
          %s7938 = sadd.s32 %s7895, 12
          %s7939 = scalar_lea.vmem [#allocation7], %s7938
          %7940 = vst.msk [vmem:[%s7939] sm:$0xf] %vm7897, %v7937
        $region69: #{ocean_forward.1} parent=63 // loop_footer
          %s413 = sadd.s32 1, %s409
        $region70: #{ocean_forward.1} parent=63 // loop_footer_branch
          %408 = sbr.rel target = $region66
        $region71: #{ocean_forward.1} parent=63 // loop_exit
          _
        %v7941 = vld [vmem:[#allocation7] ss:$16 sm:$0x3]
        %v7942 = vld [vmem:[#allocation7] ss:$16 sm:$0xc]
        %v7943 = vor.u32 %v7941, %v7942
        %v7944 = vld [vmem:[#allocation7] ss:$16 sm:$0x30]
        %v7945 = vor.u32 %v7943, %v7944
        %v7946 = vld [vmem:[#allocation7] ss:$16 sm:$0xc0]
        %v7947 = vor.u32 %v7945, %v7946
        %v7948 = vpack.c.bf16 %v7947, %v7947
        %v7949 = vld [vmem:[%s7] sm:$0xf]
        %v7950 = vld [vmem:[%s7 + $0x4] sm:$0xf]
        %v7951 = vld [vmem:[%s7 + $0x8] sm:$0xf]
        %v7952 = vld [vmem:[%s7 + $0xc] sm:$0xf]
        %v7953 = vld [vmem:[%s7 + $0x10] sm:$0xf]
        %v7954 = vld [vmem:[%s7 + $0x14] sm:$0xf]
        %v7955 = vld [vmem:[%s7 + $0x18] sm:$0xf]
        %v7956 = vld [vmem:[%s7 + $0x1c] sm:$0xf]
        %s7957 = scalar_lea.vmem [#allocation7], 1
        %v7958 = vld [vmem:[%s7957] ss:$16 sm:$0x3]
        %v7959 = vld [vmem:[%s7957] ss:$16 sm:$0xc]
        %v7960 = vor.u32 %v7958, %v7959
        %v7961 = vld [vmem:[%s7957] ss:$16 sm:$0x30]
        %v7962 = vor.u32 %v7960, %v7961
        %v7963 = vld [vmem:[%s7957] ss:$16 sm:$0xc0]
        %v7964 = vor.u32 %v7962, %v7963
        %v7965 = vpack.c.bf16 %v7964, %v7964
        %s7966 = scalar_lea.vmem %s7, 32
        %v7967 = vld [vmem:[%s7966] sm:$0xf]
        %v7968 = vld [vmem:[%s7966 + $0x4] sm:$0xf]
        %v7969 = vld [vmem:[%s7966 + $0x8] sm:$0xf]
        %v7970 = vld [vmem:[%s7966 + $0xc] sm:$0xf]
        %v7971 = vld [vmem:[%s7966 + $0x10] sm:$0xf]
        %v7972 = vld [vmem:[%s7966 + $0x14] sm:$0xf]
        %v7973 = vld [vmem:[%s7966 + $0x18] sm:$0xf]
        %v7974 = vld [vmem:[%s7966 + $0x1c] sm:$0xf]
        %v7983 = vunpack.c.l.b16 %v7967
        %v7984 = vunpack.c.l.b16 %v7968
        %v7985 = vunpack.c.l.b16 %v7969
        %v7986 = vunpack.c.l.b16 %v7970
        %v7987 = vunpack.c.l.b16 %v7971
        %v7988 = vunpack.c.l.b16 %v7972
        %v7989 = vunpack.c.l.b16 %v7973
        %v7990 = vunpack.c.l.b16 %v7974
        %v7991 = vpack.c.b16 %v7984, %v7983
        %v7992 = vpack.c.b16 %v7986, %v7985
        %v7993 = vpack.c.b16 %v7988, %v7987
        %v7994 = vpack.c.b16 %v7990, %v7989
        %vm7999 = vcmask 523264
        %v8001 = vsel %vm7999, %v7965, 0
        %8003 = vmatprep.subr.bf16.mxu0 0
        %8004 = vmatpush1.bf16.msra.mxu0 %v7991
        %8005 = vmatprep.subr.bf16.mxu0 0
        %8006 = vmatpush1.bf16.msra.mxu0 %v7992
        %8007 = vmatprep.subr.bf16.mxu0 0
        %8008 = vmatpush1.bf16.msra.mxu0 %v7993
        %8009 = vmatprep.subr.bf16.mxu0 0
        %8010 = vmatpush1.bf16.msra.mxu0 %v7994
        %8011 = vmatprep.subr.bf16.mxu0 0
        %8012 = vmatpush1.bf16.msra.mxu0 0
        %8013 = vmatprep.subr.bf16.mxu0 0
        %8014 = vmatpush1.bf16.msra.mxu0 0
        %8015 = vmatprep.subr.bf16.mxu0 0
        %8016 = vmatpush1.bf16.msra.mxu0 0
        %8017 = vmatprep.subr.bf16.mxu0 0
        %8018 = vmatpush1.bf16.msra.mxu0 0
        %8019 = vmatprep.subr.bf16.mxu0 0
        %8020 = vmatpush1.bf16.msra.mxu0 0
        %8021 = vmatprep.subr.bf16.mxu0 0
        %8022 = vmatpush1.bf16.msra.mxu0 0
        %8023 = vmatprep.subr.bf16.mxu0 0
        %8024 = vmatpush1.bf16.msra.mxu0 0
        %8025 = vmatprep.subr.bf16.mxu0 0
        %8026 = vmatpush1.bf16.msra.mxu0 0
        %8027 = vmatprep.subr.bf16.mxu0 0
        %8028 = vmatpush1.bf16.msra.mxu0 0
        %8029 = vmatprep.subr.bf16.mxu0 0
        %8030 = vmatpush1.bf16.msra.mxu0 0
        %8031 = vmatprep.subr.bf16.mxu0 0
        %8032 = vmatpush1.bf16.msra.mxu0 0
        %8033 = vmatprep.subr.bf16.mxu0 0
        %8034 = vmatpush1.bf16.msra.mxu0 0
        %8035 = vmatprep.mubr.bf16.mxu0 0
        %8036 = vmatmul.mubr.bf16.gmra.mrb[0].mxu0 %v8001
        %v8037 = vpop.f32.mrb[0].mxu0
        %v8038 = vadd.f32 0.0, %v8037
        %v8039 = vpop.f32.mrb[0].mxu0
        %v8040 = vpop.f32.mrb[0].mxu0
        %v8041 = vpop.f32.mrb[0].mxu0
        %8042 = vdwg.mxu0
        %v8051 = vunpack.c.l.b16 %v7949
        %v8052 = vunpack.c.l.b16 %v7950
        %v8053 = vunpack.c.l.b16 %v7951
        %v8054 = vunpack.c.l.b16 %v7952
        %v8055 = vunpack.c.l.b16 %v7953
        %v8056 = vunpack.c.l.b16 %v7954
        %v8057 = vunpack.c.l.b16 %v7955
        %v8058 = vunpack.c.l.b16 %v7956
        %v8059 = vpack.c.b16 %v8052, %v8051
        %v8060 = vpack.c.b16 %v8054, %v8053
        %v8061 = vpack.c.b16 %v8056, %v8055
        %v8062 = vpack.c.b16 %v8058, %v8057
        %v8068 = vsel %vm7999, %v7948, 0
        %8070 = vmatprep.subr.bf16.mxu0 0
        %8071 = vmatpush1.bf16.msra.mxu0 %v8059
        %8072 = vmatprep.subr.bf16.mxu0 0
        %8073 = vmatpush1.bf16.msra.mxu0 %v8060
        %8074 = vmatprep.subr.bf16.mxu0 0
        %8075 = vmatpush1.bf16.msra.mxu0 %v8061
        %8076 = vmatprep.subr.bf16.mxu0 0
        %8077 = vmatpush1.bf16.msra.mxu0 %v8062
        %8078 = vmatprep.subr.bf16.mxu0 0
        %8079 = vmatpush1.bf16.msra.mxu0 0
        %8080 = vmatprep.subr.bf16.mxu0 0
        %8081 = vmatpush1.bf16.msra.mxu0 0
        %8082 = vmatprep.subr.bf16.mxu0 0
        %8083 = vmatpush1.bf16.msra.mxu0 0
        %8084 = vmatprep.subr.bf16.mxu0 0
        %8085 = vmatpush1.bf16.msra.mxu0 0
        %8086 = vmatprep.subr.bf16.mxu0 0
        %8087 = vmatpush1.bf16.msra.mxu0 0
        %8088 = vmatprep.subr.bf16.mxu0 0
        %8089 = vmatpush1.bf16.msra.mxu0 0
        %8090 = vmatprep.subr.bf16.mxu0 0
        %8091 = vmatpush1.bf16.msra.mxu0 0
        %8092 = vmatprep.subr.bf16.mxu0 0
        %8093 = vmatpush1.bf16.msra.mxu0 0
        %8094 = vmatprep.subr.bf16.mxu0 0
        %8095 = vmatpush1.bf16.msra.mxu0 0
        %8096 = vmatprep.subr.bf16.mxu0 0
        %8097 = vmatpush1.bf16.msra.mxu0 0
        %8098 = vmatprep.subr.bf16.mxu0 0
        %8099 = vmatpush1.bf16.msra.mxu0 0
        %8100 = vmatprep.subr.bf16.mxu0 0
        %8101 = vmatpush1.bf16.msra.mxu0 0
        %8102 = vmatprep.mubr.bf16.mxu0 0
        %8103 = vmatmul.mubr.bf16.gmra.mrb[0].mxu0 %v8068
        %v8104 = vpop.f32.mrb[0].mxu0
        %v8105 = vadd.f32 %v8038, %v8104
        %v8106 = vpop.f32.mrb[0].mxu0
        %v8107 = vpop.f32.mrb[0].mxu0
        %v8108 = vpop.f32.mrb[0].mxu0
        %8109 = vdwg.mxu0
        %s8110 = scalar_lea.vmem [#allocation7], 2
        %v8111 = vld [vmem:[%s8110] ss:$16 sm:$0x3]
        %v8112 = vld [vmem:[%s8110] ss:$16 sm:$0xc]
        %v8113 = vor.u32 %v8111, %v8112
        %v8114 = vld [vmem:[%s8110] ss:$16 sm:$0x30]
        %v8115 = vor.u32 %v8113, %v8114
        %v8116 = vld [vmem:[%s8110] ss:$16 sm:$0xc0]
        %v8117 = vor.u32 %v8115, %v8116
        %v8118 = vpack.c.bf16 %v8117, %v8117
        %s8119 = scalar_lea.vmem %s7, 64
        %v8120 = vld [vmem:[%s8119] sm:$0xf]
        %v8121 = vld [vmem:[%s8119 + $0x4] sm:$0xf]
        %v8122 = vld [vmem:[%s8119 + $0x8] sm:$0xf]
        %v8123 = vld [vmem:[%s8119 + $0xc] sm:$0xf]
        %v8124 = vld [vmem:[%s8119 + $0x10] sm:$0xf]
        %v8125 = vld [vmem:[%s8119 + $0x14] sm:$0xf]
        %v8126 = vld [vmem:[%s8119 + $0x18] sm:$0xf]
        %v8127 = vld [vmem:[%s8119 + $0x1c] sm:$0xf]
        %v8136 = vunpack.c.l.b16 %v8120
        %v8137 = vunpack.c.l.b16 %v8121
        %v8138 = vunpack.c.l.b16 %v8122
        %v8139 = vunpack.c.l.b16 %v8123
        %v8140 = vunpack.c.l.b16 %v8124
        %v8141 = vunpack.c.l.b16 %v8125
        %v8142 = vunpack.c.l.b16 %v8126
        %v8143 = vunpack.c.l.b16 %v8127
        %v8144 = vpack.c.b16 %v8137, %v8136
        %v8145 = vpack.c.b16 %v8139, %v8138
        %v8146 = vpack.c.b16 %v8141, %v8140
        %v8147 = vpack.c.b16 %v8143, %v8142
        %v8153 = vsel %vm7999, %v8118, 0
        %8155 = vmatprep.subr.bf16.mxu0 0
        %8156 = vmatpush1.bf16.msra.mxu0 %v8144
        %8157 = vmatprep.subr.bf16.mxu0 0
        %8158 = vmatpush1.bf16.msra.mxu0 %v8145
        %8159 = vmatprep.subr.bf16.mxu0 0
        %8160 = vmatpush1.bf16.msra.mxu0 %v8146
        %8161 = vmatprep.subr.bf16.mxu0 0
        %8162 = vmatpush1.bf16.msra.mxu0 %v8147
        %8163 = vmatprep.subr.bf16.mxu0 0
        %8164 = vmatpush1.bf16.msra.mxu0 0
        %8165 = vmatprep.subr.bf16.mxu0 0
        %8166 = vmatpush1.bf16.msra.mxu0 0
        %8167 = vmatprep.subr.bf16.mxu0 0
        %8168 = vmatpush1.bf16.msra.mxu0 0
        %8169 = vmatprep.subr.bf16.mxu0 0
        %8170 = vmatpush1.bf16.msra.mxu0 0
        %8171 = vmatprep.subr.bf16.mxu0 0
        %8172 = vmatpush1.bf16.msra.mxu0 0
        %8173 = vmatprep.subr.bf16.mxu0 0
        %8174 = vmatpush1.bf16.msra.mxu0 0
        %8175 = vmatprep.subr.bf16.mxu0 0
        %8176 = vmatpush1.bf16.msra.mxu0 0
        %8177 = vmatprep.subr.bf16.mxu0 0
        %8178 = vmatpush1.bf16.msra.mxu0 0
        %8179 = vmatprep.subr.bf16.mxu0 0
        %8180 = vmatpush1.bf16.msra.mxu0 0
        %8181 = vmatprep.subr.bf16.mxu0 0
        %8182 = vmatpush1.bf16.msra.mxu0 0
        %8183 = vmatprep.subr.bf16.mxu0 0
        %8184 = vmatpush1.bf16.msra.mxu0 0
        %8185 = vmatprep.subr.bf16.mxu0 0
        %8186 = vmatpush1.bf16.msra.mxu0 0
        %8187 = vmatprep.mubr.bf16.mxu0 0
        %8188 = vmatmul.mubr.bf16.gmra.mrb[0].mxu0 %v8153
        %v8189 = vpop.f32.mrb[0].mxu0
        %v8190 = vadd.f32 0.0, %v8189
        %v8191 = vpop.f32.mrb[0].mxu0
        %v8192 = vpop.f32.mrb[0].mxu0
        %v8193 = vpop.f32.mrb[0].mxu0
        %8194 = vdwg.mxu0
        %v8195 = vadd.f32 %v8105, %v8190
        %s8196 = scalar_lea.vmem [#allocation7], 3
        %v8197 = vld [vmem:[%s8196] ss:$16 sm:$0x3]
        %v8198 = vld [vmem:[%s8196] ss:$16 sm:$0xc]
        %v8199 = vor.u32 %v8197, %v8198
        %v8200 = vld [vmem:[%s8196] ss:$16 sm:$0x30]
        %v8201 = vor.u32 %v8199, %v8200
        %v8202 = vld [vmem:[%s8196] ss:$16 sm:$0xc0]
        %v8203 = vor.u32 %v8201, %v8202
        %v8204 = vpack.c.bf16 %v8203, %v8203
        %s8205 = scalar_lea.vmem %s7, 96
        %v8206 = vld [vmem:[%s8205] sm:$0xf]
        %v8207 = vld [vmem:[%s8205 + $0x4] sm:$0xf]
        %v8208 = vld [vmem:[%s8205 + $0x8] sm:$0xf]
        %v8209 = vld [vmem:[%s8205 + $0xc] sm:$0xf]
        %v8210 = vld [vmem:[%s8205 + $0x10] sm:$0xf]
        %v8211 = vld [vmem:[%s8205 + $0x14] sm:$0xf]
        %v8212 = vld [vmem:[%s8205 + $0x18] sm:$0xf]
        %v8213 = vld [vmem:[%s8205 + $0x1c] sm:$0xf]
        %v8222 = vunpack.c.l.b16 %v8206
        %v8223 = vunpack.c.l.b16 %v8207
        %v8224 = vunpack.c.l.b16 %v8208
        %v8225 = vunpack.c.l.b16 %v8209
        %v8226 = vunpack.c.l.b16 %v8210
        %v8227 = vunpack.c.l.b16 %v8211
        %v8228 = vunpack.c.l.b16 %v8212
        %v8229 = vunpack.c.l.b16 %v8213
        %v8230 = vpack.c.b16 %v8223, %v8222
        %v8231 = vpack.c.b16 %v8225, %v8224
        %v8232 = vpack.c.b16 %v8227, %v8226
        %v8233 = vpack.c.b16 %v8229, %v8228
        %v8239 = vsel %vm7999, %v8204, 0
        %8241 = vmatprep.subr.bf16.mxu0 0
        %8242 = vmatpush1.bf16.msra.mxu0 %v8230
        %8243 = vmatprep.subr.bf16.mxu0 0
        %8244 = vmatpush1.bf16.msra.mxu0 %v8231
        %8245 = vmatprep.subr.bf16.mxu0 0
        %8246 = vmatpush1.bf16.msra.mxu0 %v8232
        %8247 = vmatprep.subr.bf16.mxu0 0
        %8248 = vmatpush1.bf16.msra.mxu0 %v8233
        %8249 = vmatprep.subr.bf16.mxu0 0
        %8250 = vmatpush1.bf16.msra.mxu0 0
        %8251 = vmatprep.subr.bf16.mxu0 0
        %8252 = vmatpush1.bf16.msra.mxu0 0
        %8253 = vmatprep.subr.bf16.mxu0 0
        %8254 = vmatpush1.bf16.msra.mxu0 0
        %8255 = vmatprep.subr.bf16.mxu0 0
        %8256 = vmatpush1.bf16.msra.mxu0 0
        %8257 = vmatprep.subr.bf16.mxu0 0
        %8258 = vmatpush1.bf16.msra.mxu0 0
        %8259 = vmatprep.subr.bf16.mxu0 0
        %8260 = vmatpush1.bf16.msra.mxu0 0
        %8261 = vmatprep.subr.bf16.mxu0 0
        %8262 = vmatpush1.bf16.msra.mxu0 0
        %8263 = vmatprep.subr.bf16.mxu0 0
        %8264 = vmatpush1.bf16.msra.mxu0 0
        %8265 = vmatprep.subr.bf16.mxu0 0
        %8266 = vmatpush1.bf16.msra.mxu0 0
        %8267 = vmatprep.subr.bf16.mxu0 0
        %8268 = vmatpush1.bf16.msra.mxu0 0
        %8269 = vmatprep.subr.bf16.mxu0 0
        %8270 = vmatpush1.bf16.msra.mxu0 0
        %8271 = vmatprep.subr.bf16.mxu0 0
        %8272 = vmatpush1.bf16.msra.mxu0 0
        %8273 = vmatprep.mubr.bf16.mxu0 0
        %8274 = vmatmul.mubr.bf16.gmra.mrb[0].mxu0 %v8239
        %v8275 = vpop.f32.mrb[0].mxu0
        %v8276 = vadd.f32 0.0, %v8275
        %v8277 = vpop.f32.mrb[0].mxu0
        %v8278 = vpop.f32.mrb[0].mxu0
        %v8279 = vpop.f32.mrb[0].mxu0
        %8280 = vdwg.mxu0
        %v8281 = vadd.f32 %v8195, %v8276
        %s8282 = scalar_lea.vmem [#allocation7], 4
        %v8283 = vld [vmem:[%s8282] ss:$16 sm:$0x3]
        %v8284 = vld [vmem:[%s8282] ss:$16 sm:$0xc]
        %v8285 = vor.u32 %v8283, %v8284
        %v8286 = vld [vmem:[%s8282] ss:$16 sm:$0x30]
        %v8287 = vor.u32 %v8285, %v8286
        %v8288 = vld [vmem:[%s8282] ss:$16 sm:$0xc0]
        %v8289 = vor.u32 %v8287, %v8288
        %v8290 = vpack.c.bf16 %v8289, %v8289
        %s8291 = scalar_lea.vmem %s7, 128
        %v8292 = vld [vmem:[%s8291] sm:$0xf]
        %v8293 = vld [vmem:[%s8291 + $0x4] sm:$0xf]
        %v8294 = vld [vmem:[%s8291 + $0x8] sm:$0xf]
        %v8295 = vld [vmem:[%s8291 + $0xc] sm:$0xf]
        %v8296 = vld [vmem:[%s8291 + $0x10] sm:$0xf]
        %v8297 = vld [vmem:[%s8291 + $0x14] sm:$0xf]
        %v8298 = vld [vmem:[%s8291 + $0x18] sm:$0xf]
        %v8299 = vld [vmem:[%s8291 + $0x1c] sm:$0xf]
        %v8308 = vunpack.c.l.b16 %v8292
        %v8309 = vunpack.c.l.b16 %v8293
        %v8310 = vunpack.c.l.b16 %v8294
        %v8311 = vunpack.c.l.b16 %v8295
        %v8312 = vunpack.c.l.b16 %v8296
        %v8313 = vunpack.c.l.b16 %v8297
        %v8314 = vunpack.c.l.b16 %v8298
        %v8315 = vunpack.c.l.b16 %v8299
        %v8316 = vpack.c.b16 %v8309, %v8308
        %v8317 = vpack.c.b16 %v8311, %v8310
        %v8318 = vpack.c.b16 %v8313, %v8312
        %v8319 = vpack.c.b16 %v8315, %v8314
        %v8325 = vsel %vm7999, %v8290, 0
        %8327 = vmatprep.subr.bf16.mxu0 0
        %8328 = vmatpush1.bf16.msra.mxu0 %v8316
        %8329 = vmatprep.subr.bf16.mxu0 0
        %8330 = vmatpush1.bf16.msra.mxu0 %v8317
        %8331 = vmatprep.subr.bf16.mxu0 0
        %8332 = vmatpush1.bf16.msra.mxu0 %v8318
        %8333 = vmatprep.subr.bf16.mxu0 0
        %8334 = vmatpush1.bf16.msra.mxu0 %v8319
        %8335 = vmatprep.subr.bf16.mxu0 0
        %8336 = vmatpush1.bf16.msra.mxu0 0
        %8337 = vmatprep.subr.bf16.mxu0 0
        %8338 = vmatpush1.bf16.msra.mxu0 0
        %8339 = vmatprep.subr.bf16.mxu0 0
        %8340 = vmatpush1.bf16.msra.mxu0 0
        %8341 = vmatprep.subr.bf16.mxu0 0
        %8342 = vmatpush1.bf16.msra.mxu0 0
        %8343 = vmatprep.subr.bf16.mxu0 0
        %8344 = vmatpush1.bf16.msra.mxu0 0
        %8345 = vmatprep.subr.bf16.mxu0 0
        %8346 = vmatpush1.bf16.msra.mxu0 0
        %8347 = vmatprep.subr.bf16.mxu0 0
        %8348 = vmatpush1.bf16.msra.mxu0 0
        %8349 = vmatprep.subr.bf16.mxu0 0
        %8350 = vmatpush1.bf16.msra.mxu0 0
        %8351 = vmatprep.subr.bf16.mxu0 0
        %8352 = vmatpush1.bf16.msra.mxu0 0
        %8353 = vmatprep.subr.bf16.mxu0 0
        %8354 = vmatpush1.bf16.msra.mxu0 0
        %8355 = vmatprep.subr.bf16.mxu0 0
        %8356 = vmatpush1.bf16.msra.mxu0 0
        %8357 = vmatprep.subr.bf16.mxu0 0
        %8358 = vmatpush1.bf16.msra.mxu0 0
        %8359 = vmatprep.mubr.bf16.mxu0 0
        %8360 = vmatmul.mubr.bf16.gmra.mrb[0].mxu0 %v8325
        %v8361 = vpop.f32.mrb[0].mxu0
        %v8362 = vadd.f32 0.0, %v8361
        %v8363 = vpop.f32.mrb[0].mxu0
        %v8364 = vpop.f32.mrb[0].mxu0
        %v8365 = vpop.f32.mrb[0].mxu0
        %8366 = vdwg.mxu0
        %v8367 = vadd.f32 %v8281, %v8362
        %s8368 = scalar_lea.vmem [#allocation7], 5
        %v8369 = vld [vmem:[%s8368] ss:$16 sm:$0x3]
        %v8370 = vld [vmem:[%s8368] ss:$16 sm:$0xc]
        %v8371 = vor.u32 %v8369, %v8370
        %v8372 = vld [vmem:[%s8368] ss:$16 sm:$0x30]
        %v8373 = vor.u32 %v8371, %v8372
        %v8374 = vld [vmem:[%s8368] ss:$16 sm:$0xc0]
        %v8375 = vor.u32 %v8373, %v8374
        %v8376 = vpack.c.bf16 %v8375, %v8375
        %s8377 = scalar_lea.vmem %s7, 160
        %v8378 = vld [vmem:[%s8377] sm:$0xf]
        %v8379 = vld [vmem:[%s8377 + $0x4] sm:$0xf]
        %v8380 = vld [vmem:[%s8377 + $0x8] sm:$0xf]
        %v8381 = vld [vmem:[%s8377 + $0xc] sm:$0xf]
        %v8382 = vld [vmem:[%s8377 + $0x10] sm:$0xf]
        %v8383 = vld [vmem:[%s8377 + $0x14] sm:$0xf]
        %v8384 = vld [vmem:[%s8377 + $0x18] sm:$0xf]
        %v8385 = vld [vmem:[%s8377 + $0x1c] sm:$0xf]
        %v8394 = vunpack.c.l.b16 %v8378
        %v8395 = vunpack.c.l.b16 %v8379
        %v8396 = vunpack.c.l.b16 %v8380
        %v8397 = vunpack.c.l.b16 %v8381
        %v8398 = vunpack.c.l.b16 %v8382
        %v8399 = vunpack.c.l.b16 %v8383
        %v8400 = vunpack.c.l.b16 %v8384
        %v8401 = vunpack.c.l.b16 %v8385
        %v8402 = vpack.c.b16 %v8395, %v8394
        %v8403 = vpack.c.b16 %v8397, %v8396
        %v8404 = vpack.c.b16 %v8399, %v8398
        %v8405 = vpack.c.b16 %v8401, %v8400
        %v8411 = vsel %vm7999, %v8376, 0
        %8413 = vmatprep.subr.bf16.mxu0 0
        %8414 = vmatpush1.bf16.msra.mxu0 %v8402
        %8415 = vmatprep.subr.bf16.mxu0 0
        %8416 = vmatpush1.bf16.msra.mxu0 %v8403
        %8417 = vmatprep.subr.bf16.mxu0 0
        %8418 = vmatpush1.bf16.msra.mxu0 %v8404
        %8419 = vmatprep.subr.bf16.mxu0 0
        %8420 = vmatpush1.bf16.msra.mxu0 %v8405
        %8421 = vmatprep.subr.bf16.mxu0 0
        %8422 = vmatpush1.bf16.msra.mxu0 0
        %8423 = vmatprep.subr.bf16.mxu0 0
        %8424 = vmatpush1.bf16.msra.mxu0 0
        %8425 = vmatprep.subr.bf16.mxu0 0
        %8426 = vmatpush1.bf16.msra.mxu0 0
        %8427 = vmatprep.subr.bf16.mxu0 0
        %8428 = vmatpush1.bf16.msra.mxu0 0
        %8429 = vmatprep.subr.bf16.mxu0 0
        %8430 = vmatpush1.bf16.msra.mxu0 0
        %8431 = vmatprep.subr.bf16.mxu0 0
        %8432 = vmatpush1.bf16.msra.mxu0 0
        %8433 = vmatprep.subr.bf16.mxu0 0
        %8434 = vmatpush1.bf16.msra.mxu0 0
        %8435 = vmatprep.subr.bf16.mxu0 0
        %8436 = vmatpush1.bf16.msra.mxu0 0
        %8437 = vmatprep.subr.bf16.mxu0 0
        %8438 = vmatpush1.bf16.msra.mxu0 0
        %8439 = vmatprep.subr.bf16.mxu0 0
        %8440 = vmatpush1.bf16.msra.mxu0 0
        %8441 = vmatprep.subr.bf16.mxu0 0
        %8442 = vmatpush1.bf16.msra.mxu0 0
        %8443 = vmatprep.subr.bf16.mxu0 0
        %8444 = vmatpush1.bf16.msra.mxu0 0
        %8445 = vmatprep.mubr.bf16.mxu0 0
        %8446 = vmatmul.mubr.bf16.gmra.mrb[0].mxu0 %v8411
        %v8447 = vpop.f32.mrb[0].mxu0
        %v8448 = vadd.f32 0.0, %v8447
        %v8449 = vpop.f32.mrb[0].mxu0
        %v8450 = vpop.f32.mrb[0].mxu0
        %v8451 = vpop.f32.mrb[0].mxu0
        %8452 = vdwg.mxu0
        %v8453 = vadd.f32 %v8367, %v8448
        %s8454 = scalar_lea.vmem [#allocation7], 6
        %v8455 = vld [vmem:[%s8454] ss:$16 sm:$0x3]
        %v8456 = vld [vmem:[%s8454] ss:$16 sm:$0xc]
        %v8457 = vor.u32 %v8455, %v8456
        %v8458 = vld [vmem:[%s8454] ss:$16 sm:$0x30]
        %v8459 = vor.u32 %v8457, %v8458
        %v8460 = vld [vmem:[%s8454] ss:$16 sm:$0xc0]
        %v8461 = vor.u32 %v8459, %v8460
        %v8462 = vpack.c.bf16 %v8461, %v8461
        %s8463 = scalar_lea.vmem %s7, 192
        %v8464 = vld [vmem:[%s8463] sm:$0xf]
        %v8465 = vld [vmem:[%s8463 + $0x4] sm:$0xf]
        %v8466 = vld [vmem:[%s8463 + $0x8] sm:$0xf]
        %v8467 = vld [vmem:[%s8463 + $0xc] sm:$0xf]
        %v8468 = vld [vmem:[%s8463 + $0x10] sm:$0xf]
        %v8469 = vld [vmem:[%s8463 + $0x14] sm:$0xf]
        %v8470 = vld [vmem:[%s8463 + $0x18] sm:$0xf]
        %v8471 = vld [vmem:[%s8463 + $0x1c] sm:$0xf]
        %v8480 = vunpack.c.l.b16 %v8464
        %v8481 = vunpack.c.l.b16 %v8465
        %v8482 = vunpack.c.l.b16 %v8466
        %v8483 = vunpack.c.l.b16 %v8467
        %v8484 = vunpack.c.l.b16 %v8468
        %v8485 = vunpack.c.l.b16 %v8469
        %v8486 = vunpack.c.l.b16 %v8470
        %v8487 = vunpack.c.l.b16 %v8471
        %v8488 = vpack.c.b16 %v8481, %v8480
        %v8489 = vpack.c.b16 %v8483, %v8482
        %v8490 = vpack.c.b16 %v8485, %v8484
        %v8491 = vpack.c.b16 %v8487, %v8486
        %v8497 = vsel %vm7999, %v8462, 0
        %8499 = vmatprep.subr.bf16.mxu0 0
        %8500 = vmatpush1.bf16.msra.mxu0 %v8488
        %8501 = vmatprep.subr.bf16.mxu0 0
        %8502 = vmatpush1.bf16.msra.mxu0 %v8489
        %8503 = vmatprep.subr.bf16.mxu0 0
        %8504 = vmatpush1.bf16.msra.mxu0 %v8490
        %8505 = vmatprep.subr.bf16.mxu0 0
        %8506 = vmatpush1.bf16.msra.mxu0 %v8491
        %8507 = vmatprep.subr.bf16.mxu0 0
        %8508 = vmatpush1.bf16.msra.mxu0 0
        %8509 = vmatprep.subr.bf16.mxu0 0
        %8510 = vmatpush1.bf16.msra.mxu0 0
        %8511 = vmatprep.subr.bf16.mxu0 0
        %8512 = vmatpush1.bf16.msra.mxu0 0
        %8513 = vmatprep.subr.bf16.mxu0 0
        %8514 = vmatpush1.bf16.msra.mxu0 0
        %8515 = vmatprep.subr.bf16.mxu0 0
        %8516 = vmatpush1.bf16.msra.mxu0 0
        %8517 = vmatprep.subr.bf16.mxu0 0
        %8518 = vmatpush1.bf16.msra.mxu0 0
        %8519 = vmatprep.subr.bf16.mxu0 0
        %8520 = vmatpush1.bf16.msra.mxu0 0
        %8521 = vmatprep.subr.bf16.mxu0 0
        %8522 = vmatpush1.bf16.msra.mxu0 0
        %8523 = vmatprep.subr.bf16.mxu0 0
        %8524 = vmatpush1.bf16.msra.mxu0 0
        %8525 = vmatprep.subr.bf16.mxu0 0
        %8526 = vmatpush1.bf16.msra.mxu0 0
        %8527 = vmatprep.subr.bf16.mxu0 0
        %8528 = vmatpush1.bf16.msra.mxu0 0
        %8529 = vmatprep.subr.bf16.mxu0 0
        %8530 = vmatpush1.bf16.msra.mxu0 0
        %8531 = vmatprep.mubr.bf16.mxu0 0
        %8532 = vmatmul.mubr.bf16.gmra.mrb[0].mxu0 %v8497
        %v8533 = vpop.f32.mrb[0].mxu0
        %v8534 = vadd.f32 0.0, %v8533
        %v8535 = vpop.f32.mrb[0].mxu0
        %v8536 = vpop.f32.mrb[0].mxu0
        %v8537 = vpop.f32.mrb[0].mxu0
        %8538 = vdwg.mxu0
        %v8539 = vadd.f32 %v8453, %v8534
        %s8540 = scalar_lea.vmem [#allocation7], 7
        %v8541 = vld [vmem:[%s8540] ss:$16 sm:$0x3]
        %v8542 = vld [vmem:[%s8540] ss:$16 sm:$0xc]
        %v8543 = vor.u32 %v8541, %v8542
        %v8544 = vld [vmem:[%s8540] ss:$16 sm:$0x30]
        %v8545 = vor.u32 %v8543, %v8544
        %v8546 = vld [vmem:[%s8540] ss:$16 sm:$0xc0]
        %v8547 = vor.u32 %v8545, %v8546
        %v8548 = vpack.c.bf16 %v8547, %v8547
        %s8549 = scalar_lea.vmem %s7, 224
        %v8550 = vld [vmem:[%s8549] sm:$0xf]
        %v8551 = vld [vmem:[%s8549 + $0x4] sm:$0xf]
        %v8552 = vld [vmem:[%s8549 + $0x8] sm:$0xf]
        %v8553 = vld [vmem:[%s8549 + $0xc] sm:$0xf]
        %v8554 = vld [vmem:[%s8549 + $0x10] sm:$0xf]
        %v8555 = vld [vmem:[%s8549 + $0x14] sm:$0xf]
        %v8556 = vld [vmem:[%s8549 + $0x18] sm:$0xf]
        %v8557 = vld [vmem:[%s8549 + $0x1c] sm:$0xf]
        %v8566 = vunpack.c.l.b16 %v8550
        %v8567 = vunpack.c.l.b16 %v8551
        %v8568 = vunpack.c.l.b16 %v8552
        %v8569 = vunpack.c.l.b16 %v8553
        %v8570 = vunpack.c.l.b16 %v8554
        %v8571 = vunpack.c.l.b16 %v8555
        %v8572 = vunpack.c.l.b16 %v8556
        %v8573 = vunpack.c.l.b16 %v8557
        %v8574 = vpack.c.b16 %v8567, %v8566
        %v8575 = vpack.c.b16 %v8569, %v8568
        %v8576 = vpack.c.b16 %v8571, %v8570
        %v8577 = vpack.c.b16 %v8573, %v8572
        %v8583 = vsel %vm7999, %v8548, 0
        %8585 = vmatprep.subr.bf16.mxu0 0
        %8586 = vmatpush1.bf16.msra.mxu0 %v8574
        %8587 = vmatprep.subr.bf16.mxu0 0
        %8588 = vmatpush1.bf16.msra.mxu0 %v8575
        %8589 = vmatprep.subr.bf16.mxu0 0
        %8590 = vmatpush1.bf16.msra.mxu0 %v8576
        %8591 = vmatprep.subr.bf16.mxu0 0
        %8592 = vmatpush1.bf16.msra.mxu0 %v8577
        %8593 = vmatprep.subr.bf16.mxu0 0
        %8594 = vmatpush1.bf16.msra.mxu0 0
        %8595 = vmatprep.subr.bf16.mxu0 0
        %8596 = vmatpush1.bf16.msra.mxu0 0
        %8597 = vmatprep.subr.bf16.mxu0 0
        %8598 = vmatpush1.bf16.msra.mxu0 0
        %8599 = vmatprep.subr.bf16.mxu0 0
        %8600 = vmatpush1.bf16.msra.mxu0 0
        %8601 = vmatprep.subr.bf16.mxu0 0
        %8602 = vmatpush1.bf16.msra.mxu0 0
        %8603 = vmatprep.subr.bf16.mxu0 0
        %8604 = vmatpush1.bf16.msra.mxu0 0
        %8605 = vmatprep.subr.bf16.mxu0 0
        %8606 = vmatpush1.bf16.msra.mxu0 0
        %8607 = vmatprep.subr.bf16.mxu0 0
        %8608 = vmatpush1.bf16.msra.mxu0 0
        %8609 = vmatprep.subr.bf16.mxu0 0
        %8610 = vmatpush1.bf16.msra.mxu0 0
        %8611 = vmatprep.subr.bf16.mxu0 0
        %8612 = vmatpush1.bf16.msra.mxu0 0
        %8613 = vmatprep.subr.bf16.mxu0 0
        %8614 = vmatpush1.bf16.msra.mxu0 0
        %8615 = vmatprep.subr.bf16.mxu0 0
        %8616 = vmatpush1.bf16.msra.mxu0 0
        %8617 = vmatprep.mubr.bf16.mxu0 0
        %8618 = vmatmul.mubr.bf16.gmra.mrb[0].mxu0 %v8583
        %v8619 = vpop.f32.mrb[0].mxu0
        %v8620 = vadd.f32 0.0, %v8619
        %v8621 = vpop.f32.mrb[0].mxu0
        %v8622 = vpop.f32.mrb[0].mxu0
        %v8623 = vpop.f32.mrb[0].mxu0
        %8624 = vdwg.mxu0
        %v8625 = vadd.f32 %v8539, %v8620
        %s8626 = scalar_lea.vmem [#allocation7], 8
        %v8627 = vld [vmem:[%s8626] ss:$16 sm:$0x3]
        %v8628 = vld [vmem:[%s8626] ss:$16 sm:$0xc]
        %v8629 = vor.u32 %v8627, %v8628
        %v8630 = vld [vmem:[%s8626] ss:$16 sm:$0x30]
        %v8631 = vor.u32 %v8629, %v8630
        %v8632 = vld [vmem:[%s8626] ss:$16 sm:$0xc0]
        %v8633 = vor.u32 %v8631, %v8632
        %v8634 = vpack.c.bf16 %v8633, %v8633
        %s8635 = scalar_lea.vmem %s7, 256
        %v8636 = vld [vmem:[%s8635] sm:$0xf]
        %v8637 = vld [vmem:[%s8635 + $0x4] sm:$0xf]
        %v8638 = vld [vmem:[%s8635 + $0x8] sm:$0xf]
        %v8639 = vld [vmem:[%s8635 + $0xc] sm:$0xf]
        %v8640 = vld [vmem:[%s8635 + $0x10] sm:$0xf]
        %v8641 = vld [vmem:[%s8635 + $0x14] sm:$0xf]
        %v8642 = vld [vmem:[%s8635 + $0x18] sm:$0xf]
        %v8643 = vld [vmem:[%s8635 + $0x1c] sm:$0xf]
        %v8652 = vunpack.c.l.b16 %v8636
        %v8653 = vunpack.c.l.b16 %v8637
        %v8654 = vunpack.c.l.b16 %v8638
        %v8655 = vunpack.c.l.b16 %v8639
        %v8656 = vunpack.c.l.b16 %v8640
        %v8657 = vunpack.c.l.b16 %v8641
        %v8658 = vunpack.c.l.b16 %v8642
        %v8659 = vunpack.c.l.b16 %v8643
        %v8660 = vpack.c.b16 %v8653, %v8652
        %v8661 = vpack.c.b16 %v8655, %v8654
        %v8662 = vpack.c.b16 %v8657, %v8656
        %v8663 = vpack.c.b16 %v8659, %v8658
        %v8669 = vsel %vm7999, %v8634, 0
        %8671 = vmatprep.subr.bf16.mxu0 0
        %8672 = vmatpush1.bf16.msra.mxu0 %v8660
        %8673 = vmatprep.subr.bf16.mxu0 0
        %8674 = vmatpush1.bf16.msra.mxu0 %v8661
        %8675 = vmatprep.subr.bf16.mxu0 0
        %8676 = vmatpush1.bf16.msra.mxu0 %v8662
        %8677 = vmatprep.subr.bf16.mxu0 0
        %8678 = vmatpush1.bf16.msra.mxu0 %v8663
        %8679 = vmatprep.subr.bf16.mxu0 0
        %8680 = vmatpush1.bf16.msra.mxu0 0
        %8681 = vmatprep.subr.bf16.mxu0 0
        %8682 = vmatpush1.bf16.msra.mxu0 0
        %8683 = vmatprep.subr.bf16.mxu0 0
        %8684 = vmatpush1.bf16.msra.mxu0 0
        %8685 = vmatprep.subr.bf16.mxu0 0
        %8686 = vmatpush1.bf16.msra.mxu0 0
        %8687 = vmatprep.subr.bf16.mxu0 0
        %8688 = vmatpush1.bf16.msra.mxu0 0
        %8689 = vmatprep.subr.bf16.mxu0 0
        %8690 = vmatpush1.bf16.msra.mxu0 0
        %8691 = vmatprep.subr.bf16.mxu0 0
        %8692 = vmatpush1.bf16.msra.mxu0 0
        %8693 = vmatprep.subr.bf16.mxu0 0
        %8694 = vmatpush1.bf16.msra.mxu0 0
        %8695 = vmatprep.subr.bf16.mxu0 0
        %8696 = vmatpush1.bf16.msra.mxu0 0
        %8697 = vmatprep.subr.bf16.mxu0 0
        %8698 = vmatpush1.bf16.msra.mxu0 0
        %8699 = vmatprep.subr.bf16.mxu0 0
        %8700 = vmatpush1.bf16.msra.mxu0 0
        %8701 = vmatprep.subr.bf16.mxu0 0
        %8702 = vmatpush1.bf16.msra.mxu0 0
        %8703 = vmatprep.mubr.bf16.mxu0 0
        %8704 = vmatmul.mubr.bf16.gmra.mrb[0].mxu0 %v8669
        %v8705 = vpop.f32.mrb[0].mxu0
        %v8706 = vadd.f32 0.0, %v8705
        %v8707 = vpop.f32.mrb[0].mxu0
        %v8708 = vpop.f32.mrb[0].mxu0
        %v8709 = vpop.f32.mrb[0].mxu0
        %8710 = vdwg.mxu0
        %v8711 = vadd.f32 %v8625, %v8706
        %s8712 = scalar_lea.vmem [#allocation7], 9
        %v8713 = vld [vmem:[%s8712] ss:$16 sm:$0x3]
        %v8714 = vld [vmem:[%s8712] ss:$16 sm:$0xc]
        %v8715 = vor.u32 %v8713, %v8714
        %v8716 = vld [vmem:[%s8712] ss:$16 sm:$0x30]
        %v8717 = vor.u32 %v8715, %v8716
        %v8718 = vld [vmem:[%s8712] ss:$16 sm:$0xc0]
        %v8719 = vor.u32 %v8717, %v8718
        %v8720 = vpack.c.bf16 %v8719, %v8719
        %s8721 = scalar_lea.vmem %s7, 288
        %v8722 = vld [vmem:[%s8721] sm:$0xf]
        %v8723 = vld [vmem:[%s8721 + $0x4] sm:$0xf]
        %v8724 = vld [vmem:[%s8721 + $0x8] sm:$0xf]
        %v8725 = vld [vmem:[%s8721 + $0xc] sm:$0xf]
        %v8726 = vld [vmem:[%s8721 + $0x10] sm:$0xf]
        %v8727 = vld [vmem:[%s8721 + $0x14] sm:$0xf]
        %v8728 = vld [vmem:[%s8721 + $0x18] sm:$0xf]
        %v8729 = vld [vmem:[%s8721 + $0x1c] sm:$0xf]
        %v8738 = vunpack.c.l.b16 %v8722
        %v8739 = vunpack.c.l.b16 %v8723
        %v8740 = vunpack.c.l.b16 %v8724
        %v8741 = vunpack.c.l.b16 %v8725
        %v8742 = vunpack.c.l.b16 %v8726
        %v8743 = vunpack.c.l.b16 %v8727
        %v8744 = vunpack.c.l.b16 %v8728
        %v8745 = vunpack.c.l.b16 %v8729
        %v8746 = vpack.c.b16 %v8739, %v8738
        %v8747 = vpack.c.b16 %v8741, %v8740
        %v8748 = vpack.c.b16 %v8743, %v8742
        %v8749 = vpack.c.b16 %v8745, %v8744
        %v8755 = vsel %vm7999, %v8720, 0
        %8757 = vmatprep.subr.bf16.mxu0 0
        %8758 = vmatpush1.bf16.msra.mxu0 %v8746
        %8759 = vmatprep.subr.bf16.mxu0 0
        %8760 = vmatpush1.bf16.msra.mxu0 %v8747
        %8761 = vmatprep.subr.bf16.mxu0 0
        %8762 = vmatpush1.bf16.msra.mxu0 %v8748
        %8763 = vmatprep.subr.bf16.mxu0 0
        %8764 = vmatpush1.bf16.msra.mxu0 %v8749
        %8765 = vmatprep.subr.bf16.mxu0 0
        %8766 = vmatpush1.bf16.msra.mxu0 0
        %8767 = vmatprep.subr.bf16.mxu0 0
        %8768 = vmatpush1.bf16.msra.mxu0 0
        %8769 = vmatprep.subr.bf16.mxu0 0
        %8770 = vmatpush1.bf16.msra.mxu0 0
        %8771 = vmatprep.subr.bf16.mxu0 0
        %8772 = vmatpush1.bf16.msra.mxu0 0
        %8773 = vmatprep.subr.bf16.mxu0 0
        %8774 = vmatpush1.bf16.msra.mxu0 0
        %8775 = vmatprep.subr.bf16.mxu0 0
        %8776 = vmatpush1.bf16.msra.mxu0 0
        %8777 = vmatprep.subr.bf16.mxu0 0
        %8778 = vmatpush1.bf16.msra.mxu0 0
        %8779 = vmatprep.subr.bf16.mxu0 0
        %8780 = vmatpush1.bf16.msra.mxu0 0
        %8781 = vmatprep.subr.bf16.mxu0 0
        %8782 = vmatpush1.bf16.msra.mxu0 0
        %8783 = vmatprep.subr.bf16.mxu0 0
        %8784 = vmatpush1.bf16.msra.mxu0 0
        %8785 = vmatprep.subr.bf16.mxu0 0
        %8786 = vmatpush1.bf16.msra.mxu0 0
        %8787 = vmatprep.subr.bf16.mxu0 0
        %8788 = vmatpush1.bf16.msra.mxu0 0
        %8789 = vmatprep.mubr.bf16.mxu0 0
        %8790 = vmatmul.mubr.bf16.gmra.mrb[0].mxu0 %v8755
        %v8791 = vpop.f32.mrb[0].mxu0
        %v8792 = vadd.f32 0.0, %v8791
        %v8793 = vpop.f32.mrb[0].mxu0
        %v8794 = vpop.f32.mrb[0].mxu0
        %v8795 = vpop.f32.mrb[0].mxu0
        %8796 = vdwg.mxu0
        %v8797 = vadd.f32 %v8711, %v8792
        %s8798 = scalar_lea.vmem [#allocation7], 10
        %v8799 = vld [vmem:[%s8798] ss:$16 sm:$0x3]
        %v8800 = vld [vmem:[%s8798] ss:$16 sm:$0xc]
        %v8801 = vor.u32 %v8799, %v8800
        %v8802 = vld [vmem:[%s8798] ss:$16 sm:$0x30]
        %v8803 = vor.u32 %v8801, %v8802
        %v8804 = vld [vmem:[%s8798] ss:$16 sm:$0xc0]
        %v8805 = vor.u32 %v8803, %v8804
        %v8806 = vpack.c.bf16 %v8805, %v8805
        %s8807 = scalar_lea.vmem %s7, 320
        %v8808 = vld [vmem:[%s8807] sm:$0xf]
        %v8809 = vld [vmem:[%s8807 + $0x4] sm:$0xf]
        %v8810 = vld [vmem:[%s8807 + $0x8] sm:$0xf]
        %v8811 = vld [vmem:[%s8807 + $0xc] sm:$0xf]
        %v8812 = vld [vmem:[%s8807 + $0x10] sm:$0xf]
        %v8813 = vld [vmem:[%s8807 + $0x14] sm:$0xf]
        %v8814 = vld [vmem:[%s8807 + $0x18] sm:$0xf]
        %v8815 = vld [vmem:[%s8807 + $0x1c] sm:$0xf]
        %v8824 = vunpack.c.l.b16 %v8808
        %v8825 = vunpack.c.l.b16 %v8809
        %v8826 = vunpack.c.l.b16 %v8810
        %v8827 = vunpack.c.l.b16 %v8811
        %v8828 = vunpack.c.l.b16 %v8812
        %v8829 = vunpack.c.l.b16 %v8813
        %v8830 = vunpack.c.l.b16 %v8814
        %v8831 = vunpack.c.l.b16 %v8815
        %v8832 = vpack.c.b16 %v8825, %v8824
        %v8833 = vpack.c.b16 %v8827, %v8826
        %v8834 = vpack.c.b16 %v8829, %v8828
        %v8835 = vpack.c.b16 %v8831, %v8830
        %v8841 = vsel %vm7999, %v8806, 0
        %8843 = vmatprep.subr.bf16.mxu0 0
        %8844 = vmatpush1.bf16.msra.mxu0 %v8832
        %8845 = vmatprep.subr.bf16.mxu0 0
        %8846 = vmatpush1.bf16.msra.mxu0 %v8833
        %8847 = vmatprep.subr.bf16.mxu0 0
        %8848 = vmatpush1.bf16.msra.mxu0 %v8834
        %8849 = vmatprep.subr.bf16.mxu0 0
        %8850 = vmatpush1.bf16.msra.mxu0 %v8835
        %8851 = vmatprep.subr.bf16.mxu0 0
        %8852 = vmatpush1.bf16.msra.mxu0 0
        %8853 = vmatprep.subr.bf16.mxu0 0
        %8854 = vmatpush1.bf16.msra.mxu0 0
        %8855 = vmatprep.subr.bf16.mxu0 0
        %8856 = vmatpush1.bf16.msra.mxu0 0
        %8857 = vmatprep.subr.bf16.mxu0 0
        %8858 = vmatpush1.bf16.msra.mxu0 0
        %8859 = vmatprep.subr.bf16.mxu0 0
        %8860 = vmatpush1.bf16.msra.mxu0 0
        %8861 = vmatprep.subr.bf16.mxu0 0
        %8862 = vmatpush1.bf16.msra.mxu0 0
        %8863 = vmatprep.subr.bf16.mxu0 0
        %8864 = vmatpush1.bf16.msra.mxu0 0
        %8865 = vmatprep.subr.bf16.mxu0 0
        %8866 = vmatpush1.bf16.msra.mxu0 0
        %8867 = vmatprep.subr.bf16.mxu0 0
        %8868 = vmatpush1.bf16.msra.mxu0 0
        %8869 = vmatprep.subr.bf16.mxu0 0
        %8870 = vmatpush1.bf16.msra.mxu0 0
        %8871 = vmatprep.subr.bf16.mxu0 0
        %8872 = vmatpush1.bf16.msra.mxu0 0
        %8873 = vmatprep.subr.bf16.mxu0 0
        %8874 = vmatpush1.bf16.msra.mxu0 0
        %8875 = vmatprep.mubr.bf16.mxu0 0
        %8876 = vmatmul.mubr.bf16.gmra.mrb[0].mxu0 %v8841
        %v8877 = vpop.f32.mrb[0].mxu0
        %v8878 = vadd.f32 0.0, %v8877
        %v8879 = vpop.f32.mrb[0].mxu0
        %v8880 = vpop.f32.mrb[0].mxu0
        %v8881 = vpop.f32.mrb[0].mxu0
        %8882 = vdwg.mxu0
        %v8883 = vadd.f32 %v8797, %v8878
        %s8884 = scalar_lea.vmem [#allocation7], 11
        %v8885 = vld [vmem:[%s8884] ss:$16 sm:$0x3]
        %v8886 = vld [vmem:[%s8884] ss:$16 sm:$0xc]
        %v8887 = vor.u32 %v8885, %v8886
        %v8888 = vld [vmem:[%s8884] ss:$16 sm:$0x30]
        %v8889 = vor.u32 %v8887, %v8888
        %v8890 = vld [vmem:[%s8884] ss:$16 sm:$0xc0]
        %v8891 = vor.u32 %v8889, %v8890
        %v8892 = vpack.c.bf16 %v8891, %v8891
        %s8893 = scalar_lea.vmem %s7, 352
        %v8894 = vld [vmem:[%s8893] sm:$0xf]
        %v8895 = vld [vmem:[%s8893 + $0x4] sm:$0xf]
        %v8896 = vld [vmem:[%s8893 + $0x8] sm:$0xf]
        %v8897 = vld [vmem:[%s8893 + $0xc] sm:$0xf]
        %v8898 = vld [vmem:[%s8893 + $0x10] sm:$0xf]
        %v8899 = vld [vmem:[%s8893 + $0x14] sm:$0xf]
        %v8900 = vld [vmem:[%s8893 + $0x18] sm:$0xf]
        %v8901 = vld [vmem:[%s8893 + $0x1c] sm:$0xf]
        %v8910 = vunpack.c.l.b16 %v8894
        %v8911 = vunpack.c.l.b16 %v8895
        %v8912 = vunpack.c.l.b16 %v8896
        %v8913 = vunpack.c.l.b16 %v8897
        %v8914 = vunpack.c.l.b16 %v8898
        %v8915 = vunpack.c.l.b16 %v8899
        %v8916 = vunpack.c.l.b16 %v8900
        %v8917 = vunpack.c.l.b16 %v8901
        %v8918 = vpack.c.b16 %v8911, %v8910
        %v8919 = vpack.c.b16 %v8913, %v8912
        %v8920 = vpack.c.b16 %v8915, %v8914
        %v8921 = vpack.c.b16 %v8917, %v8916
        %v8927 = vsel %vm7999, %v8892, 0
        %8929 = vmatprep.subr.bf16.mxu0 0
        %8930 = vmatpush1.bf16.msra.mxu0 %v8918
        %8931 = vmatprep.subr.bf16.mxu0 0
        %8932 = vmatpush1.bf16.msra.mxu0 %v8919
        %8933 = vmatprep.subr.bf16.mxu0 0
        %8934 = vmatpush1.bf16.msra.mxu0 %v8920
        %8935 = vmatprep.subr.bf16.mxu0 0
        %8936 = vmatpush1.bf16.msra.mxu0 %v8921
        %8937 = vmatprep.subr.bf16.mxu0 0
        %8938 = vmatpush1.bf16.msra.mxu0 0
        %8939 = vmatprep.subr.bf16.mxu0 0
        %8940 = vmatpush1.bf16.msra.mxu0 0
        %8941 = vmatprep.subr.bf16.mxu0 0
        %8942 = vmatpush1.bf16.msra.mxu0 0
        %8943 = vmatprep.subr.bf16.mxu0 0
        %8944 = vmatpush1.bf16.msra.mxu0 0
        %8945 = vmatprep.subr.bf16.mxu0 0
        %8946 = vmatpush1.bf16.msra.mxu0 0
        %8947 = vmatprep.subr.bf16.mxu0 0
        %8948 = vmatpush1.bf16.msra.mxu0 0
        %8949 = vmatprep.subr.bf16.mxu0 0
        %8950 = vmatpush1.bf16.msra.mxu0 0
        %8951 = vmatprep.subr.bf16.mxu0 0
        %8952 = vmatpush1.bf16.msra.mxu0 0
        %8953 = vmatprep.subr.bf16.mxu0 0
        %8954 = vmatpush1.bf16.msra.mxu0 0
        %8955 = vmatprep.subr.bf16.mxu0 0
        %8956 = vmatpush1.bf16.msra.mxu0 0
        %8957 = vmatprep.subr.bf16.mxu0 0
        %8958 = vmatpush1.bf16.msra.mxu0 0
        %8959 = vmatprep.subr.bf16.mxu0 0
        %8960 = vmatpush1.bf16.msra.mxu0 0
        %8961 = vmatprep.mubr.bf16.mxu0 0
        %8962 = vmatmul.mubr.bf16.gmra.mrb[0].mxu0 %v8927
        %v8963 = vpop.f32.mrb[0].mxu0
        %v8964 = vadd.f32 0.0, %v8963
        %v8965 = vpop.f32.mrb[0].mxu0
        %v8966 = vpop.f32.mrb[0].mxu0
        %v8967 = vpop.f32.mrb[0].mxu0
        %8968 = vdwg.mxu0
        %v8969 = vadd.f32 %v8883, %v8964
        %s8970 = scalar_lea.vmem [#allocation7], 12
        %v8971 = vld [vmem:[%s8970] ss:$16 sm:$0x3]
        %v8972 = vld [vmem:[%s8970] ss:$16 sm:$0xc]
        %v8973 = vor.u32 %v8971, %v8972
        %v8974 = vld [vmem:[%s8970] ss:$16 sm:$0x30]
        %v8975 = vor.u32 %v8973, %v8974
        %v8976 = vld [vmem:[%s8970] ss:$16 sm:$0xc0]
        %v8977 = vor.u32 %v8975, %v8976
        %v8978 = vpack.c.bf16 %v8977, %v8977
        %s8979 = scalar_lea.vmem %s7, 384
        %v8980 = vld [vmem:[%s8979] sm:$0xf]
        %v8981 = vld [vmem:[%s8979 + $0x4] sm:$0xf]
        %v8982 = vld [vmem:[%s8979 + $0x8] sm:$0xf]
        %v8983 = vld [vmem:[%s8979 + $0xc] sm:$0xf]
        %v8984 = vld [vmem:[%s8979 + $0x10] sm:$0xf]
        %v8985 = vld [vmem:[%s8979 + $0x14] sm:$0xf]
        %v8986 = vld [vmem:[%s8979 + $0x18] sm:$0xf]
        %v8987 = vld [vmem:[%s8979 + $0x1c] sm:$0xf]
        %v8996 = vunpack.c.l.b16 %v8980
        %v8997 = vunpack.c.l.b16 %v8981
        %v8998 = vunpack.c.l.b16 %v8982
        %v8999 = vunpack.c.l.b16 %v8983
        %v9000 = vunpack.c.l.b16 %v8984
        %v9001 = vunpack.c.l.b16 %v8985
        %v9002 = vunpack.c.l.b16 %v8986
        %v9003 = vunpack.c.l.b16 %v8987
        %v9004 = vpack.c.b16 %v8997, %v8996
        %v9005 = vpack.c.b16 %v8999, %v8998
        %v9006 = vpack.c.b16 %v9001, %v9000
        %v9007 = vpack.c.b16 %v9003, %v9002
        %v9013 = vsel %vm7999, %v8978, 0
        %9015 = vmatprep.subr.bf16.mxu0 0
        %9016 = vmatpush1.bf16.msra.mxu0 %v9004
        %9017 = vmatprep.subr.bf16.mxu0 0
        %9018 = vmatpush1.bf16.msra.mxu0 %v9005
        %9019 = vmatprep.subr.bf16.mxu0 0
        %9020 = vmatpush1.bf16.msra.mxu0 %v9006
        %9021 = vmatprep.subr.bf16.mxu0 0
        %9022 = vmatpush1.bf16.msra.mxu0 %v9007
        %9023 = vmatprep.subr.bf16.mxu0 0
        %9024 = vmatpush1.bf16.msra.mxu0 0
        %9025 = vmatprep.subr.bf16.mxu0 0
        %9026 = vmatpush1.bf16.msra.mxu0 0
        %9027 = vmatprep.subr.bf16.mxu0 0
        %9028 = vmatpush1.bf16.msra.mxu0 0
        %9029 = vmatprep.subr.bf16.mxu0 0
        %9030 = vmatpush1.bf16.msra.mxu0 0
        %9031 = vmatprep.subr.bf16.mxu0 0
        %9032 = vmatpush1.bf16.msra.mxu0 0
        %9033 = vmatprep.subr.bf16.mxu0 0
        %9034 = vmatpush1.bf16.msra.mxu0 0
        %9035 = vmatprep.subr.bf16.mxu0 0
        %9036 = vmatpush1.bf16.msra.mxu0 0
        %9037 = vmatprep.subr.bf16.mxu0 0
        %9038 = vmatpush1.bf16.msra.mxu0 0
        %9039 = vmatprep.subr.bf16.mxu0 0
        %9040 = vmatpush1.bf16.msra.mxu0 0
        %9041 = vmatprep.subr.bf16.mxu0 0
        %9042 = vmatpush1.bf16.msra.mxu0 0
        %9043 = vmatprep.subr.bf16.mxu0 0
        %9044 = vmatpush1.bf16.msra.mxu0 0
        %9045 = vmatprep.subr.bf16.mxu0 0
        %9046 = vmatpush1.bf16.msra.mxu0 0
        %9047 = vmatprep.mubr.bf16.mxu0 0
        %9048 = vmatmul.mubr.bf16.gmra.mrb[0].mxu0 %v9013
        %v9049 = vpop.f32.mrb[0].mxu0
        %v9050 = vadd.f32 0.0, %v9049
        %v9051 = vpop.f32.mrb[0].mxu0
        %v9052 = vpop.f32.mrb[0].mxu0
        %v9053 = vpop.f32.mrb[0].mxu0
        %9054 = vdwg.mxu0
        %v9055 = vadd.f32 %v8969, %v9050
        %s9056 = scalar_lea.vmem [#allocation7], 13
        %v9057 = vld [vmem:[%s9056] ss:$16 sm:$0x3]
        %v9058 = vld [vmem:[%s9056] ss:$16 sm:$0xc]
        %v9059 = vor.u32 %v9057, %v9058
        %v9060 = vld [vmem:[%s9056] ss:$16 sm:$0x30]
        %v9061 = vor.u32 %v9059, %v9060
        %v9062 = vld [vmem:[%s9056] ss:$16 sm:$0xc0]
        %v9063 = vor.u32 %v9061, %v9062
        %v9064 = vpack.c.bf16 %v9063, %v9063
        %s9065 = scalar_lea.vmem %s7, 416
        %v9066 = vld [vmem:[%s9065] sm:$0xf]
        %v9067 = vld [vmem:[%s9065 + $0x4] sm:$0xf]
        %v9068 = vld [vmem:[%s9065 + $0x8] sm:$0xf]
        %v9069 = vld [vmem:[%s9065 + $0xc] sm:$0xf]
        %v9070 = vld [vmem:[%s9065 + $0x10] sm:$0xf]
        %v9071 = vld [vmem:[%s9065 + $0x14] sm:$0xf]
        %v9072 = vld [vmem:[%s9065 + $0x18] sm:$0xf]
        %v9073 = vld [vmem:[%s9065 + $0x1c] sm:$0xf]
        %v9082 = vunpack.c.l.b16 %v9066
        %v9083 = vunpack.c.l.b16 %v9067
        %v9084 = vunpack.c.l.b16 %v9068
        %v9085 = vunpack.c.l.b16 %v9069
        %v9086 = vunpack.c.l.b16 %v9070
        %v9087 = vunpack.c.l.b16 %v9071
        %v9088 = vunpack.c.l.b16 %v9072
        %v9089 = vunpack.c.l.b16 %v9073
        %v9090 = vpack.c.b16 %v9083, %v9082
        %v9091 = vpack.c.b16 %v9085, %v9084
        %v9092 = vpack.c.b16 %v9087, %v9086
        %v9093 = vpack.c.b16 %v9089, %v9088
        %v9099 = vsel %vm7999, %v9064, 0
        %9101 = vmatprep.subr.bf16.mxu0 0
        %9102 = vmatpush1.bf16.msra.mxu0 %v9090
        %9103 = vmatprep.subr.bf16.mxu0 0
        %9104 = vmatpush1.bf16.msra.mxu0 %v9091
        %9105 = vmatprep.subr.bf16.mxu0 0
        %9106 = vmatpush1.bf16.msra.mxu0 %v9092
        %9107 = vmatprep.subr.bf16.mxu0 0
        %9108 = vmatpush1.bf16.msra.mxu0 %v9093
        %9109 = vmatprep.subr.bf16.mxu0 0
        %9110 = vmatpush1.bf16.msra.mxu0 0
        %9111 = vmatprep.subr.bf16.mxu0 0
        %9112 = vmatpush1.bf16.msra.mxu0 0
        %9113 = vmatprep.subr.bf16.mxu0 0
        %9114 = vmatpush1.bf16.msra.mxu0 0
        %9115 = vmatprep.subr.bf16.mxu0 0
        %9116 = vmatpush1.bf16.msra.mxu0 0
        %9117 = vmatprep.subr.bf16.mxu0 0
        %9118 = vmatpush1.bf16.msra.mxu0 0
        %9119 = vmatprep.subr.bf16.mxu0 0
        %9120 = vmatpush1.bf16.msra.mxu0 0
        %9121 = vmatprep.subr.bf16.mxu0 0
        %9122 = vmatpush1.bf16.msra.mxu0 0
        %9123 = vmatprep.subr.bf16.mxu0 0
        %9124 = vmatpush1.bf16.msra.mxu0 0
        %9125 = vmatprep.subr.bf16.mxu0 0
        %9126 = vmatpush1.bf16.msra.mxu0 0
        %9127 = vmatprep.subr.bf16.mxu0 0
        %9128 = vmatpush1.bf16.msra.mxu0 0
        %9129 = vmatprep.subr.bf16.mxu0 0
        %9130 = vmatpush1.bf16.msra.mxu0 0
        %9131 = vmatprep.subr.bf16.mxu0 0
        %9132 = vmatpush1.bf16.msra.mxu0 0
        %9133 = vmatprep.mubr.bf16.mxu0 0
        %9134 = vmatmul.mubr.bf16.gmra.mrb[0].mxu0 %v9099
        %v9135 = vpop.f32.mrb[0].mxu0
        %v9136 = vadd.f32 0.0, %v9135
        %v9137 = vpop.f32.mrb[0].mxu0
        %v9138 = vpop.f32.mrb[0].mxu0
        %v9139 = vpop.f32.mrb[0].mxu0
        %9140 = vdwg.mxu0
        %v9141 = vadd.f32 %v9055, %v9136
        %s9142 = scalar_lea.vmem [#allocation7], 14
        %v9143 = vld [vmem:[%s9142] ss:$16 sm:$0x3]
        %v9144 = vld [vmem:[%s9142] ss:$16 sm:$0xc]
        %v9145 = vor.u32 %v9143, %v9144
        %v9146 = vld [vmem:[%s9142] ss:$16 sm:$0x30]
        %v9147 = vor.u32 %v9145, %v9146
        %v9148 = vld [vmem:[%s9142] ss:$16 sm:$0xc0]
        %v9149 = vor.u32 %v9147, %v9148
        %v9150 = vpack.c.bf16 %v9149, %v9149
        %s9151 = scalar_lea.vmem %s7, 448
        %v9152 = vld [vmem:[%s9151] sm:$0xf]
        %v9153 = vld [vmem:[%s9151 + $0x4] sm:$0xf]
        %v9154 = vld [vmem:[%s9151 + $0x8] sm:$0xf]
        %v9155 = vld [vmem:[%s9151 + $0xc] sm:$0xf]
        %v9156 = vld [vmem:[%s9151 + $0x10] sm:$0xf]
        %v9157 = vld [vmem:[%s9151 + $0x14] sm:$0xf]
        %v9158 = vld [vmem:[%s9151 + $0x18] sm:$0xf]
        %v9159 = vld [vmem:[%s9151 + $0x1c] sm:$0xf]
        %v9168 = vunpack.c.l.b16 %v9152
        %v9169 = vunpack.c.l.b16 %v9153
        %v9170 = vunpack.c.l.b16 %v9154
        %v9171 = vunpack.c.l.b16 %v9155
        %v9172 = vunpack.c.l.b16 %v9156
        %v9173 = vunpack.c.l.b16 %v9157
        %v9174 = vunpack.c.l.b16 %v9158
        %v9175 = vunpack.c.l.b16 %v9159
        %v9176 = vpack.c.b16 %v9169, %v9168
        %v9177 = vpack.c.b16 %v9171, %v9170
        %v9178 = vpack.c.b16 %v9173, %v9172
        %v9179 = vpack.c.b16 %v9175, %v9174
        %v9185 = vsel %vm7999, %v9150, 0
        %9187 = vmatprep.subr.bf16.mxu0 0
        %9188 = vmatpush1.bf16.msra.mxu0 %v9176
        %9189 = vmatprep.subr.bf16.mxu0 0
        %9190 = vmatpush1.bf16.msra.mxu0 %v9177
        %9191 = vmatprep.subr.bf16.mxu0 0
        %9192 = vmatpush1.bf16.msra.mxu0 %v9178
        %9193 = vmatprep.subr.bf16.mxu0 0
        %9194 = vmatpush1.bf16.msra.mxu0 %v9179
        %9195 = vmatprep.subr.bf16.mxu0 0
        %9196 = vmatpush1.bf16.msra.mxu0 0
        %9197 = vmatprep.subr.bf16.mxu0 0
        %9198 = vmatpush1.bf16.msra.mxu0 0
        %9199 = vmatprep.subr.bf16.mxu0 0
        %9200 = vmatpush1.bf16.msra.mxu0 0
        %9201 = vmatprep.subr.bf16.mxu0 0
        %9202 = vmatpush1.bf16.msra.mxu0 0
        %9203 = vmatprep.subr.bf16.mxu0 0
        %9204 = vmatpush1.bf16.msra.mxu0 0
        %9205 = vmatprep.subr.bf16.mxu0 0
        %9206 = vmatpush1.bf16.msra.mxu0 0
        %9207 = vmatprep.subr.bf16.mxu0 0
        %9208 = vmatpush1.bf16.msra.mxu0 0
        %9209 = vmatprep.subr.bf16.mxu0 0
        %9210 = vmatpush1.bf16.msra.mxu0 0
        %9211 = vmatprep.subr.bf16.mxu0 0
        %9212 = vmatpush1.bf16.msra.mxu0 0
        %9213 = vmatprep.subr.bf16.mxu0 0
        %9214 = vmatpush1.bf16.msra.mxu0 0
        %9215 = vmatprep.subr.bf16.mxu0 0
        %9216 = vmatpush1.bf16.msra.mxu0 0
        %9217 = vmatprep.subr.bf16.mxu0 0
        %9218 = vmatpush1.bf16.msra.mxu0 0
        %9219 = vmatprep.mubr.bf16.mxu0 0
        %9220 = vmatmul.mubr.bf16.gmra.mrb[0].mxu0 %v9185
        %v9221 = vpop.f32.mrb[0].mxu0
        %v9222 = vadd.f32 0.0, %v9221
        %v9223 = vpop.f32.mrb[0].mxu0
        %v9224 = vpop.f32.mrb[0].mxu0
        %v9225 = vpop.f32.mrb[0].mxu0
        %9226 = vdwg.mxu0
        %v9227 = vadd.f32 %v9141, %v9222
        %s9228 = scalar_lea.vmem [#allocation7], 15
        %v9229 = vld [vmem:[%s9228] ss:$16 sm:$0x3]
        %v9230 = vld [vmem:[%s9228] ss:$16 sm:$0xc]
        %v9231 = vor.u32 %v9229, %v9230
        %v9232 = vld [vmem:[%s9228] ss:$16 sm:$0x30]
        %v9233 = vor.u32 %v9231, %v9232
        %v9234 = vld [vmem:[%s9228] ss:$16 sm:$0xc0]
        %v9235 = vor.u32 %v9233, %v9234
        %v9236 = vpack.c.bf16 %v9235, %v9235
        %s9237 = scalar_lea.vmem %s7, 480
        %v9238 = vld [vmem:[%s9237] sm:$0xf]
        %v9239 = vld [vmem:[%s9237 + $0x4] sm:$0xf]
        %v9240 = vld [vmem:[%s9237 + $0x8] sm:$0xf]
        %v9241 = vld [vmem:[%s9237 + $0xc] sm:$0xf]
        %v9242 = vld [vmem:[%s9237 + $0x10] sm:$0xf]
        %v9243 = vld [vmem:[%s9237 + $0x14] sm:$0xf]
        %v9244 = vld [vmem:[%s9237 + $0x18] sm:$0xf]
        %v9245 = vld [vmem:[%s9237 + $0x1c] sm:$0xf]
        %v9254 = vunpack.c.l.b16 %v9238
        %v9255 = vunpack.c.l.b16 %v9239
        %v9256 = vunpack.c.l.b16 %v9240
        %v9257 = vunpack.c.l.b16 %v9241
        %v9258 = vunpack.c.l.b16 %v9242
        %v9259 = vunpack.c.l.b16 %v9243
        %v9260 = vunpack.c.l.b16 %v9244
        %v9261 = vunpack.c.l.b16 %v9245
        %v9262 = vpack.c.b16 %v9255, %v9254
        %v9263 = vpack.c.b16 %v9257, %v9256
        %v9264 = vpack.c.b16 %v9259, %v9258
        %v9265 = vpack.c.b16 %v9261, %v9260
        %v9271 = vsel %vm7999, %v9236, 0
        %9273 = vmatprep.subr.bf16.mxu0 0
        %9274 = vmatpush1.bf16.msra.mxu0 %v9262
        %9275 = vmatprep.subr.bf16.mxu0 0
        %9276 = vmatpush1.bf16.msra.mxu0 %v9263
        %9277 = vmatprep.subr.bf16.mxu0 0
        %9278 = vmatpush1.bf16.msra.mxu0 %v9264
        %9279 = vmatprep.subr.bf16.mxu0 0
        %9280 = vmatpush1.bf16.msra.mxu0 %v9265
        %9281 = vmatprep.subr.bf16.mxu0 0
        %9282 = vmatpush1.bf16.msra.mxu0 0
        %9283 = vmatprep.subr.bf16.mxu0 0
        %9284 = vmatpush1.bf16.msra.mxu0 0
        %9285 = vmatprep.subr.bf16.mxu0 0
        %9286 = vmatpush1.bf16.msra.mxu0 0
        %9287 = vmatprep.subr.bf16.mxu0 0
        %9288 = vmatpush1.bf16.msra.mxu0 0
        %9289 = vmatprep.subr.bf16.mxu0 0
        %9290 = vmatpush1.bf16.msra.mxu0 0
        %9291 = vmatprep.subr.bf16.mxu0 0
        %9292 = vmatpush1.bf16.msra.mxu0 0
        %9293 = vmatprep.subr.bf16.mxu0 0
        %9294 = vmatpush1.bf16.msra.mxu0 0
        %9295 = vmatprep.subr.bf16.mxu0 0
        %9296 = vmatpush1.bf16.msra.mxu0 0
        %9297 = vmatprep.subr.bf16.mxu0 0
        %9298 = vmatpush1.bf16.msra.mxu0 0
        %9299 = vmatprep.subr.bf16.mxu0 0
        %9300 = vmatpush1.bf16.msra.mxu0 0
        %9301 = vmatprep.subr.bf16.mxu0 0
        %9302 = vmatpush1.bf16.msra.mxu0 0
        %9303 = vmatprep.subr.bf16.mxu0 0
        %9304 = vmatpush1.bf16.msra.mxu0 0
        %9305 = vmatprep.mubr.bf16.mxu0 0
        %9306 = vmatmul.mubr.bf16.gmra.mrb[0].mxu0 %v9271
        %v9307 = vpop.f32.mrb[0].mxu0
        %v9308 = vadd.f32 0.0, %v9307
        %v9309 = vpop.f32.mrb[0].mxu0
        %v9310 = vpop.f32.mrb[0].mxu0
        %v9311 = vpop.f32.mrb[0].mxu0
        %9312 = vdwg.mxu0
        %v9313 = vadd.f32 %v9227, %v9308
        %v9314 = vld [vmem:[%s8] sm:$0x1]
        %v9316 = vlaneseq
        %v9317 = vshrl.u32 %v9316, 7
        %v9318 = vsub.s32 0, %v9317
        %v9319 = vrot.slane %v9314, %v9318
        %v9321 = vadd.f32 %v9313, %v9319
        %v9322 = vpack.c.bf16 %v9321, %v9321
        %v9323 = vld [vmem:[%s9] sm:$0xf]
        %v9324 = vld [vmem:[%s9 + $0x4] sm:$0xf]
        %v9325 = vld [vmem:[%s9 + $0x8] sm:$0xf]
        %v9326 = vld [vmem:[%s9 + $0xc] sm:$0xf]
        %v9327 = vld [vmem:[%s9 + $0x10] sm:$0xf]
        %v9328 = vld [vmem:[%s9 + $0x14] sm:$0xf]
        %v9329 = vld [vmem:[%s9 + $0x18] sm:$0xf]
        %v9330 = vld [vmem:[%s9 + $0x1c] sm:$0xf]
        %v9331 = vld [vmem:[%s10] sm:$0x1]
        %v9333 = vlaneseq
        %v9334 = vshrl.u32 %v9333, 7
        %v9335 = vsub.s32 0, %v9334
        %v9336 = vrot.slane %v9331, %v9335
        %v9346 = vunpack.c.l.b16 %v9323
        %v9347 = vunpack.c.l.b16 %v9324
        %v9348 = vunpack.c.l.b16 %v9325
        %v9349 = vunpack.c.l.b16 %v9326
        %v9350 = vunpack.c.l.b16 %v9327
        %v9351 = vunpack.c.l.b16 %v9328
        %v9352 = vunpack.c.l.b16 %v9329
        %v9353 = vunpack.c.l.b16 %v9330
        %v9354 = vpack.c.b16 %v9347, %v9346
        %v9355 = vpack.c.b16 %v9349, %v9348
        %v9356 = vpack.c.b16 %v9351, %v9350
        %v9357 = vpack.c.b16 %v9353, %v9352
        %v9363 = vsel %vm7999, %v9322, 0
        %9365 = vmatprep.subr.bf16.mxu0 0
        %9366 = vmatpush1.bf16.msra.mxu0 %v9354
        %9367 = vmatprep.subr.bf16.mxu0 0
        %9368 = vmatpush1.bf16.msra.mxu0 %v9355
        %9369 = vmatprep.subr.bf16.mxu0 0
        %9370 = vmatpush1.bf16.msra.mxu0 %v9356
        %9371 = vmatprep.subr.bf16.mxu0 0
        %9372 = vmatpush1.bf16.msra.mxu0 %v9357
        %9373 = vmatprep.subr.bf16.mxu0 0
        %9374 = vmatpush1.bf16.msra.mxu0 0
        %9375 = vmatprep.subr.bf16.mxu0 0
        %9376 = vmatpush1.bf16.msra.mxu0 0
        %9377 = vmatprep.subr.bf16.mxu0 0
        %9378 = vmatpush1.bf16.msra.mxu0 0
        %9379 = vmatprep.subr.bf16.mxu0 0
        %9380 = vmatpush1.bf16.msra.mxu0 0
        %9381 = vmatprep.subr.bf16.mxu0 0
        %9382 = vmatpush1.bf16.msra.mxu0 0
        %9383 = vmatprep.subr.bf16.mxu0 0
        %9384 = vmatpush1.bf16.msra.mxu0 0
        %9385 = vmatprep.subr.bf16.mxu0 0
        %9386 = vmatpush1.bf16.msra.mxu0 0
        %9387 = vmatprep.subr.bf16.mxu0 0
        %9388 = vmatpush1.bf16.msra.mxu0 0
        %9389 = vmatprep.subr.bf16.mxu0 0
        %9390 = vmatpush1.bf16.msra.mxu0 0
        %9391 = vmatprep.subr.bf16.mxu0 0
        %9392 = vmatpush1.bf16.msra.mxu0 0
        %9393 = vmatprep.subr.bf16.mxu0 0
        %9394 = vmatpush1.bf16.msra.mxu0 0
        %9395 = vmatprep.subr.bf16.mxu0 0
        %9396 = vmatpush1.bf16.msra.mxu0 0
        %9397 = vmatprep.mubr.bf16.mxu0 0
        %9398 = vmatmul.mubr.bf16.gmra.mrb[0].mxu0 %v9363
        %v9399 = vpop.f32.mrb[0].mxu0
        %v9400 = vadd.f32 %v9336, %v9399
        %v9401 = vpop.f32.mrb[0].mxu0
        %v9402 = vpop.f32.mrb[0].mxu0
        %v9403 = vpop.f32.mrb[0].mxu0
        %9404 = vdwg.mxu0
        %9405 = vst [vmem:[%s382] sm:$0xff] %v9400
        %s9406 = sand.u32 %s269, 1
        %s9407 = scalar_lea.sflag [#allocation9], %s9406
        %s9408 = sand.u32 %s269, 1
        %s9409 = smul.addr %s9408, 8
        %s9410 = scalar_lea.vmem [#allocation8], %s9409
        // Predicated region
        $region72: #{ocean_forward.1} parent=63 // pred_check
          %p9411 = pneg %p279
        $region73: #{ocean_forward.1} parent=63 // pred_check_branch
          %9413 = sbr.rel (%p9411) target = $region75
        $region74: #{ocean_forward.1} parent=63 // pred_region
          %s9415 = ssub.s32 128, 128
          %9416 = vsyncadd %s9407, %s9415
          %s9417 = smul.addr %s25, 128
          %s9418 = scalar_lea.hbm %s11, %s9417
          %s9420 = sshll.u32 %s9410, 4
          %s9421 = int_to_ptr.vmem [resolvable:$true] %s9420
          %9423 = dma.vmem_to_hbm [thread:$0]  %s9421, 128, %s9418, %s9407
        $region75: #{ocean_forward.1} parent=63 // pred_fallthru
          _
      $region64: #{ocean_forward.1} parent=5 // pred_fallthru
        _
      %p9424 = scmp.le.s32.totalorder 2, %s20
      // Predicated region
      $region76: #{ocean_forward.1} parent=5 // pred_check
        %p9425 = pneg %p9424
      $region77: #{ocean_forward.1} parent=5 // pred_check_branch
        %9427 = sbr.rel (%p9425) target = $region79
      $region78: #{ocean_forward.1} parent=5 // pred_region
        %s9428 = ssub.s32 %s20, 2
        // Predicated region
        $region80: #{ocean_forward.1} parent=78 // pred_check
          %p9429 = pneg %p285
        $region81: #{ocean_forward.1} parent=78 // pred_check_branch
          %9431 = sbr.rel (%p9429) target = $region83
        $region82: #{ocean_forward.1} parent=78 // pred_region
          %s9432 = sand.u32 %s270, 1
          %s9433 = scalar_lea.sflag [#allocation9], %s9432
          %s9434 = sand.u32 %s270, 1
          %s9435 = smul.addr %s9434, 8
          %s9436 = scalar_lea.vmem [#allocation8], %s9435
          %9437 = dma.done %s9433, 128
        $region83: #{ocean_forward.1} parent=78 // pred_fallthru
          _
      $region79: #{ocean_forward.1} parent=5 // pred_fallthru
        _
    $region6: #{ocean_forward.1} parent=1 // loop_footer
      %s24 = sadd.s32 1, %s20
    $region7: #{ocean_forward.1} parent=1 // loop_footer_branch
      %19 = sbr.rel target = $region3
    $region8: #{ocean_forward.1} parent=1 // loop_exit
      _
    %9438 = vsyncpa [#allocation9], 1
    %s9439 = scalar_lea.sflag [#allocation9], 1
    %9440 = vsyncpa %s9439, 1

</llo_original>
